<compile_context>
chip_gen: v7x
topology: tpu7x:2x2x1
jax: 0.10.0
libtpu: 0.0.40
codegen_flags: <defaults>
</compile_context>

<pallas_src>
import math
import functools

import jax
import jax.numpy as jnp
from jax.experimental import pallas as pl
from jax.experimental.pallas import tpu as pltpu

# ----------------------------------------------------------------------------
# Hyperparameters (the module reads these as globals in the original file)
# ----------------------------------------------------------------------------
ENC_EMB_DIM    = 32
ENC_NUM_HEADS  = 4
ENC_NUM_LAYERS = 2
ENC_DROPOUT    = 0.1             # inference-mode forward: dropout is identity
NUM_ATTRS      = 8
DIM_FF         = ENC_NUM_LAYERS  # module passes dim_feedforward=enc_num_layers (as written)
LN_EPS         = 1e-5
SQRT_2         = math.sqrt(2.0)

WEIGHT_ORDER = ("wq", "bq", "wk", "bk", "wv", "bv", "wo", "bo",
                "ln1w", "ln1b", "w1", "b1", "w2", "b2", "ln2w", "ln2b")


# ----------------------------------------------------------------------------
# Fused kernel: embeddings + all encoder layers for one batch block.
# Refs: ids(R,2), emb_table(V,E), <16 weights per layer> x num_layers, out
# ----------------------------------------------------------------------------
def _fused_encoder_kernel(ids_ref, emb_ref, *refs, num_layers, num_heads, bblk, seq):
    out_ref = refs[-1]
    wrefs = refs[:-1]
    n_per = len(wrefs) // num_layers

    R = bblk * seq                       # folded (batch_block, seq) rows
    V, E = emb_ref.shape
    hd = E // num_heads
    scale = 1.0 / math.sqrt(hd)

    # --- embedding gather + add: one combined one-hot MXU matmul -------------
    # column 0 = sx id, column 1 = attr id already offset by num_sxs; row 0 of
    # each table is zero (padding_idx=0), so padded ids contribute zeros.
    ids = ids_ref[...]                                            # (R, 2) int32
    iota = jax.lax.broadcasted_iota(jnp.int32, (R, V), 1)
    oh = ((iota == ids[:, 0:1]).astype(jnp.float32)
          + (iota == ids[:, 1:2]).astype(jnp.float32))            # (R, V)
    x = jnp.dot(oh, emb_ref[...], preferred_element_type=jnp.float32)  # (R, E)

    # --- post-norm transformer encoder layers (unrolled) ---------------------
    for l in range(num_layers):
        lw = {name: wrefs[l * n_per + i] for i, name in enumerate(WEIGHT_ORDER)}

        # self-attention: per-head pre-split weights; no lane slicing, no concat
        attn = jnp.zeros((R, E), jnp.float32)
        for h in range(num_heads):
            q = jnp.dot(x, lw["wq"][h], preferred_element_type=jnp.float32) + lw["bq"][h]
            k = jnp.dot(x, lw["wk"][h], preferred_element_type=jnp.float32) + lw["bk"][h]
            v = jnp.dot(x, lw["wv"][h], preferred_element_type=jnp.float32) + lw["bv"][h]
            qb = q.reshape(bblk, seq, hd) * scale
            kb = k.reshape(bblk, seq, hd)
            vb = v.reshape(bblk, seq, hd)
            s = jnp.einsum("bqd,bkd->bqk", qb, kb, preferred_element_type=jnp.float32)
            s = s - jnp.max(s, axis=-1, keepdims=True)
            p = jnp.exp(s)
            p = p * pl.reciprocal(jnp.sum(p, axis=-1, keepdims=True), approx=True)
            ctx = jnp.einsum("bqk,bkd->bqd", p, vb, preferred_element_type=jnp.float32)
            attn = attn + jnp.dot(ctx.reshape(R, hd), lw["wo"][h],
                                  preferred_element_type=jnp.float32)
        attn = attn + lw["bo"][...]

        # residual + LayerNorm1 (norm_first=False)
        y = x + attn
        mu = jnp.mean(y, axis=-1, keepdims=True)
        var = jnp.mean((y - mu) ** 2, axis=-1, keepdims=True)
        y = (y - mu) * jax.lax.rsqrt(var + LN_EPS) * lw["ln1w"][...] + lw["ln1b"][...]

        # feed-forward: linear1 -> exact GELU (erf) -> linear2
        h1 = jnp.dot(y, lw["w1"][...], preferred_element_type=jnp.float32) + lw["b1"][...]
        h1 = 0.5 * h1 * (1.0 + jax.lax.erf(h1 / SQRT_2))
        h2 = jnp.dot(h1, lw["w2"][...], preferred_element_type=jnp.float32) + lw["b2"][...]

        # residual + LayerNorm2
        z = y + h2
        mu2 = jnp.mean(z, axis=-1, keepdims=True)
        var2 = jnp.mean((z - mu2) ** 2, axis=-1, keepdims=True)
        x = (z - mu2) * jax.lax.rsqrt(var2 + LN_EPS) * lw["ln2w"][...] + lw["ln2b"][...]

    out_ref[...] = x.reshape(bblk, seq, E)


def _full_spec(shape):
    # whole-array block (block dims equal full array dims -> satisfies TPU tiling rule)
    n = len(shape)
    return pl.BlockSpec(shape, lambda i, _n=n: (0,) * _n)


# ----------------------------------------------------------------------------
# forward(): matches SymptomEncoderXFMR.forward semantics (mask args = None)
# ----------------------------------------------------------------------------
def _forward_impl(params, sx_ids, attr_ids):
    """sx_ids, attr_ids: int32 (S, B) seq-first, like the PyTorch module.
    Returns float32 (S, B, E)."""
    # TODO(synk): attn_mask / src_key_padding_mask paths not implemented (defaults None).
    S, B = sx_ids.shape
    E = ENC_EMB_DIM
    num_sxs = params["sx_emb"].shape[0]

    # Batch blocking: a single grid step for small batches (cheapest on every
    # chip); two sublane-aligned "parallel" blocks (one per v7x TensorCore)
    # only when each half still has plenty of rows to amortize the extra step.
    if B % 16 == 0 and (B // 2) * S >= 256:
        nb, bblk = 2, B // 2
    else:
        nb, bblk = 1, B

    # Stack sx/attr ids into one (B*S, 2) int32 array; attr ids pre-offset so
    # the kernel indexes the concatenated [sx ; attr] embedding table.
    ids = jnp.stack(
        [jnp.transpose(sx_ids).astype(jnp.int32),
         jnp.transpose(attr_ids).astype(jnp.int32) + num_sxs],
        axis=-1).reshape(B * S, 2)

    emb_table = jnp.concatenate([params["sx_emb"], params["attr_emb"]], axis=0)

    flat_w = [layer[name] for layer in params["layers"] for name in WEIGHT_ORDER]

    kernel = functools.partial(
        _fused_encoder_kernel,
        num_layers=ENC_NUM_LAYERS, num_heads=ENC_NUM_HEADS, bblk=bblk, seq=S)

    in_specs = ([pl.BlockSpec((bblk * S, 2), lambda i: (i, 0)),
                 _full_spec(emb_table.shape)]
                + [_full_spec(w.shape) for w in flat_w])

    out = pl.pallas_call(
        kernel,
        out_shape=jax.ShapeDtypeStruct((B, S, E), jnp.float32),
        grid=(nb,),
        in_specs=in_specs,
        out_specs=pl.BlockSpec((bblk, S, E), lambda i: (i, 0, 0)),
        compiler_params=pltpu.CompilerParams(dimension_semantics=("parallel",)),
    )(ids, emb_table, *flat_w)

    return jnp.transpose(out, (1, 0, 2))                 # back to (S, B, E)


forward = jax.jit(_forward_impl)


# ----------------------------------------------------------------------------
# Parameter construction (deterministic, in-script).  Weights are stored
# directly in kernel orientation: x @ W form, attention weights split per head.
# ----------------------------------------------------------------------------
def init_params(key, num_sxs, num_dis):
    E, F, H, L = ENC_EMB_DIM, DIM_FF, ENC_NUM_HEADS, ENC_NUM_LAYERS
    hd = E // H
    keys = jax.random.split(key, 4 + 12 * L)
    ki = iter(keys)

    def randn(shape, scale=0.02):
        return (scale * jax.random.normal(next(ki), shape)).astype(jnp.float32)

    params = {}
    params["sx_emb"] = randn((num_sxs, E)).at[0].set(0.0)      # padding_idx=0
    params["attr_emb"] = randn((NUM_ATTRS, E)).at[0].set(0.0)  # padding_idx=0

    layers = []
    for _ in range(L):
        layers.append(dict(
            wq=randn((H, E, hd)), bq=randn((H, 1, hd)),
            wk=randn((H, E, hd)), bk=randn((H, 1, hd)),
            wv=randn((H, E, hd)), bv=randn((H, 1, hd)),
            wo=randn((H, hd, E)), bo=randn((1, E)),
            ln1w=jnp.ones((1, E), jnp.float32), ln1b=jnp.zeros((1, E), jnp.float32),
            w1=randn((E, F)), b1=randn((1, F)),
            w2=randn((F, E)), b2=randn((1, E)),
            ln2w=jnp.ones((1, E), jnp.float32), ln2b=jnp.zeros((1, E), jnp.float32),
        ))
    params["layers"] = layers

    # dis_fc exists in __init__ but is not used by forward(); kept for shape fidelity.
    params["dis_fc_w"] = randn((num_dis, E))
    params["dis_fc_b"] = randn((1, num_dis))
    return params


# ----------------------------------------------------------------------------
# Demo
# ----------------------------------------------------------------------------
if __name__ == "__main__":
    num_sxs, num_dis = 50, 10
    S, B = 8, 2

    key = jax.random.PRNGKey(0)
    k_param, k_sx, k_attr = jax.random.split(key, 3)
    params = init_params(k_param, num_sxs, num_dis)

    sx_ids = jax.random.randint(k_sx, (S, B), 0, num_sxs, dtype=jnp.int32)
    attr_ids = jax.random.randint(k_attr, (S, B), 0, NUM_ATTRS, dtype=jnp.int32)

    out = forward(params, sx_ids, attr_ids)
    out = jax.block_until_ready(out)

    assert out.shape == (S, B, ENC_EMB_DIM), out.shape
    assert bool(jnp.all(jnp.isfinite(out)))
    print("KERNEL_OK")
</pallas_src>

<mosaic_0001>
module attributes {stable_mosaic.version = 11 : i64} {
  func.func @_fused_encoder_kernel(%arg0: i32, %arg1: memref<16x2xi32, #tpu.memory_space<vmem>>, %arg2: memref<58x32xf32, #tpu.memory_space<vmem>>, %arg3: memref<4x32x8xf32, #tpu.memory_space<vmem>>, %arg4: memref<4x1x8xf32, #tpu.memory_space<vmem>>, %arg5: memref<4x32x8xf32, #tpu.memory_space<vmem>>, %arg6: memref<4x1x8xf32, #tpu.memory_space<vmem>>, %arg7: memref<4x32x8xf32, #tpu.memory_space<vmem>>, %arg8: memref<4x1x8xf32, #tpu.memory_space<vmem>>, %arg9: memref<4x8x32xf32, #tpu.memory_space<vmem>>, %arg10: memref<1x32xf32, #tpu.memory_space<vmem>>, %arg11: memref<1x32xf32, #tpu.memory_space<vmem>>, %arg12: memref<1x32xf32, #tpu.memory_space<vmem>>, %arg13: memref<32x2xf32, #tpu.memory_space<vmem>>, %arg14: memref<1x2xf32, #tpu.memory_space<vmem>>, %arg15: memref<2x32xf32, #tpu.memory_space<vmem>>, %arg16: memref<1x32xf32, #tpu.memory_space<vmem>>, %arg17: memref<1x32xf32, #tpu.memory_space<vmem>>, %arg18: memref<1x32xf32, #tpu.memory_space<vmem>>, %arg19: memref<4x32x8xf32, #tpu.memory_space<vmem>>, %arg20: memref<4x1x8xf32, #tpu.memory_space<vmem>>, %arg21: memref<4x32x8xf32, #tpu.memory_space<vmem>>, %arg22: memref<4x1x8xf32, #tpu.memory_space<vmem>>, %arg23: memref<4x32x8xf32, #tpu.memory_space<vmem>>, %arg24: memref<4x1x8xf32, #tpu.memory_space<vmem>>, %arg25: memref<4x8x32xf32, #tpu.memory_space<vmem>>, %arg26: memref<1x32xf32, #tpu.memory_space<vmem>>, %arg27: memref<1x32xf32, #tpu.memory_space<vmem>>, %arg28: memref<1x32xf32, #tpu.memory_space<vmem>>, %arg29: memref<32x2xf32, #tpu.memory_space<vmem>>, %arg30: memref<1x2xf32, #tpu.memory_space<vmem>>, %arg31: memref<2x32xf32, #tpu.memory_space<vmem>>, %arg32: memref<1x32xf32, #tpu.memory_space<vmem>>, %arg33: memref<1x32xf32, #tpu.memory_space<vmem>>, %arg34: memref<1x32xf32, #tpu.memory_space<vmem>>, %arg35: memref<2x8x32xf32, #tpu.memory_space<vmem>>) attributes {dimension_semantics = [#tpu.dimension_semantics<parallel>], iteration_bounds = array<i64: 1>, scalar_prefetch = 0 : i64, scratch_operands = 0 : i64, tpu.core_type = #tpu.core_type<tc>, window_params = [{transform_indices = @transform_0, window_bounds = array<i64: 16, 2>}, {pipeline_mode = #tpu.pipeline_mode<synchronous>, transform_indices = @transform_1, window_bounds = array<i64: 58, 32>}, {pipeline_mode = #tpu.pipeline_mode<synchronous>, transform_indices = @transform_2, window_bounds = array<i64: 4, 32, 8>}, {pipeline_mode = #tpu.pipeline_mode<synchronous>, transform_indices = @transform_3, window_bounds = array<i64: 4, 1, 8>}, {pipeline_mode = #tpu.pipeline_mode<synchronous>, transform_indices = @transform_4, window_bounds = array<i64: 4, 32, 8>}, {pipeline_mode = #tpu.pipeline_mode<synchronous>, transform_indices = @transform_5, window_bounds = array<i64: 4, 1, 8>}, {pipeline_mode = #tpu.pipeline_mode<synchronous>, transform_indices = @transform_6, window_bounds = array<i64: 4, 32, 8>}, {pipeline_mode = #tpu.pipeline_mode<synchronous>, transform_indices = @transform_7, window_bounds = array<i64: 4, 1, 8>}, {pipeline_mode = #tpu.pipeline_mode<synchronous>, transform_indices = @transform_8, window_bounds = array<i64: 4, 8, 32>}, {pipeline_mode = #tpu.pipeline_mode<synchronous>, transform_indices = @transform_9, window_bounds = array<i64: 1, 32>}, {pipeline_mode = #tpu.pipeline_mode<synchronous>, transform_indices = @transform_10, window_bounds = array<i64: 1, 32>}, {pipeline_mode = #tpu.pipeline_mode<synchronous>, transform_indices = @transform_11, window_bounds = array<i64: 1, 32>}, {pipeline_mode = #tpu.pipeline_mode<synchronous>, transform_indices = @transform_12, window_bounds = array<i64: 32, 2>}, {pipeline_mode = #tpu.pipeline_mode<synchronous>, transform_indices = @transform_13, window_bounds = array<i64: 1, 2>}, {pipeline_mode = #tpu.pipeline_mode<synchronous>, transform_indices = @transform_14, window_bounds = array<i64: 2, 32>}, {pipeline_mode = #tpu.pipeline_mode<synchronous>, transform_indices = @transform_15, window_bounds = array<i64: 1, 32>}, {pipeline_mode = #tpu.pipeline_mode<synchronous>, transform_indices = @transform_16, window_bounds = array<i64: 1, 32>}, {pipeline_mode = #tpu.pipeline_mode<synchronous>, transform_indices = @transform_17, window_bounds = array<i64: 1, 32>}, {pipeline_mode = #tpu.pipeline_mode<synchronous>, transform_indices = @transform_18, window_bounds = array<i64: 4, 32, 8>}, {pipeline_mode = #tpu.pipeline_mode<synchronous>, transform_indices = @transform_19, window_bounds = array<i64: 4, 1, 8>}, {pipeline_mode = #tpu.pipeline_mode<synchronous>, transform_indices = @transform_20, window_bounds = array<i64: 4, 32, 8>}, {pipeline_mode = #tpu.pipeline_mode<synchronous>, transform_indices = @transform_21, window_bounds = array<i64: 4, 1, 8>}, {pipeline_mode = #tpu.pipeline_mode<synchronous>, transform_indices = @transform_22, window_bounds = array<i64: 4, 32, 8>}, {pipeline_mode = #tpu.pipeline_mode<synchronous>, transform_indices = @transform_23, window_bounds = array<i64: 4, 1, 8>}, {pipeline_mode = #tpu.pipeline_mode<synchronous>, transform_indices = @transform_24, window_bounds = array<i64: 4, 8, 32>}, {pipeline_mode = #tpu.pipeline_mode<synchronous>, transform_indices = @transform_25, window_bounds = array<i64: 1, 32>}, {pipeline_mode = #tpu.pipeline_mode<synchronous>, transform_indices = @transform_26, window_bounds = array<i64: 1, 32>}, {pipeline_mode = #tpu.pipeline_mode<synchronous>, transform_indices = @transform_27, window_bounds = array<i64: 1, 32>}, {pipeline_mode = #tpu.pipeline_mode<synchronous>, transform_indices = @transform_28, window_bounds = array<i64: 32, 2>}, {pipeline_mode = #tpu.pipeline_mode<synchronous>, transform_indices = @transform_29, window_bounds = array<i64: 1, 2>}, {pipeline_mode = #tpu.pipeline_mode<synchronous>, transform_indices = @transform_30, window_bounds = array<i64: 2, 32>}, {pipeline_mode = #tpu.pipeline_mode<synchronous>, transform_indices = @transform_31, window_bounds = array<i64: 1, 32>}, {pipeline_mode = #tpu.pipeline_mode<synchronous>, transform_indices = @transform_32, window_bounds = array<i64: 1, 32>}, {pipeline_mode = #tpu.pipeline_mode<synchronous>, transform_indices = @transform_33, window_bounds = array<i64: 1, 32>}, {transform_indices = @transform_34, window_bounds = array<i64: 2, 8, 32>}]} {
    %c0 = arith.constant 0 : index
    %c0_0 = arith.constant 0 : index
    %0 = vector.load %arg1[%c0, %c0_0] : memref<16x2xi32, #tpu.memory_space<vmem>>, vector<16x2xi32>
    %1 = tpu.iota {dimensions = array<i32: 1>} : vector<16x58xi32>
    %2 = vector.extract_strided_slice %0 {offsets = [0, 0], sizes = [16, 1], strides = [1, 1]} : vector<16x2xi32> to vector<16x1xi32>
    %3 = vector.broadcast %2 : vector<16x1xi32> to vector<16x58xi32>
    %4 = arith.cmpi eq, %1, %3 : vector<16x58xi32>
    %5 = arith.extui %4 : vector<16x58xi1> to vector<16x58xi32>
    %6 = arith.sitofp %5 : vector<16x58xi32> to vector<16x58xf32>
    %7 = vector.extract_strided_slice %0 {offsets = [0, 1], sizes = [16, 1], strides = [1, 1]} : vector<16x2xi32> to vector<16x1xi32>
    %8 = vector.broadcast %7 : vector<16x1xi32> to vector<16x58xi32>
    %9 = arith.cmpi eq, %1, %8 : vector<16x58xi32>
    %10 = arith.extui %9 : vector<16x58xi1> to vector<16x58xi32>
    %11 = arith.sitofp %10 : vector<16x58xi32> to vector<16x58xf32>
    %12 = arith.addf %6, %11 : vector<16x58xf32>
    %c0_1 = arith.constant 0 : index
    %c0_2 = arith.constant 0 : index
    %13 = vector.load %arg2[%c0_1, %c0_2] : memref<58x32xf32, #tpu.memory_space<vmem>>, vector<58x32xf32>
    %cst = arith.constant dense<0.000000e+00> : vector<16x32xf32>
    %14 = tpu.matmul %12, %13, %cst {dimension_numbers = #tpu.dot_dimension_numbers<[1], [0], [0], [1], [0, 0, 1, 1], [], []>} : vector<16x58xf32>, vector<58x32xf32>, vector<16x32xf32> -> vector<16x32xf32>
    %cst_3 = arith.constant 0.000000e+00 : f32
    %15 = vector.broadcast %cst_3 : f32 to vector<16x32xf32>
    %c0_4 = arith.constant 0 : index
    %c0_5 = arith.constant 0 : index
    %c0_6 = arith.constant 0 : index
    %16 = vector.load %arg3[%c0_4, %c0_5, %c0_6] : memref<4x32x8xf32, #tpu.memory_space<vmem>>, vector<1x32x8xf32>
    %17 = vector.shape_cast %16 : vector<1x32x8xf32> to vector<32x8xf32>
    %cst_7 = arith.constant dense<0.000000e+00> : vector<16x8xf32>
    %18 = tpu.matmul %14, %17, %cst_7 {dimension_numbers = #tpu.dot_dimension_numbers<[1], [0], [0], [1], [0, 0, 1, 1], [], []>} : vector<16x32xf32>, vector<32x8xf32>, vector<16x8xf32> -> vector<16x8xf32>
    %c0_8 = arith.constant 0 : index
    %c0_9 = arith.constant 0 : index
    %c0_10 = arith.constant 0 : index
    %19 = vector.load %arg4[%c0_8, %c0_9, %c0_10] : memref<4x1x8xf32, #tpu.memory_space<vmem>>, vector<1x1x8xf32>
    %20 = vector.shape_cast %19 : vector<1x1x8xf32> to vector<1x8xf32>
    %21 = vector.broadcast %20 : vector<1x8xf32> to vector<16x8xf32>
    %22 = arith.addf %18, %21 : vector<16x8xf32>
    %c0_11 = arith.constant 0 : index
    %c0_12 = arith.constant 0 : index
    %c0_13 = arith.constant 0 : index
    %23 = vector.load %arg5[%c0_11, %c0_12, %c0_13] : memref<4x32x8xf32, #tpu.memory_space<vmem>>, vector<1x32x8xf32>
    %24 = vector.shape_cast %23 : vector<1x32x8xf32> to vector<32x8xf32>
    %cst_14 = arith.constant dense<0.000000e+00> : vector<16x8xf32>
    %25 = tpu.matmul %14, %24, %cst_14 {dimension_numbers = #tpu.dot_dimension_numbers<[1], [0], [0], [1], [0, 0, 1, 1], [], []>} : vector<16x32xf32>, vector<32x8xf32>, vector<16x8xf32> -> vector<16x8xf32>
    %c0_15 = arith.constant 0 : index
    %c0_16 = arith.constant 0 : index
    %c0_17 = arith.constant 0 : index
    %26 = vector.load %arg6[%c0_15, %c0_16, %c0_17] : memref<4x1x8xf32, #tpu.memory_space<vmem>>, vector<1x1x8xf32>
    %27 = vector.shape_cast %26 : vector<1x1x8xf32> to vector<1x8xf32>
    %28 = vector.broadcast %27 : vector<1x8xf32> to vector<16x8xf32>
    %29 = arith.addf %25, %28 : vector<16x8xf32>
    %c0_18 = arith.constant 0 : index
    %c0_19 = arith.constant 0 : index
    %c0_20 = arith.constant 0 : index
    %30 = vector.load %arg7[%c0_18, %c0_19, %c0_20] : memref<4x32x8xf32, #tpu.memory_space<vmem>>, vector<1x32x8xf32>
    %31 = vector.shape_cast %30 : vector<1x32x8xf32> to vector<32x8xf32>
    %cst_21 = arith.constant dense<0.000000e+00> : vector<16x8xf32>
    %32 = tpu.matmul %14, %31, %cst_21 {dimension_numbers = #tpu.dot_dimension_numbers<[1], [0], [0], [1], [0, 0, 1, 1], [], []>} : vector<16x32xf32>, vector<32x8xf32>, vector<16x8xf32> -> vector<16x8xf32>
    %c0_22 = arith.constant 0 : index
    %c0_23 = arith.constant 0 : index
    %c0_24 = arith.constant 0 : index
    %33 = vector.load %arg8[%c0_22, %c0_23, %c0_24] : memref<4x1x8xf32, #tpu.memory_space<vmem>>, vector<1x1x8xf32>
    %34 = vector.shape_cast %33 : vector<1x1x8xf32> to vector<1x8xf32>
    %35 = vector.broadcast %34 : vector<1x8xf32> to vector<16x8xf32>
    %36 = arith.addf %32, %35 : vector<16x8xf32>
    %37 = vector.shape_cast %22 : vector<16x8xf32> to vector<2x8x8xf32>
    %cst_25 = arith.constant 0.353553385 : f32
    %38 = vector.broadcast %cst_25 : f32 to vector<2x8x8xf32>
    %39 = arith.mulf %37, %38 : vector<2x8x8xf32>
    %40 = vector.shape_cast %29 : vector<16x8xf32> to vector<2x8x8xf32>
    %41 = vector.shape_cast %36 : vector<16x8xf32> to vector<2x8x8xf32>
    "tpu.trace_start"() <{level = 10 : i32, message = "bqd,bkd->bqk"}> : () -> ()
    %cst_26 = arith.constant dense<0.000000e+00> : vector<2x8x8xf32>
    %42 = tpu.matmul %39, %40, %cst_26 {dimension_numbers = #tpu.dot_dimension_numbers<[2], [2], [1], [1], [0, 0, 0, 1, 1, 1], [0], [0]>} : vector<2x8x8xf32>, vector<2x8x8xf32>, vector<2x8x8xf32> -> vector<2x8x8xf32>
    "tpu.trace_stop"() : () -> ()
    %cst_27 = arith.constant dense<0xFF800000> : vector<2x8xf32>
    %43 = vector.multi_reduction <maximumf>, %42, %cst_27 [2] : vector<2x8x8xf32> to vector<2x8xf32>
    %44 = vector.shape_cast %43 : vector<2x8xf32> to vector<2x8x1xf32>
    %45 = vector.broadcast %44 : vector<2x8x1xf32> to vector<2x8x8xf32>
    %46 = arith.subf %42, %45 : vector<2x8x8xf32>
    %47 = math.exp %46 : vector<2x8x8xf32>
    %cst_28 = arith.constant dense<0.000000e+00> : vector<2x8xf32>
    %48 = vector.multi_reduction <add>, %47, %cst_28 [2] : vector<2x8x8xf32> to vector<2x8xf32>
    %49 = vector.shape_cast %48 : vector<2x8xf32> to vector<2x8x1xf32>
    %50 = tpu.reciprocal %49 {approx = true} : vector<2x8x1xf32> -> vector<2x8x1xf32>
    %51 = vector.broadcast %50 : vector<2x8x1xf32> to vector<2x8x8xf32>
    %52 = arith.mulf %47, %51 : vector<2x8x8xf32>
    "tpu.trace_start"() <{level = 10 : i32, message = "bqk,bkd->bqd"}> : () -> ()
    %cst_29 = arith.constant dense<0.000000e+00> : vector<2x8x8xf32>
    %53 = tpu.matmul %52, %41, %cst_29 {dimension_numbers = #tpu.dot_dimension_numbers<[2], [1], [1], [2], [0, 0, 0, 1, 1, 2], [0], [0]>} : vector<2x8x8xf32>, vector<2x8x8xf32>, vector<2x8x8xf32> -> vector<2x8x8xf32>
    "tpu.trace_stop"() : () -> ()
    %54 = vector.shape_cast %53 : vector<2x8x8xf32> to vector<16x8xf32>
    %c0_30 = arith.constant 0 : index
    %c0_31 = arith.constant 0 : index
    %c0_32 = arith.constant 0 : index
    %55 = vector.load %arg9[%c0_30, %c0_31, %c0_32] : memref<4x8x32xf32, #tpu.memory_space<vmem>>, vector<1x8x32xf32>
    %56 = vector.shape_cast %55 : vector<1x8x32xf32> to vector<8x32xf32>
    %cst_33 = arith.constant dense<0.000000e+00> : vector<16x32xf32>
    %57 = tpu.matmul %54, %56, %cst_33 {dimension_numbers = #tpu.dot_dimension_numbers<[1], [0], [0], [1], [0, 0, 1, 1], [], []>} : vector<16x8xf32>, vector<8x32xf32>, vector<16x32xf32> -> vector<16x32xf32>
    %58 = arith.addf %15, %57 : vector<16x32xf32>
    %c1 = arith.constant 1 : index
    %c0_34 = arith.constant 0 : index
    %c0_35 = arith.constant 0 : index
    %59 = vector.load %arg3[%c1, %c0_34, %c0_35] : memref<4x32x8xf32, #tpu.memory_space<vmem>>, vector<1x32x8xf32>
    %60 = vector.shape_cast %59 : vector<1x32x8xf32> to vector<32x8xf32>
    %cst_36 = arith.constant dense<0.000000e+00> : vector<16x8xf32>
    %61 = tpu.matmul %14, %60, %cst_36 {dimension_numbers = #tpu.dot_dimension_numbers<[1], [0], [0], [1], [0, 0, 1, 1], [], []>} : vector<16x32xf32>, vector<32x8xf32>, vector<16x8xf32> -> vector<16x8xf32>
    %c1_37 = arith.constant 1 : index
    %c0_38 = arith.constant 0 : index
    %c0_39 = arith.constant 0 : index
    %62 = vector.load %arg4[%c1_37, %c0_38, %c0_39] : memref<4x1x8xf32, #tpu.memory_space<vmem>>, vector<1x1x8xf32>
    %63 = vector.shape_cast %62 : vector<1x1x8xf32> to vector<1x8xf32>
    %64 = vector.broadcast %63 : vector<1x8xf32> to vector<16x8xf32>
    %65 = arith.addf %61, %64 : vector<16x8xf32>
    %c1_40 = arith.constant 1 : index
    %c0_41 = arith.constant 0 : index
    %c0_42 = arith.constant 0 : index
    %66 = vector.load %arg5[%c1_40, %c0_41, %c0_42] : memref<4x32x8xf32, #tpu.memory_space<vmem>>, vector<1x32x8xf32>
    %67 = vector.shape_cast %66 : vector<1x32x8xf32> to vector<32x8xf32>
    %cst_43 = arith.constant dense<0.000000e+00> : vector<16x8xf32>
    %68 = tpu.matmul %14, %67, %cst_43 {dimension_numbers = #tpu.dot_dimension_numbers<[1], [0], [0], [1], [0, 0, 1, 1], [], []>} : vector<16x32xf32>, vector<32x8xf32>, vector<16x8xf32> -> vector<16x8xf32>
    %c1_44 = arith.constant 1 : index
    %c0_45 = arith.constant 0 : index
    %c0_46 = arith.constant 0 : index
    %69 = vector.load %arg6[%c1_44, %c0_45, %c0_46] : memref<4x1x8xf32, #tpu.memory_space<vmem>>, vector<1x1x8xf32>
    %70 = vector.shape_cast %69 : vector<1x1x8xf32> to vector<1x8xf32>
    %71 = vector.broadcast %70 : vector<1x8xf32> to vector<16x8xf32>
    %72 = arith.addf %68, %71 : vector<16x8xf32>
    %c1_47 = arith.constant 1 : index
    %c0_48 = arith.constant 0 : index
    %c0_49 = arith.constant 0 : index
    %73 = vector.load %arg7[%c1_47, %c0_48, %c0_49] : memref<4x32x8xf32, #tpu.memory_space<vmem>>, vector<1x32x8xf32>
    %74 = vector.shape_cast %73 : vector<1x32x8xf32> to vector<32x8xf32>
    %cst_50 = arith.constant dense<0.000000e+00> : vector<16x8xf32>
    %75 = tpu.matmul %14, %74, %cst_50 {dimension_numbers = #tpu.dot_dimension_numbers<[1], [0], [0], [1], [0, 0, 1, 1], [], []>} : vector<16x32xf32>, vector<32x8xf32>, vector<16x8xf32> -> vector<16x8xf32>
    %c1_51 = arith.constant 1 : index
    %c0_52 = arith.constant 0 : index
    %c0_53 = arith.constant 0 : index
    %76 = vector.load %arg8[%c1_51, %c0_52, %c0_53] : memref<4x1x8xf32, #tpu.memory_space<vmem>>, vector<1x1x8xf32>
    %77 = vector.shape_cast %76 : vector<1x1x8xf32> to vector<1x8xf32>
    %78 = vector.broadcast %77 : vector<1x8xf32> to vector<16x8xf32>
    %79 = arith.addf %75, %78 : vector<16x8xf32>
    %80 = vector.shape_cast %65 : vector<16x8xf32> to vector<2x8x8xf32>
    %cst_54 = arith.constant 0.353553385 : f32
    %81 = vector.broadcast %cst_54 : f32 to vector<2x8x8xf32>
    %82 = arith.mulf %80, %81 : vector<2x8x8xf32>
    %83 = vector.shape_cast %72 : vector<16x8xf32> to vector<2x8x8xf32>
    %84 = vector.shape_cast %79 : vector<16x8xf32> to vector<2x8x8xf32>
    "tpu.trace_start"() <{level = 10 : i32, message = "bqd,bkd->bqk"}> : () -> ()
    %cst_55 = arith.constant dense<0.000000e+00> : vector<2x8x8xf32>
    %85 = tpu.matmul %82, %83, %cst_55 {dimension_numbers = #tpu.dot_dimension_numbers<[2], [2], [1], [1], [0, 0, 0, 1, 1, 1], [0], [0]>} : vector<2x8x8xf32>, vector<2x8x8xf32>, vector<2x8x8xf32> -> vector<2x8x8xf32>
    "tpu.trace_stop"() : () -> ()
    %cst_56 = arith.constant dense<0xFF800000> : vector<2x8xf32>
    %86 = vector.multi_reduction <maximumf>, %85, %cst_56 [2] : vector<2x8x8xf32> to vector<2x8xf32>
    %87 = vector.shape_cast %86 : vector<2x8xf32> to vector<2x8x1xf32>
    %88 = vector.broadcast %87 : vector<2x8x1xf32> to vector<2x8x8xf32>
    %89 = arith.subf %85, %88 : vector<2x8x8xf32>
    %90 = math.exp %89 : vector<2x8x8xf32>
    %cst_57 = arith.constant dense<0.000000e+00> : vector<2x8xf32>
    %91 = vector.multi_reduction <add>, %90, %cst_57 [2] : vector<2x8x8xf32> to vector<2x8xf32>
    %92 = vector.shape_cast %91 : vector<2x8xf32> to vector<2x8x1xf32>
    %93 = tpu.reciprocal %92 {approx = true} : vector<2x8x1xf32> -> vector<2x8x1xf32>
    %94 = vector.broadcast %93 : vector<2x8x1xf32> to vector<2x8x8xf32>
    %95 = arith.mulf %90, %94 : vector<2x8x8xf32>
    "tpu.trace_start"() <{level = 10 : i32, message = "bqk,bkd->bqd"}> : () -> ()
    %cst_58 = arith.constant dense<0.000000e+00> : vector<2x8x8xf32>
    %96 = tpu.matmul %95, %84, %cst_58 {dimension_numbers = #tpu.dot_dimension_numbers<[2], [1], [1], [2], [0, 0, 0, 1, 1, 2], [0], [0]>} : vector<2x8x8xf32>, vector<2x8x8xf32>, vector<2x8x8xf32> -> vector<2x8x8xf32>
    "tpu.trace_stop"() : () -> ()
    %97 = vector.shape_cast %96 : vector<2x8x8xf32> to vector<16x8xf32>
    %c1_59 = arith.constant 1 : index
    %c0_60 = arith.constant 0 : index
    %c0_61 = arith.constant 0 : index
    %98 = vector.load %arg9[%c1_59, %c0_60, %c0_61] : memref<4x8x32xf32, #tpu.memory_space<vmem>>, vector<1x8x32xf32>
    %99 = vector.shape_cast %98 : vector<1x8x32xf32> to vector<8x32xf32>
    %cst_62 = arith.constant dense<0.000000e+00> : vector<16x32xf32>
    %100 = tpu.matmul %97, %99, %cst_62 {dimension_numbers = #tpu.dot_dimension_numbers<[1], [0], [0], [1], [0, 0, 1, 1], [], []>} : vector<16x8xf32>, vector<8x32xf32>, vector<16x32xf32> -> vector<16x32xf32>
    %101 = arith.addf %58, %100 : vector<16x32xf32>
    %c2 = arith.constant 2 : index
    %c0_63 = arith.constant 0 : index
    %c0_64 = arith.constant 0 : index
    %102 = vector.load %arg3[%c2, %c0_63, %c0_64] : memref<4x32x8xf32, #tpu.memory_space<vmem>>, vector<1x32x8xf32>
    %103 = vector.shape_cast %102 : vector<1x32x8xf32> to vector<32x8xf32>
    %cst_65 = arith.constant dense<0.000000e+00> : vector<16x8xf32>
    %104 = tpu.matmul %14, %103, %cst_65 {dimension_numbers = #tpu.dot_dimension_numbers<[1], [0], [0], [1], [0, 0, 1, 1], [], []>} : vector<16x32xf32>, vector<32x8xf32>, vector<16x8xf32> -> vector<16x8xf32>
    %c2_66 = arith.constant 2 : index
    %c0_67 = arith.constant 0 : index
    %c0_68 = arith.constant 0 : index
    %105 = vector.load %arg4[%c2_66, %c0_67, %c0_68] : memref<4x1x8xf32, #tpu.memory_space<vmem>>, vector<1x1x8xf32>
    %106 = vector.shape_cast %105 : vector<1x1x8xf32> to vector<1x8xf32>
    %107 = vector.broadcast %106 : vector<1x8xf32> to vector<16x8xf32>
    %108 = arith.addf %104, %107 : vector<16x8xf32>
    %c2_69 = arith.constant 2 : index
    %c0_70 = arith.constant 0 : index
    %c0_71 = arith.constant 0 : index
    %109 = vector.load %arg5[%c2_69, %c0_70, %c0_71] : memref<4x32x8xf32, #tpu.memory_space<vmem>>, vector<1x32x8xf32>
    %110 = vector.shape_cast %109 : vector<1x32x8xf32> to vector<32x8xf32>
    %cst_72 = arith.constant dense<0.000000e+00> : vector<16x8xf32>
    %111 = tpu.matmul %14, %110, %cst_72 {dimension_numbers = #tpu.dot_dimension_numbers<[1], [0], [0], [1], [0, 0, 1, 1], [], []>} : vector<16x32xf32>, vector<32x8xf32>, vector<16x8xf32> -> vector<16x8xf32>
    %c2_73 = arith.constant 2 : index
    %c0_74 = arith.constant 0 : index
    %c0_75 = arith.constant 0 : index
    %112 = vector.load %arg6[%c2_73, %c0_74, %c0_75] : memref<4x1x8xf32, #tpu.memory_space<vmem>>, vector<1x1x8xf32>
    %113 = vector.shape_cast %112 : vector<1x1x8xf32> to vector<1x8xf32>
    %114 = vector.broadcast %113 : vector<1x8xf32> to vector<16x8xf32>
    %115 = arith.addf %111, %114 : vector<16x8xf32>
    %c2_76 = arith.constant 2 : index
    %c0_77 = arith.constant 0 : index
    %c0_78 = arith.constant 0 : index
    %116 = vector.load %arg7[%c2_76, %c0_77, %c0_78] : memref<4x32x8xf32, #tpu.memory_space<vmem>>, vector<1x32x8xf32>
    %117 = vector.shape_cast %116 : vector<1x32x8xf32> to vector<32x8xf32>
    %cst_79 = arith.constant dense<0.000000e+00> : vector<16x8xf32>
    %118 = tpu.matmul %14, %117, %cst_79 {dimension_numbers = #tpu.dot_dimension_numbers<[1], [0], [0], [1], [0, 0, 1, 1], [], []>} : vector<16x32xf32>, vector<32x8xf32>, vector<16x8xf32> -> vector<16x8xf32>
    %c2_80 = arith.constant 2 : index
    %c0_81 = arith.constant 0 : index
    %c0_82 = arith.constant 0 : index
    %119 = vector.load %arg8[%c2_80, %c0_81, %c0_82] : memref<4x1x8xf32, #tpu.memory_space<vmem>>, vector<1x1x8xf32>
    %120 = vector.shape_cast %119 : vector<1x1x8xf32> to vector<1x8xf32>
    %121 = vector.broadcast %120 : vector<1x8xf32> to vector<16x8xf32>
    %122 = arith.addf %118, %121 : vector<16x8xf32>
    %123 = vector.shape_cast %108 : vector<16x8xf32> to vector<2x8x8xf32>
    %cst_83 = arith.constant 0.353553385 : f32
    %124 = vector.broadcast %cst_83 : f32 to vector<2x8x8xf32>
    %125 = arith.mulf %123, %124 : vector<2x8x8xf32>
    %126 = vector.shape_cast %115 : vector<16x8xf32> to vector<2x8x8xf32>
    %127 = vector.shape_cast %122 : vector<16x8xf32> to vector<2x8x8xf32>
    "tpu.trace_start"() <{level = 10 : i32, message = "bqd,bkd->bqk"}> : () -> ()
    %cst_84 = arith.constant dense<0.000000e+00> : vector<2x8x8xf32>
    %128 = tpu.matmul %125, %126, %cst_84 {dimension_numbers = #tpu.dot_dimension_numbers<[2], [2], [1], [1], [0, 0, 0, 1, 1, 1], [0], [0]>} : vector<2x8x8xf32>, vector<2x8x8xf32>, vector<2x8x8xf32> -> vector<2x8x8xf32>
    "tpu.trace_stop"() : () -> ()
    %cst_85 = arith.constant dense<0xFF800000> : vector<2x8xf32>
    %129 = vector.multi_reduction <maximumf>, %128, %cst_85 [2] : vector<2x8x8xf32> to vector<2x8xf32>
    %130 = vector.shape_cast %129 : vector<2x8xf32> to vector<2x8x1xf32>
    %131 = vector.broadcast %130 : vector<2x8x1xf32> to vector<2x8x8xf32>
    %132 = arith.subf %128, %131 : vector<2x8x8xf32>
    %133 = math.exp %132 : vector<2x8x8xf32>
    %cst_86 = arith.constant dense<0.000000e+00> : vector<2x8xf32>
    %134 = vector.multi_reduction <add>, %133, %cst_86 [2] : vector<2x8x8xf32> to vector<2x8xf32>
    %135 = vector.shape_cast %134 : vector<2x8xf32> to vector<2x8x1xf32>
    %136 = tpu.reciprocal %135 {approx = true} : vector<2x8x1xf32> -> vector<2x8x1xf32>
    %137 = vector.broadcast %136 : vector<2x8x1xf32> to vector<2x8x8xf32>
    %138 = arith.mulf %133, %137 : vector<2x8x8xf32>
    "tpu.trace_start"() <{level = 10 : i32, message = "bqk,bkd->bqd"}> : () -> ()
    %cst_87 = arith.constant dense<0.000000e+00> : vector<2x8x8xf32>
    %139 = tpu.matmul %138, %127, %cst_87 {dimension_numbers = #tpu.dot_dimension_numbers<[2], [1], [1], [2], [0, 0, 0, 1, 1, 2], [0], [0]>} : vector<2x8x8xf32>, vector<2x8x8xf32>, vector<2x8x8xf32> -> vector<2x8x8xf32>
    "tpu.trace_stop"() : () -> ()
    %140 = vector.shape_cast %139 : vector<2x8x8xf32> to vector<16x8xf32>
    %c2_88 = arith.constant 2 : index
    %c0_89 = arith.constant 0 : index
    %c0_90 = arith.constant 0 : index
    %141 = vector.load %arg9[%c2_88, %c0_89, %c0_90] : memref<4x8x32xf32, #tpu.memory_space<vmem>>, vector<1x8x32xf32>
    %142 = vector.shape_cast %141 : vector<1x8x32xf32> to vector<8x32xf32>
    %cst_91 = arith.constant dense<0.000000e+00> : vector<16x32xf32>
    %143 = tpu.matmul %140, %142, %cst_91 {dimension_numbers = #tpu.dot_dimension_numbers<[1], [0], [0], [1], [0, 0, 1, 1], [], []>} : vector<16x8xf32>, vector<8x32xf32>, vector<16x32xf32> -> vector<16x32xf32>
    %144 = arith.addf %101, %143 : vector<16x32xf32>
    %c3 = arith.constant 3 : index
    %c0_92 = arith.constant 0 : index
    %c0_93 = arith.constant 0 : index
    %145 = vector.load %arg3[%c3, %c0_92, %c0_93] : memref<4x32x8xf32, #tpu.memory_space<vmem>>, vector<1x32x8xf32>
    %146 = vector.shape_cast %145 : vector<1x32x8xf32> to vector<32x8xf32>
    %cst_94 = arith.constant dense<0.000000e+00> : vector<16x8xf32>
    %147 = tpu.matmul %14, %146, %cst_94 {dimension_numbers = #tpu.dot_dimension_numbers<[1], [0], [0], [1], [0, 0, 1, 1], [], []>} : vector<16x32xf32>, vector<32x8xf32>, vector<16x8xf32> -> vector<16x8xf32>
    %c3_95 = arith.constant 3 : index
    %c0_96 = arith.constant 0 : index
    %c0_97 = arith.constant 0 : index
    %148 = vector.load %arg4[%c3_95, %c0_96, %c0_97] : memref<4x1x8xf32, #tpu.memory_space<vmem>>, vector<1x1x8xf32>
    %149 = vector.shape_cast %148 : vector<1x1x8xf32> to vector<1x8xf32>
    %150 = vector.broadcast %149 : vector<1x8xf32> to vector<16x8xf32>
    %151 = arith.addf %147, %150 : vector<16x8xf32>
    %c3_98 = arith.constant 3 : index
    %c0_99 = arith.constant 0 : index
    %c0_100 = arith.constant 0 : index
    %152 = vector.load %arg5[%c3_98, %c0_99, %c0_100] : memref<4x32x8xf32, #tpu.memory_space<vmem>>, vector<1x32x8xf32>
    %153 = vector.shape_cast %152 : vector<1x32x8xf32> to vector<32x8xf32>
    %cst_101 = arith.constant dense<0.000000e+00> : vector<16x8xf32>
    %154 = tpu.matmul %14, %153, %cst_101 {dimension_numbers = #tpu.dot_dimension_numbers<[1], [0], [0], [1], [0, 0, 1, 1], [], []>} : vector<16x32xf32>, vector<32x8xf32>, vector<16x8xf32> -> vector<16x8xf32>
    %c3_102 = arith.constant 3 : index
    %c0_103 = arith.constant 0 : index
    %c0_104 = arith.constant 0 : index
    %155 = vector.load %arg6[%c3_102, %c0_103, %c0_104] : memref<4x1x8xf32, #tpu.memory_space<vmem>>, vector<1x1x8xf32>
    %156 = vector.shape_cast %155 : vector<1x1x8xf32> to vector<1x8xf32>
    %157 = vector.broadcast %156 : vector<1x8xf32> to vector<16x8xf32>
    %158 = arith.addf %154, %157 : vector<16x8xf32>
    %c3_105 = arith.constant 3 : index
    %c0_106 = arith.constant 0 : index
    %c0_107 = arith.constant 0 : index
    %159 = vector.load %arg7[%c3_105, %c0_106, %c0_107] : memref<4x32x8xf32, #tpu.memory_space<vmem>>, vector<1x32x8xf32>
    %160 = vector.shape_cast %159 : vector<1x32x8xf32> to vector<32x8xf32>
    %cst_108 = arith.constant dense<0.000000e+00> : vector<16x8xf32>
    %161 = tpu.matmul %14, %160, %cst_108 {dimension_numbers = #tpu.dot_dimension_numbers<[1], [0], [0], [1], [0, 0, 1, 1], [], []>} : vector<16x32xf32>, vector<32x8xf32>, vector<16x8xf32> -> vector<16x8xf32>
    %c3_109 = arith.constant 3 : index
    %c0_110 = arith.constant 0 : index
    %c0_111 = arith.constant 0 : index
    %162 = vector.load %arg8[%c3_109, %c0_110, %c0_111] : memref<4x1x8xf32, #tpu.memory_space<vmem>>, vector<1x1x8xf32>
    %163 = vector.shape_cast %162 : vector<1x1x8xf32> to vector<1x8xf32>
    %164 = vector.broadcast %163 : vector<1x8xf32> to vector<16x8xf32>
    %165 = arith.addf %161, %164 : vector<16x8xf32>
    %166 = vector.shape_cast %151 : vector<16x8xf32> to vector<2x8x8xf32>
    %cst_112 = arith.constant 0.353553385 : f32
    %167 = vector.broadcast %cst_112 : f32 to vector<2x8x8xf32>
    %168 = arith.mulf %166, %167 : vector<2x8x8xf32>
    %169 = vector.shape_cast %158 : vector<16x8xf32> to vector<2x8x8xf32>
    %170 = vector.shape_cast %165 : vector<16x8xf32> to vector<2x8x8xf32>
    "tpu.trace_start"() <{level = 10 : i32, message = "bqd,bkd->bqk"}> : () -> ()
    %cst_113 = arith.constant dense<0.000000e+00> : vector<2x8x8xf32>
    %171 = tpu.matmul %168, %169, %cst_113 {dimension_numbers = #tpu.dot_dimension_numbers<[2], [2], [1], [1], [0, 0, 0, 1, 1, 1], [0], [0]>} : vector<2x8x8xf32>, vector<2x8x8xf32>, vector<2x8x8xf32> -> vector<2x8x8xf32>
    "tpu.trace_stop"() : () -> ()
    %cst_114 = arith.constant dense<0xFF800000> : vector<2x8xf32>
    %172 = vector.multi_reduction <maximumf>, %171, %cst_114 [2] : vector<2x8x8xf32> to vector<2x8xf32>
    %173 = vector.shape_cast %172 : vector<2x8xf32> to vector<2x8x1xf32>
    %174 = vector.broadcast %173 : vector<2x8x1xf32> to vector<2x8x8xf32>
    %175 = arith.subf %171, %174 : vector<2x8x8xf32>
    %176 = math.exp %175 : vector<2x8x8xf32>
    %cst_115 = arith.constant dense<0.000000e+00> : vector<2x8xf32>
    %177 = vector.multi_reduction <add>, %176, %cst_115 [2] : vector<2x8x8xf32> to vector<2x8xf32>
    %178 = vector.shape_cast %177 : vector<2x8xf32> to vector<2x8x1xf32>
    %179 = tpu.reciprocal %178 {approx = true} : vector<2x8x1xf32> -> vector<2x8x1xf32>
    %180 = vector.broadcast %179 : vector<2x8x1xf32> to vector<2x8x8xf32>
    %181 = arith.mulf %176, %180 : vector<2x8x8xf32>
    "tpu.trace_start"() <{level = 10 : i32, message = "bqk,bkd->bqd"}> : () -> ()
    %cst_116 = arith.constant dense<0.000000e+00> : vector<2x8x8xf32>
    %182 = tpu.matmul %181, %170, %cst_116 {dimension_numbers = #tpu.dot_dimension_numbers<[2], [1], [1], [2], [0, 0, 0, 1, 1, 2], [0], [0]>} : vector<2x8x8xf32>, vector<2x8x8xf32>, vector<2x8x8xf32> -> vector<2x8x8xf32>
    "tpu.trace_stop"() : () -> ()
    %183 = vector.shape_cast %182 : vector<2x8x8xf32> to vector<16x8xf32>
    %c3_117 = arith.constant 3 : index
    %c0_118 = arith.constant 0 : index
    %c0_119 = arith.constant 0 : index
    %184 = vector.load %arg9[%c3_117, %c0_118, %c0_119] : memref<4x8x32xf32, #tpu.memory_space<vmem>>, vector<1x8x32xf32>
    %185 = vector.shape_cast %184 : vector<1x8x32xf32> to vector<8x32xf32>
    %cst_120 = arith.constant dense<0.000000e+00> : vector<16x32xf32>
    %186 = tpu.matmul %183, %185, %cst_120 {dimension_numbers = #tpu.dot_dimension_numbers<[1], [0], [0], [1], [0, 0, 1, 1], [], []>} : vector<16x8xf32>, vector<8x32xf32>, vector<16x32xf32> -> vector<16x32xf32>
    %187 = arith.addf %144, %186 : vector<16x32xf32>
    %c0_121 = arith.constant 0 : index
    %c0_122 = arith.constant 0 : index
    %188 = vector.load %arg10[%c0_121, %c0_122] : memref<1x32xf32, #tpu.memory_space<vmem>>, vector<1x32xf32>
    %189 = vector.broadcast %188 : vector<1x32xf32> to vector<16x32xf32>
    %190 = arith.addf %187, %189 : vector<16x32xf32>
    %191 = arith.addf %14, %190 : vector<16x32xf32>
    %cst_123 = arith.constant dense<0.000000e+00> : vector<16xf32>
    %192 = vector.multi_reduction <add>, %191, %cst_123 [1] : vector<16x32xf32> to vector<16xf32>
    %193 = vector.shape_cast %192 : vector<16xf32> to vector<16x1xf32>
    %cst_124 = arith.constant 3.200000e+01 : f32
    %194 = vector.broadcast %cst_124 : f32 to vector<16x1xf32>
    %195 = arith.divf %193, %194 : vector<16x1xf32>
    %196 = vector.broadcast %195 : vector<16x1xf32> to vector<16x32xf32>
    %197 = arith.subf %191, %196 : vector<16x32xf32>
    %198 = arith.mulf %197, %197 : vector<16x32xf32>
    %cst_125 = arith.constant dense<0.000000e+00> : vector<16xf32>
    %199 = vector.multi_reduction <add>, %198, %cst_125 [1] : vector<16x32xf32> to vector<16xf32>
    %200 = vector.shape_cast %199 : vector<16xf32> to vector<16x1xf32>
    %cst_126 = arith.constant 3.200000e+01 : f32
    %201 = vector.broadcast %cst_126 : f32 to vector<16x1xf32>
    %202 = arith.divf %200, %201 : vector<16x1xf32>
    %203 = vector.broadcast %195 : vector<16x1xf32> to vector<16x32xf32>
    %204 = arith.subf %191, %203 : vector<16x32xf32>
    %cst_127 = arith.constant 9.99999974E-6 : f32
    %205 = vector.broadcast %cst_127 : f32 to vector<16x1xf32>
    %206 = arith.addf %202, %205 : vector<16x1xf32>
    %207 = math.rsqrt %206 : vector<16x1xf32>
    %208 = vector.broadcast %207 : vector<16x1xf32> to vector<16x32xf32>
    %209 = arith.mulf %204, %208 : vector<16x32xf32>
    %c0_128 = arith.constant 0 : index
    %c0_129 = arith.constant 0 : index
    %210 = vector.load %arg11[%c0_128, %c0_129] : memref<1x32xf32, #tpu.memory_space<vmem>>, vector<1x32xf32>
    %211 = vector.broadcast %210 : vector<1x32xf32> to vector<16x32xf32>
    %212 = arith.mulf %209, %211 : vector<16x32xf32>
    %c0_130 = arith.constant 0 : index
    %c0_131 = arith.constant 0 : index
    %213 = vector.load %arg12[%c0_130, %c0_131] : memref<1x32xf32, #tpu.memory_space<vmem>>, vector<1x32xf32>
    %214 = vector.broadcast %213 : vector<1x32xf32> to vector<16x32xf32>
    %215 = arith.addf %212, %214 : vector<16x32xf32>
    %c0_132 = arith.constant 0 : index
    %c0_133 = arith.constant 0 : index
    %216 = vector.load %arg13[%c0_132, %c0_133] : memref<32x2xf32, #tpu.memory_space<vmem>>, vector<32x2xf32>
    %cst_134 = arith.constant dense<0.000000e+00> : vector<16x2xf32>
    %217 = tpu.matmul %215, %216, %cst_134 {dimension_numbers = #tpu.dot_dimension_numbers<[1], [0], [0], [1], [0, 0, 1, 1], [], []>} : vector<16x32xf32>, vector<32x2xf32>, vector<16x2xf32> -> vector<16x2xf32>
    %c0_135 = arith.constant 0 : index
    %c0_136 = arith.constant 0 : index
    %218 = vector.load %arg14[%c0_135, %c0_136] : memref<1x2xf32, #tpu.memory_space<vmem>>, vector<1x2xf32>
    %219 = vector.broadcast %218 : vector<1x2xf32> to vector<16x2xf32>
    %220 = arith.addf %217, %219 : vector<16x2xf32>
    %cst_137 = arith.constant 5.000000e-01 : f32
    %221 = vector.broadcast %cst_137 : f32 to vector<16x2xf32>
    %222 = arith.mulf %221, %220 : vector<16x2xf32>
    %cst_138 = arith.constant 1.41421354 : f32
    %223 = vector.broadcast %cst_138 : f32 to vector<16x2xf32>
    %224 = arith.divf %220, %223 : vector<16x2xf32>
    %225 = math.erf %224 : vector<16x2xf32>
    %cst_139 = arith.constant 1.000000e+00 : f32
    %226 = vector.broadcast %cst_139 : f32 to vector<16x2xf32>
    %227 = arith.addf %226, %225 : vector<16x2xf32>
    %228 = arith.mulf %222, %227 : vector<16x2xf32>
    %c0_140 = arith.constant 0 : index
    %c0_141 = arith.constant 0 : index
    %229 = vector.load %arg15[%c0_140, %c0_141] : memref<2x32xf32, #tpu.memory_space<vmem>>, vector<2x32xf32>
    %cst_142 = arith.constant dense<0.000000e+00> : vector<16x32xf32>
    %230 = tpu.matmul %228, %229, %cst_142 {dimension_numbers = #tpu.dot_dimension_numbers<[1], [0], [0], [1], [0, 0, 1, 1], [], []>} : vector<16x2xf32>, vector<2x32xf32>, vector<16x32xf32> -> vector<16x32xf32>
    %c0_143 = arith.constant 0 : index
    %c0_144 = arith.constant 0 : index
    %231 = vector.load %arg16[%c0_143, %c0_144] : memref<1x32xf32, #tpu.memory_space<vmem>>, vector<1x32xf32>
    %232 = vector.broadcast %231 : vector<1x32xf32> to vector<16x32xf32>
    %233 = arith.addf %230, %232 : vector<16x32xf32>
    %234 = arith.addf %215, %233 : vector<16x32xf32>
    %cst_145 = arith.constant dense<0.000000e+00> : vector<16xf32>
    %235 = vector.multi_reduction <add>, %234, %cst_145 [1] : vector<16x32xf32> to vector<16xf32>
    %236 = vector.shape_cast %235 : vector<16xf32> to vector<16x1xf32>
    %cst_146 = arith.constant 3.200000e+01 : f32
    %237 = vector.broadcast %cst_146 : f32 to vector<16x1xf32>
    %238 = arith.divf %236, %237 : vector<16x1xf32>
    %239 = vector.broadcast %238 : vector<16x1xf32> to vector<16x32xf32>
    %240 = arith.subf %234, %239 : vector<16x32xf32>
    %241 = arith.mulf %240, %240 : vector<16x32xf32>
    %cst_147 = arith.constant dense<0.000000e+00> : vector<16xf32>
    %242 = vector.multi_reduction <add>, %241, %cst_147 [1] : vector<16x32xf32> to vector<16xf32>
    %243 = vector.shape_cast %242 : vector<16xf32> to vector<16x1xf32>
    %cst_148 = arith.constant 3.200000e+01 : f32
    %244 = vector.broadcast %cst_148 : f32 to vector<16x1xf32>
    %245 = arith.divf %243, %244 : vector<16x1xf32>
    %246 = vector.broadcast %238 : vector<16x1xf32> to vector<16x32xf32>
    %247 = arith.subf %234, %246 : vector<16x32xf32>
    %cst_149 = arith.constant 9.99999974E-6 : f32
    %248 = vector.broadcast %cst_149 : f32 to vector<16x1xf32>
    %249 = arith.addf %245, %248 : vector<16x1xf32>
    %250 = math.rsqrt %249 : vector<16x1xf32>
    %251 = vector.broadcast %250 : vector<16x1xf32> to vector<16x32xf32>
    %252 = arith.mulf %247, %251 : vector<16x32xf32>
    %c0_150 = arith.constant 0 : index
    %c0_151 = arith.constant 0 : index
    %253 = vector.load %arg17[%c0_150, %c0_151] : memref<1x32xf32, #tpu.memory_space<vmem>>, vector<1x32xf32>
    %254 = vector.broadcast %253 : vector<1x32xf32> to vector<16x32xf32>
    %255 = arith.mulf %252, %254 : vector<16x32xf32>
    %c0_152 = arith.constant 0 : index
    %c0_153 = arith.constant 0 : index
    %256 = vector.load %arg18[%c0_152, %c0_153] : memref<1x32xf32, #tpu.memory_space<vmem>>, vector<1x32xf32>
    %257 = vector.broadcast %256 : vector<1x32xf32> to vector<16x32xf32>
    %258 = arith.addf %255, %257 : vector<16x32xf32>
    %cst_154 = arith.constant 0.000000e+00 : f32
    %259 = vector.broadcast %cst_154 : f32 to vector<16x32xf32>
    %c0_155 = arith.constant 0 : index
    %c0_156 = arith.constant 0 : index
    %c0_157 = arith.constant 0 : index
    %260 = vector.load %arg19[%c0_155, %c0_156, %c0_157] : memref<4x32x8xf32, #tpu.memory_space<vmem>>, vector<1x32x8xf32>
    %261 = vector.shape_cast %260 : vector<1x32x8xf32> to vector<32x8xf32>
    %cst_158 = arith.constant dense<0.000000e+00> : vector<16x8xf32>
    %262 = tpu.matmul %258, %261, %cst_158 {dimension_numbers = #tpu.dot_dimension_numbers<[1], [0], [0], [1], [0, 0, 1, 1], [], []>} : vector<16x32xf32>, vector<32x8xf32>, vector<16x8xf32> -> vector<16x8xf32>
    %c0_159 = arith.constant 0 : index
    %c0_160 = arith.constant 0 : index
    %c0_161 = arith.constant 0 : index
    %263 = vector.load %arg20[%c0_159, %c0_160, %c0_161] : memref<4x1x8xf32, #tpu.memory_space<vmem>>, vector<1x1x8xf32>
    %264 = vector.shape_cast %263 : vector<1x1x8xf32> to vector<1x8xf32>
    %265 = vector.broadcast %264 : vector<1x8xf32> to vector<16x8xf32>
    %266 = arith.addf %262, %265 : vector<16x8xf32>
    %c0_162 = arith.constant 0 : index
    %c0_163 = arith.constant 0 : index
    %c0_164 = arith.constant 0 : index
    %267 = vector.load %arg21[%c0_162, %c0_163, %c0_164] : memref<4x32x8xf32, #tpu.memory_space<vmem>>, vector<1x32x8xf32>
    %268 = vector.shape_cast %267 : vector<1x32x8xf32> to vector<32x8xf32>
    %cst_165 = arith.constant dense<0.000000e+00> : vector<16x8xf32>
    %269 = tpu.matmul %258, %268, %cst_165 {dimension_numbers = #tpu.dot_dimension_numbers<[1], [0], [0], [1], [0, 0, 1, 1], [], []>} : vector<16x32xf32>, vector<32x8xf32>, vector<16x8xf32> -> vector<16x8xf32>
    %c0_166 = arith.constant 0 : index
    %c0_167 = arith.constant 0 : index
    %c0_168 = arith.constant 0 : index
    %270 = vector.load %arg22[%c0_166, %c0_167, %c0_168] : memref<4x1x8xf32, #tpu.memory_space<vmem>>, vector<1x1x8xf32>
    %271 = vector.shape_cast %270 : vector<1x1x8xf32> to vector<1x8xf32>
    %272 = vector.broadcast %271 : vector<1x8xf32> to vector<16x8xf32>
    %273 = arith.addf %269, %272 : vector<16x8xf32>
    %c0_169 = arith.constant 0 : index
    %c0_170 = arith.constant 0 : index
    %c0_171 = arith.constant 0 : index
    %274 = vector.load %arg23[%c0_169, %c0_170, %c0_171] : memref<4x32x8xf32, #tpu.memory_space<vmem>>, vector<1x32x8xf32>
    %275 = vector.shape_cast %274 : vector<1x32x8xf32> to vector<32x8xf32>
    %cst_172 = arith.constant dense<0.000000e+00> : vector<16x8xf32>
    %276 = tpu.matmul %258, %275, %cst_172 {dimension_numbers = #tpu.dot_dimension_numbers<[1], [0], [0], [1], [0, 0, 1, 1], [], []>} : vector<16x32xf32>, vector<32x8xf32>, vector<16x8xf32> -> vector<16x8xf32>
    %c0_173 = arith.constant 0 : index
    %c0_174 = arith.constant 0 : index
    %c0_175 = arith.constant 0 : index
    %277 = vector.load %arg24[%c0_173, %c0_174, %c0_175] : memref<4x1x8xf32, #tpu.memory_space<vmem>>, vector<1x1x8xf32>
    %278 = vector.shape_cast %277 : vector<1x1x8xf32> to vector<1x8xf32>
    %279 = vector.broadcast %278 : vector<1x8xf32> to vector<16x8xf32>
    %280 = arith.addf %276, %279 : vector<16x8xf32>
    %281 = vector.shape_cast %266 : vector<16x8xf32> to vector<2x8x8xf32>
    %cst_176 = arith.constant 0.353553385 : f32
    %282 = vector.broadcast %cst_176 : f32 to vector<2x8x8xf32>
    %283 = arith.mulf %281, %282 : vector<2x8x8xf32>
    %284 = vector.shape_cast %273 : vector<16x8xf32> to vector<2x8x8xf32>
    %285 = vector.shape_cast %280 : vector<16x8xf32> to vector<2x8x8xf32>
    "tpu.trace_start"() <{level = 10 : i32, message = "bqd,bkd->bqk"}> : () -> ()
    %cst_177 = arith.constant dense<0.000000e+00> : vector<2x8x8xf32>
    %286 = tpu.matmul %283, %284, %cst_177 {dimension_numbers = #tpu.dot_dimension_numbers<[2], [2], [1], [1], [0, 0, 0, 1, 1, 1], [0], [0]>} : vector<2x8x8xf32>, vector<2x8x8xf32>, vector<2x8x8xf32> -> vector<2x8x8xf32>
    "tpu.trace_stop"() : () -> ()
    %cst_178 = arith.constant dense<0xFF800000> : vector<2x8xf32>
    %287 = vector.multi_reduction <maximumf>, %286, %cst_178 [2] : vector<2x8x8xf32> to vector<2x8xf32>
    %288 = vector.shape_cast %287 : vector<2x8xf32> to vector<2x8x1xf32>
    %289 = vector.broadcast %288 : vector<2x8x1xf32> to vector<2x8x8xf32>
    %290 = arith.subf %286, %289 : vector<2x8x8xf32>
    %291 = math.exp %290 : vector<2x8x8xf32>
    %cst_179 = arith.constant dense<0.000000e+00> : vector<2x8xf32>
    %292 = vector.multi_reduction <add>, %291, %cst_179 [2] : vector<2x8x8xf32> to vector<2x8xf32>
    %293 = vector.shape_cast %292 : vector<2x8xf32> to vector<2x8x1xf32>
    %294 = tpu.reciprocal %293 {approx = true} : vector<2x8x1xf32> -> vector<2x8x1xf32>
    %295 = vector.broadcast %294 : vector<2x8x1xf32> to vector<2x8x8xf32>
    %296 = arith.mulf %291, %295 : vector<2x8x8xf32>
    "tpu.trace_start"() <{level = 10 : i32, message = "bqk,bkd->bqd"}> : () -> ()
    %cst_180 = arith.constant dense<0.000000e+00> : vector<2x8x8xf32>
    %297 = tpu.matmul %296, %285, %cst_180 {dimension_numbers = #tpu.dot_dimension_numbers<[2], [1], [1], [2], [0, 0, 0, 1, 1, 2], [0], [0]>} : vector<2x8x8xf32>, vector<2x8x8xf32>, vector<2x8x8xf32> -> vector<2x8x8xf32>
    "tpu.trace_stop"() : () -> ()
    %298 = vector.shape_cast %297 : vector<2x8x8xf32> to vector<16x8xf32>
    %c0_181 = arith.constant 0 : index
    %c0_182 = arith.constant 0 : index
    %c0_183 = arith.constant 0 : index
    %299 = vector.load %arg25[%c0_181, %c0_182, %c0_183] : memref<4x8x32xf32, #tpu.memory_space<vmem>>, vector<1x8x32xf32>
    %300 = vector.shape_cast %299 : vector<1x8x32xf32> to vector<8x32xf32>
    %cst_184 = arith.constant dense<0.000000e+00> : vector<16x32xf32>
    %301 = tpu.matmul %298, %300, %cst_184 {dimension_numbers = #tpu.dot_dimension_numbers<[1], [0], [0], [1], [0, 0, 1, 1], [], []>} : vector<16x8xf32>, vector<8x32xf32>, vector<16x32xf32> -> vector<16x32xf32>
    %302 = arith.addf %259, %301 : vector<16x32xf32>
    %c1_185 = arith.constant 1 : index
    %c0_186 = arith.constant 0 : index
    %c0_187 = arith.constant 0 : index
    %303 = vector.load %arg19[%c1_185, %c0_186, %c0_187] : memref<4x32x8xf32, #tpu.memory_space<vmem>>, vector<1x32x8xf32>
    %304 = vector.shape_cast %303 : vector<1x32x8xf32> to vector<32x8xf32>
    %cst_188 = arith.constant dense<0.000000e+00> : vector<16x8xf32>
    %305 = tpu.matmul %258, %304, %cst_188 {dimension_numbers = #tpu.dot_dimension_numbers<[1], [0], [0], [1], [0, 0, 1, 1], [], []>} : vector<16x32xf32>, vector<32x8xf32>, vector<16x8xf32> -> vector<16x8xf32>
    %c1_189 = arith.constant 1 : index
    %c0_190 = arith.constant 0 : index
    %c0_191 = arith.constant 0 : index
    %306 = vector.load %arg20[%c1_189, %c0_190, %c0_191] : memref<4x1x8xf32, #tpu.memory_space<vmem>>, vector<1x1x8xf32>
    %307 = vector.shape_cast %306 : vector<1x1x8xf32> to vector<1x8xf32>
    %308 = vector.broadcast %307 : vector<1x8xf32> to vector<16x8xf32>
    %309 = arith.addf %305, %308 : vector<16x8xf32>
    %c1_192 = arith.constant 1 : index
    %c0_193 = arith.constant 0 : index
    %c0_194 = arith.constant 0 : index
    %310 = vector.load %arg21[%c1_192, %c0_193, %c0_194] : memref<4x32x8xf32, #tpu.memory_space<vmem>>, vector<1x32x8xf32>
    %311 = vector.shape_cast %310 : vector<1x32x8xf32> to vector<32x8xf32>
    %cst_195 = arith.constant dense<0.000000e+00> : vector<16x8xf32>
    %312 = tpu.matmul %258, %311, %cst_195 {dimension_numbers = #tpu.dot_dimension_numbers<[1], [0], [0], [1], [0, 0, 1, 1], [], []>} : vector<16x32xf32>, vector<32x8xf32>, vector<16x8xf32> -> vector<16x8xf32>
    %c1_196 = arith.constant 1 : index
    %c0_197 = arith.constant 0 : index
    %c0_198 = arith.constant 0 : index
    %313 = vector.load %arg22[%c1_196, %c0_197, %c0_198] : memref<4x1x8xf32, #tpu.memory_space<vmem>>, vector<1x1x8xf32>
    %314 = vector.shape_cast %313 : vector<1x1x8xf32> to vector<1x8xf32>
    %315 = vector.broadcast %314 : vector<1x8xf32> to vector<16x8xf32>
    %316 = arith.addf %312, %315 : vector<16x8xf32>
    %c1_199 = arith.constant 1 : index
    %c0_200 = arith.constant 0 : index
    %c0_201 = arith.constant 0 : index
    %317 = vector.load %arg23[%c1_199, %c0_200, %c0_201] : memref<4x32x8xf32, #tpu.memory_space<vmem>>, vector<1x32x8xf32>
    %318 = vector.shape_cast %317 : vector<1x32x8xf32> to vector<32x8xf32>
    %cst_202 = arith.constant dense<0.000000e+00> : vector<16x8xf32>
    %319 = tpu.matmul %258, %318, %cst_202 {dimension_numbers = #tpu.dot_dimension_numbers<[1], [0], [0], [1], [0, 0, 1, 1], [], []>} : vector<16x32xf32>, vector<32x8xf32>, vector<16x8xf32> -> vector<16x8xf32>
    %c1_203 = arith.constant 1 : index
    %c0_204 = arith.constant 0 : index
    %c0_205 = arith.constant 0 : index
    %320 = vector.load %arg24[%c1_203, %c0_204, %c0_205] : memref<4x1x8xf32, #tpu.memory_space<vmem>>, vector<1x1x8xf32>
    %321 = vector.shape_cast %320 : vector<1x1x8xf32> to vector<1x8xf32>
    %322 = vector.broadcast %321 : vector<1x8xf32> to vector<16x8xf32>
    %323 = arith.addf %319, %322 : vector<16x8xf32>
    %324 = vector.shape_cast %309 : vector<16x8xf32> to vector<2x8x8xf32>
    %cst_206 = arith.constant 0.353553385 : f32
    %325 = vector.broadcast %cst_206 : f32 to vector<2x8x8xf32>
    %326 = arith.mulf %324, %325 : vector<2x8x8xf32>
    %327 = vector.shape_cast %316 : vector<16x8xf32> to vector<2x8x8xf32>
    %328 = vector.shape_cast %323 : vector<16x8xf32> to vector<2x8x8xf32>
    "tpu.trace_start"() <{level = 10 : i32, message = "bqd,bkd->bqk"}> : () -> ()
    %cst_207 = arith.constant dense<0.000000e+00> : vector<2x8x8xf32>
    %329 = tpu.matmul %326, %327, %cst_207 {dimension_numbers = #tpu.dot_dimension_numbers<[2], [2], [1], [1], [0, 0, 0, 1, 1, 1], [0], [0]>} : vector<2x8x8xf32>, vector<2x8x8xf32>, vector<2x8x8xf32> -> vector<2x8x8xf32>
    "tpu.trace_stop"() : () -> ()
    %cst_208 = arith.constant dense<0xFF800000> : vector<2x8xf32>
    %330 = vector.multi_reduction <maximumf>, %329, %cst_208 [2] : vector<2x8x8xf32> to vector<2x8xf32>
    %331 = vector.shape_cast %330 : vector<2x8xf32> to vector<2x8x1xf32>
    %332 = vector.broadcast %331 : vector<2x8x1xf32> to vector<2x8x8xf32>
    %333 = arith.subf %329, %332 : vector<2x8x8xf32>
    %334 = math.exp %333 : vector<2x8x8xf32>
    %cst_209 = arith.constant dense<0.000000e+00> : vector<2x8xf32>
    %335 = vector.multi_reduction <add>, %334, %cst_209 [2] : vector<2x8x8xf32> to vector<2x8xf32>
    %336 = vector.shape_cast %335 : vector<2x8xf32> to vector<2x8x1xf32>
    %337 = tpu.reciprocal %336 {approx = true} : vector<2x8x1xf32> -> vector<2x8x1xf32>
    %338 = vector.broadcast %337 : vector<2x8x1xf32> to vector<2x8x8xf32>
    %339 = arith.mulf %334, %338 : vector<2x8x8xf32>
    "tpu.trace_start"() <{level = 10 : i32, message = "bqk,bkd->bqd"}> : () -> ()
    %cst_210 = arith.constant dense<0.000000e+00> : vector<2x8x8xf32>
    %340 = tpu.matmul %339, %328, %cst_210 {dimension_numbers = #tpu.dot_dimension_numbers<[2], [1], [1], [2], [0, 0, 0, 1, 1, 2], [0], [0]>} : vector<2x8x8xf32>, vector<2x8x8xf32>, vector<2x8x8xf32> -> vector<2x8x8xf32>
    "tpu.trace_stop"() : () -> ()
    %341 = vector.shape_cast %340 : vector<2x8x8xf32> to vector<16x8xf32>
    %c1_211 = arith.constant 1 : index
    %c0_212 = arith.constant 0 : index
    %c0_213 = arith.constant 0 : index
    %342 = vector.load %arg25[%c1_211, %c0_212, %c0_213] : memref<4x8x32xf32, #tpu.memory_space<vmem>>, vector<1x8x32xf32>
    %343 = vector.shape_cast %342 : vector<1x8x32xf32> to vector<8x32xf32>
    %cst_214 = arith.constant dense<0.000000e+00> : vector<16x32xf32>
    %344 = tpu.matmul %341, %343, %cst_214 {dimension_numbers = #tpu.dot_dimension_numbers<[1], [0], [0], [1], [0, 0, 1, 1], [], []>} : vector<16x8xf32>, vector<8x32xf32>, vector<16x32xf32> -> vector<16x32xf32>
    %345 = arith.addf %302, %344 : vector<16x32xf32>
    %c2_215 = arith.constant 2 : index
    %c0_216 = arith.constant 0 : index
    %c0_217 = arith.constant 0 : index
    %346 = vector.load %arg19[%c2_215, %c0_216, %c0_217] : memref<4x32x8xf32, #tpu.memory_space<vmem>>, vector<1x32x8xf32>
    %347 = vector.shape_cast %346 : vector<1x32x8xf32> to vector<32x8xf32>
    %cst_218 = arith.constant dense<0.000000e+00> : vector<16x8xf32>
    %348 = tpu.matmul %258, %347, %cst_218 {dimension_numbers = #tpu.dot_dimension_numbers<[1], [0], [0], [1], [0, 0, 1, 1], [], []>} : vector<16x32xf32>, vector<32x8xf32>, vector<16x8xf32> -> vector<16x8xf32>
    %c2_219 = arith.constant 2 : index
    %c0_220 = arith.constant 0 : index
    %c0_221 = arith.constant 0 : index
    %349 = vector.load %arg20[%c2_219, %c0_220, %c0_221] : memref<4x1x8xf32, #tpu.memory_space<vmem>>, vector<1x1x8xf32>
    %350 = vector.shape_cast %349 : vector<1x1x8xf32> to vector<1x8xf32>
    %351 = vector.broadcast %350 : vector<1x8xf32> to vector<16x8xf32>
    %352 = arith.addf %348, %351 : vector<16x8xf32>
    %c2_222 = arith.constant 2 : index
    %c0_223 = arith.constant 0 : index
    %c0_224 = arith.constant 0 : index
    %353 = vector.load %arg21[%c2_222, %c0_223, %c0_224] : memref<4x32x8xf32, #tpu.memory_space<vmem>>, vector<1x32x8xf32>
    %354 = vector.shape_cast %353 : vector<1x32x8xf32> to vector<32x8xf32>
    %cst_225 = arith.constant dense<0.000000e+00> : vector<16x8xf32>
    %355 = tpu.matmul %258, %354, %cst_225 {dimension_numbers = #tpu.dot_dimension_numbers<[1], [0], [0], [1], [0, 0, 1, 1], [], []>} : vector<16x32xf32>, vector<32x8xf32>, vector<16x8xf32> -> vector<16x8xf32>
    %c2_226 = arith.constant 2 : index
    %c0_227 = arith.constant 0 : index
    %c0_228 = arith.constant 0 : index
    %356 = vector.load %arg22[%c2_226, %c0_227, %c0_228] : memref<4x1x8xf32, #tpu.memory_space<vmem>>, vector<1x1x8xf32>
    %357 = vector.shape_cast %356 : vector<1x1x8xf32> to vector<1x8xf32>
    %358 = vector.broadcast %357 : vector<1x8xf32> to vector<16x8xf32>
    %359 = arith.addf %355, %358 : vector<16x8xf32>
    %c2_229 = arith.constant 2 : index
    %c0_230 = arith.constant 0 : index
    %c0_231 = arith.constant 0 : index
    %360 = vector.load %arg23[%c2_229, %c0_230, %c0_231] : memref<4x32x8xf32, #tpu.memory_space<vmem>>, vector<1x32x8xf32>
    %361 = vector.shape_cast %360 : vector<1x32x8xf32> to vector<32x8xf32>
    %cst_232 = arith.constant dense<0.000000e+00> : vector<16x8xf32>
    %362 = tpu.matmul %258, %361, %cst_232 {dimension_numbers = #tpu.dot_dimension_numbers<[1], [0], [0], [1], [0, 0, 1, 1], [], []>} : vector<16x32xf32>, vector<32x8xf32>, vector<16x8xf32> -> vector<16x8xf32>
    %c2_233 = arith.constant 2 : index
    %c0_234 = arith.constant 0 : index
    %c0_235 = arith.constant 0 : index
    %363 = vector.load %arg24[%c2_233, %c0_234, %c0_235] : memref<4x1x8xf32, #tpu.memory_space<vmem>>, vector<1x1x8xf32>
    %364 = vector.shape_cast %363 : vector<1x1x8xf32> to vector<1x8xf32>
    %365 = vector.broadcast %364 : vector<1x8xf32> to vector<16x8xf32>
    %366 = arith.addf %362, %365 : vector<16x8xf32>
    %367 = vector.shape_cast %352 : vector<16x8xf32> to vector<2x8x8xf32>
    %cst_236 = arith.constant 0.353553385 : f32
    %368 = vector.broadcast %cst_236 : f32 to vector<2x8x8xf32>
    %369 = arith.mulf %367, %368 : vector<2x8x8xf32>
    %370 = vector.shape_cast %359 : vector<16x8xf32> to vector<2x8x8xf32>
    %371 = vector.shape_cast %366 : vector<16x8xf32> to vector<2x8x8xf32>
    "tpu.trace_start"() <{level = 10 : i32, message = "bqd,bkd->bqk"}> : () -> ()
    %cst_237 = arith.constant dense<0.000000e+00> : vector<2x8x8xf32>
    %372 = tpu.matmul %369, %370, %cst_237 {dimension_numbers = #tpu.dot_dimension_numbers<[2], [2], [1], [1], [0, 0, 0, 1, 1, 1], [0], [0]>} : vector<2x8x8xf32>, vector<2x8x8xf32>, vector<2x8x8xf32> -> vector<2x8x8xf32>
    "tpu.trace_stop"() : () -> ()
    %cst_238 = arith.constant dense<0xFF800000> : vector<2x8xf32>
    %373 = vector.multi_reduction <maximumf>, %372, %cst_238 [2] : vector<2x8x8xf32> to vector<2x8xf32>
    %374 = vector.shape_cast %373 : vector<2x8xf32> to vector<2x8x1xf32>
    %375 = vector.broadcast %374 : vector<2x8x1xf32> to vector<2x8x8xf32>
    %376 = arith.subf %372, %375 : vector<2x8x8xf32>
    %377 = math.exp %376 : vector<2x8x8xf32>
    %cst_239 = arith.constant dense<0.000000e+00> : vector<2x8xf32>
    %378 = vector.multi_reduction <add>, %377, %cst_239 [2] : vector<2x8x8xf32> to vector<2x8xf32>
    %379 = vector.shape_cast %378 : vector<2x8xf32> to vector<2x8x1xf32>
    %380 = tpu.reciprocal %379 {approx = true} : vector<2x8x1xf32> -> vector<2x8x1xf32>
    %381 = vector.broadcast %380 : vector<2x8x1xf32> to vector<2x8x8xf32>
    %382 = arith.mulf %377, %381 : vector<2x8x8xf32>
    "tpu.trace_start"() <{level = 10 : i32, message = "bqk,bkd->bqd"}> : () -> ()
    %cst_240 = arith.constant dense<0.000000e+00> : vector<2x8x8xf32>
    %383 = tpu.matmul %382, %371, %cst_240 {dimension_numbers = #tpu.dot_dimension_numbers<[2], [1], [1], [2], [0, 0, 0, 1, 1, 2], [0], [0]>} : vector<2x8x8xf32>, vector<2x8x8xf32>, vector<2x8x8xf32> -> vector<2x8x8xf32>
    "tpu.trace_stop"() : () -> ()
    %384 = vector.shape_cast %383 : vector<2x8x8xf32> to vector<16x8xf32>
    %c2_241 = arith.constant 2 : index
    %c0_242 = arith.constant 0 : index
    %c0_243 = arith.constant 0 : index
    %385 = vector.load %arg25[%c2_241, %c0_242, %c0_243] : memref<4x8x32xf32, #tpu.memory_space<vmem>>, vector<1x8x32xf32>
    %386 = vector.shape_cast %385 : vector<1x8x32xf32> to vector<8x32xf32>
    %cst_244 = arith.constant dense<0.000000e+00> : vector<16x32xf32>
    %387 = tpu.matmul %384, %386, %cst_244 {dimension_numbers = #tpu.dot_dimension_numbers<[1], [0], [0], [1], [0, 0, 1, 1], [], []>} : vector<16x8xf32>, vector<8x32xf32>, vector<16x32xf32> -> vector<16x32xf32>
    %388 = arith.addf %345, %387 : vector<16x32xf32>
    %c3_245 = arith.constant 3 : index
    %c0_246 = arith.constant 0 : index
    %c0_247 = arith.constant 0 : index
    %389 = vector.load %arg19[%c3_245, %c0_246, %c0_247] : memref<4x32x8xf32, #tpu.memory_space<vmem>>, vector<1x32x8xf32>
    %390 = vector.shape_cast %389 : vector<1x32x8xf32> to vector<32x8xf32>
    %cst_248 = arith.constant dense<0.000000e+00> : vector<16x8xf32>
    %391 = tpu.matmul %258, %390, %cst_248 {dimension_numbers = #tpu.dot_dimension_numbers<[1], [0], [0], [1], [0, 0, 1, 1], [], []>} : vector<16x32xf32>, vector<32x8xf32>, vector<16x8xf32> -> vector<16x8xf32>
    %c3_249 = arith.constant 3 : index
    %c0_250 = arith.constant 0 : index
    %c0_251 = arith.constant 0 : index
    %392 = vector.load %arg20[%c3_249, %c0_250, %c0_251] : memref<4x1x8xf32, #tpu.memory_space<vmem>>, vector<1x1x8xf32>
    %393 = vector.shape_cast %392 : vector<1x1x8xf32> to vector<1x8xf32>
    %394 = vector.broadcast %393 : vector<1x8xf32> to vector<16x8xf32>
    %395 = arith.addf %391, %394 : vector<16x8xf32>
    %c3_252 = arith.constant 3 : index
    %c0_253 = arith.constant 0 : index
    %c0_254 = arith.constant 0 : index
    %396 = vector.load %arg21[%c3_252, %c0_253, %c0_254] : memref<4x32x8xf32, #tpu.memory_space<vmem>>, vector<1x32x8xf32>
    %397 = vector.shape_cast %396 : vector<1x32x8xf32> to vector<32x8xf32>
    %cst_255 = arith.constant dense<0.000000e+00> : vector<16x8xf32>
    %398 = tpu.matmul %258, %397, %cst_255 {dimension_numbers = #tpu.dot_dimension_numbers<[1], [0], [0], [1], [0, 0, 1, 1], [], []>} : vector<16x32xf32>, vector<32x8xf32>, vector<16x8xf32> -> vector<16x8xf32>
    %c3_256 = arith.constant 3 : index
    %c0_257 = arith.constant 0 : index
    %c0_258 = arith.constant 0 : index
    %399 = vector.load %arg22[%c3_256, %c0_257, %c0_258] : memref<4x1x8xf32, #tpu.memory_space<vmem>>, vector<1x1x8xf32>
    %400 = vector.shape_cast %399 : vector<1x1x8xf32> to vector<1x8xf32>
    %401 = vector.broadcast %400 : vector<1x8xf32> to vector<16x8xf32>
    %402 = arith.addf %398, %401 : vector<16x8xf32>
    %c3_259 = arith.constant 3 : index
    %c0_260 = arith.constant 0 : index
    %c0_261 = arith.constant 0 : index
    %403 = vector.load %arg23[%c3_259, %c0_260, %c0_261] : memref<4x32x8xf32, #tpu.memory_space<vmem>>, vector<1x32x8xf32>
    %404 = vector.shape_cast %403 : vector<1x32x8xf32> to vector<32x8xf32>
    %cst_262 = arith.constant dense<0.000000e+00> : vector<16x8xf32>
    %405 = tpu.matmul %258, %404, %cst_262 {dimension_numbers = #tpu.dot_dimension_numbers<[1], [0], [0], [1], [0, 0, 1, 1], [], []>} : vector<16x32xf32>, vector<32x8xf32>, vector<16x8xf32> -> vector<16x8xf32>
    %c3_263 = arith.constant 3 : index
    %c0_264 = arith.constant 0 : index
    %c0_265 = arith.constant 0 : index
    %406 = vector.load %arg24[%c3_263, %c0_264, %c0_265] : memref<4x1x8xf32, #tpu.memory_space<vmem>>, vector<1x1x8xf32>
    %407 = vector.shape_cast %406 : vector<1x1x8xf32> to vector<1x8xf32>
    %408 = vector.broadcast %407 : vector<1x8xf32> to vector<16x8xf32>
    %409 = arith.addf %405, %408 : vector<16x8xf32>
    %410 = vector.shape_cast %395 : vector<16x8xf32> to vector<2x8x8xf32>
    %cst_266 = arith.constant 0.353553385 : f32
    %411 = vector.broadcast %cst_266 : f32 to vector<2x8x8xf32>
    %412 = arith.mulf %410, %411 : vector<2x8x8xf32>
    %413 = vector.shape_cast %402 : vector<16x8xf32> to vector<2x8x8xf32>
    %414 = vector.shape_cast %409 : vector<16x8xf32> to vector<2x8x8xf32>
    "tpu.trace_start"() <{level = 10 : i32, message = "bqd,bkd->bqk"}> : () -> ()
    %cst_267 = arith.constant dense<0.000000e+00> : vector<2x8x8xf32>
    %415 = tpu.matmul %412, %413, %cst_267 {dimension_numbers = #tpu.dot_dimension_numbers<[2], [2], [1], [1], [0, 0, 0, 1, 1, 1], [0], [0]>} : vector<2x8x8xf32>, vector<2x8x8xf32>, vector<2x8x8xf32> -> vector<2x8x8xf32>
    "tpu.trace_stop"() : () -> ()
    %cst_268 = arith.constant dense<0xFF800000> : vector<2x8xf32>
    %416 = vector.multi_reduction <maximumf>, %415, %cst_268 [2] : vector<2x8x8xf32> to vector<2x8xf32>
    %417 = vector.shape_cast %416 : vector<2x8xf32> to vector<2x8x1xf32>
    %418 = vector.broadcast %417 : vector<2x8x1xf32> to vector<2x8x8xf32>
    %419 = arith.subf %415, %418 : vector<2x8x8xf32>
    %420 = math.exp %419 : vector<2x8x8xf32>
    %cst_269 = arith.constant dense<0.000000e+00> : vector<2x8xf32>
    %421 = vector.multi_reduction <add>, %420, %cst_269 [2] : vector<2x8x8xf32> to vector<2x8xf32>
    %422 = vector.shape_cast %421 : vector<2x8xf32> to vector<2x8x1xf32>
    %423 = tpu.reciprocal %422 {approx = true} : vector<2x8x1xf32> -> vector<2x8x1xf32>
    %424 = vector.broadcast %423 : vector<2x8x1xf32> to vector<2x8x8xf32>
    %425 = arith.mulf %420, %424 : vector<2x8x8xf32>
    "tpu.trace_start"() <{level = 10 : i32, message = "bqk,bkd->bqd"}> : () -> ()
    %cst_270 = arith.constant dense<0.000000e+00> : vector<2x8x8xf32>
    %426 = tpu.matmul %425, %414, %cst_270 {dimension_numbers = #tpu.dot_dimension_numbers<[2], [1], [1], [2], [0, 0, 0, 1, 1, 2], [0], [0]>} : vector<2x8x8xf32>, vector<2x8x8xf32>, vector<2x8x8xf32> -> vector<2x8x8xf32>
    "tpu.trace_stop"() : () -> ()
    %427 = vector.shape_cast %426 : vector<2x8x8xf32> to vector<16x8xf32>
    %c3_271 = arith.constant 3 : index
    %c0_272 = arith.constant 0 : index
    %c0_273 = arith.constant 0 : index
    %428 = vector.load %arg25[%c3_271, %c0_272, %c0_273] : memref<4x8x32xf32, #tpu.memory_space<vmem>>, vector<1x8x32xf32>
    %429 = vector.shape_cast %428 : vector<1x8x32xf32> to vector<8x32xf32>
    %cst_274 = arith.constant dense<0.000000e+00> : vector<16x32xf32>
    %430 = tpu.matmul %427, %429, %cst_274 {dimension_numbers = #tpu.dot_dimension_numbers<[1], [0], [0], [1], [0, 0, 1, 1], [], []>} : vector<16x8xf32>, vector<8x32xf32>, vector<16x32xf32> -> vector<16x32xf32>
    %431 = arith.addf %388, %430 : vector<16x32xf32>
    %c0_275 = arith.constant 0 : index
    %c0_276 = arith.constant 0 : index
    %432 = vector.load %arg26[%c0_275, %c0_276] : memref<1x32xf32, #tpu.memory_space<vmem>>, vector<1x32xf32>
    %433 = vector.broadcast %432 : vector<1x32xf32> to vector<16x32xf32>
    %434 = arith.addf %431, %433 : vector<16x32xf32>
    %435 = arith.addf %258, %434 : vector<16x32xf32>
    %cst_277 = arith.constant dense<0.000000e+00> : vector<16xf32>
    %436 = vector.multi_reduction <add>, %435, %cst_277 [1] : vector<16x32xf32> to vector<16xf32>
    %437 = vector.shape_cast %436 : vector<16xf32> to vector<16x1xf32>
    %cst_278 = arith.constant 3.200000e+01 : f32
    %438 = vector.broadcast %cst_278 : f32 to vector<16x1xf32>
    %439 = arith.divf %437, %438 : vector<16x1xf32>
    %440 = vector.broadcast %439 : vector<16x1xf32> to vector<16x32xf32>
    %441 = arith.subf %435, %440 : vector<16x32xf32>
    %442 = arith.mulf %441, %441 : vector<16x32xf32>
    %cst_279 = arith.constant dense<0.000000e+00> : vector<16xf32>
    %443 = vector.multi_reduction <add>, %442, %cst_279 [1] : vector<16x32xf32> to vector<16xf32>
    %444 = vector.shape_cast %443 : vector<16xf32> to vector<16x1xf32>
    %cst_280 = arith.constant 3.200000e+01 : f32
    %445 = vector.broadcast %cst_280 : f32 to vector<16x1xf32>
    %446 = arith.divf %444, %445 : vector<16x1xf32>
    %447 = vector.broadcast %439 : vector<16x1xf32> to vector<16x32xf32>
    %448 = arith.subf %435, %447 : vector<16x32xf32>
    %cst_281 = arith.constant 9.99999974E-6 : f32
    %449 = vector.broadcast %cst_281 : f32 to vector<16x1xf32>
    %450 = arith.addf %446, %449 : vector<16x1xf32>
    %451 = math.rsqrt %450 : vector<16x1xf32>
    %452 = vector.broadcast %451 : vector<16x1xf32> to vector<16x32xf32>
    %453 = arith.mulf %448, %452 : vector<16x32xf32>
    %c0_282 = arith.constant 0 : index
    %c0_283 = arith.constant 0 : index
    %454 = vector.load %arg27[%c0_282, %c0_283] : memref<1x32xf32, #tpu.memory_space<vmem>>, vector<1x32xf32>
    %455 = vector.broadcast %454 : vector<1x32xf32> to vector<16x32xf32>
    %456 = arith.mulf %453, %455 : vector<16x32xf32>
    %c0_284 = arith.constant 0 : index
    %c0_285 = arith.constant 0 : index
    %457 = vector.load %arg28[%c0_284, %c0_285] : memref<1x32xf32, #tpu.memory_space<vmem>>, vector<1x32xf32>
    %458 = vector.broadcast %457 : vector<1x32xf32> to vector<16x32xf32>
    %459 = arith.addf %456, %458 : vector<16x32xf32>
    %c0_286 = arith.constant 0 : index
    %c0_287 = arith.constant 0 : index
    %460 = vector.load %arg29[%c0_286, %c0_287] : memref<32x2xf32, #tpu.memory_space<vmem>>, vector<32x2xf32>
    %cst_288 = arith.constant dense<0.000000e+00> : vector<16x2xf32>
    %461 = tpu.matmul %459, %460, %cst_288 {dimension_numbers = #tpu.dot_dimension_numbers<[1], [0], [0], [1], [0, 0, 1, 1], [], []>} : vector<16x32xf32>, vector<32x2xf32>, vector<16x2xf32> -> vector<16x2xf32>
    %c0_289 = arith.constant 0 : index
    %c0_290 = arith.constant 0 : index
    %462 = vector.load %arg30[%c0_289, %c0_290] : memref<1x2xf32, #tpu.memory_space<vmem>>, vector<1x2xf32>
    %463 = vector.broadcast %462 : vector<1x2xf32> to vector<16x2xf32>
    %464 = arith.addf %461, %463 : vector<16x2xf32>
    %cst_291 = arith.constant 5.000000e-01 : f32
    %465 = vector.broadcast %cst_291 : f32 to vector<16x2xf32>
    %466 = arith.mulf %465, %464 : vector<16x2xf32>
    %cst_292 = arith.constant 1.41421354 : f32
    %467 = vector.broadcast %cst_292 : f32 to vector<16x2xf32>
    %468 = arith.divf %464, %467 : vector<16x2xf32>
    %469 = math.erf %468 : vector<16x2xf32>
    %cst_293 = arith.constant 1.000000e+00 : f32
    %470 = vector.broadcast %cst_293 : f32 to vector<16x2xf32>
    %471 = arith.addf %470, %469 : vector<16x2xf32>
    %472 = arith.mulf %466, %471 : vector<16x2xf32>
    %c0_294 = arith.constant 0 : index
    %c0_295 = arith.constant 0 : index
    %473 = vector.load %arg31[%c0_294, %c0_295] : memref<2x32xf32, #tpu.memory_space<vmem>>, vector<2x32xf32>
    %cst_296 = arith.constant dense<0.000000e+00> : vector<16x32xf32>
    %474 = tpu.matmul %472, %473, %cst_296 {dimension_numbers = #tpu.dot_dimension_numbers<[1], [0], [0], [1], [0, 0, 1, 1], [], []>} : vector<16x2xf32>, vector<2x32xf32>, vector<16x32xf32> -> vector<16x32xf32>
    %c0_297 = arith.constant 0 : index
    %c0_298 = arith.constant 0 : index
    %475 = vector.load %arg32[%c0_297, %c0_298] : memref<1x32xf32, #tpu.memory_space<vmem>>, vector<1x32xf32>
    %476 = vector.broadcast %475 : vector<1x32xf32> to vector<16x32xf32>
    %477 = arith.addf %474, %476 : vector<16x32xf32>
    %478 = arith.addf %459, %477 : vector<16x32xf32>
    %cst_299 = arith.constant dense<0.000000e+00> : vector<16xf32>
    %479 = vector.multi_reduction <add>, %478, %cst_299 [1] : vector<16x32xf32> to vector<16xf32>
    %480 = vector.shape_cast %479 : vector<16xf32> to vector<16x1xf32>
    %cst_300 = arith.constant 3.200000e+01 : f32
    %481 = vector.broadcast %cst_300 : f32 to vector<16x1xf32>
    %482 = arith.divf %480, %481 : vector<16x1xf32>
    %483 = vector.broadcast %482 : vector<16x1xf32> to vector<16x32xf32>
    %484 = arith.subf %478, %483 : vector<16x32xf32>
    %485 = arith.mulf %484, %484 : vector<16x32xf32>
    %cst_301 = arith.constant dense<0.000000e+00> : vector<16xf32>
    %486 = vector.multi_reduction <add>, %485, %cst_301 [1] : vector<16x32xf32> to vector<16xf32>
    %487 = vector.shape_cast %486 : vector<16xf32> to vector<16x1xf32>
    %cst_302 = arith.constant 3.200000e+01 : f32
    %488 = vector.broadcast %cst_302 : f32 to vector<16x1xf32>
    %489 = arith.divf %487, %488 : vector<16x1xf32>
    %490 = vector.broadcast %482 : vector<16x1xf32> to vector<16x32xf32>
    %491 = arith.subf %478, %490 : vector<16x32xf32>
    %cst_303 = arith.constant 9.99999974E-6 : f32
    %492 = vector.broadcast %cst_303 : f32 to vector<16x1xf32>
    %493 = arith.addf %489, %492 : vector<16x1xf32>
    %494 = math.rsqrt %493 : vector<16x1xf32>
    %495 = vector.broadcast %494 : vector<16x1xf32> to vector<16x32xf32>
    %496 = arith.mulf %491, %495 : vector<16x32xf32>
    %c0_304 = arith.constant 0 : index
    %c0_305 = arith.constant 0 : index
    %497 = vector.load %arg33[%c0_304, %c0_305] : memref<1x32xf32, #tpu.memory_space<vmem>>, vector<1x32xf32>
    %498 = vector.broadcast %497 : vector<1x32xf32> to vector<16x32xf32>
    %499 = arith.mulf %496, %498 : vector<16x32xf32>
    %c0_306 = arith.constant 0 : index
    %c0_307 = arith.constant 0 : index
    %500 = vector.load %arg34[%c0_306, %c0_307] : memref<1x32xf32, #tpu.memory_space<vmem>>, vector<1x32xf32>
    %501 = vector.broadcast %500 : vector<1x32xf32> to vector<16x32xf32>
    %502 = arith.addf %499, %501 : vector<16x32xf32>
    %503 = vector.shape_cast %502 : vector<16x32xf32> to vector<2x8x32xf32>
    %c0_308 = arith.constant 0 : index
    %c0_309 = arith.constant 0 : index
    %c0_310 = arith.constant 0 : index
    %504 = vector.load %arg35[%c0_308, %c0_309, %c0_310] : memref<2x8x32xf32, #tpu.memory_space<vmem>>, vector<2x8x32xf32>
    tpu.vector_store %arg35[%c0_308, %c0_309, %c0_310], %503 {strides = array<i32>} : memref<2x8x32xf32, #tpu.memory_space<vmem>>, vector<2x8x32xf32>,
    return
  }
  func.func @transform_0(%arg0: i32) -> (i32, i32) {
    %c0_i32 = arith.constant 0 : i32
    %c0_i32_0 = arith.constant 0 : i32
    return %arg0, %c0_i32 : i32, i32
  }
  func.func @transform_1(%arg0: i32) -> (i32, i32) {
    %c0_i32 = arith.constant 0 : i32
    %c0_i32_0 = arith.constant 0 : i32
    %c0_i32_1 = arith.constant 0 : i32
    return %c0_i32, %c0_i32_0 : i32, i32
  }
  func.func @transform_2(%arg0: i32) -> (i32, i32, i32) {
    %c0_i32 = arith.constant 0 : i32
    %c0_i32_0 = arith.constant 0 : i32
    %c0_i32_1 = arith.constant 0 : i32
    %c0_i32_2 = arith.constant 0 : i32
    return %c0_i32, %c0_i32_0, %c0_i32_1 : i32, i32, i32
  }
  func.func @transform_3(%arg0: i32) -> (i32, i32, i32) {
    %c0_i32 = arith.constant 0 : i32
    %c0_i32_0 = arith.constant 0 : i32
    %c0_i32_1 = arith.constant 0 : i32
    %c0_i32_2 = arith.constant 0 : i32
    return %c0_i32, %c0_i32_0, %c0_i32_1 : i32, i32, i32
  }
  func.func @transform_4(%arg0: i32) -> (i32, i32, i32) {
    %c0_i32 = arith.constant 0 : i32
    %c0_i32_0 = arith.constant 0 : i32
    %c0_i32_1 = arith.constant 0 : i32
    %c0_i32_2 = arith.constant 0 : i32
    return %c0_i32, %c0_i32_0, %c0_i32_1 : i32, i32, i32
  }
  func.func @transform_5(%arg0: i32) -> (i32, i32, i32) {
    %c0_i32 = arith.constant 0 : i32
    %c0_i32_0 = arith.constant 0 : i32
    %c0_i32_1 = arith.constant 0 : i32
    %c0_i32_2 = arith.constant 0 : i32
    return %c0_i32, %c0_i32_0, %c0_i32_1 : i32, i32, i32
  }
  func.func @transform_6(%arg0: i32) -> (i32, i32, i32) {
    %c0_i32 = arith.constant 0 : i32
    %c0_i32_0 = arith.constant 0 : i32
    %c0_i32_1 = arith.constant 0 : i32
    %c0_i32_2 = arith.constant 0 : i32
    return %c0_i32, %c0_i32_0, %c0_i32_1 : i32, i32, i32
  }
  func.func @transform_7(%arg0: i32) -> (i32, i32, i32) {
    %c0_i32 = arith.constant 0 : i32
    %c0_i32_0 = arith.constant 0 : i32
    %c0_i32_1 = arith.constant 0 : i32
    %c0_i32_2 = arith.constant 0 : i32
    return %c0_i32, %c0_i32_0, %c0_i32_1 : i32, i32, i32
  }
  func.func @transform_8(%arg0: i32) -> (i32, i32, i32) {
    %c0_i32 = arith.constant 0 : i32
    %c0_i32_0 = arith.constant 0 : i32
    %c0_i32_1 = arith.constant 0 : i32
    %c0_i32_2 = arith.constant 0 : i32
    return %c0_i32, %c0_i32_0, %c0_i32_1 : i32, i32, i32
  }
  func.func @transform_9(%arg0: i32) -> (i32, i32) {
    %c0_i32 = arith.constant 0 : i32
    %c0_i32_0 = arith.constant 0 : i32
    %c0_i32_1 = arith.constant 0 : i32
    return %c0_i32, %c0_i32_0 : i32, i32
  }
  func.func @transform_10(%arg0: i32) -> (i32, i32) {
    %c0_i32 = arith.constant 0 : i32
    %c0_i32_0 = arith.constant 0 : i32
    %c0_i32_1 = arith.constant 0 : i32
    return %c0_i32, %c0_i32_0 : i32, i32
  }
  func.func @transform_11(%arg0: i32) -> (i32, i32) {
    %c0_i32 = arith.constant 0 : i32
    %c0_i32_0 = arith.constant 0 : i32
    %c0_i32_1 = arith.constant 0 : i32
    return %c0_i32, %c0_i32_0 : i32, i32
  }
  func.func @transform_12(%arg0: i32) -> (i32, i32) {
    %c0_i32 = arith.constant 0 : i32
    %c0_i32_0 = arith.constant 0 : i32
    %c0_i32_1 = arith.constant 0 : i32
    return %c0_i32, %c0_i32_0 : i32, i32
  }
  func.func @transform_13(%arg0: i32) -> (i32, i32) {
    %c0_i32 = arith.constant 0 : i32
    %c0_i32_0 = arith.constant 0 : i32
    %c0_i32_1 = arith.constant 0 : i32
    return %c0_i32, %c0_i32_0 : i32, i32
  }
  func.func @transform_14(%arg0: i32) -> (i32, i32) {
    %c0_i32 = arith.constant 0 : i32
    %c0_i32_0 = arith.constant 0 : i32
    %c0_i32_1 = arith.constant 0 : i32
    return %c0_i32, %c0_i32_0 : i32, i32
  }
  func.func @transform_15(%arg0: i32) -> (i32, i32) {
    %c0_i32 = arith.constant 0 : i32
    %c0_i32_0 = arith.constant 0 : i32
    %c0_i32_1 = arith.constant 0 : i32
    return %c0_i32, %c0_i32_0 : i32, i32
  }
  func.func @transform_16(%arg0: i32) -> (i32, i32) {
    %c0_i32 = arith.constant 0 : i32
    %c0_i32_0 = arith.constant 0 : i32
    %c0_i32_1 = arith.constant 0 : i32
    return %c0_i32, %c0_i32_0 : i32, i32
  }
  func.func @transform_17(%arg0: i32) -> (i32, i32) {
    %c0_i32 = arith.constant 0 : i32
    %c0_i32_0 = arith.constant 0 : i32
    %c0_i32_1 = arith.constant 0 : i32
    return %c0_i32, %c0_i32_0 : i32, i32
  }
  func.func @transform_18(%arg0: i32) -> (i32, i32, i32) {
    %c0_i32 = arith.constant 0 : i32
    %c0_i32_0 = arith.constant 0 : i32
    %c0_i32_1 = arith.constant 0 : i32
    %c0_i32_2 = arith.constant 0 : i32
    return %c0_i32, %c0_i32_0, %c0_i32_1 : i32, i32, i32
  }
  func.func @transform_19(%arg0: i32) -> (i32, i32, i32) {
    %c0_i32 = arith.constant 0 : i32
    %c0_i32_0 = arith.constant 0 : i32
    %c0_i32_1 = arith.constant 0 : i32
    %c0_i32_2 = arith.constant 0 : i32
    return %c0_i32, %c0_i32_0, %c0_i32_1 : i32, i32, i32
  }
  func.func @transform_20(%arg0: i32) -> (i32, i32, i32) {
    %c0_i32 = arith.constant 0 : i32
    %c0_i32_0 = arith.constant 0 : i32
    %c0_i32_1 = arith.constant 0 : i32
    %c0_i32_2 = arith.constant 0 : i32
    return %c0_i32, %c0_i32_0, %c0_i32_1 : i32, i32, i32
  }
  func.func @transform_21(%arg0: i32) -> (i32, i32, i32) {
    %c0_i32 = arith.constant 0 : i32
    %c0_i32_0 = arith.constant 0 : i32
    %c0_i32_1 = arith.constant 0 : i32
    %c0_i32_2 = arith.constant 0 : i32
    return %c0_i32, %c0_i32_0, %c0_i32_1 : i32, i32, i32
  }
  func.func @transform_22(%arg0: i32) -> (i32, i32, i32) {
    %c0_i32 = arith.constant 0 : i32
    %c0_i32_0 = arith.constant 0 : i32
    %c0_i32_1 = arith.constant 0 : i32
    %c0_i32_2 = arith.constant 0 : i32
    return %c0_i32, %c0_i32_0, %c0_i32_1 : i32, i32, i32
  }
  func.func @transform_23(%arg0: i32) -> (i32, i32, i32) {
    %c0_i32 = arith.constant 0 : i32
    %c0_i32_0 = arith.constant 0 : i32
    %c0_i32_1 = arith.constant 0 : i32
    %c0_i32_2 = arith.constant 0 : i32
    return %c0_i32, %c0_i32_0, %c0_i32_1 : i32, i32, i32
  }
  func.func @transform_24(%arg0: i32) -> (i32, i32, i32) {
    %c0_i32 = arith.constant 0 : i32
    %c0_i32_0 = arith.constant 0 : i32
    %c0_i32_1 = arith.constant 0 : i32
    %c0_i32_2 = arith.constant 0 : i32
    return %c0_i32, %c0_i32_0, %c0_i32_1 : i32, i32, i32
  }
  func.func @transform_25(%arg0: i32) -> (i32, i32) {
    %c0_i32 = arith.constant 0 : i32
    %c0_i32_0 = arith.constant 0 : i32
    %c0_i32_1 = arith.constant 0 : i32
    return %c0_i32, %c0_i32_0 : i32, i32
  }
  func.func @transform_26(%arg0: i32) -> (i32, i32) {
    %c0_i32 = arith.constant 0 : i32
    %c0_i32_0 = arith.constant 0 : i32
    %c0_i32_1 = arith.constant 0 : i32
    return %c0_i32, %c0_i32_0 : i32, i32
  }
  func.func @transform_27(%arg0: i32) -> (i32, i32) {
    %c0_i32 = arith.constant 0 : i32
    %c0_i32_0 = arith.constant 0 : i32
    %c0_i32_1 = arith.constant 0 : i32
    return %c0_i32, %c0_i32_0 : i32, i32
  }
  func.func @transform_28(%arg0: i32) -> (i32, i32) {
    %c0_i32 = arith.constant 0 : i32
    %c0_i32_0 = arith.constant 0 : i32
    %c0_i32_1 = arith.constant 0 : i32
    return %c0_i32, %c0_i32_0 : i32, i32
  }
  func.func @transform_29(%arg0: i32) -> (i32, i32) {
    %c0_i32 = arith.constant 0 : i32
    %c0_i32_0 = arith.constant 0 : i32
    %c0_i32_1 = arith.constant 0 : i32
    return %c0_i32, %c0_i32_0 : i32, i32
  }
  func.func @transform_30(%arg0: i32) -> (i32, i32) {
    %c0_i32 = arith.constant 0 : i32
    %c0_i32_0 = arith.constant 0 : i32
    %c0_i32_1 = arith.constant 0 : i32
    return %c0_i32, %c0_i32_0 : i32, i32
  }
  func.func @transform_31(%arg0: i32) -> (i32, i32) {
    %c0_i32 = arith.constant 0 : i32
    %c0_i32_0 = arith.constant 0 : i32
    %c0_i32_1 = arith.constant 0 : i32
    return %c0_i32, %c0_i32_0 : i32, i32
  }
  func.func @transform_32(%arg0: i32) -> (i32, i32) {
    %c0_i32 = arith.constant 0 : i32
    %c0_i32_0 = arith.constant 0 : i32
    %c0_i32_1 = arith.constant 0 : i32
    return %c0_i32, %c0_i32_0 : i32, i32
  }
  func.func @transform_33(%arg0: i32) -> (i32, i32) {
    %c0_i32 = arith.constant 0 : i32
    %c0_i32_0 = arith.constant 0 : i32
    %c0_i32_1 = arith.constant 0 : i32
    return %c0_i32, %c0_i32_0 : i32, i32
  }
  func.func @transform_34(%arg0: i32) -> (i32, i32, i32) {
    %c0_i32 = arith.constant 0 : i32
    %c0_i32_0 = arith.constant 0 : i32
    %c0_i32_1 = arith.constant 0 : i32
    return %arg0, %c0_i32, %c0_i32_0 : i32, i32, i32
  }
}

</mosaic_0001>

<llo_original>
// kernel: _forward_impl.1
$region0: #{_forward_impl.1}
  #allocation0 [shape = 'u32[]', space=smem, size = 0x4, offset = 0x4, fixed_abs, tag = 'smem constant byte address 0x4 - core index']
  #allocation1 [shape = 'u32[144,128]{1,0:T(1,128)}', space=vmem, size = 0x12000, scoped, tag = 'internal scratch']
  %s0 = inlined_call_operand.smem [shape: u32[35], index: -1, kind: input, shape index: {}]
  %s1 = sld [smem:[%s0]]
  %s2 = scalar_lea.smem %s0, 1
  %s3 = sld [smem:[%s2]]
  %s4 = scalar_lea.smem %s0, 2
  %s5 = sld [smem:[%s4]]
  %s6 = scalar_lea.smem %s0, 3
  %s7 = sld [smem:[%s6]]
  %s8 = scalar_lea.smem %s0, 4
  %s9 = sld [smem:[%s8]]
  %s10 = scalar_lea.smem %s0, 5
  %s11 = sld [smem:[%s10]]
  %s12 = scalar_lea.smem %s0, 6
  %s13 = sld [smem:[%s12]]
  %s14 = scalar_lea.smem %s0, 7
  %s15 = sld [smem:[%s14]]
  %s16 = scalar_lea.smem %s0, 8
  %s17 = sld [smem:[%s16]]
  %s18 = scalar_lea.smem %s0, 9
  %s19 = sld [smem:[%s18]]
  %s20 = scalar_lea.smem %s0, 10
  %s21 = sld [smem:[%s20]]
  %s22 = scalar_lea.smem %s0, 11
  %s23 = sld [smem:[%s22]]
  %s24 = scalar_lea.smem %s0, 12
  %s25 = sld [smem:[%s24]]
  %s26 = scalar_lea.smem %s0, 13
  %s27 = sld [smem:[%s26]]
  %s28 = scalar_lea.smem %s0, 14
  %s29 = sld [smem:[%s28]]
  %s30 = scalar_lea.smem %s0, 15
  %s31 = sld [smem:[%s30]]
  %s32 = scalar_lea.smem %s0, 16
  %s33 = sld [smem:[%s32]]
  %s34 = scalar_lea.smem %s0, 17
  %s35 = sld [smem:[%s34]]
  %s36 = scalar_lea.smem %s0, 18
  %s37 = sld [smem:[%s36]]
  %s38 = scalar_lea.smem %s0, 19
  %s39 = sld [smem:[%s38]]
  %s40 = scalar_lea.smem %s0, 20
  %s41 = sld [smem:[%s40]]
  %s42 = scalar_lea.smem %s0, 21
  %s43 = sld [smem:[%s42]]
  %s44 = scalar_lea.smem %s0, 22
  %s45 = sld [smem:[%s44]]
  %s46 = scalar_lea.smem %s0, 23
  %s47 = sld [smem:[%s46]]
  %s48 = scalar_lea.smem %s0, 24
  %s49 = sld [smem:[%s48]]
  %s50 = scalar_lea.smem %s0, 25
  %s51 = sld [smem:[%s50]]
  %s52 = scalar_lea.smem %s0, 26
  %s53 = sld [smem:[%s52]]
  %s54 = scalar_lea.smem %s0, 27
  %s55 = sld [smem:[%s54]]
  %s56 = scalar_lea.smem %s0, 28
  %s57 = sld [smem:[%s56]]
  %s58 = scalar_lea.smem %s0, 29
  %s59 = sld [smem:[%s58]]
  %s60 = scalar_lea.smem %s0, 30
  %s61 = sld [smem:[%s60]]
  %s62 = scalar_lea.smem %s0, 31
  %s63 = sld [smem:[%s62]]
  %s64 = scalar_lea.smem %s0, 32
  %s65 = sld [smem:[%s64]]
  %s66 = scalar_lea.smem %s0, 33
  %s67 = sld [smem:[%s66]]
  %s68 = scalar_lea.smem %s0, 34
  %s69 = sld [smem:[%s68]]
  %s70 = sld [smem:[#allocation0]]
  $region146: #{_forward_impl.1} parent=0
    _
  %s72 = ssub.s32 1, %s70
  %s73 = scalar_select 0, %s72, %s70
  // Predicated region
  $region2: #{_forward_impl.1} parent=0 // pred_check
    _
  $region3: #{_forward_impl.1} parent=0 // pred_check_branch
    %75 = sbr.rel (0) target = $region5
  $region4: #{_forward_impl.1} parent=0 // pred_region
    _
  $region5: #{_forward_impl.1} parent=0 // pred_fallthru
    _
  // Predicated region
  $region6: #{_forward_impl.1} parent=0 // pred_check
    _
  $region7: #{_forward_impl.1} parent=0 // pred_check_branch
    %77 = sbr.rel (0) target = $region9
  $region8: #{_forward_impl.1} parent=0 // pred_region
    _
  $region9: #{_forward_impl.1} parent=0 // pred_fallthru
    _
  // Predicated region
  $region10: #{_forward_impl.1} parent=0 // pred_check
    _
  $region11: #{_forward_impl.1} parent=0 // pred_check_branch
    %79 = sbr.rel (0) target = $region13
  $region12: #{_forward_impl.1} parent=0 // pred_region
    _
  $region13: #{_forward_impl.1} parent=0 // pred_fallthru
    _
  // Predicated region
  $region14: #{_forward_impl.1} parent=0 // pred_check
    _
  $region15: #{_forward_impl.1} parent=0 // pred_check_branch
    %81 = sbr.rel (0) target = $region17
  $region16: #{_forward_impl.1} parent=0 // pred_region
    _
  $region17: #{_forward_impl.1} parent=0 // pred_fallthru
    _
  // Predicated region
  $region18: #{_forward_impl.1} parent=0 // pred_check
    _
  $region19: #{_forward_impl.1} parent=0 // pred_check_branch
    %83 = sbr.rel (0) target = $region21
  $region20: #{_forward_impl.1} parent=0 // pred_region
    _
  $region21: #{_forward_impl.1} parent=0 // pred_fallthru
    _
  // Predicated region
  $region22: #{_forward_impl.1} parent=0 // pred_check
    _
  $region23: #{_forward_impl.1} parent=0 // pred_check_branch
    %85 = sbr.rel (0) target = $region25
  $region24: #{_forward_impl.1} parent=0 // pred_region
    _
  $region25: #{_forward_impl.1} parent=0 // pred_fallthru
    _
  // Predicated region
  $region26: #{_forward_impl.1} parent=0 // pred_check
    _
  $region27: #{_forward_impl.1} parent=0 // pred_check_branch
    %87 = sbr.rel (0) target = $region29
  $region28: #{_forward_impl.1} parent=0 // pred_region
    _
  $region29: #{_forward_impl.1} parent=0 // pred_fallthru
    _
  // Predicated region
  $region30: #{_forward_impl.1} parent=0 // pred_check
    _
  $region31: #{_forward_impl.1} parent=0 // pred_check_branch
    %89 = sbr.rel (0) target = $region33
  $region32: #{_forward_impl.1} parent=0 // pred_region
    _
  $region33: #{_forward_impl.1} parent=0 // pred_fallthru
    _
  // Predicated region
  $region34: #{_forward_impl.1} parent=0 // pred_check
    _
  $region35: #{_forward_impl.1} parent=0 // pred_check_branch
    %91 = sbr.rel (0) target = $region37
  $region36: #{_forward_impl.1} parent=0 // pred_region
    _
  $region37: #{_forward_impl.1} parent=0 // pred_fallthru
    _
  // Predicated region
  $region38: #{_forward_impl.1} parent=0 // pred_check
    _
  $region39: #{_forward_impl.1} parent=0 // pred_check_branch
    %93 = sbr.rel (0) target = $region41
  $region40: #{_forward_impl.1} parent=0 // pred_region
    _
  $region41: #{_forward_impl.1} parent=0 // pred_fallthru
    _
  // Predicated region
  $region42: #{_forward_impl.1} parent=0 // pred_check
    _
  $region43: #{_forward_impl.1} parent=0 // pred_check_branch
    %95 = sbr.rel (0) target = $region45
  $region44: #{_forward_impl.1} parent=0 // pred_region
    _
  $region45: #{_forward_impl.1} parent=0 // pred_fallthru
    _
  // Predicated region
  $region46: #{_forward_impl.1} parent=0 // pred_check
    _
  $region47: #{_forward_impl.1} parent=0 // pred_check_branch
    %97 = sbr.rel (0) target = $region49
  $region48: #{_forward_impl.1} parent=0 // pred_region
    _
  $region49: #{_forward_impl.1} parent=0 // pred_fallthru
    _
  // Predicated region
  $region50: #{_forward_impl.1} parent=0 // pred_check
    _
  $region51: #{_forward_impl.1} parent=0 // pred_check_branch
    %99 = sbr.rel (0) target = $region53
  $region52: #{_forward_impl.1} parent=0 // pred_region
    _
  $region53: #{_forward_impl.1} parent=0 // pred_fallthru
    _
  // Predicated region
  $region54: #{_forward_impl.1} parent=0 // pred_check
    _
  $region55: #{_forward_impl.1} parent=0 // pred_check_branch
    %101 = sbr.rel (0) target = $region57
  $region56: #{_forward_impl.1} parent=0 // pred_region
    _
  $region57: #{_forward_impl.1} parent=0 // pred_fallthru
    _
  // Predicated region
  $region58: #{_forward_impl.1} parent=0 // pred_check
    _
  $region59: #{_forward_impl.1} parent=0 // pred_check_branch
    %103 = sbr.rel (0) target = $region61
  $region60: #{_forward_impl.1} parent=0 // pred_region
    _
  $region61: #{_forward_impl.1} parent=0 // pred_fallthru
    _
  // Predicated region
  $region62: #{_forward_impl.1} parent=0 // pred_check
    _
  $region63: #{_forward_impl.1} parent=0 // pred_check_branch
    %105 = sbr.rel (0) target = $region65
  $region64: #{_forward_impl.1} parent=0 // pred_region
    _
  $region65: #{_forward_impl.1} parent=0 // pred_fallthru
    _
  // Predicated region
  $region66: #{_forward_impl.1} parent=0 // pred_check
    _
  $region67: #{_forward_impl.1} parent=0 // pred_check_branch
    %107 = sbr.rel (0) target = $region69
  $region68: #{_forward_impl.1} parent=0 // pred_region
    _
  $region69: #{_forward_impl.1} parent=0 // pred_fallthru
    _
  // Predicated region
  $region70: #{_forward_impl.1} parent=0 // pred_check
    _
  $region71: #{_forward_impl.1} parent=0 // pred_check_branch
    %109 = sbr.rel (0) target = $region73
  $region72: #{_forward_impl.1} parent=0 // pred_region
    _
  $region73: #{_forward_impl.1} parent=0 // pred_fallthru
    _
  // Predicated region
  $region74: #{_forward_impl.1} parent=0 // pred_check
    _
  $region75: #{_forward_impl.1} parent=0 // pred_check_branch
    %111 = sbr.rel (0) target = $region77
  $region76: #{_forward_impl.1} parent=0 // pred_region
    _
  $region77: #{_forward_impl.1} parent=0 // pred_fallthru
    _
  // Predicated region
  $region78: #{_forward_impl.1} parent=0 // pred_check
    _
  $region79: #{_forward_impl.1} parent=0 // pred_check_branch
    %113 = sbr.rel (0) target = $region81
  $region80: #{_forward_impl.1} parent=0 // pred_region
    _
  $region81: #{_forward_impl.1} parent=0 // pred_fallthru
    _
  // Predicated region
  $region82: #{_forward_impl.1} parent=0 // pred_check
    _
  $region83: #{_forward_impl.1} parent=0 // pred_check_branch
    %115 = sbr.rel (0) target = $region85
  $region84: #{_forward_impl.1} parent=0 // pred_region
    _
  $region85: #{_forward_impl.1} parent=0 // pred_fallthru
    _
  // Predicated region
  $region86: #{_forward_impl.1} parent=0 // pred_check
    _
  $region87: #{_forward_impl.1} parent=0 // pred_check_branch
    %117 = sbr.rel (0) target = $region89
  $region88: #{_forward_impl.1} parent=0 // pred_region
    _
  $region89: #{_forward_impl.1} parent=0 // pred_fallthru
    _
  // Predicated region
  $region90: #{_forward_impl.1} parent=0 // pred_check
    _
  $region91: #{_forward_impl.1} parent=0 // pred_check_branch
    %119 = sbr.rel (0) target = $region93
  $region92: #{_forward_impl.1} parent=0 // pred_region
    _
  $region93: #{_forward_impl.1} parent=0 // pred_fallthru
    _
  // Predicated region
  $region94: #{_forward_impl.1} parent=0 // pred_check
    _
  $region95: #{_forward_impl.1} parent=0 // pred_check_branch
    %121 = sbr.rel (0) target = $region97
  $region96: #{_forward_impl.1} parent=0 // pred_region
    _
  $region97: #{_forward_impl.1} parent=0 // pred_fallthru
    _
  // Predicated region
  $region98: #{_forward_impl.1} parent=0 // pred_check
    _
  $region99: #{_forward_impl.1} parent=0 // pred_check_branch
    %123 = sbr.rel (0) target = $region101
  $region100: #{_forward_impl.1} parent=0 // pred_region
    _
  $region101: #{_forward_impl.1} parent=0 // pred_fallthru
    _
  // Predicated region
  $region102: #{_forward_impl.1} parent=0 // pred_check
    _
  $region103: #{_forward_impl.1} parent=0 // pred_check_branch
    %125 = sbr.rel (0) target = $region105
  $region104: #{_forward_impl.1} parent=0 // pred_region
    _
  $region105: #{_forward_impl.1} parent=0 // pred_fallthru
    _
  // Predicated region
  $region106: #{_forward_impl.1} parent=0 // pred_check
    _
  $region107: #{_forward_impl.1} parent=0 // pred_check_branch
    %127 = sbr.rel (0) target = $region109
  $region108: #{_forward_impl.1} parent=0 // pred_region
    _
  $region109: #{_forward_impl.1} parent=0 // pred_fallthru
    _
  // Predicated region
  $region110: #{_forward_impl.1} parent=0 // pred_check
    _
  $region111: #{_forward_impl.1} parent=0 // pred_check_branch
    %129 = sbr.rel (0) target = $region113
  $region112: #{_forward_impl.1} parent=0 // pred_region
    _
  $region113: #{_forward_impl.1} parent=0 // pred_fallthru
    _
  // Predicated region
  $region114: #{_forward_impl.1} parent=0 // pred_check
    _
  $region115: #{_forward_impl.1} parent=0 // pred_check_branch
    %131 = sbr.rel (0) target = $region117
  $region116: #{_forward_impl.1} parent=0 // pred_region
    _
  $region117: #{_forward_impl.1} parent=0 // pred_fallthru
    _
  // Predicated region
  $region118: #{_forward_impl.1} parent=0 // pred_check
    _
  $region119: #{_forward_impl.1} parent=0 // pred_check_branch
    %133 = sbr.rel (0) target = $region121
  $region120: #{_forward_impl.1} parent=0 // pred_region
    _
  $region121: #{_forward_impl.1} parent=0 // pred_fallthru
    _
  // Predicated region
  $region122: #{_forward_impl.1} parent=0 // pred_check
    _
  $region123: #{_forward_impl.1} parent=0 // pred_check_branch
    %135 = sbr.rel (0) target = $region125
  $region124: #{_forward_impl.1} parent=0 // pred_region
    _
  $region125: #{_forward_impl.1} parent=0 // pred_fallthru
    _
  // Predicated region
  $region126: #{_forward_impl.1} parent=0 // pred_check
    _
  $region127: #{_forward_impl.1} parent=0 // pred_check_branch
    %137 = sbr.rel (0) target = $region129
  $region128: #{_forward_impl.1} parent=0 // pred_region
    _
  $region129: #{_forward_impl.1} parent=0 // pred_fallthru
    _
  // Predicated region
  $region130: #{_forward_impl.1} parent=0 // pred_check
    _
  $region131: #{_forward_impl.1} parent=0 // pred_check_branch
    %139 = sbr.rel (0) target = $region133
  $region132: #{_forward_impl.1} parent=0 // pred_region
    _
  $region133: #{_forward_impl.1} parent=0 // pred_fallthru
    _
  // Predicated region
  $region134: #{_forward_impl.1} parent=0 // pred_check
    _
  $region135: #{_forward_impl.1} parent=0 // pred_check_branch
    %141 = sbr.rel (0) target = $region137
  $region136: #{_forward_impl.1} parent=0 // pred_region
    _
  $region137: #{_forward_impl.1} parent=0 // pred_fallthru
    _
  %v142 = vld [vmem:[%s1] sm:$0xff]
  %v143 = vld [vmem:[%s1 + $0x8] sm:$0xff]
  %v144 = vlaneseq
  %v145 = vand.u32 %v144, 127
  %146 = vset.pattern.permute.xlu0 0
  %147 = vperm.xlu0 %146, %v142
  %v148 = vpop.permute.xlu0 %147
  %149 = vset.pattern.permute.xlu0 0
  %150 = vperm.xlu0 %149, %v143
  %v151 = vpop.permute.xlu0 %150
  %vm152 = vcmp.eq.s32.totalorder %v145, %v148
  %vm153 = vcmp.eq.s32.totalorder %v145, %v151
  %v154 = vsel %vm152, 1, 0
  %v155 = vsel %vm153, 1, 0
  %v156 = vcvt.s32.f32 %v154
  %v157 = vcvt.s32.f32 %v155
  %158 = vset.pattern.permute.xlu0 1
  %159 = vperm.xlu0 %158, %v142
  %v160 = vpop.permute.xlu0 %159
  %161 = vset.pattern.permute.xlu0 1
  %162 = vperm.xlu0 %161, %v143
  %v163 = vpop.permute.xlu0 %162
  %vm164 = vcmp.eq.s32.totalorder %v145, %v160
  %vm165 = vcmp.eq.s32.totalorder %v145, %v163
  %v166 = vsel %vm164, 1, 0
  %v167 = vsel %vm165, 1, 0
  %v168 = vcvt.s32.f32 %v166
  %v169 = vcvt.s32.f32 %v167
  %v170 = vadd.f32 %v156, %v168
  %v171 = vadd.f32 %v157, %v169
  %v172 = vld [vmem:[%s3] sm:$0xff]
  %v173 = vld [vmem:[%s3 + $0x8] sm:$0xff]
  %v174 = vld [vmem:[%s3 + $0x10] sm:$0xff]
  %v175 = vld [vmem:[%s3 + $0x18] sm:$0xff]
  %v176 = vld [vmem:[%s3 + $0x20] sm:$0xff]
  %v177 = vld [vmem:[%s3 + $0x28] sm:$0xff]
  %v178 = vld [vmem:[%s3 + $0x30] sm:$0xff]
  %v179 = vld [vmem:[%s3 + $0x38] sm:$0x3]
  %vm180 = vcmask 474112
  %v182 = vsel %vm180, %v170, 0
  %v185 = vsel %vm180, %v171, 0
  %vm187 = vcmask 1041408
  %v189 = vsel %vm187, %v179, 0
  %191 = vmatprep.subr.mxu0 0.0
  %192 = vmatpush1.msra.mxu0 %v172
  %193 = vmatprep.subr.mxu0 0.0
  %194 = vmatpush1.msra.mxu0 %v173
  %195 = vmatprep.subr.mxu0 0.0
  %196 = vmatpush1.msra.mxu0 %v174
  %197 = vmatprep.subr.mxu0 0.0
  %198 = vmatpush1.msra.mxu0 %v175
  %199 = vmatprep.subr.mxu0 0.0
  %200 = vmatpush1.msra.mxu0 %v176
  %201 = vmatprep.subr.mxu0 0.0
  %202 = vmatpush1.msra.mxu0 %v177
  %203 = vmatprep.subr.mxu0 0.0
  %204 = vmatpush1.msra.mxu0 %v178
  %205 = vmatprep.subr.mxu0 0.0
  %206 = vmatpush1.msra.mxu0 %v189
  %207 = vmatprep.subr.mxu0 0.0
  %208 = vmatpush1.msra.mxu0 0.0
  %209 = vmatprep.subr.mxu0 0.0
  %210 = vmatpush1.msra.mxu0 0.0
  %211 = vmatprep.subr.mxu0 0.0
  %212 = vmatpush1.msra.mxu0 0.0
  %213 = vmatprep.subr.mxu0 0.0
  %214 = vmatpush1.msra.mxu0 0.0
  %215 = vmatprep.subr.mxu0 0.0
  %216 = vmatpush1.msra.mxu0 0.0
  %217 = vmatprep.subr.mxu0 0.0
  %218 = vmatpush1.msra.mxu0 0.0
  %219 = vmatprep.subr.mxu0 0.0
  %220 = vmatpush1.msra.mxu0 0.0
  %221 = vmatprep.subr.mxu0 0.0
  %222 = vmatpush1.msra.mxu0 0.0
  %223 = vmatprep.subr.mxu0 0.0
  %224 = vmatpush1.msra.mxu0 0.0
  %225 = vmatprep.subr.mxu0 0.0
  %226 = vmatpush1.msra.mxu0 0.0
  %227 = vmatprep.subr.mxu0 0.0
  %228 = vmatpush1.msra.mxu0 0.0
  %229 = vmatprep.subr.mxu0 0.0
  %230 = vmatpush1.msra.mxu0 0.0
  %231 = vmatprep.subr.mxu0 0.0
  %232 = vmatpush1.msra.mxu0 0.0
  %233 = vmatprep.subr.mxu0 0.0
  %234 = vmatpush1.msra.mxu0 0.0
  %235 = vmatprep.subr.mxu0 0.0
  %236 = vmatpush1.msra.mxu0 0.0
  %237 = vmatprep.subr.mxu0 0.0
  %238 = vmatpush1.msra.mxu0 0.0
  %239 = vmatprep.subr.mxu0 0.0
  %240 = vmatpush1.msra.mxu0 0.0
  %241 = vmatprep.subr.mxu0 0.0
  %242 = vmatpush1.msra.mxu0 0.0
  %243 = vmatprep.subr.mxu0 0.0
  %244 = vmatpush1.msra.mxu0 0.0
  %245 = vmatprep.subr.mxu0 0.0
  %246 = vmatpush1.msra.mxu0 0.0
  %247 = vmatprep.subr.mxu0 0.0
  %248 = vmatpush1.msra.mxu0 0.0
  %249 = vmatprep.subr.mxu0 0.0
  %250 = vmatpush1.msra.mxu0 0.0
  %251 = vmatprep.subr.mxu0 0.0
  %252 = vmatpush1.msra.mxu0 0.0
  %253 = vmatprep.subr.mxu0 0.0
  %254 = vmatpush1.msra.mxu0 0.0
  %255 = vmatprep.mubr.f32.mxu0 0.0
  %256 = vmatmul.mubr.f32.gmra.mrb[0].mxu0 %v182
  %v257 = vpop.f32.mrb[0].mxu0
  %v258 = vadd.f32 0.0, %v257
  %v259 = vpop.f32.mrb[0].mxu0
  %260 = vmatprep.mubr.f32.mxu0 0.0
  %261 = vmatmul.mubr.f32.gmra.mrb[0].mxu0 %v185
  %v262 = vpop.f32.mrb[0].mxu0
  %v263 = vadd.f32 0.0, %v262
  %v264 = vpop.f32.mrb[0].mxu0
  %265 = vdwg.mxu0
  %v266 = vld [vmem:[%s5] sm:$0xff]
  %v267 = vld [vmem:[%s5 + $0x8] sm:$0xff]
  %v268 = vld [vmem:[%s5 + $0x10] sm:$0xff]
  %v269 = vld [vmem:[%s5 + $0x18] sm:$0xff]
  %v270 = vld [vmem:[%s7] sm:$0x1]
  %v272 = vlaneseq
  %v273 = vshrl.u32 %v272, 7
  %v274 = vsub.s32 0, %v273
  %v275 = vrot.slane %v270, %v274
  %vm277 = vcmask 261120
  %v279 = vsel %vm277, %v258, 0
  %v282 = vsel %vm277, %v263, 0
  %284 = vmatprep.subr.mxu0 0.0
  %285 = vmatpush1.msra.mxu0 %v266
  %286 = vmatprep.subr.mxu0 0.0
  %287 = vmatpush1.msra.mxu0 %v267
  %288 = vmatprep.subr.mxu0 0.0
  %289 = vmatpush1.msra.mxu0 %v268
  %290 = vmatprep.subr.mxu0 0.0
  %291 = vmatpush1.msra.mxu0 %v269
  %292 = vmatprep.subr.mxu0 0.0
  %293 = vmatpush1.msra.mxu0 0.0
  %294 = vmatprep.subr.mxu0 0.0
  %295 = vmatpush1.msra.mxu0 0.0
  %296 = vmatprep.subr.mxu0 0.0
  %297 = vmatpush1.msra.mxu0 0.0
  %298 = vmatprep.subr.mxu0 0.0
  %299 = vmatpush1.msra.mxu0 0.0
  %300 = vmatprep.subr.mxu0 0.0
  %301 = vmatpush1.msra.mxu0 0.0
  %302 = vmatprep.subr.mxu0 0.0
  %303 = vmatpush1.msra.mxu0 0.0
  %304 = vmatprep.subr.mxu0 0.0
  %305 = vmatpush1.msra.mxu0 0.0
  %306 = vmatprep.subr.mxu0 0.0
  %307 = vmatpush1.msra.mxu0 0.0
  %308 = vmatprep.subr.mxu0 0.0
  %309 = vmatpush1.msra.mxu0 0.0
  %310 = vmatprep.subr.mxu0 0.0
  %311 = vmatpush1.msra.mxu0 0.0
  %312 = vmatprep.subr.mxu0 0.0
  %313 = vmatpush1.msra.mxu0 0.0
  %314 = vmatprep.subr.mxu0 0.0
  %315 = vmatpush1.msra.mxu0 0.0
  %316 = vmatprep.subr.mxu0 0.0
  %317 = vmatpush1.msra.mxu0 0.0
  %318 = vmatprep.subr.mxu0 0.0
  %319 = vmatpush1.msra.mxu0 0.0
  %320 = vmatprep.subr.mxu0 0.0
  %321 = vmatpush1.msra.mxu0 0.0
  %322 = vmatprep.subr.mxu0 0.0
  %323 = vmatpush1.msra.mxu0 0.0
  %324 = vmatprep.subr.mxu0 0.0
  %325 = vmatpush1.msra.mxu0 0.0
  %326 = vmatprep.subr.mxu0 0.0
  %327 = vmatpush1.msra.mxu0 0.0
  %328 = vmatprep.subr.mxu0 0.0
  %329 = vmatpush1.msra.mxu0 0.0
  %330 = vmatprep.subr.mxu0 0.0
  %331 = vmatpush1.msra.mxu0 0.0
  %332 = vmatprep.subr.mxu0 0.0
  %333 = vmatpush1.msra.mxu0 0.0
  %334 = vmatprep.subr.mxu0 0.0
  %335 = vmatpush1.msra.mxu0 0.0
  %336 = vmatprep.subr.mxu0 0.0
  %337 = vmatpush1.msra.mxu0 0.0
  %338 = vmatprep.subr.mxu0 0.0
  %339 = vmatpush1.msra.mxu0 0.0
  %340 = vmatprep.subr.mxu0 0.0
  %341 = vmatpush1.msra.mxu0 0.0
  %342 = vmatprep.subr.mxu0 0.0
  %343 = vmatpush1.msra.mxu0 0.0
  %344 = vmatprep.subr.mxu0 0.0
  %345 = vmatpush1.msra.mxu0 0.0
  %346 = vmatprep.subr.mxu0 0.0
  %347 = vmatpush1.msra.mxu0 0.0
  %348 = vmatprep.mubr.f32.mxu0 0.0
  %349 = vmatmul.mubr.f32.gmra.mrb[0].mxu0 %v279
  %v350 = vpop.f32.mrb[0].mxu0
  %v351 = vadd.f32 %v275, %v350
  %v352 = vpop.f32.mrb[0].mxu0
  %353 = vmatprep.mubr.f32.mxu0 0.0
  %354 = vmatmul.mubr.f32.gmra.mrb[0].mxu0 %v282
  %v355 = vpop.f32.mrb[0].mxu0
  %v356 = vadd.f32 %v275, %v355
  %v357 = vpop.f32.mrb[0].mxu0
  %358 = vdwg.mxu0
  %v359 = vld [vmem:[%s9] sm:$0xff]
  %v360 = vld [vmem:[%s9 + $0x8] sm:$0xff]
  %v361 = vld [vmem:[%s9 + $0x10] sm:$0xff]
  %v362 = vld [vmem:[%s9 + $0x18] sm:$0xff]
  %v363 = vld [vmem:[%s11] sm:$0x1]
  %v365 = vlaneseq
  %v366 = vshrl.u32 %v365, 7
  %v367 = vsub.s32 0, %v366
  %v368 = vrot.slane %v363, %v367
  %370 = vmatprep.subr.mxu0 0.0
  %371 = vmatpush1.msra.mxu0 %v359
  %372 = vmatprep.subr.mxu0 0.0
  %373 = vmatpush1.msra.mxu0 %v360
  %374 = vmatprep.subr.mxu0 0.0
  %375 = vmatpush1.msra.mxu0 %v361
  %376 = vmatprep.subr.mxu0 0.0
  %377 = vmatpush1.msra.mxu0 %v362
  %378 = vmatprep.subr.mxu0 0.0
  %379 = vmatpush1.msra.mxu0 0.0
  %380 = vmatprep.subr.mxu0 0.0
  %381 = vmatpush1.msra.mxu0 0.0
  %382 = vmatprep.subr.mxu0 0.0
  %383 = vmatpush1.msra.mxu0 0.0
  %384 = vmatprep.subr.mxu0 0.0
  %385 = vmatpush1.msra.mxu0 0.0
  %386 = vmatprep.subr.mxu0 0.0
  %387 = vmatpush1.msra.mxu0 0.0
  %388 = vmatprep.subr.mxu0 0.0
  %389 = vmatpush1.msra.mxu0 0.0
  %390 = vmatprep.subr.mxu0 0.0
  %391 = vmatpush1.msra.mxu0 0.0
  %392 = vmatprep.subr.mxu0 0.0
  %393 = vmatpush1.msra.mxu0 0.0
  %394 = vmatprep.subr.mxu0 0.0
  %395 = vmatpush1.msra.mxu0 0.0
  %396 = vmatprep.subr.mxu0 0.0
  %397 = vmatpush1.msra.mxu0 0.0
  %398 = vmatprep.subr.mxu0 0.0
  %399 = vmatpush1.msra.mxu0 0.0
  %400 = vmatprep.subr.mxu0 0.0
  %401 = vmatpush1.msra.mxu0 0.0
  %402 = vmatprep.subr.mxu0 0.0
  %403 = vmatpush1.msra.mxu0 0.0
  %404 = vmatprep.subr.mxu0 0.0
  %405 = vmatpush1.msra.mxu0 0.0
  %406 = vmatprep.subr.mxu0 0.0
  %407 = vmatpush1.msra.mxu0 0.0
  %408 = vmatprep.subr.mxu0 0.0
  %409 = vmatpush1.msra.mxu0 0.0
  %410 = vmatprep.subr.mxu0 0.0
  %411 = vmatpush1.msra.mxu0 0.0
  %412 = vmatprep.subr.mxu0 0.0
  %413 = vmatpush1.msra.mxu0 0.0
  %414 = vmatprep.subr.mxu0 0.0
  %415 = vmatpush1.msra.mxu0 0.0
  %416 = vmatprep.subr.mxu0 0.0
  %417 = vmatpush1.msra.mxu0 0.0
  %418 = vmatprep.subr.mxu0 0.0
  %419 = vmatpush1.msra.mxu0 0.0
  %420 = vmatprep.subr.mxu0 0.0
  %421 = vmatpush1.msra.mxu0 0.0
  %422 = vmatprep.subr.mxu0 0.0
  %423 = vmatpush1.msra.mxu0 0.0
  %424 = vmatprep.subr.mxu0 0.0
  %425 = vmatpush1.msra.mxu0 0.0
  %426 = vmatprep.subr.mxu0 0.0
  %427 = vmatpush1.msra.mxu0 0.0
  %428 = vmatprep.subr.mxu0 0.0
  %429 = vmatpush1.msra.mxu0 0.0
  %430 = vmatprep.subr.mxu0 0.0
  %431 = vmatpush1.msra.mxu0 0.0
  %432 = vmatprep.subr.mxu0 0.0
  %433 = vmatpush1.msra.mxu0 0.0
  %434 = vmatprep.mubr.f32.mxu0 0.0
  %435 = vmatmul.mubr.f32.gmra.mrb[0].mxu0 %v279
  %v436 = vpop.f32.mrb[0].mxu0
  %v437 = vadd.f32 %v368, %v436
  %v438 = vpop.f32.mrb[0].mxu0
  %439 = vmatprep.mubr.f32.mxu0 0.0
  %440 = vmatmul.mubr.f32.gmra.mrb[0].mxu0 %v282
  %v441 = vpop.f32.mrb[0].mxu0
  %v442 = vadd.f32 %v368, %v441
  %v443 = vpop.f32.mrb[0].mxu0
  %444 = vdwg.mxu0
  %v445 = vld [vmem:[%s13] sm:$0xff]
  %v446 = vld [vmem:[%s13 + $0x8] sm:$0xff]
  %v447 = vld [vmem:[%s13 + $0x10] sm:$0xff]
  %v448 = vld [vmem:[%s13 + $0x18] sm:$0xff]
  %v449 = vld [vmem:[%s15] sm:$0x1]
  %v451 = vlaneseq
  %v452 = vshrl.u32 %v451, 7
  %v453 = vsub.s32 0, %v452
  %v454 = vrot.slane %v449, %v453
  %456 = vmatprep.subr.mxu0 0.0
  %457 = vmatpush1.msra.mxu0 %v445
  %458 = vmatprep.subr.mxu0 0.0
  %459 = vmatpush1.msra.mxu0 %v446
  %460 = vmatprep.subr.mxu0 0.0
  %461 = vmatpush1.msra.mxu0 %v447
  %462 = vmatprep.subr.mxu0 0.0
  %463 = vmatpush1.msra.mxu0 %v448
  %464 = vmatprep.subr.mxu0 0.0
  %465 = vmatpush1.msra.mxu0 0.0
  %466 = vmatprep.subr.mxu0 0.0
  %467 = vmatpush1.msra.mxu0 0.0
  %468 = vmatprep.subr.mxu0 0.0
  %469 = vmatpush1.msra.mxu0 0.0
  %470 = vmatprep.subr.mxu0 0.0
  %471 = vmatpush1.msra.mxu0 0.0
  %472 = vmatprep.subr.mxu0 0.0
  %473 = vmatpush1.msra.mxu0 0.0
  %474 = vmatprep.subr.mxu0 0.0
  %475 = vmatpush1.msra.mxu0 0.0
  %476 = vmatprep.subr.mxu0 0.0
  %477 = vmatpush1.msra.mxu0 0.0
  %478 = vmatprep.subr.mxu0 0.0
  %479 = vmatpush1.msra.mxu0 0.0
  %480 = vmatprep.subr.mxu0 0.0
  %481 = vmatpush1.msra.mxu0 0.0
  %482 = vmatprep.subr.mxu0 0.0
  %483 = vmatpush1.msra.mxu0 0.0
  %484 = vmatprep.subr.mxu0 0.0
  %485 = vmatpush1.msra.mxu0 0.0
  %486 = vmatprep.subr.mxu0 0.0
  %487 = vmatpush1.msra.mxu0 0.0
  %488 = vmatprep.subr.mxu0 0.0
  %489 = vmatpush1.msra.mxu0 0.0
  %490 = vmatprep.subr.mxu0 0.0
  %491 = vmatpush1.msra.mxu0 0.0
  %492 = vmatprep.subr.mxu0 0.0
  %493 = vmatpush1.msra.mxu0 0.0
  %494 = vmatprep.subr.mxu0 0.0
  %495 = vmatpush1.msra.mxu0 0.0
  %496 = vmatprep.subr.mxu0 0.0
  %497 = vmatpush1.msra.mxu0 0.0
  %498 = vmatprep.subr.mxu0 0.0
  %499 = vmatpush1.msra.mxu0 0.0
  %500 = vmatprep.subr.mxu0 0.0
  %501 = vmatpush1.msra.mxu0 0.0
  %502 = vmatprep.subr.mxu0 0.0
  %503 = vmatpush1.msra.mxu0 0.0
  %504 = vmatprep.subr.mxu0 0.0
  %505 = vmatpush1.msra.mxu0 0.0
  %506 = vmatprep.subr.mxu0 0.0
  %507 = vmatpush1.msra.mxu0 0.0
  %508 = vmatprep.subr.mxu0 0.0
  %509 = vmatpush1.msra.mxu0 0.0
  %510 = vmatprep.subr.mxu0 0.0
  %511 = vmatpush1.msra.mxu0 0.0
  %512 = vmatprep.subr.mxu0 0.0
  %513 = vmatpush1.msra.mxu0 0.0
  %514 = vmatprep.subr.mxu0 0.0
  %515 = vmatpush1.msra.mxu0 0.0
  %516 = vmatprep.subr.mxu0 0.0
  %517 = vmatpush1.msra.mxu0 0.0
  %518 = vmatprep.subr.mxu0 0.0
  %519 = vmatpush1.msra.mxu0 0.0
  %520 = vmatprep.mubr.f32.mxu0 0.0
  %521 = vmatmul.mubr.f32.gmra.mrb[0].mxu0 %v279
  %v522 = vpop.f32.mrb[0].mxu0
  %v523 = vadd.f32 %v454, %v522
  %v524 = vpop.f32.mrb[0].mxu0
  %525 = vmatprep.mubr.f32.mxu0 0.0
  %526 = vmatmul.mubr.f32.gmra.mrb[0].mxu0 %v282
  %v527 = vpop.f32.mrb[0].mxu0
  %v528 = vadd.f32 %v454, %v527
  %v529 = vpop.f32.mrb[0].mxu0
  %530 = vdwg.mxu0
  %v531 = vmul.f32 %v351, 0.35355338
  %v532 = vmul.f32 %v356, 0.35355338
  %vm533 = vcmask 64512
  %v535 = vsel %vm533, %v531, 0
  %v538 = vsel %vm533, %v437, 0
  %540 = vmatprep.subr.mxu0 0.0
  %541 = vmatpush1.xpose.msra.mxu0 %v538
  %542 = vmatprep.subr.mxu0 0.0
  %543 = vmatpush1.xpose.msra.mxu0 0.0
  %544 = vmatprep.subr.mxu0 0.0
  %545 = vmatpush1.xpose.msra.mxu0 0.0
  %546 = vmatprep.subr.mxu0 0.0
  %547 = vmatpush1.xpose.msra.mxu0 0.0
  %548 = vmatprep.subr.mxu0 0.0
  %549 = vmatpush1.xpose.msra.mxu0 0.0
  %550 = vmatprep.subr.mxu0 0.0
  %551 = vmatpush1.xpose.msra.mxu0 0.0
  %552 = vmatprep.subr.mxu0 0.0
  %553 = vmatpush1.xpose.msra.mxu0 0.0
  %554 = vmatprep.subr.mxu0 0.0
  %555 = vmatpush1.xpose.msra.mxu0 0.0
  %556 = vmatprep.subr.mxu0 0.0
  %557 = vmatpush1.xpose.msra.mxu0 0.0
  %558 = vmatprep.subr.mxu0 0.0
  %559 = vmatpush1.xpose.msra.mxu0 0.0
  %560 = vmatprep.subr.mxu0 0.0
  %561 = vmatpush1.xpose.msra.mxu0 0.0
  %562 = vmatprep.subr.mxu0 0.0
  %563 = vmatpush1.xpose.msra.mxu0 0.0
  %564 = vmatprep.subr.mxu0 0.0
  %565 = vmatpush1.xpose.msra.mxu0 0.0
  %566 = vmatprep.subr.mxu0 0.0
  %567 = vmatpush1.xpose.msra.mxu0 0.0
  %568 = vmatprep.subr.mxu0 0.0
  %569 = vmatpush1.xpose.msra.mxu0 0.0
  %570 = vmatprep.subr.mxu0 0.0
  %571 = vmatpush1.xpose.msra.mxu0 0.0
  %572 = vmatprep.subr.mxu0 0.0
  %573 = vmatpush1.xpose.msra.mxu0 0.0
  %574 = vmatprep.subr.mxu0 0.0
  %575 = vmatpush1.xpose.msra.mxu0 0.0
  %576 = vmatprep.subr.mxu0 0.0
  %577 = vmatpush1.xpose.msra.mxu0 0.0
  %578 = vmatprep.subr.mxu0 0.0
  %579 = vmatpush1.xpose.msra.mxu0 0.0
  %580 = vmatprep.subr.mxu0 0.0
  %581 = vmatpush1.xpose.msra.mxu0 0.0
  %582 = vmatprep.subr.mxu0 0.0
  %583 = vmatpush1.xpose.msra.mxu0 0.0
  %584 = vmatprep.subr.mxu0 0.0
  %585 = vmatpush1.xpose.msra.mxu0 0.0
  %586 = vmatprep.subr.mxu0 0.0
  %587 = vmatpush1.xpose.msra.mxu0 0.0
  %588 = vmatprep.subr.mxu0 0.0
  %589 = vmatpush1.xpose.msra.mxu0 0.0
  %590 = vmatprep.subr.mxu0 0.0
  %591 = vmatpush1.xpose.msra.mxu0 0.0
  %592 = vmatprep.subr.mxu0 0.0
  %593 = vmatpush1.xpose.msra.mxu0 0.0
  %594 = vmatprep.subr.mxu0 0.0
  %595 = vmatpush1.xpose.msra.mxu0 0.0
  %596 = vmatprep.subr.mxu0 0.0
  %597 = vmatpush1.xpose.msra.mxu0 0.0
  %598 = vmatprep.subr.mxu0 0.0
  %599 = vmatpush1.xpose.msra.mxu0 0.0
  %600 = vmatprep.subr.mxu0 0.0
  %601 = vmatpush1.xpose.msra.mxu0 0.0
  %602 = vmatprep.subr.mxu0 0.0
  %603 = vmatpush1.xpose.msra.mxu0 0.0
  %604 = vmatprep.mubr.f32.mxu0 0.0
  %605 = vmatmul.mubr.f32.gmra.mrb[0].mxu0 %v535
  %v606 = vpop.f32.mrb[0].mxu0
  %v607 = vadd.f32 0.0, %v606
  %v608 = vpop.f32.mrb[0].mxu0
  %609 = vdwg.mxu0
  %v611 = vsel %vm533, %v532, 0
  %v614 = vsel %vm533, %v442, 0
  %616 = vmatprep.subr.mxu0 0.0
  %617 = vmatpush1.xpose.msra.mxu0 %v614
  %618 = vmatprep.subr.mxu0 0.0
  %619 = vmatpush1.xpose.msra.mxu0 0.0
  %620 = vmatprep.subr.mxu0 0.0
  %621 = vmatpush1.xpose.msra.mxu0 0.0
  %622 = vmatprep.subr.mxu0 0.0
  %623 = vmatpush1.xpose.msra.mxu0 0.0
  %624 = vmatprep.subr.mxu0 0.0
  %625 = vmatpush1.xpose.msra.mxu0 0.0
  %626 = vmatprep.subr.mxu0 0.0
  %627 = vmatpush1.xpose.msra.mxu0 0.0
  %628 = vmatprep.subr.mxu0 0.0
  %629 = vmatpush1.xpose.msra.mxu0 0.0
  %630 = vmatprep.subr.mxu0 0.0
  %631 = vmatpush1.xpose.msra.mxu0 0.0
  %632 = vmatprep.subr.mxu0 0.0
  %633 = vmatpush1.xpose.msra.mxu0 0.0
  %634 = vmatprep.subr.mxu0 0.0
  %635 = vmatpush1.xpose.msra.mxu0 0.0
  %636 = vmatprep.subr.mxu0 0.0
  %637 = vmatpush1.xpose.msra.mxu0 0.0
  %638 = vmatprep.subr.mxu0 0.0
  %639 = vmatpush1.xpose.msra.mxu0 0.0
  %640 = vmatprep.subr.mxu0 0.0
  %641 = vmatpush1.xpose.msra.mxu0 0.0
  %642 = vmatprep.subr.mxu0 0.0
  %643 = vmatpush1.xpose.msra.mxu0 0.0
  %644 = vmatprep.subr.mxu0 0.0
  %645 = vmatpush1.xpose.msra.mxu0 0.0
  %646 = vmatprep.subr.mxu0 0.0
  %647 = vmatpush1.xpose.msra.mxu0 0.0
  %648 = vmatprep.subr.mxu0 0.0
  %649 = vmatpush1.xpose.msra.mxu0 0.0
  %650 = vmatprep.subr.mxu0 0.0
  %651 = vmatpush1.xpose.msra.mxu0 0.0
  %652 = vmatprep.subr.mxu0 0.0
  %653 = vmatpush1.xpose.msra.mxu0 0.0
  %654 = vmatprep.subr.mxu0 0.0
  %655 = vmatpush1.xpose.msra.mxu0 0.0
  %656 = vmatprep.subr.mxu0 0.0
  %657 = vmatpush1.xpose.msra.mxu0 0.0
  %658 = vmatprep.subr.mxu0 0.0
  %659 = vmatpush1.xpose.msra.mxu0 0.0
  %660 = vmatprep.subr.mxu0 0.0
  %661 = vmatpush1.xpose.msra.mxu0 0.0
  %662 = vmatprep.subr.mxu0 0.0
  %663 = vmatpush1.xpose.msra.mxu0 0.0
  %664 = vmatprep.subr.mxu0 0.0
  %665 = vmatpush1.xpose.msra.mxu0 0.0
  %666 = vmatprep.subr.mxu0 0.0
  %667 = vmatpush1.xpose.msra.mxu0 0.0
  %668 = vmatprep.subr.mxu0 0.0
  %669 = vmatpush1.xpose.msra.mxu0 0.0
  %670 = vmatprep.subr.mxu0 0.0
  %671 = vmatpush1.xpose.msra.mxu0 0.0
  %672 = vmatprep.subr.mxu0 0.0
  %673 = vmatpush1.xpose.msra.mxu0 0.0
  %674 = vmatprep.subr.mxu0 0.0
  %675 = vmatpush1.xpose.msra.mxu0 0.0
  %676 = vmatprep.subr.mxu0 0.0
  %677 = vmatpush1.xpose.msra.mxu0 0.0
  %678 = vmatprep.subr.mxu0 0.0
  %679 = vmatpush1.xpose.msra.mxu0 0.0
  %680 = vmatprep.mubr.f32.mxu0 0.0
  %681 = vmatmul.mubr.f32.gmra.mrb[0].mxu0 %v611
  %v682 = vpop.f32.mrb[0].mxu0
  %v683 = vadd.f32 0.0, %v682
  %v684 = vpop.f32.mrb[0].mxu0
  %685 = vdwg.mxu0
  %v686 = vsel %vm533, %v607, -inf
  %687 = vmax.xlane.f32.xlu0 %v686
  %v688 = vpop.xlane.xlu0 %687
  %v689 = vsel %vm533, %v683, -inf
  %690 = vmax.xlane.f32.xlu0 %v689
  %v691 = vpop.xlane.xlu0 %690
  %v692 = vsub.f32 %v607, %v688
  %v693 = vsub.f32 %v683, %v691
  %v694 = vmul.f32 %v692, 1.442695
  %v695 = vpow.pop %v694
  %v696 = vmul.f32 %v693, 1.442695
  %v697 = vpow.pop %v696
  %v698 = vsel %vm533, %v695, 0.0
  %699 = vadd.xlane.f32.xlu0 %v698
  %v700 = vpop.xlane.xlu0 %699
  %v701 = vsel %vm533, %v697, 0.0
  %702 = vadd.xlane.f32.xlu0 %v701
  %v703 = vpop.xlane.xlu0 %702
  %v704 = vrcp.pop %v700
  %v705 = vrcp.pop %v703
  %v706 = vmul.f32 %v695, %v704
  %v707 = vmul.f32 %v697, %v705
  %v709 = vsel %vm533, %v706, 0
  %711 = vmatprep.subr.mxu0 0.0
  %712 = vmatpush1.msra.mxu0 %v523
  %713 = vmatprep.subr.mxu0 0.0
  %714 = vmatpush1.msra.mxu0 0.0
  %715 = vmatprep.subr.mxu0 0.0
  %716 = vmatpush1.msra.mxu0 0.0
  %717 = vmatprep.subr.mxu0 0.0
  %718 = vmatpush1.msra.mxu0 0.0
  %719 = vmatprep.subr.mxu0 0.0
  %720 = vmatpush1.msra.mxu0 0.0
  %721 = vmatprep.subr.mxu0 0.0
  %722 = vmatpush1.msra.mxu0 0.0
  %723 = vmatprep.subr.mxu0 0.0
  %724 = vmatpush1.msra.mxu0 0.0
  %725 = vmatprep.subr.mxu0 0.0
  %726 = vmatpush1.msra.mxu0 0.0
  %727 = vmatprep.subr.mxu0 0.0
  %728 = vmatpush1.msra.mxu0 0.0
  %729 = vmatprep.subr.mxu0 0.0
  %730 = vmatpush1.msra.mxu0 0.0
  %731 = vmatprep.subr.mxu0 0.0
  %732 = vmatpush1.msra.mxu0 0.0
  %733 = vmatprep.subr.mxu0 0.0
  %734 = vmatpush1.msra.mxu0 0.0
  %735 = vmatprep.subr.mxu0 0.0
  %736 = vmatpush1.msra.mxu0 0.0
  %737 = vmatprep.subr.mxu0 0.0
  %738 = vmatpush1.msra.mxu0 0.0
  %739 = vmatprep.subr.mxu0 0.0
  %740 = vmatpush1.msra.mxu0 0.0
  %741 = vmatprep.subr.mxu0 0.0
  %742 = vmatpush1.msra.mxu0 0.0
  %743 = vmatprep.subr.mxu0 0.0
  %744 = vmatpush1.msra.mxu0 0.0
  %745 = vmatprep.subr.mxu0 0.0
  %746 = vmatpush1.msra.mxu0 0.0
  %747 = vmatprep.subr.mxu0 0.0
  %748 = vmatpush1.msra.mxu0 0.0
  %749 = vmatprep.subr.mxu0 0.0
  %750 = vmatpush1.msra.mxu0 0.0
  %751 = vmatprep.subr.mxu0 0.0
  %752 = vmatpush1.msra.mxu0 0.0
  %753 = vmatprep.subr.mxu0 0.0
  %754 = vmatpush1.msra.mxu0 0.0
  %755 = vmatprep.subr.mxu0 0.0
  %756 = vmatpush1.msra.mxu0 0.0
  %757 = vmatprep.subr.mxu0 0.0
  %758 = vmatpush1.msra.mxu0 0.0
  %759 = vmatprep.subr.mxu0 0.0
  %760 = vmatpush1.msra.mxu0 0.0
  %761 = vmatprep.subr.mxu0 0.0
  %762 = vmatpush1.msra.mxu0 0.0
  %763 = vmatprep.subr.mxu0 0.0
  %764 = vmatpush1.msra.mxu0 0.0
  %765 = vmatprep.subr.mxu0 0.0
  %766 = vmatpush1.msra.mxu0 0.0
  %767 = vmatprep.subr.mxu0 0.0
  %768 = vmatpush1.msra.mxu0 0.0
  %769 = vmatprep.subr.mxu0 0.0
  %770 = vmatpush1.msra.mxu0 0.0
  %771 = vmatprep.subr.mxu0 0.0
  %772 = vmatpush1.msra.mxu0 0.0
  %773 = vmatprep.subr.mxu0 0.0
  %774 = vmatpush1.msra.mxu0 0.0
  %775 = vmatprep.mubr.f32.mxu0 0.0
  %776 = vmatmul.mubr.f32.gmra.mrb[0].mxu0 %v709
  %v777 = vpop.f32.mrb[0].mxu0
  %v778 = vadd.f32 0.0, %v777
  %v779 = vpop.f32.mrb[0].mxu0
  %780 = vdwg.mxu0
  %v782 = vsel %vm533, %v707, 0
  %784 = vmatprep.subr.mxu0 0.0
  %785 = vmatpush1.msra.mxu0 %v528
  %786 = vmatprep.subr.mxu0 0.0
  %787 = vmatpush1.msra.mxu0 0.0
  %788 = vmatprep.subr.mxu0 0.0
  %789 = vmatpush1.msra.mxu0 0.0
  %790 = vmatprep.subr.mxu0 0.0
  %791 = vmatpush1.msra.mxu0 0.0
  %792 = vmatprep.subr.mxu0 0.0
  %793 = vmatpush1.msra.mxu0 0.0
  %794 = vmatprep.subr.mxu0 0.0
  %795 = vmatpush1.msra.mxu0 0.0
  %796 = vmatprep.subr.mxu0 0.0
  %797 = vmatpush1.msra.mxu0 0.0
  %798 = vmatprep.subr.mxu0 0.0
  %799 = vmatpush1.msra.mxu0 0.0
  %800 = vmatprep.subr.mxu0 0.0
  %801 = vmatpush1.msra.mxu0 0.0
  %802 = vmatprep.subr.mxu0 0.0
  %803 = vmatpush1.msra.mxu0 0.0
  %804 = vmatprep.subr.mxu0 0.0
  %805 = vmatpush1.msra.mxu0 0.0
  %806 = vmatprep.subr.mxu0 0.0
  %807 = vmatpush1.msra.mxu0 0.0
  %808 = vmatprep.subr.mxu0 0.0
  %809 = vmatpush1.msra.mxu0 0.0
  %810 = vmatprep.subr.mxu0 0.0
  %811 = vmatpush1.msra.mxu0 0.0
  %812 = vmatprep.subr.mxu0 0.0
  %813 = vmatpush1.msra.mxu0 0.0
  %814 = vmatprep.subr.mxu0 0.0
  %815 = vmatpush1.msra.mxu0 0.0
  %816 = vmatprep.subr.mxu0 0.0
  %817 = vmatpush1.msra.mxu0 0.0
  %818 = vmatprep.subr.mxu0 0.0
  %819 = vmatpush1.msra.mxu0 0.0
  %820 = vmatprep.subr.mxu0 0.0
  %821 = vmatpush1.msra.mxu0 0.0
  %822 = vmatprep.subr.mxu0 0.0
  %823 = vmatpush1.msra.mxu0 0.0
  %824 = vmatprep.subr.mxu0 0.0
  %825 = vmatpush1.msra.mxu0 0.0
  %826 = vmatprep.subr.mxu0 0.0
  %827 = vmatpush1.msra.mxu0 0.0
  %828 = vmatprep.subr.mxu0 0.0
  %829 = vmatpush1.msra.mxu0 0.0
  %830 = vmatprep.subr.mxu0 0.0
  %831 = vmatpush1.msra.mxu0 0.0
  %832 = vmatprep.subr.mxu0 0.0
  %833 = vmatpush1.msra.mxu0 0.0
  %834 = vmatprep.subr.mxu0 0.0
  %835 = vmatpush1.msra.mxu0 0.0
  %836 = vmatprep.subr.mxu0 0.0
  %837 = vmatpush1.msra.mxu0 0.0
  %838 = vmatprep.subr.mxu0 0.0
  %839 = vmatpush1.msra.mxu0 0.0
  %840 = vmatprep.subr.mxu0 0.0
  %841 = vmatpush1.msra.mxu0 0.0
  %842 = vmatprep.subr.mxu0 0.0
  %843 = vmatpush1.msra.mxu0 0.0
  %844 = vmatprep.subr.mxu0 0.0
  %845 = vmatpush1.msra.mxu0 0.0
  %846 = vmatprep.subr.mxu0 0.0
  %847 = vmatpush1.msra.mxu0 0.0
  %848 = vmatprep.mubr.f32.mxu0 0.0
  %849 = vmatmul.mubr.f32.gmra.mrb[0].mxu0 %v782
  %v850 = vpop.f32.mrb[0].mxu0
  %v851 = vadd.f32 0.0, %v850
  %v852 = vpop.f32.mrb[0].mxu0
  %853 = vdwg.mxu0
  %v854 = vld [vmem:[%s17] sm:$0xff]
  %s855 = scalar_lea.vmem %s5, 32
  %v856 = vld [vmem:[%s855] sm:$0xff]
  %v857 = vld [vmem:[%s855 + $0x8] sm:$0xff]
  %v858 = vld [vmem:[%s855 + $0x10] sm:$0xff]
  %v859 = vld [vmem:[%s855 + $0x18] sm:$0xff]
  %s860 = scalar_lea.vmem %s7, 1
  %v861 = vld [vmem:[%s860] sm:$0x1]
  %v863 = vlaneseq
  %v864 = vshrl.u32 %v863, 7
  %v865 = vsub.s32 0, %v864
  %v866 = vrot.slane %v861, %v865
  %868 = vmatprep.subr.mxu0 0.0
  %869 = vmatpush1.msra.mxu0 %v856
  %870 = vmatprep.subr.mxu0 0.0
  %871 = vmatpush1.msra.mxu0 %v857
  %872 = vmatprep.subr.mxu0 0.0
  %873 = vmatpush1.msra.mxu0 %v858
  %874 = vmatprep.subr.mxu0 0.0
  %875 = vmatpush1.msra.mxu0 %v859
  %876 = vmatprep.subr.mxu0 0.0
  %877 = vmatpush1.msra.mxu0 0.0
  %878 = vmatprep.subr.mxu0 0.0
  %879 = vmatpush1.msra.mxu0 0.0
  %880 = vmatprep.subr.mxu0 0.0
  %881 = vmatpush1.msra.mxu0 0.0
  %882 = vmatprep.subr.mxu0 0.0
  %883 = vmatpush1.msra.mxu0 0.0
  %884 = vmatprep.subr.mxu0 0.0
  %885 = vmatpush1.msra.mxu0 0.0
  %886 = vmatprep.subr.mxu0 0.0
  %887 = vmatpush1.msra.mxu0 0.0
  %888 = vmatprep.subr.mxu0 0.0
  %889 = vmatpush1.msra.mxu0 0.0
  %890 = vmatprep.subr.mxu0 0.0
  %891 = vmatpush1.msra.mxu0 0.0
  %892 = vmatprep.subr.mxu0 0.0
  %893 = vmatpush1.msra.mxu0 0.0
  %894 = vmatprep.subr.mxu0 0.0
  %895 = vmatpush1.msra.mxu0 0.0
  %896 = vmatprep.subr.mxu0 0.0
  %897 = vmatpush1.msra.mxu0 0.0
  %898 = vmatprep.subr.mxu0 0.0
  %899 = vmatpush1.msra.mxu0 0.0
  %900 = vmatprep.subr.mxu0 0.0
  %901 = vmatpush1.msra.mxu0 0.0
  %902 = vmatprep.subr.mxu0 0.0
  %903 = vmatpush1.msra.mxu0 0.0
  %904 = vmatprep.subr.mxu0 0.0
  %905 = vmatpush1.msra.mxu0 0.0
  %906 = vmatprep.subr.mxu0 0.0
  %907 = vmatpush1.msra.mxu0 0.0
  %908 = vmatprep.subr.mxu0 0.0
  %909 = vmatpush1.msra.mxu0 0.0
  %910 = vmatprep.subr.mxu0 0.0
  %911 = vmatpush1.msra.mxu0 0.0
  %912 = vmatprep.subr.mxu0 0.0
  %913 = vmatpush1.msra.mxu0 0.0
  %914 = vmatprep.subr.mxu0 0.0
  %915 = vmatpush1.msra.mxu0 0.0
  %916 = vmatprep.subr.mxu0 0.0
  %917 = vmatpush1.msra.mxu0 0.0
  %918 = vmatprep.subr.mxu0 0.0
  %919 = vmatpush1.msra.mxu0 0.0
  %920 = vmatprep.subr.mxu0 0.0
  %921 = vmatpush1.msra.mxu0 0.0
  %922 = vmatprep.subr.mxu0 0.0
  %923 = vmatpush1.msra.mxu0 0.0
  %924 = vmatprep.subr.mxu0 0.0
  %925 = vmatpush1.msra.mxu0 0.0
  %926 = vmatprep.subr.mxu0 0.0
  %927 = vmatpush1.msra.mxu0 0.0
  %928 = vmatprep.subr.mxu0 0.0
  %929 = vmatpush1.msra.mxu0 0.0
  %930 = vmatprep.subr.mxu0 0.0
  %931 = vmatpush1.msra.mxu0 0.0
  %932 = vmatprep.mubr.f32.mxu0 0.0
  %933 = vmatmul.mubr.f32.gmra.mrb[0].mxu0 %v279
  %v934 = vpop.f32.mrb[0].mxu0
  %v935 = vadd.f32 %v866, %v934
  %v936 = vpop.f32.mrb[0].mxu0
  %937 = vmatprep.mubr.f32.mxu0 0.0
  %938 = vmatmul.mubr.f32.gmra.mrb[0].mxu0 %v282
  %v939 = vpop.f32.mrb[0].mxu0
  %v940 = vadd.f32 %v866, %v939
  %v941 = vpop.f32.mrb[0].mxu0
  %942 = vdwg.mxu0
  %s943 = scalar_lea.vmem %s9, 32
  %v944 = vld [vmem:[%s943] sm:$0xff]
  %v945 = vld [vmem:[%s943 + $0x8] sm:$0xff]
  %v946 = vld [vmem:[%s943 + $0x10] sm:$0xff]
  %v947 = vld [vmem:[%s943 + $0x18] sm:$0xff]
  %s948 = scalar_lea.vmem %s11, 1
  %v949 = vld [vmem:[%s948] sm:$0x1]
  %v951 = vlaneseq
  %v952 = vshrl.u32 %v951, 7
  %v953 = vsub.s32 0, %v952
  %v954 = vrot.slane %v949, %v953
  %956 = vmatprep.subr.mxu0 0.0
  %957 = vmatpush1.msra.mxu0 %v944
  %958 = vmatprep.subr.mxu0 0.0
  %959 = vmatpush1.msra.mxu0 %v945
  %960 = vmatprep.subr.mxu0 0.0
  %961 = vmatpush1.msra.mxu0 %v946
  %962 = vmatprep.subr.mxu0 0.0
  %963 = vmatpush1.msra.mxu0 %v947
  %964 = vmatprep.subr.mxu0 0.0
  %965 = vmatpush1.msra.mxu0 0.0
  %966 = vmatprep.subr.mxu0 0.0
  %967 = vmatpush1.msra.mxu0 0.0
  %968 = vmatprep.subr.mxu0 0.0
  %969 = vmatpush1.msra.mxu0 0.0
  %970 = vmatprep.subr.mxu0 0.0
  %971 = vmatpush1.msra.mxu0 0.0
  %972 = vmatprep.subr.mxu0 0.0
  %973 = vmatpush1.msra.mxu0 0.0
  %974 = vmatprep.subr.mxu0 0.0
  %975 = vmatpush1.msra.mxu0 0.0
  %976 = vmatprep.subr.mxu0 0.0
  %977 = vmatpush1.msra.mxu0 0.0
  %978 = vmatprep.subr.mxu0 0.0
  %979 = vmatpush1.msra.mxu0 0.0
  %980 = vmatprep.subr.mxu0 0.0
  %981 = vmatpush1.msra.mxu0 0.0
  %982 = vmatprep.subr.mxu0 0.0
  %983 = vmatpush1.msra.mxu0 0.0
  %984 = vmatprep.subr.mxu0 0.0
  %985 = vmatpush1.msra.mxu0 0.0
  %986 = vmatprep.subr.mxu0 0.0
  %987 = vmatpush1.msra.mxu0 0.0
  %988 = vmatprep.subr.mxu0 0.0
  %989 = vmatpush1.msra.mxu0 0.0
  %990 = vmatprep.subr.mxu0 0.0
  %991 = vmatpush1.msra.mxu0 0.0
  %992 = vmatprep.subr.mxu0 0.0
  %993 = vmatpush1.msra.mxu0 0.0
  %994 = vmatprep.subr.mxu0 0.0
  %995 = vmatpush1.msra.mxu0 0.0
  %996 = vmatprep.subr.mxu0 0.0
  %997 = vmatpush1.msra.mxu0 0.0
  %998 = vmatprep.subr.mxu0 0.0
  %999 = vmatpush1.msra.mxu0 0.0
  %1000 = vmatprep.subr.mxu0 0.0
  %1001 = vmatpush1.msra.mxu0 0.0
  %1002 = vmatprep.subr.mxu0 0.0
  %1003 = vmatpush1.msra.mxu0 0.0
  %1004 = vmatprep.subr.mxu0 0.0
  %1005 = vmatpush1.msra.mxu0 0.0
  %1006 = vmatprep.subr.mxu0 0.0
  %1007 = vmatpush1.msra.mxu0 0.0
  %1008 = vmatprep.subr.mxu0 0.0
  %1009 = vmatpush1.msra.mxu0 0.0
  %1010 = vmatprep.subr.mxu0 0.0
  %1011 = vmatpush1.msra.mxu0 0.0
  %1012 = vmatprep.subr.mxu0 0.0
  %1013 = vmatpush1.msra.mxu0 0.0
  %1014 = vmatprep.subr.mxu0 0.0
  %1015 = vmatpush1.msra.mxu0 0.0
  %1016 = vmatprep.subr.mxu0 0.0
  %1017 = vmatpush1.msra.mxu0 0.0
  %1018 = vmatprep.subr.mxu0 0.0
  %1019 = vmatpush1.msra.mxu0 0.0
  %1020 = vmatprep.mubr.f32.mxu0 0.0
  %1021 = vmatmul.mubr.f32.gmra.mrb[0].mxu0 %v279
  %v1022 = vpop.f32.mrb[0].mxu0
  %v1023 = vadd.f32 %v954, %v1022
  %v1024 = vpop.f32.mrb[0].mxu0
  %1025 = vmatprep.mubr.f32.mxu0 0.0
  %1026 = vmatmul.mubr.f32.gmra.mrb[0].mxu0 %v282
  %v1027 = vpop.f32.mrb[0].mxu0
  %v1028 = vadd.f32 %v954, %v1027
  %v1029 = vpop.f32.mrb[0].mxu0
  %1030 = vdwg.mxu0
  %s1031 = scalar_lea.vmem %s13, 32
  %v1032 = vld [vmem:[%s1031] sm:$0xff]
  %v1033 = vld [vmem:[%s1031 + $0x8] sm:$0xff]
  %v1034 = vld [vmem:[%s1031 + $0x10] sm:$0xff]
  %v1035 = vld [vmem:[%s1031 + $0x18] sm:$0xff]
  %s1036 = scalar_lea.vmem %s15, 1
  %v1037 = vld [vmem:[%s1036] sm:$0x1]
  %v1039 = vlaneseq
  %v1040 = vshrl.u32 %v1039, 7
  %v1041 = vsub.s32 0, %v1040
  %v1042 = vrot.slane %v1037, %v1041
  %1044 = vmatprep.subr.mxu0 0.0
  %1045 = vmatpush1.msra.mxu0 %v1032
  %1046 = vmatprep.subr.mxu0 0.0
  %1047 = vmatpush1.msra.mxu0 %v1033
  %1048 = vmatprep.subr.mxu0 0.0
  %1049 = vmatpush1.msra.mxu0 %v1034
  %1050 = vmatprep.subr.mxu0 0.0
  %1051 = vmatpush1.msra.mxu0 %v1035
  %1052 = vmatprep.subr.mxu0 0.0
  %1053 = vmatpush1.msra.mxu0 0.0
  %1054 = vmatprep.subr.mxu0 0.0
  %1055 = vmatpush1.msra.mxu0 0.0
  %1056 = vmatprep.subr.mxu0 0.0
  %1057 = vmatpush1.msra.mxu0 0.0
  %1058 = vmatprep.subr.mxu0 0.0
  %1059 = vmatpush1.msra.mxu0 0.0
  %1060 = vmatprep.subr.mxu0 0.0
  %1061 = vmatpush1.msra.mxu0 0.0
  %1062 = vmatprep.subr.mxu0 0.0
  %1063 = vmatpush1.msra.mxu0 0.0
  %1064 = vmatprep.subr.mxu0 0.0
  %1065 = vmatpush1.msra.mxu0 0.0
  %1066 = vmatprep.subr.mxu0 0.0
  %1067 = vmatpush1.msra.mxu0 0.0
  %1068 = vmatprep.subr.mxu0 0.0
  %1069 = vmatpush1.msra.mxu0 0.0
  %1070 = vmatprep.subr.mxu0 0.0
  %1071 = vmatpush1.msra.mxu0 0.0
  %1072 = vmatprep.subr.mxu0 0.0
  %1073 = vmatpush1.msra.mxu0 0.0
  %1074 = vmatprep.subr.mxu0 0.0
  %1075 = vmatpush1.msra.mxu0 0.0
  %1076 = vmatprep.subr.mxu0 0.0
  %1077 = vmatpush1.msra.mxu0 0.0
  %1078 = vmatprep.subr.mxu0 0.0
  %1079 = vmatpush1.msra.mxu0 0.0
  %1080 = vmatprep.subr.mxu0 0.0
  %1081 = vmatpush1.msra.mxu0 0.0
  %1082 = vmatprep.subr.mxu0 0.0
  %1083 = vmatpush1.msra.mxu0 0.0
  %1084 = vmatprep.subr.mxu0 0.0
  %1085 = vmatpush1.msra.mxu0 0.0
  %1086 = vmatprep.subr.mxu0 0.0
  %1087 = vmatpush1.msra.mxu0 0.0
  %1088 = vmatprep.subr.mxu0 0.0
  %1089 = vmatpush1.msra.mxu0 0.0
  %1090 = vmatprep.subr.mxu0 0.0
  %1091 = vmatpush1.msra.mxu0 0.0
  %1092 = vmatprep.subr.mxu0 0.0
  %1093 = vmatpush1.msra.mxu0 0.0
  %1094 = vmatprep.subr.mxu0 0.0
  %1095 = vmatpush1.msra.mxu0 0.0
  %1096 = vmatprep.subr.mxu0 0.0
  %1097 = vmatpush1.msra.mxu0 0.0
  %1098 = vmatprep.subr.mxu0 0.0
  %1099 = vmatpush1.msra.mxu0 0.0
  %1100 = vmatprep.subr.mxu0 0.0
  %1101 = vmatpush1.msra.mxu0 0.0
  %1102 = vmatprep.subr.mxu0 0.0
  %1103 = vmatpush1.msra.mxu0 0.0
  %1104 = vmatprep.subr.mxu0 0.0
  %1105 = vmatpush1.msra.mxu0 0.0
  %1106 = vmatprep.subr.mxu0 0.0
  %1107 = vmatpush1.msra.mxu0 0.0
  %1108 = vmatprep.mubr.f32.mxu0 0.0
  %1109 = vmatmul.mubr.f32.gmra.mrb[0].mxu0 %v279
  %v1110 = vpop.f32.mrb[0].mxu0
  %v1111 = vadd.f32 %v1042, %v1110
  %v1112 = vpop.f32.mrb[0].mxu0
  %1113 = vmatprep.mubr.f32.mxu0 0.0
  %1114 = vmatmul.mubr.f32.gmra.mrb[0].mxu0 %v282
  %v1115 = vpop.f32.mrb[0].mxu0
  %v1116 = vadd.f32 %v1042, %v1115
  %v1117 = vpop.f32.mrb[0].mxu0
  %1118 = vdwg.mxu0
  %v1119 = vmul.f32 %v935, 0.35355338
  %v1120 = vmul.f32 %v940, 0.35355338
  %v1122 = vsel %vm533, %v1119, 0
  %v1125 = vsel %vm533, %v1023, 0
  %1127 = vmatprep.subr.mxu0 0.0
  %1128 = vmatpush1.xpose.msra.mxu0 %v1125
  %1129 = vmatprep.subr.mxu0 0.0
  %1130 = vmatpush1.xpose.msra.mxu0 0.0
  %1131 = vmatprep.subr.mxu0 0.0
  %1132 = vmatpush1.xpose.msra.mxu0 0.0
  %1133 = vmatprep.subr.mxu0 0.0
  %1134 = vmatpush1.xpose.msra.mxu0 0.0
  %1135 = vmatprep.subr.mxu0 0.0
  %1136 = vmatpush1.xpose.msra.mxu0 0.0
  %1137 = vmatprep.subr.mxu0 0.0
  %1138 = vmatpush1.xpose.msra.mxu0 0.0
  %1139 = vmatprep.subr.mxu0 0.0
  %1140 = vmatpush1.xpose.msra.mxu0 0.0
  %1141 = vmatprep.subr.mxu0 0.0
  %1142 = vmatpush1.xpose.msra.mxu0 0.0
  %1143 = vmatprep.subr.mxu0 0.0
  %1144 = vmatpush1.xpose.msra.mxu0 0.0
  %1145 = vmatprep.subr.mxu0 0.0
  %1146 = vmatpush1.xpose.msra.mxu0 0.0
  %1147 = vmatprep.subr.mxu0 0.0
  %1148 = vmatpush1.xpose.msra.mxu0 0.0
  %1149 = vmatprep.subr.mxu0 0.0
  %1150 = vmatpush1.xpose.msra.mxu0 0.0
  %1151 = vmatprep.subr.mxu0 0.0
  %1152 = vmatpush1.xpose.msra.mxu0 0.0
  %1153 = vmatprep.subr.mxu0 0.0
  %1154 = vmatpush1.xpose.msra.mxu0 0.0
  %1155 = vmatprep.subr.mxu0 0.0
  %1156 = vmatpush1.xpose.msra.mxu0 0.0
  %1157 = vmatprep.subr.mxu0 0.0
  %1158 = vmatpush1.xpose.msra.mxu0 0.0
  %1159 = vmatprep.subr.mxu0 0.0
  %1160 = vmatpush1.xpose.msra.mxu0 0.0
  %1161 = vmatprep.subr.mxu0 0.0
  %1162 = vmatpush1.xpose.msra.mxu0 0.0
  %1163 = vmatprep.subr.mxu0 0.0
  %1164 = vmatpush1.xpose.msra.mxu0 0.0
  %1165 = vmatprep.subr.mxu0 0.0
  %1166 = vmatpush1.xpose.msra.mxu0 0.0
  %1167 = vmatprep.subr.mxu0 0.0
  %1168 = vmatpush1.xpose.msra.mxu0 0.0
  %1169 = vmatprep.subr.mxu0 0.0
  %1170 = vmatpush1.xpose.msra.mxu0 0.0
  %1171 = vmatprep.subr.mxu0 0.0
  %1172 = vmatpush1.xpose.msra.mxu0 0.0
  %1173 = vmatprep.subr.mxu0 0.0
  %1174 = vmatpush1.xpose.msra.mxu0 0.0
  %1175 = vmatprep.subr.mxu0 0.0
  %1176 = vmatpush1.xpose.msra.mxu0 0.0
  %1177 = vmatprep.subr.mxu0 0.0
  %1178 = vmatpush1.xpose.msra.mxu0 0.0
  %1179 = vmatprep.subr.mxu0 0.0
  %1180 = vmatpush1.xpose.msra.mxu0 0.0
  %1181 = vmatprep.subr.mxu0 0.0
  %1182 = vmatpush1.xpose.msra.mxu0 0.0
  %1183 = vmatprep.subr.mxu0 0.0
  %1184 = vmatpush1.xpose.msra.mxu0 0.0
  %1185 = vmatprep.subr.mxu0 0.0
  %1186 = vmatpush1.xpose.msra.mxu0 0.0
  %1187 = vmatprep.subr.mxu0 0.0
  %1188 = vmatpush1.xpose.msra.mxu0 0.0
  %1189 = vmatprep.subr.mxu0 0.0
  %1190 = vmatpush1.xpose.msra.mxu0 0.0
  %1191 = vmatprep.mubr.f32.mxu0 0.0
  %1192 = vmatmul.mubr.f32.gmra.mrb[0].mxu0 %v1122
  %v1193 = vpop.f32.mrb[0].mxu0
  %v1194 = vadd.f32 0.0, %v1193
  %v1195 = vpop.f32.mrb[0].mxu0
  %1196 = vdwg.mxu0
  %v1198 = vsel %vm533, %v1120, 0
  %v1201 = vsel %vm533, %v1028, 0
  %1203 = vmatprep.subr.mxu0 0.0
  %1204 = vmatpush1.xpose.msra.mxu0 %v1201
  %1205 = vmatprep.subr.mxu0 0.0
  %1206 = vmatpush1.xpose.msra.mxu0 0.0
  %1207 = vmatprep.subr.mxu0 0.0
  %1208 = vmatpush1.xpose.msra.mxu0 0.0
  %1209 = vmatprep.subr.mxu0 0.0
  %1210 = vmatpush1.xpose.msra.mxu0 0.0
  %1211 = vmatprep.subr.mxu0 0.0
  %1212 = vmatpush1.xpose.msra.mxu0 0.0
  %1213 = vmatprep.subr.mxu0 0.0
  %1214 = vmatpush1.xpose.msra.mxu0 0.0
  %1215 = vmatprep.subr.mxu0 0.0
  %1216 = vmatpush1.xpose.msra.mxu0 0.0
  %1217 = vmatprep.subr.mxu0 0.0
  %1218 = vmatpush1.xpose.msra.mxu0 0.0
  %1219 = vmatprep.subr.mxu0 0.0
  %1220 = vmatpush1.xpose.msra.mxu0 0.0
  %1221 = vmatprep.subr.mxu0 0.0
  %1222 = vmatpush1.xpose.msra.mxu0 0.0
  %1223 = vmatprep.subr.mxu0 0.0
  %1224 = vmatpush1.xpose.msra.mxu0 0.0
  %1225 = vmatprep.subr.mxu0 0.0
  %1226 = vmatpush1.xpose.msra.mxu0 0.0
  %1227 = vmatprep.subr.mxu0 0.0
  %1228 = vmatpush1.xpose.msra.mxu0 0.0
  %1229 = vmatprep.subr.mxu0 0.0
  %1230 = vmatpush1.xpose.msra.mxu0 0.0
  %1231 = vmatprep.subr.mxu0 0.0
  %1232 = vmatpush1.xpose.msra.mxu0 0.0
  %1233 = vmatprep.subr.mxu0 0.0
  %1234 = vmatpush1.xpose.msra.mxu0 0.0
  %1235 = vmatprep.subr.mxu0 0.0
  %1236 = vmatpush1.xpose.msra.mxu0 0.0
  %1237 = vmatprep.subr.mxu0 0.0
  %1238 = vmatpush1.xpose.msra.mxu0 0.0
  %1239 = vmatprep.subr.mxu0 0.0
  %1240 = vmatpush1.xpose.msra.mxu0 0.0
  %1241 = vmatprep.subr.mxu0 0.0
  %1242 = vmatpush1.xpose.msra.mxu0 0.0
  %1243 = vmatprep.subr.mxu0 0.0
  %1244 = vmatpush1.xpose.msra.mxu0 0.0
  %1245 = vmatprep.subr.mxu0 0.0
  %1246 = vmatpush1.xpose.msra.mxu0 0.0
  %1247 = vmatprep.subr.mxu0 0.0
  %1248 = vmatpush1.xpose.msra.mxu0 0.0
  %1249 = vmatprep.subr.mxu0 0.0
  %1250 = vmatpush1.xpose.msra.mxu0 0.0
  %1251 = vmatprep.subr.mxu0 0.0
  %1252 = vmatpush1.xpose.msra.mxu0 0.0
  %1253 = vmatprep.subr.mxu0 0.0
  %1254 = vmatpush1.xpose.msra.mxu0 0.0
  %1255 = vmatprep.subr.mxu0 0.0
  %1256 = vmatpush1.xpose.msra.mxu0 0.0
  %1257 = vmatprep.subr.mxu0 0.0
  %1258 = vmatpush1.xpose.msra.mxu0 0.0
  %1259 = vmatprep.subr.mxu0 0.0
  %1260 = vmatpush1.xpose.msra.mxu0 0.0
  %1261 = vmatprep.subr.mxu0 0.0
  %1262 = vmatpush1.xpose.msra.mxu0 0.0
  %1263 = vmatprep.subr.mxu0 0.0
  %1264 = vmatpush1.xpose.msra.mxu0 0.0
  %1265 = vmatprep.subr.mxu0 0.0
  %1266 = vmatpush1.xpose.msra.mxu0 0.0
  %1267 = vmatprep.mubr.f32.mxu0 0.0
  %1268 = vmatmul.mubr.f32.gmra.mrb[0].mxu0 %v1198
  %v1269 = vpop.f32.mrb[0].mxu0
  %v1270 = vadd.f32 0.0, %v1269
  %v1271 = vpop.f32.mrb[0].mxu0
  %1272 = vdwg.mxu0
  %v1273 = vsel %vm533, %v1194, -inf
  %1274 = vmax.xlane.f32.xlu0 %v1273
  %v1275 = vpop.xlane.xlu0 %1274
  %v1276 = vsel %vm533, %v1270, -inf
  %1277 = vmax.xlane.f32.xlu0 %v1276
  %v1278 = vpop.xlane.xlu0 %1277
  %v1279 = vsub.f32 %v1194, %v1275
  %v1280 = vsub.f32 %v1270, %v1278
  %v1281 = vmul.f32 %v1279, 1.442695
  %v1282 = vpow.pop %v1281
  %v1283 = vmul.f32 %v1280, 1.442695
  %v1284 = vpow.pop %v1283
  %v1285 = vsel %vm533, %v1282, 0.0
  %1286 = vadd.xlane.f32.xlu0 %v1285
  %v1287 = vpop.xlane.xlu0 %1286
  %v1288 = vsel %vm533, %v1284, 0.0
  %1289 = vadd.xlane.f32.xlu0 %v1288
  %v1290 = vpop.xlane.xlu0 %1289
  %v1291 = vrcp.pop %v1287
  %v1292 = vrcp.pop %v1290
  %v1293 = vmul.f32 %v1282, %v1291
  %v1294 = vmul.f32 %v1284, %v1292
  %v1296 = vsel %vm533, %v1293, 0
  %1298 = vmatprep.subr.mxu0 0.0
  %1299 = vmatpush1.msra.mxu0 %v1111
  %1300 = vmatprep.subr.mxu0 0.0
  %1301 = vmatpush1.msra.mxu0 0.0
  %1302 = vmatprep.subr.mxu0 0.0
  %1303 = vmatpush1.msra.mxu0 0.0
  %1304 = vmatprep.subr.mxu0 0.0
  %1305 = vmatpush1.msra.mxu0 0.0
  %1306 = vmatprep.subr.mxu0 0.0
  %1307 = vmatpush1.msra.mxu0 0.0
  %1308 = vmatprep.subr.mxu0 0.0
  %1309 = vmatpush1.msra.mxu0 0.0
  %1310 = vmatprep.subr.mxu0 0.0
  %1311 = vmatpush1.msra.mxu0 0.0
  %1312 = vmatprep.subr.mxu0 0.0
  %1313 = vmatpush1.msra.mxu0 0.0
  %1314 = vmatprep.subr.mxu0 0.0
  %1315 = vmatpush1.msra.mxu0 0.0
  %1316 = vmatprep.subr.mxu0 0.0
  %1317 = vmatpush1.msra.mxu0 0.0
  %1318 = vmatprep.subr.mxu0 0.0
  %1319 = vmatpush1.msra.mxu0 0.0
  %1320 = vmatprep.subr.mxu0 0.0
  %1321 = vmatpush1.msra.mxu0 0.0
  %1322 = vmatprep.subr.mxu0 0.0
  %1323 = vmatpush1.msra.mxu0 0.0
  %1324 = vmatprep.subr.mxu0 0.0
  %1325 = vmatpush1.msra.mxu0 0.0
  %1326 = vmatprep.subr.mxu0 0.0
  %1327 = vmatpush1.msra.mxu0 0.0
  %1328 = vmatprep.subr.mxu0 0.0
  %1329 = vmatpush1.msra.mxu0 0.0
  %1330 = vmatprep.subr.mxu0 0.0
  %1331 = vmatpush1.msra.mxu0 0.0
  %1332 = vmatprep.subr.mxu0 0.0
  %1333 = vmatpush1.msra.mxu0 0.0
  %1334 = vmatprep.subr.mxu0 0.0
  %1335 = vmatpush1.msra.mxu0 0.0
  %1336 = vmatprep.subr.mxu0 0.0
  %1337 = vmatpush1.msra.mxu0 0.0
  %1338 = vmatprep.subr.mxu0 0.0
  %1339 = vmatpush1.msra.mxu0 0.0
  %1340 = vmatprep.subr.mxu0 0.0
  %1341 = vmatpush1.msra.mxu0 0.0
  %1342 = vmatprep.subr.mxu0 0.0
  %1343 = vmatpush1.msra.mxu0 0.0
  %1344 = vmatprep.subr.mxu0 0.0
  %1345 = vmatpush1.msra.mxu0 0.0
  %1346 = vmatprep.subr.mxu0 0.0
  %1347 = vmatpush1.msra.mxu0 0.0
  %1348 = vmatprep.subr.mxu0 0.0
  %1349 = vmatpush1.msra.mxu0 0.0
  %1350 = vmatprep.subr.mxu0 0.0
  %1351 = vmatpush1.msra.mxu0 0.0
  %1352 = vmatprep.subr.mxu0 0.0
  %1353 = vmatpush1.msra.mxu0 0.0
  %1354 = vmatprep.subr.mxu0 0.0
  %1355 = vmatpush1.msra.mxu0 0.0
  %1356 = vmatprep.subr.mxu0 0.0
  %1357 = vmatpush1.msra.mxu0 0.0
  %1358 = vmatprep.subr.mxu0 0.0
  %1359 = vmatpush1.msra.mxu0 0.0
  %1360 = vmatprep.subr.mxu0 0.0
  %1361 = vmatpush1.msra.mxu0 0.0
  %1362 = vmatprep.mubr.f32.mxu0 0.0
  %1363 = vmatmul.mubr.f32.gmra.mrb[0].mxu0 %v1296
  %v1364 = vpop.f32.mrb[0].mxu0
  %v1365 = vadd.f32 0.0, %v1364
  %v1366 = vpop.f32.mrb[0].mxu0
  %1367 = vdwg.mxu0
  %v1369 = vsel %vm533, %v1294, 0
  %1371 = vmatprep.subr.mxu0 0.0
  %1372 = vmatpush1.msra.mxu0 %v1116
  %1373 = vmatprep.subr.mxu0 0.0
  %1374 = vmatpush1.msra.mxu0 0.0
  %1375 = vmatprep.subr.mxu0 0.0
  %1376 = vmatpush1.msra.mxu0 0.0
  %1377 = vmatprep.subr.mxu0 0.0
  %1378 = vmatpush1.msra.mxu0 0.0
  %1379 = vmatprep.subr.mxu0 0.0
  %1380 = vmatpush1.msra.mxu0 0.0
  %1381 = vmatprep.subr.mxu0 0.0
  %1382 = vmatpush1.msra.mxu0 0.0
  %1383 = vmatprep.subr.mxu0 0.0
  %1384 = vmatpush1.msra.mxu0 0.0
  %1385 = vmatprep.subr.mxu0 0.0
  %1386 = vmatpush1.msra.mxu0 0.0
  %1387 = vmatprep.subr.mxu0 0.0
  %1388 = vmatpush1.msra.mxu0 0.0
  %1389 = vmatprep.subr.mxu0 0.0
  %1390 = vmatpush1.msra.mxu0 0.0
  %1391 = vmatprep.subr.mxu0 0.0
  %1392 = vmatpush1.msra.mxu0 0.0
  %1393 = vmatprep.subr.mxu0 0.0
  %1394 = vmatpush1.msra.mxu0 0.0
  %1395 = vmatprep.subr.mxu0 0.0
  %1396 = vmatpush1.msra.mxu0 0.0
  %1397 = vmatprep.subr.mxu0 0.0
  %1398 = vmatpush1.msra.mxu0 0.0
  %1399 = vmatprep.subr.mxu0 0.0
  %1400 = vmatpush1.msra.mxu0 0.0
  %1401 = vmatprep.subr.mxu0 0.0
  %1402 = vmatpush1.msra.mxu0 0.0
  %1403 = vmatprep.subr.mxu0 0.0
  %1404 = vmatpush1.msra.mxu0 0.0
  %1405 = vmatprep.subr.mxu0 0.0
  %1406 = vmatpush1.msra.mxu0 0.0
  %1407 = vmatprep.subr.mxu0 0.0
  %1408 = vmatpush1.msra.mxu0 0.0
  %1409 = vmatprep.subr.mxu0 0.0
  %1410 = vmatpush1.msra.mxu0 0.0
  %1411 = vmatprep.subr.mxu0 0.0
  %1412 = vmatpush1.msra.mxu0 0.0
  %1413 = vmatprep.subr.mxu0 0.0
  %1414 = vmatpush1.msra.mxu0 0.0
  %1415 = vmatprep.subr.mxu0 0.0
  %1416 = vmatpush1.msra.mxu0 0.0
  %1417 = vmatprep.subr.mxu0 0.0
  %1418 = vmatpush1.msra.mxu0 0.0
  %1419 = vmatprep.subr.mxu0 0.0
  %1420 = vmatpush1.msra.mxu0 0.0
  %1421 = vmatprep.subr.mxu0 0.0
  %1422 = vmatpush1.msra.mxu0 0.0
  %1423 = vmatprep.subr.mxu0 0.0
  %1424 = vmatpush1.msra.mxu0 0.0
  %1425 = vmatprep.subr.mxu0 0.0
  %1426 = vmatpush1.msra.mxu0 0.0
  %1427 = vmatprep.subr.mxu0 0.0
  %1428 = vmatpush1.msra.mxu0 0.0
  %1429 = vmatprep.subr.mxu0 0.0
  %1430 = vmatpush1.msra.mxu0 0.0
  %1431 = vmatprep.subr.mxu0 0.0
  %1432 = vmatpush1.msra.mxu0 0.0
  %1433 = vmatprep.subr.mxu0 0.0
  %1434 = vmatpush1.msra.mxu0 0.0
  %1435 = vmatprep.mubr.f32.mxu0 0.0
  %1436 = vmatmul.mubr.f32.gmra.mrb[0].mxu0 %v1369
  %v1437 = vpop.f32.mrb[0].mxu0
  %v1438 = vadd.f32 0.0, %v1437
  %v1439 = vpop.f32.mrb[0].mxu0
  %1440 = vdwg.mxu0
  %s1441 = scalar_lea.vmem %s17, 8
  %v1442 = vld [vmem:[%s1441] sm:$0xff]
  %v1444 = vsel %vm533, %v1365, 0
  %v1447 = vsel %vm533, %v1438, 0
  %1449 = vmatprep.subr.mxu0 0.0
  %1450 = vmatpush1.msra.mxu0 %v1442
  %1451 = vmatprep.subr.mxu0 0.0
  %1452 = vmatpush1.msra.mxu0 0.0
  %1453 = vmatprep.subr.mxu0 0.0
  %1454 = vmatpush1.msra.mxu0 0.0
  %1455 = vmatprep.subr.mxu0 0.0
  %1456 = vmatpush1.msra.mxu0 0.0
  %1457 = vmatprep.subr.mxu0 0.0
  %1458 = vmatpush1.msra.mxu0 0.0
  %1459 = vmatprep.subr.mxu0 0.0
  %1460 = vmatpush1.msra.mxu0 0.0
  %1461 = vmatprep.subr.mxu0 0.0
  %1462 = vmatpush1.msra.mxu0 0.0
  %1463 = vmatprep.subr.mxu0 0.0
  %1464 = vmatpush1.msra.mxu0 0.0
  %1465 = vmatprep.subr.mxu0 0.0
  %1466 = vmatpush1.msra.mxu0 0.0
  %1467 = vmatprep.subr.mxu0 0.0
  %1468 = vmatpush1.msra.mxu0 0.0
  %1469 = vmatprep.subr.mxu0 0.0
  %1470 = vmatpush1.msra.mxu0 0.0
  %1471 = vmatprep.subr.mxu0 0.0
  %1472 = vmatpush1.msra.mxu0 0.0
  %1473 = vmatprep.subr.mxu0 0.0
  %1474 = vmatpush1.msra.mxu0 0.0
  %1475 = vmatprep.subr.mxu0 0.0
  %1476 = vmatpush1.msra.mxu0 0.0
  %1477 = vmatprep.subr.mxu0 0.0
  %1478 = vmatpush1.msra.mxu0 0.0
  %1479 = vmatprep.subr.mxu0 0.0
  %1480 = vmatpush1.msra.mxu0 0.0
  %1481 = vmatprep.subr.mxu0 0.0
  %1482 = vmatpush1.msra.mxu0 0.0
  %1483 = vmatprep.subr.mxu0 0.0
  %1484 = vmatpush1.msra.mxu0 0.0
  %1485 = vmatprep.subr.mxu0 0.0
  %1486 = vmatpush1.msra.mxu0 0.0
  %1487 = vmatprep.subr.mxu0 0.0
  %1488 = vmatpush1.msra.mxu0 0.0
  %1489 = vmatprep.subr.mxu0 0.0
  %1490 = vmatpush1.msra.mxu0 0.0
  %1491 = vmatprep.subr.mxu0 0.0
  %1492 = vmatpush1.msra.mxu0 0.0
  %1493 = vmatprep.subr.mxu0 0.0
  %1494 = vmatpush1.msra.mxu0 0.0
  %1495 = vmatprep.subr.mxu0 0.0
  %1496 = vmatpush1.msra.mxu0 0.0
  %1497 = vmatprep.subr.mxu0 0.0
  %1498 = vmatpush1.msra.mxu0 0.0
  %1499 = vmatprep.subr.mxu0 0.0
  %1500 = vmatpush1.msra.mxu0 0.0
  %1501 = vmatprep.subr.mxu0 0.0
  %1502 = vmatpush1.msra.mxu0 0.0
  %1503 = vmatprep.subr.mxu0 0.0
  %1504 = vmatpush1.msra.mxu0 0.0
  %1505 = vmatprep.subr.mxu0 0.0
  %1506 = vmatpush1.msra.mxu0 0.0
  %1507 = vmatprep.subr.mxu0 0.0
  %1508 = vmatpush1.msra.mxu0 0.0
  %1509 = vmatprep.subr.mxu0 0.0
  %1510 = vmatpush1.msra.mxu0 0.0
  %1511 = vmatprep.subr.mxu0 0.0
  %1512 = vmatpush1.msra.mxu0 0.0
  %1513 = vmatprep.mubr.f32.mxu0 0.0
  %1514 = vmatmul.mubr.f32.gmra.mrb[0].mxu0 %v1444
  %v1515 = vpop.f32.mrb[0].mxu0
  %v1516 = vadd.f32 0.0, %v1515
  %v1517 = vpop.f32.mrb[0].mxu0
  %1518 = vmatprep.mubr.f32.mxu0 0.0
  %1519 = vmatmul.mubr.f32.gmra.mrb[0].mxu0 %v1447
  %v1520 = vpop.f32.mrb[0].mxu0
  %v1521 = vadd.f32 0.0, %v1520
  %v1522 = vpop.f32.mrb[0].mxu0
  %1523 = vdwg.mxu0
  %v1525 = vsel %vm533, %v778, 0
  %v1528 = vsel %vm533, %v851, 0
  %1530 = vmatprep.subr.mxu0 0.0
  %1531 = vmatpush1.msra.mxu0 %v854
  %1532 = vmatprep.subr.mxu0 0.0
  %1533 = vmatpush1.msra.mxu0 0.0
  %1534 = vmatprep.subr.mxu0 0.0
  %1535 = vmatpush1.msra.mxu0 0.0
  %1536 = vmatprep.subr.mxu0 0.0
  %1537 = vmatpush1.msra.mxu0 0.0
  %1538 = vmatprep.subr.mxu0 0.0
  %1539 = vmatpush1.msra.mxu0 0.0
  %1540 = vmatprep.subr.mxu0 0.0
  %1541 = vmatpush1.msra.mxu0 0.0
  %1542 = vmatprep.subr.mxu0 0.0
  %1543 = vmatpush1.msra.mxu0 0.0
  %1544 = vmatprep.subr.mxu0 0.0
  %1545 = vmatpush1.msra.mxu0 0.0
  %1546 = vmatprep.subr.mxu0 0.0
  %1547 = vmatpush1.msra.mxu0 0.0
  %1548 = vmatprep.subr.mxu0 0.0
  %1549 = vmatpush1.msra.mxu0 0.0
  %1550 = vmatprep.subr.mxu0 0.0
  %1551 = vmatpush1.msra.mxu0 0.0
  %1552 = vmatprep.subr.mxu0 0.0
  %1553 = vmatpush1.msra.mxu0 0.0
  %1554 = vmatprep.subr.mxu0 0.0
  %1555 = vmatpush1.msra.mxu0 0.0
  %1556 = vmatprep.subr.mxu0 0.0
  %1557 = vmatpush1.msra.mxu0 0.0
  %1558 = vmatprep.subr.mxu0 0.0
  %1559 = vmatpush1.msra.mxu0 0.0
  %1560 = vmatprep.subr.mxu0 0.0
  %1561 = vmatpush1.msra.mxu0 0.0
  %1562 = vmatprep.subr.mxu0 0.0
  %1563 = vmatpush1.msra.mxu0 0.0
  %1564 = vmatprep.subr.mxu0 0.0
  %1565 = vmatpush1.msra.mxu0 0.0
  %1566 = vmatprep.subr.mxu0 0.0
  %1567 = vmatpush1.msra.mxu0 0.0
  %1568 = vmatprep.subr.mxu0 0.0
  %1569 = vmatpush1.msra.mxu0 0.0
  %1570 = vmatprep.subr.mxu0 0.0
  %1571 = vmatpush1.msra.mxu0 0.0
  %1572 = vmatprep.subr.mxu0 0.0
  %1573 = vmatpush1.msra.mxu0 0.0
  %1574 = vmatprep.subr.mxu0 0.0
  %1575 = vmatpush1.msra.mxu0 0.0
  %1576 = vmatprep.subr.mxu0 0.0
  %1577 = vmatpush1.msra.mxu0 0.0
  %1578 = vmatprep.subr.mxu0 0.0
  %1579 = vmatpush1.msra.mxu0 0.0
  %1580 = vmatprep.subr.mxu0 0.0
  %1581 = vmatpush1.msra.mxu0 0.0
  %1582 = vmatprep.subr.mxu0 0.0
  %1583 = vmatpush1.msra.mxu0 0.0
  %1584 = vmatprep.subr.mxu0 0.0
  %1585 = vmatpush1.msra.mxu0 0.0
  %1586 = vmatprep.subr.mxu0 0.0
  %1587 = vmatpush1.msra.mxu0 0.0
  %1588 = vmatprep.subr.mxu0 0.0
  %1589 = vmatpush1.msra.mxu0 0.0
  %1590 = vmatprep.subr.mxu0 0.0
  %1591 = vmatpush1.msra.mxu0 0.0
  %1592 = vmatprep.subr.mxu0 0.0
  %1593 = vmatpush1.msra.mxu0 0.0
  %1594 = vmatprep.mubr.f32.mxu0 0.0
  %1595 = vmatmul.mubr.f32.gmra.mrb[0].mxu0 %v1525
  %v1596 = vpop.f32.mrb[0].mxu0
  %v1597 = vadd.f32 %v1516, %v1596
  %v1598 = vpop.f32.mrb[0].mxu0
  %1599 = vmatprep.mubr.f32.mxu0 0.0
  %1600 = vmatmul.mubr.f32.gmra.mrb[0].mxu0 %v1528
  %v1601 = vpop.f32.mrb[0].mxu0
  %v1602 = vadd.f32 %v1521, %v1601
  %v1603 = vpop.f32.mrb[0].mxu0
  %1604 = vdwg.mxu0
  %s1605 = scalar_lea.vmem %s5, 64
  %v1606 = vld [vmem:[%s1605] sm:$0xff]
  %v1607 = vld [vmem:[%s1605 + $0x8] sm:$0xff]
  %v1608 = vld [vmem:[%s1605 + $0x10] sm:$0xff]
  %v1609 = vld [vmem:[%s1605 + $0x18] sm:$0xff]
  %s1610 = scalar_lea.vmem %s7, 2
  %v1611 = vld [vmem:[%s1610] sm:$0x1]
  %v1613 = vlaneseq
  %v1614 = vshrl.u32 %v1613, 7
  %v1615 = vsub.s32 0, %v1614
  %v1616 = vrot.slane %v1611, %v1615
  %1618 = vmatprep.subr.mxu0 0.0
  %1619 = vmatpush1.msra.mxu0 %v1606
  %1620 = vmatprep.subr.mxu0 0.0
  %1621 = vmatpush1.msra.mxu0 %v1607
  %1622 = vmatprep.subr.mxu0 0.0
  %1623 = vmatpush1.msra.mxu0 %v1608
  %1624 = vmatprep.subr.mxu0 0.0
  %1625 = vmatpush1.msra.mxu0 %v1609
  %1626 = vmatprep.subr.mxu0 0.0
  %1627 = vmatpush1.msra.mxu0 0.0
  %1628 = vmatprep.subr.mxu0 0.0
  %1629 = vmatpush1.msra.mxu0 0.0
  %1630 = vmatprep.subr.mxu0 0.0
  %1631 = vmatpush1.msra.mxu0 0.0
  %1632 = vmatprep.subr.mxu0 0.0
  %1633 = vmatpush1.msra.mxu0 0.0
  %1634 = vmatprep.subr.mxu0 0.0
  %1635 = vmatpush1.msra.mxu0 0.0
  %1636 = vmatprep.subr.mxu0 0.0
  %1637 = vmatpush1.msra.mxu0 0.0
  %1638 = vmatprep.subr.mxu0 0.0
  %1639 = vmatpush1.msra.mxu0 0.0
  %1640 = vmatprep.subr.mxu0 0.0
  %1641 = vmatpush1.msra.mxu0 0.0
  %1642 = vmatprep.subr.mxu0 0.0
  %1643 = vmatpush1.msra.mxu0 0.0
  %1644 = vmatprep.subr.mxu0 0.0
  %1645 = vmatpush1.msra.mxu0 0.0
  %1646 = vmatprep.subr.mxu0 0.0
  %1647 = vmatpush1.msra.mxu0 0.0
  %1648 = vmatprep.subr.mxu0 0.0
  %1649 = vmatpush1.msra.mxu0 0.0
  %1650 = vmatprep.subr.mxu0 0.0
  %1651 = vmatpush1.msra.mxu0 0.0
  %1652 = vmatprep.subr.mxu0 0.0
  %1653 = vmatpush1.msra.mxu0 0.0
  %1654 = vmatprep.subr.mxu0 0.0
  %1655 = vmatpush1.msra.mxu0 0.0
  %1656 = vmatprep.subr.mxu0 0.0
  %1657 = vmatpush1.msra.mxu0 0.0
  %1658 = vmatprep.subr.mxu0 0.0
  %1659 = vmatpush1.msra.mxu0 0.0
  %1660 = vmatprep.subr.mxu0 0.0
  %1661 = vmatpush1.msra.mxu0 0.0
  %1662 = vmatprep.subr.mxu0 0.0
  %1663 = vmatpush1.msra.mxu0 0.0
  %1664 = vmatprep.subr.mxu0 0.0
  %1665 = vmatpush1.msra.mxu0 0.0
  %1666 = vmatprep.subr.mxu0 0.0
  %1667 = vmatpush1.msra.mxu0 0.0
  %1668 = vmatprep.subr.mxu0 0.0
  %1669 = vmatpush1.msra.mxu0 0.0
  %1670 = vmatprep.subr.mxu0 0.0
  %1671 = vmatpush1.msra.mxu0 0.0
  %1672 = vmatprep.subr.mxu0 0.0
  %1673 = vmatpush1.msra.mxu0 0.0
  %1674 = vmatprep.subr.mxu0 0.0
  %1675 = vmatpush1.msra.mxu0 0.0
  %1676 = vmatprep.subr.mxu0 0.0
  %1677 = vmatpush1.msra.mxu0 0.0
  %1678 = vmatprep.subr.mxu0 0.0
  %1679 = vmatpush1.msra.mxu0 0.0
  %1680 = vmatprep.subr.mxu0 0.0
  %1681 = vmatpush1.msra.mxu0 0.0
  %1682 = vmatprep.mubr.f32.mxu0 0.0
  %1683 = vmatmul.mubr.f32.gmra.mrb[0].mxu0 %v279
  %v1684 = vpop.f32.mrb[0].mxu0
  %v1685 = vadd.f32 %v1616, %v1684
  %v1686 = vpop.f32.mrb[0].mxu0
  %1687 = vmatprep.mubr.f32.mxu0 0.0
  %1688 = vmatmul.mubr.f32.gmra.mrb[0].mxu0 %v282
  %v1689 = vpop.f32.mrb[0].mxu0
  %v1690 = vadd.f32 %v1616, %v1689
  %v1691 = vpop.f32.mrb[0].mxu0
  %1692 = vdwg.mxu0
  %s1693 = scalar_lea.vmem %s9, 64
  %v1694 = vld [vmem:[%s1693] sm:$0xff]
  %v1695 = vld [vmem:[%s1693 + $0x8] sm:$0xff]
  %v1696 = vld [vmem:[%s1693 + $0x10] sm:$0xff]
  %v1697 = vld [vmem:[%s1693 + $0x18] sm:$0xff]
  %s1698 = scalar_lea.vmem %s11, 2
  %v1699 = vld [vmem:[%s1698] sm:$0x1]
  %v1701 = vlaneseq
  %v1702 = vshrl.u32 %v1701, 7
  %v1703 = vsub.s32 0, %v1702
  %v1704 = vrot.slane %v1699, %v1703
  %1706 = vmatprep.subr.mxu0 0.0
  %1707 = vmatpush1.msra.mxu0 %v1694
  %1708 = vmatprep.subr.mxu0 0.0
  %1709 = vmatpush1.msra.mxu0 %v1695
  %1710 = vmatprep.subr.mxu0 0.0
  %1711 = vmatpush1.msra.mxu0 %v1696
  %1712 = vmatprep.subr.mxu0 0.0
  %1713 = vmatpush1.msra.mxu0 %v1697
  %1714 = vmatprep.subr.mxu0 0.0
  %1715 = vmatpush1.msra.mxu0 0.0
  %1716 = vmatprep.subr.mxu0 0.0
  %1717 = vmatpush1.msra.mxu0 0.0
  %1718 = vmatprep.subr.mxu0 0.0
  %1719 = vmatpush1.msra.mxu0 0.0
  %1720 = vmatprep.subr.mxu0 0.0
  %1721 = vmatpush1.msra.mxu0 0.0
  %1722 = vmatprep.subr.mxu0 0.0
  %1723 = vmatpush1.msra.mxu0 0.0
  %1724 = vmatprep.subr.mxu0 0.0
  %1725 = vmatpush1.msra.mxu0 0.0
  %1726 = vmatprep.subr.mxu0 0.0
  %1727 = vmatpush1.msra.mxu0 0.0
  %1728 = vmatprep.subr.mxu0 0.0
  %1729 = vmatpush1.msra.mxu0 0.0
  %1730 = vmatprep.subr.mxu0 0.0
  %1731 = vmatpush1.msra.mxu0 0.0
  %1732 = vmatprep.subr.mxu0 0.0
  %1733 = vmatpush1.msra.mxu0 0.0
  %1734 = vmatprep.subr.mxu0 0.0
  %1735 = vmatpush1.msra.mxu0 0.0
  %1736 = vmatprep.subr.mxu0 0.0
  %1737 = vmatpush1.msra.mxu0 0.0
  %1738 = vmatprep.subr.mxu0 0.0
  %1739 = vmatpush1.msra.mxu0 0.0
  %1740 = vmatprep.subr.mxu0 0.0
  %1741 = vmatpush1.msra.mxu0 0.0
  %1742 = vmatprep.subr.mxu0 0.0
  %1743 = vmatpush1.msra.mxu0 0.0
  %1744 = vmatprep.subr.mxu0 0.0
  %1745 = vmatpush1.msra.mxu0 0.0
  %1746 = vmatprep.subr.mxu0 0.0
  %1747 = vmatpush1.msra.mxu0 0.0
  %1748 = vmatprep.subr.mxu0 0.0
  %1749 = vmatpush1.msra.mxu0 0.0
  %1750 = vmatprep.subr.mxu0 0.0
  %1751 = vmatpush1.msra.mxu0 0.0
  %1752 = vmatprep.subr.mxu0 0.0
  %1753 = vmatpush1.msra.mxu0 0.0
  %1754 = vmatprep.subr.mxu0 0.0
  %1755 = vmatpush1.msra.mxu0 0.0
  %1756 = vmatprep.subr.mxu0 0.0
  %1757 = vmatpush1.msra.mxu0 0.0
  %1758 = vmatprep.subr.mxu0 0.0
  %1759 = vmatpush1.msra.mxu0 0.0
  %1760 = vmatprep.subr.mxu0 0.0
  %1761 = vmatpush1.msra.mxu0 0.0
  %1762 = vmatprep.subr.mxu0 0.0
  %1763 = vmatpush1.msra.mxu0 0.0
  %1764 = vmatprep.subr.mxu0 0.0
  %1765 = vmatpush1.msra.mxu0 0.0
  %1766 = vmatprep.subr.mxu0 0.0
  %1767 = vmatpush1.msra.mxu0 0.0
  %1768 = vmatprep.subr.mxu0 0.0
  %1769 = vmatpush1.msra.mxu0 0.0
  %1770 = vmatprep.mubr.f32.mxu0 0.0
  %1771 = vmatmul.mubr.f32.gmra.mrb[0].mxu0 %v279
  %v1772 = vpop.f32.mrb[0].mxu0
  %v1773 = vadd.f32 %v1704, %v1772
  %v1774 = vpop.f32.mrb[0].mxu0
  %1775 = vmatprep.mubr.f32.mxu0 0.0
  %1776 = vmatmul.mubr.f32.gmra.mrb[0].mxu0 %v282
  %v1777 = vpop.f32.mrb[0].mxu0
  %v1778 = vadd.f32 %v1704, %v1777
  %v1779 = vpop.f32.mrb[0].mxu0
  %1780 = vdwg.mxu0
  %s1781 = scalar_lea.vmem %s13, 64
  %v1782 = vld [vmem:[%s1781] sm:$0xff]
  %v1783 = vld [vmem:[%s1781 + $0x8] sm:$0xff]
  %v1784 = vld [vmem:[%s1781 + $0x10] sm:$0xff]
  %v1785 = vld [vmem:[%s1781 + $0x18] sm:$0xff]
  %s1786 = scalar_lea.vmem %s15, 2
  %v1787 = vld [vmem:[%s1786] sm:$0x1]
  %v1789 = vlaneseq
  %v1790 = vshrl.u32 %v1789, 7
  %v1791 = vsub.s32 0, %v1790
  %v1792 = vrot.slane %v1787, %v1791
  %1794 = vmatprep.subr.mxu0 0.0
  %1795 = vmatpush1.msra.mxu0 %v1782
  %1796 = vmatprep.subr.mxu0 0.0
  %1797 = vmatpush1.msra.mxu0 %v1783
  %1798 = vmatprep.subr.mxu0 0.0
  %1799 = vmatpush1.msra.mxu0 %v1784
  %1800 = vmatprep.subr.mxu0 0.0
  %1801 = vmatpush1.msra.mxu0 %v1785
  %1802 = vmatprep.subr.mxu0 0.0
  %1803 = vmatpush1.msra.mxu0 0.0
  %1804 = vmatprep.subr.mxu0 0.0
  %1805 = vmatpush1.msra.mxu0 0.0
  %1806 = vmatprep.subr.mxu0 0.0
  %1807 = vmatpush1.msra.mxu0 0.0
  %1808 = vmatprep.subr.mxu0 0.0
  %1809 = vmatpush1.msra.mxu0 0.0
  %1810 = vmatprep.subr.mxu0 0.0
  %1811 = vmatpush1.msra.mxu0 0.0
  %1812 = vmatprep.subr.mxu0 0.0
  %1813 = vmatpush1.msra.mxu0 0.0
  %1814 = vmatprep.subr.mxu0 0.0
  %1815 = vmatpush1.msra.mxu0 0.0
  %1816 = vmatprep.subr.mxu0 0.0
  %1817 = vmatpush1.msra.mxu0 0.0
  %1818 = vmatprep.subr.mxu0 0.0
  %1819 = vmatpush1.msra.mxu0 0.0
  %1820 = vmatprep.subr.mxu0 0.0
  %1821 = vmatpush1.msra.mxu0 0.0
  %1822 = vmatprep.subr.mxu0 0.0
  %1823 = vmatpush1.msra.mxu0 0.0
  %1824 = vmatprep.subr.mxu0 0.0
  %1825 = vmatpush1.msra.mxu0 0.0
  %1826 = vmatprep.subr.mxu0 0.0
  %1827 = vmatpush1.msra.mxu0 0.0
  %1828 = vmatprep.subr.mxu0 0.0
  %1829 = vmatpush1.msra.mxu0 0.0
  %1830 = vmatprep.subr.mxu0 0.0
  %1831 = vmatpush1.msra.mxu0 0.0
  %1832 = vmatprep.subr.mxu0 0.0
  %1833 = vmatpush1.msra.mxu0 0.0
  %1834 = vmatprep.subr.mxu0 0.0
  %1835 = vmatpush1.msra.mxu0 0.0
  %1836 = vmatprep.subr.mxu0 0.0
  %1837 = vmatpush1.msra.mxu0 0.0
  %1838 = vmatprep.subr.mxu0 0.0
  %1839 = vmatpush1.msra.mxu0 0.0
  %1840 = vmatprep.subr.mxu0 0.0
  %1841 = vmatpush1.msra.mxu0 0.0
  %1842 = vmatprep.subr.mxu0 0.0
  %1843 = vmatpush1.msra.mxu0 0.0
  %1844 = vmatprep.subr.mxu0 0.0
  %1845 = vmatpush1.msra.mxu0 0.0
  %1846 = vmatprep.subr.mxu0 0.0
  %1847 = vmatpush1.msra.mxu0 0.0
  %1848 = vmatprep.subr.mxu0 0.0
  %1849 = vmatpush1.msra.mxu0 0.0
  %1850 = vmatprep.subr.mxu0 0.0
  %1851 = vmatpush1.msra.mxu0 0.0
  %1852 = vmatprep.subr.mxu0 0.0
  %1853 = vmatpush1.msra.mxu0 0.0
  %1854 = vmatprep.subr.mxu0 0.0
  %1855 = vmatpush1.msra.mxu0 0.0
  %1856 = vmatprep.subr.mxu0 0.0
  %1857 = vmatpush1.msra.mxu0 0.0
  %1858 = vmatprep.mubr.f32.mxu0 0.0
  %1859 = vmatmul.mubr.f32.gmra.mrb[0].mxu0 %v279
  %v1860 = vpop.f32.mrb[0].mxu0
  %v1861 = vadd.f32 %v1792, %v1860
  %v1862 = vpop.f32.mrb[0].mxu0
  %1863 = vmatprep.mubr.f32.mxu0 0.0
  %1864 = vmatmul.mubr.f32.gmra.mrb[0].mxu0 %v282
  %v1865 = vpop.f32.mrb[0].mxu0
  %v1866 = vadd.f32 %v1792, %v1865
  %v1867 = vpop.f32.mrb[0].mxu0
  %1868 = vdwg.mxu0
  %v1869 = vmul.f32 %v1685, 0.35355338
  %v1870 = vmul.f32 %v1690, 0.35355338
  %v1872 = vsel %vm533, %v1869, 0
  %v1875 = vsel %vm533, %v1773, 0
  %1877 = vmatprep.subr.mxu0 0.0
  %1878 = vmatpush1.xpose.msra.mxu0 %v1875
  %1879 = vmatprep.subr.mxu0 0.0
  %1880 = vmatpush1.xpose.msra.mxu0 0.0
  %1881 = vmatprep.subr.mxu0 0.0
  %1882 = vmatpush1.xpose.msra.mxu0 0.0
  %1883 = vmatprep.subr.mxu0 0.0
  %1884 = vmatpush1.xpose.msra.mxu0 0.0
  %1885 = vmatprep.subr.mxu0 0.0
  %1886 = vmatpush1.xpose.msra.mxu0 0.0
  %1887 = vmatprep.subr.mxu0 0.0
  %1888 = vmatpush1.xpose.msra.mxu0 0.0
  %1889 = vmatprep.subr.mxu0 0.0
  %1890 = vmatpush1.xpose.msra.mxu0 0.0
  %1891 = vmatprep.subr.mxu0 0.0
  %1892 = vmatpush1.xpose.msra.mxu0 0.0
  %1893 = vmatprep.subr.mxu0 0.0
  %1894 = vmatpush1.xpose.msra.mxu0 0.0
  %1895 = vmatprep.subr.mxu0 0.0
  %1896 = vmatpush1.xpose.msra.mxu0 0.0
  %1897 = vmatprep.subr.mxu0 0.0
  %1898 = vmatpush1.xpose.msra.mxu0 0.0
  %1899 = vmatprep.subr.mxu0 0.0
  %1900 = vmatpush1.xpose.msra.mxu0 0.0
  %1901 = vmatprep.subr.mxu0 0.0
  %1902 = vmatpush1.xpose.msra.mxu0 0.0
  %1903 = vmatprep.subr.mxu0 0.0
  %1904 = vmatpush1.xpose.msra.mxu0 0.0
  %1905 = vmatprep.subr.mxu0 0.0
  %1906 = vmatpush1.xpose.msra.mxu0 0.0
  %1907 = vmatprep.subr.mxu0 0.0
  %1908 = vmatpush1.xpose.msra.mxu0 0.0
  %1909 = vmatprep.subr.mxu0 0.0
  %1910 = vmatpush1.xpose.msra.mxu0 0.0
  %1911 = vmatprep.subr.mxu0 0.0
  %1912 = vmatpush1.xpose.msra.mxu0 0.0
  %1913 = vmatprep.subr.mxu0 0.0
  %1914 = vmatpush1.xpose.msra.mxu0 0.0
  %1915 = vmatprep.subr.mxu0 0.0
  %1916 = vmatpush1.xpose.msra.mxu0 0.0
  %1917 = vmatprep.subr.mxu0 0.0
  %1918 = vmatpush1.xpose.msra.mxu0 0.0
  %1919 = vmatprep.subr.mxu0 0.0
  %1920 = vmatpush1.xpose.msra.mxu0 0.0
  %1921 = vmatprep.subr.mxu0 0.0
  %1922 = vmatpush1.xpose.msra.mxu0 0.0
  %1923 = vmatprep.subr.mxu0 0.0
  %1924 = vmatpush1.xpose.msra.mxu0 0.0
  %1925 = vmatprep.subr.mxu0 0.0
  %1926 = vmatpush1.xpose.msra.mxu0 0.0
  %1927 = vmatprep.subr.mxu0 0.0
  %1928 = vmatpush1.xpose.msra.mxu0 0.0
  %1929 = vmatprep.subr.mxu0 0.0
  %1930 = vmatpush1.xpose.msra.mxu0 0.0
  %1931 = vmatprep.subr.mxu0 0.0
  %1932 = vmatpush1.xpose.msra.mxu0 0.0
  %1933 = vmatprep.subr.mxu0 0.0
  %1934 = vmatpush1.xpose.msra.mxu0 0.0
  %1935 = vmatprep.subr.mxu0 0.0
  %1936 = vmatpush1.xpose.msra.mxu0 0.0
  %1937 = vmatprep.subr.mxu0 0.0
  %1938 = vmatpush1.xpose.msra.mxu0 0.0
  %1939 = vmatprep.subr.mxu0 0.0
  %1940 = vmatpush1.xpose.msra.mxu0 0.0
  %1941 = vmatprep.mubr.f32.mxu0 0.0
  %1942 = vmatmul.mubr.f32.gmra.mrb[0].mxu0 %v1872
  %v1943 = vpop.f32.mrb[0].mxu0
  %v1944 = vadd.f32 0.0, %v1943
  %v1945 = vpop.f32.mrb[0].mxu0
  %1946 = vdwg.mxu0
  %v1948 = vsel %vm533, %v1870, 0
  %v1951 = vsel %vm533, %v1778, 0
  %1953 = vmatprep.subr.mxu0 0.0
  %1954 = vmatpush1.xpose.msra.mxu0 %v1951
  %1955 = vmatprep.subr.mxu0 0.0
  %1956 = vmatpush1.xpose.msra.mxu0 0.0
  %1957 = vmatprep.subr.mxu0 0.0
  %1958 = vmatpush1.xpose.msra.mxu0 0.0
  %1959 = vmatprep.subr.mxu0 0.0
  %1960 = vmatpush1.xpose.msra.mxu0 0.0
  %1961 = vmatprep.subr.mxu0 0.0
  %1962 = vmatpush1.xpose.msra.mxu0 0.0
  %1963 = vmatprep.subr.mxu0 0.0
  %1964 = vmatpush1.xpose.msra.mxu0 0.0
  %1965 = vmatprep.subr.mxu0 0.0
  %1966 = vmatpush1.xpose.msra.mxu0 0.0
  %1967 = vmatprep.subr.mxu0 0.0
  %1968 = vmatpush1.xpose.msra.mxu0 0.0
  %1969 = vmatprep.subr.mxu0 0.0
  %1970 = vmatpush1.xpose.msra.mxu0 0.0
  %1971 = vmatprep.subr.mxu0 0.0
  %1972 = vmatpush1.xpose.msra.mxu0 0.0
  %1973 = vmatprep.subr.mxu0 0.0
  %1974 = vmatpush1.xpose.msra.mxu0 0.0
  %1975 = vmatprep.subr.mxu0 0.0
  %1976 = vmatpush1.xpose.msra.mxu0 0.0
  %1977 = vmatprep.subr.mxu0 0.0
  %1978 = vmatpush1.xpose.msra.mxu0 0.0
  %1979 = vmatprep.subr.mxu0 0.0
  %1980 = vmatpush1.xpose.msra.mxu0 0.0
  %1981 = vmatprep.subr.mxu0 0.0
  %1982 = vmatpush1.xpose.msra.mxu0 0.0
  %1983 = vmatprep.subr.mxu0 0.0
  %1984 = vmatpush1.xpose.msra.mxu0 0.0
  %1985 = vmatprep.subr.mxu0 0.0
  %1986 = vmatpush1.xpose.msra.mxu0 0.0
  %1987 = vmatprep.subr.mxu0 0.0
  %1988 = vmatpush1.xpose.msra.mxu0 0.0
  %1989 = vmatprep.subr.mxu0 0.0
  %1990 = vmatpush1.xpose.msra.mxu0 0.0
  %1991 = vmatprep.subr.mxu0 0.0
  %1992 = vmatpush1.xpose.msra.mxu0 0.0
  %1993 = vmatprep.subr.mxu0 0.0
  %1994 = vmatpush1.xpose.msra.mxu0 0.0
  %1995 = vmatprep.subr.mxu0 0.0
  %1996 = vmatpush1.xpose.msra.mxu0 0.0
  %1997 = vmatprep.subr.mxu0 0.0
  %1998 = vmatpush1.xpose.msra.mxu0 0.0
  %1999 = vmatprep.subr.mxu0 0.0
  %2000 = vmatpush1.xpose.msra.mxu0 0.0
  %2001 = vmatprep.subr.mxu0 0.0
  %2002 = vmatpush1.xpose.msra.mxu0 0.0
  %2003 = vmatprep.subr.mxu0 0.0
  %2004 = vmatpush1.xpose.msra.mxu0 0.0
  %2005 = vmatprep.subr.mxu0 0.0
  %2006 = vmatpush1.xpose.msra.mxu0 0.0
  %2007 = vmatprep.subr.mxu0 0.0
  %2008 = vmatpush1.xpose.msra.mxu0 0.0
  %2009 = vmatprep.subr.mxu0 0.0
  %2010 = vmatpush1.xpose.msra.mxu0 0.0
  %2011 = vmatprep.subr.mxu0 0.0
  %2012 = vmatpush1.xpose.msra.mxu0 0.0
  %2013 = vmatprep.subr.mxu0 0.0
  %2014 = vmatpush1.xpose.msra.mxu0 0.0
  %2015 = vmatprep.subr.mxu0 0.0
  %2016 = vmatpush1.xpose.msra.mxu0 0.0
  %2017 = vmatprep.mubr.f32.mxu0 0.0
  %2018 = vmatmul.mubr.f32.gmra.mrb[0].mxu0 %v1948
  %v2019 = vpop.f32.mrb[0].mxu0
  %v2020 = vadd.f32 0.0, %v2019
  %v2021 = vpop.f32.mrb[0].mxu0
  %2022 = vdwg.mxu0
  %v2023 = vsel %vm533, %v1944, -inf
  %2024 = vmax.xlane.f32.xlu0 %v2023
  %v2025 = vpop.xlane.xlu0 %2024
  %v2026 = vsel %vm533, %v2020, -inf
  %2027 = vmax.xlane.f32.xlu0 %v2026
  %v2028 = vpop.xlane.xlu0 %2027
  %v2029 = vsub.f32 %v1944, %v2025
  %v2030 = vsub.f32 %v2020, %v2028
  %v2031 = vmul.f32 %v2029, 1.442695
  %v2032 = vpow.pop %v2031
  %v2033 = vmul.f32 %v2030, 1.442695
  %v2034 = vpow.pop %v2033
  %v2035 = vsel %vm533, %v2032, 0.0
  %2036 = vadd.xlane.f32.xlu0 %v2035
  %v2037 = vpop.xlane.xlu0 %2036
  %v2038 = vsel %vm533, %v2034, 0.0
  %2039 = vadd.xlane.f32.xlu0 %v2038
  %v2040 = vpop.xlane.xlu0 %2039
  %v2041 = vrcp.pop %v2037
  %v2042 = vrcp.pop %v2040
  %v2043 = vmul.f32 %v2032, %v2041
  %v2044 = vmul.f32 %v2034, %v2042
  %v2046 = vsel %vm533, %v2043, 0
  %2048 = vmatprep.subr.mxu0 0.0
  %2049 = vmatpush1.msra.mxu0 %v1861
  %2050 = vmatprep.subr.mxu0 0.0
  %2051 = vmatpush1.msra.mxu0 0.0
  %2052 = vmatprep.subr.mxu0 0.0
  %2053 = vmatpush1.msra.mxu0 0.0
  %2054 = vmatprep.subr.mxu0 0.0
  %2055 = vmatpush1.msra.mxu0 0.0
  %2056 = vmatprep.subr.mxu0 0.0
  %2057 = vmatpush1.msra.mxu0 0.0
  %2058 = vmatprep.subr.mxu0 0.0
  %2059 = vmatpush1.msra.mxu0 0.0
  %2060 = vmatprep.subr.mxu0 0.0
  %2061 = vmatpush1.msra.mxu0 0.0
  %2062 = vmatprep.subr.mxu0 0.0
  %2063 = vmatpush1.msra.mxu0 0.0
  %2064 = vmatprep.subr.mxu0 0.0
  %2065 = vmatpush1.msra.mxu0 0.0
  %2066 = vmatprep.subr.mxu0 0.0
  %2067 = vmatpush1.msra.mxu0 0.0
  %2068 = vmatprep.subr.mxu0 0.0
  %2069 = vmatpush1.msra.mxu0 0.0
  %2070 = vmatprep.subr.mxu0 0.0
  %2071 = vmatpush1.msra.mxu0 0.0
  %2072 = vmatprep.subr.mxu0 0.0
  %2073 = vmatpush1.msra.mxu0 0.0
  %2074 = vmatprep.subr.mxu0 0.0
  %2075 = vmatpush1.msra.mxu0 0.0
  %2076 = vmatprep.subr.mxu0 0.0
  %2077 = vmatpush1.msra.mxu0 0.0
  %2078 = vmatprep.subr.mxu0 0.0
  %2079 = vmatpush1.msra.mxu0 0.0
  %2080 = vmatprep.subr.mxu0 0.0
  %2081 = vmatpush1.msra.mxu0 0.0
  %2082 = vmatprep.subr.mxu0 0.0
  %2083 = vmatpush1.msra.mxu0 0.0
  %2084 = vmatprep.subr.mxu0 0.0
  %2085 = vmatpush1.msra.mxu0 0.0
  %2086 = vmatprep.subr.mxu0 0.0
  %2087 = vmatpush1.msra.mxu0 0.0
  %2088 = vmatprep.subr.mxu0 0.0
  %2089 = vmatpush1.msra.mxu0 0.0
  %2090 = vmatprep.subr.mxu0 0.0
  %2091 = vmatpush1.msra.mxu0 0.0
  %2092 = vmatprep.subr.mxu0 0.0
  %2093 = vmatpush1.msra.mxu0 0.0
  %2094 = vmatprep.subr.mxu0 0.0
  %2095 = vmatpush1.msra.mxu0 0.0
  %2096 = vmatprep.subr.mxu0 0.0
  %2097 = vmatpush1.msra.mxu0 0.0
  %2098 = vmatprep.subr.mxu0 0.0
  %2099 = vmatpush1.msra.mxu0 0.0
  %2100 = vmatprep.subr.mxu0 0.0
  %2101 = vmatpush1.msra.mxu0 0.0
  %2102 = vmatprep.subr.mxu0 0.0
  %2103 = vmatpush1.msra.mxu0 0.0
  %2104 = vmatprep.subr.mxu0 0.0
  %2105 = vmatpush1.msra.mxu0 0.0
  %2106 = vmatprep.subr.mxu0 0.0
  %2107 = vmatpush1.msra.mxu0 0.0
  %2108 = vmatprep.subr.mxu0 0.0
  %2109 = vmatpush1.msra.mxu0 0.0
  %2110 = vmatprep.subr.mxu0 0.0
  %2111 = vmatpush1.msra.mxu0 0.0
  %2112 = vmatprep.mubr.f32.mxu0 0.0
  %2113 = vmatmul.mubr.f32.gmra.mrb[0].mxu0 %v2046
  %v2114 = vpop.f32.mrb[0].mxu0
  %v2115 = vadd.f32 0.0, %v2114
  %v2116 = vpop.f32.mrb[0].mxu0
  %2117 = vdwg.mxu0
  %v2119 = vsel %vm533, %v2044, 0
  %2121 = vmatprep.subr.mxu0 0.0
  %2122 = vmatpush1.msra.mxu0 %v1866
  %2123 = vmatprep.subr.mxu0 0.0
  %2124 = vmatpush1.msra.mxu0 0.0
  %2125 = vmatprep.subr.mxu0 0.0
  %2126 = vmatpush1.msra.mxu0 0.0
  %2127 = vmatprep.subr.mxu0 0.0
  %2128 = vmatpush1.msra.mxu0 0.0
  %2129 = vmatprep.subr.mxu0 0.0
  %2130 = vmatpush1.msra.mxu0 0.0
  %2131 = vmatprep.subr.mxu0 0.0
  %2132 = vmatpush1.msra.mxu0 0.0
  %2133 = vmatprep.subr.mxu0 0.0
  %2134 = vmatpush1.msra.mxu0 0.0
  %2135 = vmatprep.subr.mxu0 0.0
  %2136 = vmatpush1.msra.mxu0 0.0
  %2137 = vmatprep.subr.mxu0 0.0
  %2138 = vmatpush1.msra.mxu0 0.0
  %2139 = vmatprep.subr.mxu0 0.0
  %2140 = vmatpush1.msra.mxu0 0.0
  %2141 = vmatprep.subr.mxu0 0.0
  %2142 = vmatpush1.msra.mxu0 0.0
  %2143 = vmatprep.subr.mxu0 0.0
  %2144 = vmatpush1.msra.mxu0 0.0
  %2145 = vmatprep.subr.mxu0 0.0
  %2146 = vmatpush1.msra.mxu0 0.0
  %2147 = vmatprep.subr.mxu0 0.0
  %2148 = vmatpush1.msra.mxu0 0.0
  %2149 = vmatprep.subr.mxu0 0.0
  %2150 = vmatpush1.msra.mxu0 0.0
  %2151 = vmatprep.subr.mxu0 0.0
  %2152 = vmatpush1.msra.mxu0 0.0
  %2153 = vmatprep.subr.mxu0 0.0
  %2154 = vmatpush1.msra.mxu0 0.0
  %2155 = vmatprep.subr.mxu0 0.0
  %2156 = vmatpush1.msra.mxu0 0.0
  %2157 = vmatprep.subr.mxu0 0.0
  %2158 = vmatpush1.msra.mxu0 0.0
  %2159 = vmatprep.subr.mxu0 0.0
  %2160 = vmatpush1.msra.mxu0 0.0
  %2161 = vmatprep.subr.mxu0 0.0
  %2162 = vmatpush1.msra.mxu0 0.0
  %2163 = vmatprep.subr.mxu0 0.0
  %2164 = vmatpush1.msra.mxu0 0.0
  %2165 = vmatprep.subr.mxu0 0.0
  %2166 = vmatpush1.msra.mxu0 0.0
  %2167 = vmatprep.subr.mxu0 0.0
  %2168 = vmatpush1.msra.mxu0 0.0
  %2169 = vmatprep.subr.mxu0 0.0
  %2170 = vmatpush1.msra.mxu0 0.0
  %2171 = vmatprep.subr.mxu0 0.0
  %2172 = vmatpush1.msra.mxu0 0.0
  %2173 = vmatprep.subr.mxu0 0.0
  %2174 = vmatpush1.msra.mxu0 0.0
  %2175 = vmatprep.subr.mxu0 0.0
  %2176 = vmatpush1.msra.mxu0 0.0
  %2177 = vmatprep.subr.mxu0 0.0
  %2178 = vmatpush1.msra.mxu0 0.0
  %2179 = vmatprep.subr.mxu0 0.0
  %2180 = vmatpush1.msra.mxu0 0.0
  %2181 = vmatprep.subr.mxu0 0.0
  %2182 = vmatpush1.msra.mxu0 0.0
  %2183 = vmatprep.subr.mxu0 0.0
  %2184 = vmatpush1.msra.mxu0 0.0
  %2185 = vmatprep.mubr.f32.mxu0 0.0
  %2186 = vmatmul.mubr.f32.gmra.mrb[0].mxu0 %v2119
  %v2187 = vpop.f32.mrb[0].mxu0
  %v2188 = vadd.f32 0.0, %v2187
  %v2189 = vpop.f32.mrb[0].mxu0
  %2190 = vdwg.mxu0
  %s2191 = scalar_lea.vmem %s17, 16
  %v2192 = vld [vmem:[%s2191] sm:$0xff]
  %v2194 = vsel %vm533, %v2115, 0
  %v2197 = vsel %vm533, %v2188, 0
  %2199 = vmatprep.subr.mxu0 0.0
  %2200 = vmatpush1.msra.mxu0 %v2192
  %2201 = vmatprep.subr.mxu0 0.0
  %2202 = vmatpush1.msra.mxu0 0.0
  %2203 = vmatprep.subr.mxu0 0.0
  %2204 = vmatpush1.msra.mxu0 0.0
  %2205 = vmatprep.subr.mxu0 0.0
  %2206 = vmatpush1.msra.mxu0 0.0
  %2207 = vmatprep.subr.mxu0 0.0
  %2208 = vmatpush1.msra.mxu0 0.0
  %2209 = vmatprep.subr.mxu0 0.0
  %2210 = vmatpush1.msra.mxu0 0.0
  %2211 = vmatprep.subr.mxu0 0.0
  %2212 = vmatpush1.msra.mxu0 0.0
  %2213 = vmatprep.subr.mxu0 0.0
  %2214 = vmatpush1.msra.mxu0 0.0
  %2215 = vmatprep.subr.mxu0 0.0
  %2216 = vmatpush1.msra.mxu0 0.0
  %2217 = vmatprep.subr.mxu0 0.0
  %2218 = vmatpush1.msra.mxu0 0.0
  %2219 = vmatprep.subr.mxu0 0.0
  %2220 = vmatpush1.msra.mxu0 0.0
  %2221 = vmatprep.subr.mxu0 0.0
  %2222 = vmatpush1.msra.mxu0 0.0
  %2223 = vmatprep.subr.mxu0 0.0
  %2224 = vmatpush1.msra.mxu0 0.0
  %2225 = vmatprep.subr.mxu0 0.0
  %2226 = vmatpush1.msra.mxu0 0.0
  %2227 = vmatprep.subr.mxu0 0.0
  %2228 = vmatpush1.msra.mxu0 0.0
  %2229 = vmatprep.subr.mxu0 0.0
  %2230 = vmatpush1.msra.mxu0 0.0
  %2231 = vmatprep.subr.mxu0 0.0
  %2232 = vmatpush1.msra.mxu0 0.0
  %2233 = vmatprep.subr.mxu0 0.0
  %2234 = vmatpush1.msra.mxu0 0.0
  %2235 = vmatprep.subr.mxu0 0.0
  %2236 = vmatpush1.msra.mxu0 0.0
  %2237 = vmatprep.subr.mxu0 0.0
  %2238 = vmatpush1.msra.mxu0 0.0
  %2239 = vmatprep.subr.mxu0 0.0
  %2240 = vmatpush1.msra.mxu0 0.0
  %2241 = vmatprep.subr.mxu0 0.0
  %2242 = vmatpush1.msra.mxu0 0.0
  %2243 = vmatprep.subr.mxu0 0.0
  %2244 = vmatpush1.msra.mxu0 0.0
  %2245 = vmatprep.subr.mxu0 0.0
  %2246 = vmatpush1.msra.mxu0 0.0
  %2247 = vmatprep.subr.mxu0 0.0
  %2248 = vmatpush1.msra.mxu0 0.0
  %2249 = vmatprep.subr.mxu0 0.0
  %2250 = vmatpush1.msra.mxu0 0.0
  %2251 = vmatprep.subr.mxu0 0.0
  %2252 = vmatpush1.msra.mxu0 0.0
  %2253 = vmatprep.subr.mxu0 0.0
  %2254 = vmatpush1.msra.mxu0 0.0
  %2255 = vmatprep.subr.mxu0 0.0
  %2256 = vmatpush1.msra.mxu0 0.0
  %2257 = vmatprep.subr.mxu0 0.0
  %2258 = vmatpush1.msra.mxu0 0.0
  %2259 = vmatprep.subr.mxu0 0.0
  %2260 = vmatpush1.msra.mxu0 0.0
  %2261 = vmatprep.subr.mxu0 0.0
  %2262 = vmatpush1.msra.mxu0 0.0
  %2263 = vmatprep.mubr.f32.mxu0 0.0
  %2264 = vmatmul.mubr.f32.gmra.mrb[0].mxu0 %v2194
  %v2265 = vpop.f32.mrb[0].mxu0
  %v2266 = vadd.f32 0.0, %v2265
  %v2267 = vpop.f32.mrb[0].mxu0
  %2268 = vmatprep.mubr.f32.mxu0 0.0
  %2269 = vmatmul.mubr.f32.gmra.mrb[0].mxu0 %v2197
  %v2270 = vpop.f32.mrb[0].mxu0
  %v2271 = vadd.f32 0.0, %v2270
  %v2272 = vpop.f32.mrb[0].mxu0
  %2273 = vdwg.mxu0
  %v2274 = vadd.f32 %v1597, %v2266
  %v2275 = vadd.f32 %v1602, %v2271
  %s2276 = scalar_lea.vmem %s5, 96
  %v2277 = vld [vmem:[%s2276] sm:$0xff]
  %v2278 = vld [vmem:[%s2276 + $0x8] sm:$0xff]
  %v2279 = vld [vmem:[%s2276 + $0x10] sm:$0xff]
  %v2280 = vld [vmem:[%s2276 + $0x18] sm:$0xff]
  %s2281 = scalar_lea.vmem %s7, 3
  %v2282 = vld [vmem:[%s2281] sm:$0x1]
  %v2284 = vlaneseq
  %v2285 = vshrl.u32 %v2284, 7
  %v2286 = vsub.s32 0, %v2285
  %v2287 = vrot.slane %v2282, %v2286
  %2289 = vmatprep.subr.mxu0 0.0
  %2290 = vmatpush1.msra.mxu0 %v2277
  %2291 = vmatprep.subr.mxu0 0.0
  %2292 = vmatpush1.msra.mxu0 %v2278
  %2293 = vmatprep.subr.mxu0 0.0
  %2294 = vmatpush1.msra.mxu0 %v2279
  %2295 = vmatprep.subr.mxu0 0.0
  %2296 = vmatpush1.msra.mxu0 %v2280
  %2297 = vmatprep.subr.mxu0 0.0
  %2298 = vmatpush1.msra.mxu0 0.0
  %2299 = vmatprep.subr.mxu0 0.0
  %2300 = vmatpush1.msra.mxu0 0.0
  %2301 = vmatprep.subr.mxu0 0.0
  %2302 = vmatpush1.msra.mxu0 0.0
  %2303 = vmatprep.subr.mxu0 0.0
  %2304 = vmatpush1.msra.mxu0 0.0
  %2305 = vmatprep.subr.mxu0 0.0
  %2306 = vmatpush1.msra.mxu0 0.0
  %2307 = vmatprep.subr.mxu0 0.0
  %2308 = vmatpush1.msra.mxu0 0.0
  %2309 = vmatprep.subr.mxu0 0.0
  %2310 = vmatpush1.msra.mxu0 0.0
  %2311 = vmatprep.subr.mxu0 0.0
  %2312 = vmatpush1.msra.mxu0 0.0
  %2313 = vmatprep.subr.mxu0 0.0
  %2314 = vmatpush1.msra.mxu0 0.0
  %2315 = vmatprep.subr.mxu0 0.0
  %2316 = vmatpush1.msra.mxu0 0.0
  %2317 = vmatprep.subr.mxu0 0.0
  %2318 = vmatpush1.msra.mxu0 0.0
  %2319 = vmatprep.subr.mxu0 0.0
  %2320 = vmatpush1.msra.mxu0 0.0
  %2321 = vmatprep.subr.mxu0 0.0
  %2322 = vmatpush1.msra.mxu0 0.0
  %2323 = vmatprep.subr.mxu0 0.0
  %2324 = vmatpush1.msra.mxu0 0.0
  %2325 = vmatprep.subr.mxu0 0.0
  %2326 = vmatpush1.msra.mxu0 0.0
  %2327 = vmatprep.subr.mxu0 0.0
  %2328 = vmatpush1.msra.mxu0 0.0
  %2329 = vmatprep.subr.mxu0 0.0
  %2330 = vmatpush1.msra.mxu0 0.0
  %2331 = vmatprep.subr.mxu0 0.0
  %2332 = vmatpush1.msra.mxu0 0.0
  %2333 = vmatprep.subr.mxu0 0.0
  %2334 = vmatpush1.msra.mxu0 0.0
  %2335 = vmatprep.subr.mxu0 0.0
  %2336 = vmatpush1.msra.mxu0 0.0
  %2337 = vmatprep.subr.mxu0 0.0
  %2338 = vmatpush1.msra.mxu0 0.0
  %2339 = vmatprep.subr.mxu0 0.0
  %2340 = vmatpush1.msra.mxu0 0.0
  %2341 = vmatprep.subr.mxu0 0.0
  %2342 = vmatpush1.msra.mxu0 0.0
  %2343 = vmatprep.subr.mxu0 0.0
  %2344 = vmatpush1.msra.mxu0 0.0
  %2345 = vmatprep.subr.mxu0 0.0
  %2346 = vmatpush1.msra.mxu0 0.0
  %2347 = vmatprep.subr.mxu0 0.0
  %2348 = vmatpush1.msra.mxu0 0.0
  %2349 = vmatprep.subr.mxu0 0.0
  %2350 = vmatpush1.msra.mxu0 0.0
  %2351 = vmatprep.subr.mxu0 0.0
  %2352 = vmatpush1.msra.mxu0 0.0
  %2353 = vmatprep.mubr.f32.mxu0 0.0
  %2354 = vmatmul.mubr.f32.gmra.mrb[0].mxu0 %v279
  %v2355 = vpop.f32.mrb[0].mxu0
  %v2356 = vadd.f32 %v2287, %v2355
  %v2357 = vpop.f32.mrb[0].mxu0
  %2358 = vmatprep.mubr.f32.mxu0 0.0
  %2359 = vmatmul.mubr.f32.gmra.mrb[0].mxu0 %v282
  %v2360 = vpop.f32.mrb[0].mxu0
  %v2361 = vadd.f32 %v2287, %v2360
  %v2362 = vpop.f32.mrb[0].mxu0
  %2363 = vdwg.mxu0
  %s2364 = scalar_lea.vmem %s9, 96
  %v2365 = vld [vmem:[%s2364] sm:$0xff]
  %v2366 = vld [vmem:[%s2364 + $0x8] sm:$0xff]
  %v2367 = vld [vmem:[%s2364 + $0x10] sm:$0xff]
  %v2368 = vld [vmem:[%s2364 + $0x18] sm:$0xff]
  %s2369 = scalar_lea.vmem %s11, 3
  %v2370 = vld [vmem:[%s2369] sm:$0x1]
  %v2372 = vlaneseq
  %v2373 = vshrl.u32 %v2372, 7
  %v2374 = vsub.s32 0, %v2373
  %v2375 = vrot.slane %v2370, %v2374
  %2377 = vmatprep.subr.mxu0 0.0
  %2378 = vmatpush1.msra.mxu0 %v2365
  %2379 = vmatprep.subr.mxu0 0.0
  %2380 = vmatpush1.msra.mxu0 %v2366
  %2381 = vmatprep.subr.mxu0 0.0
  %2382 = vmatpush1.msra.mxu0 %v2367
  %2383 = vmatprep.subr.mxu0 0.0
  %2384 = vmatpush1.msra.mxu0 %v2368
  %2385 = vmatprep.subr.mxu0 0.0
  %2386 = vmatpush1.msra.mxu0 0.0
  %2387 = vmatprep.subr.mxu0 0.0
  %2388 = vmatpush1.msra.mxu0 0.0
  %2389 = vmatprep.subr.mxu0 0.0
  %2390 = vmatpush1.msra.mxu0 0.0
  %2391 = vmatprep.subr.mxu0 0.0
  %2392 = vmatpush1.msra.mxu0 0.0
  %2393 = vmatprep.subr.mxu0 0.0
  %2394 = vmatpush1.msra.mxu0 0.0
  %2395 = vmatprep.subr.mxu0 0.0
  %2396 = vmatpush1.msra.mxu0 0.0
  %2397 = vmatprep.subr.mxu0 0.0
  %2398 = vmatpush1.msra.mxu0 0.0
  %2399 = vmatprep.subr.mxu0 0.0
  %2400 = vmatpush1.msra.mxu0 0.0
  %2401 = vmatprep.subr.mxu0 0.0
  %2402 = vmatpush1.msra.mxu0 0.0
  %2403 = vmatprep.subr.mxu0 0.0
  %2404 = vmatpush1.msra.mxu0 0.0
  %2405 = vmatprep.subr.mxu0 0.0
  %2406 = vmatpush1.msra.mxu0 0.0
  %2407 = vmatprep.subr.mxu0 0.0
  %2408 = vmatpush1.msra.mxu0 0.0
  %2409 = vmatprep.subr.mxu0 0.0
  %2410 = vmatpush1.msra.mxu0 0.0
  %2411 = vmatprep.subr.mxu0 0.0
  %2412 = vmatpush1.msra.mxu0 0.0
  %2413 = vmatprep.subr.mxu0 0.0
  %2414 = vmatpush1.msra.mxu0 0.0
  %2415 = vmatprep.subr.mxu0 0.0
  %2416 = vmatpush1.msra.mxu0 0.0
  %2417 = vmatprep.subr.mxu0 0.0
  %2418 = vmatpush1.msra.mxu0 0.0
  %2419 = vmatprep.subr.mxu0 0.0
  %2420 = vmatpush1.msra.mxu0 0.0
  %2421 = vmatprep.subr.mxu0 0.0
  %2422 = vmatpush1.msra.mxu0 0.0
  %2423 = vmatprep.subr.mxu0 0.0
  %2424 = vmatpush1.msra.mxu0 0.0
  %2425 = vmatprep.subr.mxu0 0.0
  %2426 = vmatpush1.msra.mxu0 0.0
  %2427 = vmatprep.subr.mxu0 0.0
  %2428 = vmatpush1.msra.mxu0 0.0
  %2429 = vmatprep.subr.mxu0 0.0
  %2430 = vmatpush1.msra.mxu0 0.0
  %2431 = vmatprep.subr.mxu0 0.0
  %2432 = vmatpush1.msra.mxu0 0.0
  %2433 = vmatprep.subr.mxu0 0.0
  %2434 = vmatpush1.msra.mxu0 0.0
  %2435 = vmatprep.subr.mxu0 0.0
  %2436 = vmatpush1.msra.mxu0 0.0
  %2437 = vmatprep.subr.mxu0 0.0
  %2438 = vmatpush1.msra.mxu0 0.0
  %2439 = vmatprep.subr.mxu0 0.0
  %2440 = vmatpush1.msra.mxu0 0.0
  %2441 = vmatprep.mubr.f32.mxu0 0.0
  %2442 = vmatmul.mubr.f32.gmra.mrb[0].mxu0 %v279
  %v2443 = vpop.f32.mrb[0].mxu0
  %v2444 = vadd.f32 %v2375, %v2443
  %v2445 = vpop.f32.mrb[0].mxu0
  %2446 = vmatprep.mubr.f32.mxu0 0.0
  %2447 = vmatmul.mubr.f32.gmra.mrb[0].mxu0 %v282
  %v2448 = vpop.f32.mrb[0].mxu0
  %v2449 = vadd.f32 %v2375, %v2448
  %v2450 = vpop.f32.mrb[0].mxu0
  %2451 = vdwg.mxu0
  %s2452 = scalar_lea.vmem %s13, 96
  %v2453 = vld [vmem:[%s2452] sm:$0xff]
  %v2454 = vld [vmem:[%s2452 + $0x8] sm:$0xff]
  %v2455 = vld [vmem:[%s2452 + $0x10] sm:$0xff]
  %v2456 = vld [vmem:[%s2452 + $0x18] sm:$0xff]
  %s2457 = scalar_lea.vmem %s15, 3
  %v2458 = vld [vmem:[%s2457] sm:$0x1]
  %v2460 = vlaneseq
  %v2461 = vshrl.u32 %v2460, 7
  %v2462 = vsub.s32 0, %v2461
  %v2463 = vrot.slane %v2458, %v2462
  %2465 = vmatprep.subr.mxu0 0.0
  %2466 = vmatpush1.msra.mxu0 %v2453
  %2467 = vmatprep.subr.mxu0 0.0
  %2468 = vmatpush1.msra.mxu0 %v2454
  %2469 = vmatprep.subr.mxu0 0.0
  %2470 = vmatpush1.msra.mxu0 %v2455
  %2471 = vmatprep.subr.mxu0 0.0
  %2472 = vmatpush1.msra.mxu0 %v2456
  %2473 = vmatprep.subr.mxu0 0.0
  %2474 = vmatpush1.msra.mxu0 0.0
  %2475 = vmatprep.subr.mxu0 0.0
  %2476 = vmatpush1.msra.mxu0 0.0
  %2477 = vmatprep.subr.mxu0 0.0
  %2478 = vmatpush1.msra.mxu0 0.0
  %2479 = vmatprep.subr.mxu0 0.0
  %2480 = vmatpush1.msra.mxu0 0.0
  %2481 = vmatprep.subr.mxu0 0.0
  %2482 = vmatpush1.msra.mxu0 0.0
  %2483 = vmatprep.subr.mxu0 0.0
  %2484 = vmatpush1.msra.mxu0 0.0
  %2485 = vmatprep.subr.mxu0 0.0
  %2486 = vmatpush1.msra.mxu0 0.0
  %2487 = vmatprep.subr.mxu0 0.0
  %2488 = vmatpush1.msra.mxu0 0.0
  %2489 = vmatprep.subr.mxu0 0.0
  %2490 = vmatpush1.msra.mxu0 0.0
  %2491 = vmatprep.subr.mxu0 0.0
  %2492 = vmatpush1.msra.mxu0 0.0
  %2493 = vmatprep.subr.mxu0 0.0
  %2494 = vmatpush1.msra.mxu0 0.0
  %2495 = vmatprep.subr.mxu0 0.0
  %2496 = vmatpush1.msra.mxu0 0.0
  %2497 = vmatprep.subr.mxu0 0.0
  %2498 = vmatpush1.msra.mxu0 0.0
  %2499 = vmatprep.subr.mxu0 0.0
  %2500 = vmatpush1.msra.mxu0 0.0
  %2501 = vmatprep.subr.mxu0 0.0
  %2502 = vmatpush1.msra.mxu0 0.0
  %2503 = vmatprep.subr.mxu0 0.0
  %2504 = vmatpush1.msra.mxu0 0.0
  %2505 = vmatprep.subr.mxu0 0.0
  %2506 = vmatpush1.msra.mxu0 0.0
  %2507 = vmatprep.subr.mxu0 0.0
  %2508 = vmatpush1.msra.mxu0 0.0
  %2509 = vmatprep.subr.mxu0 0.0
  %2510 = vmatpush1.msra.mxu0 0.0
  %2511 = vmatprep.subr.mxu0 0.0
  %2512 = vmatpush1.msra.mxu0 0.0
  %2513 = vmatprep.subr.mxu0 0.0
  %2514 = vmatpush1.msra.mxu0 0.0
  %2515 = vmatprep.subr.mxu0 0.0
  %2516 = vmatpush1.msra.mxu0 0.0
  %2517 = vmatprep.subr.mxu0 0.0
  %2518 = vmatpush1.msra.mxu0 0.0
  %2519 = vmatprep.subr.mxu0 0.0
  %2520 = vmatpush1.msra.mxu0 0.0
  %2521 = vmatprep.subr.mxu0 0.0
  %2522 = vmatpush1.msra.mxu0 0.0
  %2523 = vmatprep.subr.mxu0 0.0
  %2524 = vmatpush1.msra.mxu0 0.0
  %2525 = vmatprep.subr.mxu0 0.0
  %2526 = vmatpush1.msra.mxu0 0.0
  %2527 = vmatprep.subr.mxu0 0.0
  %2528 = vmatpush1.msra.mxu0 0.0
  %2529 = vmatprep.mubr.f32.mxu0 0.0
  %2530 = vmatmul.mubr.f32.gmra.mrb[0].mxu0 %v279
  %v2531 = vpop.f32.mrb[0].mxu0
  %v2532 = vadd.f32 %v2463, %v2531
  %v2533 = vpop.f32.mrb[0].mxu0
  %2534 = vmatprep.mubr.f32.mxu0 0.0
  %2535 = vmatmul.mubr.f32.gmra.mrb[0].mxu0 %v282
  %v2536 = vpop.f32.mrb[0].mxu0
  %v2537 = vadd.f32 %v2463, %v2536
  %v2538 = vpop.f32.mrb[0].mxu0
  %2539 = vdwg.mxu0
  %v2540 = vmul.f32 %v2356, 0.35355338
  %v2541 = vmul.f32 %v2361, 0.35355338
  %v2543 = vsel %vm533, %v2540, 0
  %v2546 = vsel %vm533, %v2444, 0
  %2548 = vmatprep.subr.mxu0 0.0
  %2549 = vmatpush1.xpose.msra.mxu0 %v2546
  %2550 = vmatprep.subr.mxu0 0.0
  %2551 = vmatpush1.xpose.msra.mxu0 0.0
  %2552 = vmatprep.subr.mxu0 0.0
  %2553 = vmatpush1.xpose.msra.mxu0 0.0
  %2554 = vmatprep.subr.mxu0 0.0
  %2555 = vmatpush1.xpose.msra.mxu0 0.0
  %2556 = vmatprep.subr.mxu0 0.0
  %2557 = vmatpush1.xpose.msra.mxu0 0.0
  %2558 = vmatprep.subr.mxu0 0.0
  %2559 = vmatpush1.xpose.msra.mxu0 0.0
  %2560 = vmatprep.subr.mxu0 0.0
  %2561 = vmatpush1.xpose.msra.mxu0 0.0
  %2562 = vmatprep.subr.mxu0 0.0
  %2563 = vmatpush1.xpose.msra.mxu0 0.0
  %2564 = vmatprep.subr.mxu0 0.0
  %2565 = vmatpush1.xpose.msra.mxu0 0.0
  %2566 = vmatprep.subr.mxu0 0.0
  %2567 = vmatpush1.xpose.msra.mxu0 0.0
  %2568 = vmatprep.subr.mxu0 0.0
  %2569 = vmatpush1.xpose.msra.mxu0 0.0
  %2570 = vmatprep.subr.mxu0 0.0
  %2571 = vmatpush1.xpose.msra.mxu0 0.0
  %2572 = vmatprep.subr.mxu0 0.0
  %2573 = vmatpush1.xpose.msra.mxu0 0.0
  %2574 = vmatprep.subr.mxu0 0.0
  %2575 = vmatpush1.xpose.msra.mxu0 0.0
  %2576 = vmatprep.subr.mxu0 0.0
  %2577 = vmatpush1.xpose.msra.mxu0 0.0
  %2578 = vmatprep.subr.mxu0 0.0
  %2579 = vmatpush1.xpose.msra.mxu0 0.0
  %2580 = vmatprep.subr.mxu0 0.0
  %2581 = vmatpush1.xpose.msra.mxu0 0.0
  %2582 = vmatprep.subr.mxu0 0.0
  %2583 = vmatpush1.xpose.msra.mxu0 0.0
  %2584 = vmatprep.subr.mxu0 0.0
  %2585 = vmatpush1.xpose.msra.mxu0 0.0
  %2586 = vmatprep.subr.mxu0 0.0
  %2587 = vmatpush1.xpose.msra.mxu0 0.0
  %2588 = vmatprep.subr.mxu0 0.0
  %2589 = vmatpush1.xpose.msra.mxu0 0.0
  %2590 = vmatprep.subr.mxu0 0.0
  %2591 = vmatpush1.xpose.msra.mxu0 0.0
  %2592 = vmatprep.subr.mxu0 0.0
  %2593 = vmatpush1.xpose.msra.mxu0 0.0
  %2594 = vmatprep.subr.mxu0 0.0
  %2595 = vmatpush1.xpose.msra.mxu0 0.0
  %2596 = vmatprep.subr.mxu0 0.0
  %2597 = vmatpush1.xpose.msra.mxu0 0.0
  %2598 = vmatprep.subr.mxu0 0.0
  %2599 = vmatpush1.xpose.msra.mxu0 0.0
  %2600 = vmatprep.subr.mxu0 0.0
  %2601 = vmatpush1.xpose.msra.mxu0 0.0
  %2602 = vmatprep.subr.mxu0 0.0
  %2603 = vmatpush1.xpose.msra.mxu0 0.0
  %2604 = vmatprep.subr.mxu0 0.0
  %2605 = vmatpush1.xpose.msra.mxu0 0.0
  %2606 = vmatprep.subr.mxu0 0.0
  %2607 = vmatpush1.xpose.msra.mxu0 0.0
  %2608 = vmatprep.subr.mxu0 0.0
  %2609 = vmatpush1.xpose.msra.mxu0 0.0
  %2610 = vmatprep.subr.mxu0 0.0
  %2611 = vmatpush1.xpose.msra.mxu0 0.0
  %2612 = vmatprep.mubr.f32.mxu0 0.0
  %2613 = vmatmul.mubr.f32.gmra.mrb[0].mxu0 %v2543
  %v2614 = vpop.f32.mrb[0].mxu0
  %v2615 = vadd.f32 0.0, %v2614
  %v2616 = vpop.f32.mrb[0].mxu0
  %2617 = vdwg.mxu0
  %v2619 = vsel %vm533, %v2541, 0
  %v2622 = vsel %vm533, %v2449, 0
  %2624 = vmatprep.subr.mxu0 0.0
  %2625 = vmatpush1.xpose.msra.mxu0 %v2622
  %2626 = vmatprep.subr.mxu0 0.0
  %2627 = vmatpush1.xpose.msra.mxu0 0.0
  %2628 = vmatprep.subr.mxu0 0.0
  %2629 = vmatpush1.xpose.msra.mxu0 0.0
  %2630 = vmatprep.subr.mxu0 0.0
  %2631 = vmatpush1.xpose.msra.mxu0 0.0
  %2632 = vmatprep.subr.mxu0 0.0
  %2633 = vmatpush1.xpose.msra.mxu0 0.0
  %2634 = vmatprep.subr.mxu0 0.0
  %2635 = vmatpush1.xpose.msra.mxu0 0.0
  %2636 = vmatprep.subr.mxu0 0.0
  %2637 = vmatpush1.xpose.msra.mxu0 0.0
  %2638 = vmatprep.subr.mxu0 0.0
  %2639 = vmatpush1.xpose.msra.mxu0 0.0
  %2640 = vmatprep.subr.mxu0 0.0
  %2641 = vmatpush1.xpose.msra.mxu0 0.0
  %2642 = vmatprep.subr.mxu0 0.0
  %2643 = vmatpush1.xpose.msra.mxu0 0.0
  %2644 = vmatprep.subr.mxu0 0.0
  %2645 = vmatpush1.xpose.msra.mxu0 0.0
  %2646 = vmatprep.subr.mxu0 0.0
  %2647 = vmatpush1.xpose.msra.mxu0 0.0
  %2648 = vmatprep.subr.mxu0 0.0
  %2649 = vmatpush1.xpose.msra.mxu0 0.0
  %2650 = vmatprep.subr.mxu0 0.0
  %2651 = vmatpush1.xpose.msra.mxu0 0.0
  %2652 = vmatprep.subr.mxu0 0.0
  %2653 = vmatpush1.xpose.msra.mxu0 0.0
  %2654 = vmatprep.subr.mxu0 0.0
  %2655 = vmatpush1.xpose.msra.mxu0 0.0
  %2656 = vmatprep.subr.mxu0 0.0
  %2657 = vmatpush1.xpose.msra.mxu0 0.0
  %2658 = vmatprep.subr.mxu0 0.0
  %2659 = vmatpush1.xpose.msra.mxu0 0.0
  %2660 = vmatprep.subr.mxu0 0.0
  %2661 = vmatpush1.xpose.msra.mxu0 0.0
  %2662 = vmatprep.subr.mxu0 0.0
  %2663 = vmatpush1.xpose.msra.mxu0 0.0
  %2664 = vmatprep.subr.mxu0 0.0
  %2665 = vmatpush1.xpose.msra.mxu0 0.0
  %2666 = vmatprep.subr.mxu0 0.0
  %2667 = vmatpush1.xpose.msra.mxu0 0.0
  %2668 = vmatprep.subr.mxu0 0.0
  %2669 = vmatpush1.xpose.msra.mxu0 0.0
  %2670 = vmatprep.subr.mxu0 0.0
  %2671 = vmatpush1.xpose.msra.mxu0 0.0
  %2672 = vmatprep.subr.mxu0 0.0
  %2673 = vmatpush1.xpose.msra.mxu0 0.0
  %2674 = vmatprep.subr.mxu0 0.0
  %2675 = vmatpush1.xpose.msra.mxu0 0.0
  %2676 = vmatprep.subr.mxu0 0.0
  %2677 = vmatpush1.xpose.msra.mxu0 0.0
  %2678 = vmatprep.subr.mxu0 0.0
  %2679 = vmatpush1.xpose.msra.mxu0 0.0
  %2680 = vmatprep.subr.mxu0 0.0
  %2681 = vmatpush1.xpose.msra.mxu0 0.0
  %2682 = vmatprep.subr.mxu0 0.0
  %2683 = vmatpush1.xpose.msra.mxu0 0.0
  %2684 = vmatprep.subr.mxu0 0.0
  %2685 = vmatpush1.xpose.msra.mxu0 0.0
  %2686 = vmatprep.subr.mxu0 0.0
  %2687 = vmatpush1.xpose.msra.mxu0 0.0
  %2688 = vmatprep.mubr.f32.mxu0 0.0
  %2689 = vmatmul.mubr.f32.gmra.mrb[0].mxu0 %v2619
  %v2690 = vpop.f32.mrb[0].mxu0
  %v2691 = vadd.f32 0.0, %v2690
  %v2692 = vpop.f32.mrb[0].mxu0
  %2693 = vdwg.mxu0
  %v2694 = vsel %vm533, %v2615, -inf
  %2695 = vmax.xlane.f32.xlu0 %v2694
  %v2696 = vpop.xlane.xlu0 %2695
  %v2697 = vsel %vm533, %v2691, -inf
  %2698 = vmax.xlane.f32.xlu0 %v2697
  %v2699 = vpop.xlane.xlu0 %2698
  %v2700 = vsub.f32 %v2615, %v2696
  %v2701 = vsub.f32 %v2691, %v2699
  %v2702 = vmul.f32 %v2700, 1.442695
  %v2703 = vpow.pop %v2702
  %v2704 = vmul.f32 %v2701, 1.442695
  %v2705 = vpow.pop %v2704
  %v2706 = vsel %vm533, %v2703, 0.0
  %2707 = vadd.xlane.f32.xlu0 %v2706
  %v2708 = vpop.xlane.xlu0 %2707
  %v2709 = vsel %vm533, %v2705, 0.0
  %2710 = vadd.xlane.f32.xlu0 %v2709
  %v2711 = vpop.xlane.xlu0 %2710
  %v2712 = vrcp.pop %v2708
  %v2713 = vrcp.pop %v2711
  %v2714 = vmul.f32 %v2703, %v2712
  %v2715 = vmul.f32 %v2705, %v2713
  %v2717 = vsel %vm533, %v2714, 0
  %2719 = vmatprep.subr.mxu0 0.0
  %2720 = vmatpush1.msra.mxu0 %v2532
  %2721 = vmatprep.subr.mxu0 0.0
  %2722 = vmatpush1.msra.mxu0 0.0
  %2723 = vmatprep.subr.mxu0 0.0
  %2724 = vmatpush1.msra.mxu0 0.0
  %2725 = vmatprep.subr.mxu0 0.0
  %2726 = vmatpush1.msra.mxu0 0.0
  %2727 = vmatprep.subr.mxu0 0.0
  %2728 = vmatpush1.msra.mxu0 0.0
  %2729 = vmatprep.subr.mxu0 0.0
  %2730 = vmatpush1.msra.mxu0 0.0
  %2731 = vmatprep.subr.mxu0 0.0
  %2732 = vmatpush1.msra.mxu0 0.0
  %2733 = vmatprep.subr.mxu0 0.0
  %2734 = vmatpush1.msra.mxu0 0.0
  %2735 = vmatprep.subr.mxu0 0.0
  %2736 = vmatpush1.msra.mxu0 0.0
  %2737 = vmatprep.subr.mxu0 0.0
  %2738 = vmatpush1.msra.mxu0 0.0
  %2739 = vmatprep.subr.mxu0 0.0
  %2740 = vmatpush1.msra.mxu0 0.0
  %2741 = vmatprep.subr.mxu0 0.0
  %2742 = vmatpush1.msra.mxu0 0.0
  %2743 = vmatprep.subr.mxu0 0.0
  %2744 = vmatpush1.msra.mxu0 0.0
  %2745 = vmatprep.subr.mxu0 0.0
  %2746 = vmatpush1.msra.mxu0 0.0
  %2747 = vmatprep.subr.mxu0 0.0
  %2748 = vmatpush1.msra.mxu0 0.0
  %2749 = vmatprep.subr.mxu0 0.0
  %2750 = vmatpush1.msra.mxu0 0.0
  %2751 = vmatprep.subr.mxu0 0.0
  %2752 = vmatpush1.msra.mxu0 0.0
  %2753 = vmatprep.subr.mxu0 0.0
  %2754 = vmatpush1.msra.mxu0 0.0
  %2755 = vmatprep.subr.mxu0 0.0
  %2756 = vmatpush1.msra.mxu0 0.0
  %2757 = vmatprep.subr.mxu0 0.0
  %2758 = vmatpush1.msra.mxu0 0.0
  %2759 = vmatprep.subr.mxu0 0.0
  %2760 = vmatpush1.msra.mxu0 0.0
  %2761 = vmatprep.subr.mxu0 0.0
  %2762 = vmatpush1.msra.mxu0 0.0
  %2763 = vmatprep.subr.mxu0 0.0
  %2764 = vmatpush1.msra.mxu0 0.0
  %2765 = vmatprep.subr.mxu0 0.0
  %2766 = vmatpush1.msra.mxu0 0.0
  %2767 = vmatprep.subr.mxu0 0.0
  %2768 = vmatpush1.msra.mxu0 0.0
  %2769 = vmatprep.subr.mxu0 0.0
  %2770 = vmatpush1.msra.mxu0 0.0
  %2771 = vmatprep.subr.mxu0 0.0
  %2772 = vmatpush1.msra.mxu0 0.0
  %2773 = vmatprep.subr.mxu0 0.0
  %2774 = vmatpush1.msra.mxu0 0.0
  %2775 = vmatprep.subr.mxu0 0.0
  %2776 = vmatpush1.msra.mxu0 0.0
  %2777 = vmatprep.subr.mxu0 0.0
  %2778 = vmatpush1.msra.mxu0 0.0
  %2779 = vmatprep.subr.mxu0 0.0
  %2780 = vmatpush1.msra.mxu0 0.0
  %2781 = vmatprep.subr.mxu0 0.0
  %2782 = vmatpush1.msra.mxu0 0.0
  %2783 = vmatprep.mubr.f32.mxu0 0.0
  %2784 = vmatmul.mubr.f32.gmra.mrb[0].mxu0 %v2717
  %v2785 = vpop.f32.mrb[0].mxu0
  %v2786 = vadd.f32 0.0, %v2785
  %v2787 = vpop.f32.mrb[0].mxu0
  %2788 = vdwg.mxu0
  %v2790 = vsel %vm533, %v2715, 0
  %2792 = vmatprep.subr.mxu0 0.0
  %2793 = vmatpush1.msra.mxu0 %v2537
  %2794 = vmatprep.subr.mxu0 0.0
  %2795 = vmatpush1.msra.mxu0 0.0
  %2796 = vmatprep.subr.mxu0 0.0
  %2797 = vmatpush1.msra.mxu0 0.0
  %2798 = vmatprep.subr.mxu0 0.0
  %2799 = vmatpush1.msra.mxu0 0.0
  %2800 = vmatprep.subr.mxu0 0.0
  %2801 = vmatpush1.msra.mxu0 0.0
  %2802 = vmatprep.subr.mxu0 0.0
  %2803 = vmatpush1.msra.mxu0 0.0
  %2804 = vmatprep.subr.mxu0 0.0
  %2805 = vmatpush1.msra.mxu0 0.0
  %2806 = vmatprep.subr.mxu0 0.0
  %2807 = vmatpush1.msra.mxu0 0.0
  %2808 = vmatprep.subr.mxu0 0.0
  %2809 = vmatpush1.msra.mxu0 0.0
  %2810 = vmatprep.subr.mxu0 0.0
  %2811 = vmatpush1.msra.mxu0 0.0
  %2812 = vmatprep.subr.mxu0 0.0
  %2813 = vmatpush1.msra.mxu0 0.0
  %2814 = vmatprep.subr.mxu0 0.0
  %2815 = vmatpush1.msra.mxu0 0.0
  %2816 = vmatprep.subr.mxu0 0.0
  %2817 = vmatpush1.msra.mxu0 0.0
  %2818 = vmatprep.subr.mxu0 0.0
  %2819 = vmatpush1.msra.mxu0 0.0
  %2820 = vmatprep.subr.mxu0 0.0
  %2821 = vmatpush1.msra.mxu0 0.0
  %2822 = vmatprep.subr.mxu0 0.0
  %2823 = vmatpush1.msra.mxu0 0.0
  %2824 = vmatprep.subr.mxu0 0.0
  %2825 = vmatpush1.msra.mxu0 0.0
  %2826 = vmatprep.subr.mxu0 0.0
  %2827 = vmatpush1.msra.mxu0 0.0
  %2828 = vmatprep.subr.mxu0 0.0
  %2829 = vmatpush1.msra.mxu0 0.0
  %2830 = vmatprep.subr.mxu0 0.0
  %2831 = vmatpush1.msra.mxu0 0.0
  %2832 = vmatprep.subr.mxu0 0.0
  %2833 = vmatpush1.msra.mxu0 0.0
  %2834 = vmatprep.subr.mxu0 0.0
  %2835 = vmatpush1.msra.mxu0 0.0
  %2836 = vmatprep.subr.mxu0 0.0
  %2837 = vmatpush1.msra.mxu0 0.0
  %2838 = vmatprep.subr.mxu0 0.0
  %2839 = vmatpush1.msra.mxu0 0.0
  %2840 = vmatprep.subr.mxu0 0.0
  %2841 = vmatpush1.msra.mxu0 0.0
  %2842 = vmatprep.subr.mxu0 0.0
  %2843 = vmatpush1.msra.mxu0 0.0
  %2844 = vmatprep.subr.mxu0 0.0
  %2845 = vmatpush1.msra.mxu0 0.0
  %2846 = vmatprep.subr.mxu0 0.0
  %2847 = vmatpush1.msra.mxu0 0.0
  %2848 = vmatprep.subr.mxu0 0.0
  %2849 = vmatpush1.msra.mxu0 0.0
  %2850 = vmatprep.subr.mxu0 0.0
  %2851 = vmatpush1.msra.mxu0 0.0
  %2852 = vmatprep.subr.mxu0 0.0
  %2853 = vmatpush1.msra.mxu0 0.0
  %2854 = vmatprep.subr.mxu0 0.0
  %2855 = vmatpush1.msra.mxu0 0.0
  %2856 = vmatprep.mubr.f32.mxu0 0.0
  %2857 = vmatmul.mubr.f32.gmra.mrb[0].mxu0 %v2790
  %v2858 = vpop.f32.mrb[0].mxu0
  %v2859 = vadd.f32 0.0, %v2858
  %v2860 = vpop.f32.mrb[0].mxu0
  %2861 = vdwg.mxu0
  %s2862 = scalar_lea.vmem %s17, 24
  %v2863 = vld [vmem:[%s2862] sm:$0xff]
  %v2865 = vsel %vm533, %v2786, 0
  %v2868 = vsel %vm533, %v2859, 0
  %2870 = vmatprep.subr.mxu0 0.0
  %2871 = vmatpush1.msra.mxu0 %v2863
  %2872 = vmatprep.subr.mxu0 0.0
  %2873 = vmatpush1.msra.mxu0 0.0
  %2874 = vmatprep.subr.mxu0 0.0
  %2875 = vmatpush1.msra.mxu0 0.0
  %2876 = vmatprep.subr.mxu0 0.0
  %2877 = vmatpush1.msra.mxu0 0.0
  %2878 = vmatprep.subr.mxu0 0.0
  %2879 = vmatpush1.msra.mxu0 0.0
  %2880 = vmatprep.subr.mxu0 0.0
  %2881 = vmatpush1.msra.mxu0 0.0
  %2882 = vmatprep.subr.mxu0 0.0
  %2883 = vmatpush1.msra.mxu0 0.0
  %2884 = vmatprep.subr.mxu0 0.0
  %2885 = vmatpush1.msra.mxu0 0.0
  %2886 = vmatprep.subr.mxu0 0.0
  %2887 = vmatpush1.msra.mxu0 0.0
  %2888 = vmatprep.subr.mxu0 0.0
  %2889 = vmatpush1.msra.mxu0 0.0
  %2890 = vmatprep.subr.mxu0 0.0
  %2891 = vmatpush1.msra.mxu0 0.0
  %2892 = vmatprep.subr.mxu0 0.0
  %2893 = vmatpush1.msra.mxu0 0.0
  %2894 = vmatprep.subr.mxu0 0.0
  %2895 = vmatpush1.msra.mxu0 0.0
  %2896 = vmatprep.subr.mxu0 0.0
  %2897 = vmatpush1.msra.mxu0 0.0
  %2898 = vmatprep.subr.mxu0 0.0
  %2899 = vmatpush1.msra.mxu0 0.0
  %2900 = vmatprep.subr.mxu0 0.0
  %2901 = vmatpush1.msra.mxu0 0.0
  %2902 = vmatprep.subr.mxu0 0.0
  %2903 = vmatpush1.msra.mxu0 0.0
  %2904 = vmatprep.subr.mxu0 0.0
  %2905 = vmatpush1.msra.mxu0 0.0
  %2906 = vmatprep.subr.mxu0 0.0
  %2907 = vmatpush1.msra.mxu0 0.0
  %2908 = vmatprep.subr.mxu0 0.0
  %2909 = vmatpush1.msra.mxu0 0.0
  %2910 = vmatprep.subr.mxu0 0.0
  %2911 = vmatpush1.msra.mxu0 0.0
  %2912 = vmatprep.subr.mxu0 0.0
  %2913 = vmatpush1.msra.mxu0 0.0
  %2914 = vmatprep.subr.mxu0 0.0
  %2915 = vmatpush1.msra.mxu0 0.0
  %2916 = vmatprep.subr.mxu0 0.0
  %2917 = vmatpush1.msra.mxu0 0.0
  %2918 = vmatprep.subr.mxu0 0.0
  %2919 = vmatpush1.msra.mxu0 0.0
  %2920 = vmatprep.subr.mxu0 0.0
  %2921 = vmatpush1.msra.mxu0 0.0
  %2922 = vmatprep.subr.mxu0 0.0
  %2923 = vmatpush1.msra.mxu0 0.0
  %2924 = vmatprep.subr.mxu0 0.0
  %2925 = vmatpush1.msra.mxu0 0.0
  %2926 = vmatprep.subr.mxu0 0.0
  %2927 = vmatpush1.msra.mxu0 0.0
  %2928 = vmatprep.subr.mxu0 0.0
  %2929 = vmatpush1.msra.mxu0 0.0
  %2930 = vmatprep.subr.mxu0 0.0
  %2931 = vmatpush1.msra.mxu0 0.0
  %2932 = vmatprep.subr.mxu0 0.0
  %2933 = vmatpush1.msra.mxu0 0.0
  %2934 = vmatprep.mubr.f32.mxu0 0.0
  %2935 = vmatmul.mubr.f32.gmra.mrb[0].mxu0 %v2865
  %v2936 = vpop.f32.mrb[0].mxu0
  %v2937 = vadd.f32 0.0, %v2936
  %v2938 = vpop.f32.mrb[0].mxu0
  %2939 = vmatprep.mubr.f32.mxu0 0.0
  %2940 = vmatmul.mubr.f32.gmra.mrb[0].mxu0 %v2868
  %v2941 = vpop.f32.mrb[0].mxu0
  %v2942 = vadd.f32 0.0, %v2941
  %v2943 = vpop.f32.mrb[0].mxu0
  %2944 = vdwg.mxu0
  %v2945 = vadd.f32 %v2274, %v2937
  %v2946 = vadd.f32 %v2275, %v2942
  %v2947 = vld [vmem:[%s19] sm:$0x1]
  %v2949 = vlaneseq
  %v2950 = vshrl.u32 %v2949, 7
  %v2951 = vsub.s32 0, %v2950
  %v2952 = vrot.slane %v2947, %v2951
  %v2954 = vadd.f32 %v2945, %v2952
  %v2955 = vadd.f32 %v2946, %v2952
  %v2956 = vadd.f32 %v258, %v2954
  %v2957 = vadd.f32 %v263, %v2955
  %v2958 = vsel %vm277, %v2956, 0.0
  %2959 = vadd.xlane.f32.xlu0 %v2958
  %v2960 = vpop.xlane.xlu0 %2959
  %v2961 = vsel %vm277, %v2957, 0.0
  %2962 = vadd.xlane.f32.xlu0 %v2961
  %v2963 = vpop.xlane.xlu0 %2962
  %v2964 = vrcp.pop 32.0
  %v2965 = vmul.f32 %v2960, %v2964
  %v2966 = vmul.f32 %v2963, %v2964
  %v2967 = vsub.f32 %v2956, %v2965
  %v2968 = vsub.f32 %v2957, %v2966
  %v2969 = vmul.f32 %v2967, %v2967
  %v2970 = vmul.f32 %v2968, %v2968
  %v2971 = vsel %vm277, %v2969, 0.0
  %2972 = vadd.xlane.f32.xlu0 %v2971
  %v2973 = vpop.xlane.xlu0 %2972
  %v2974 = vsel %vm277, %v2970, 0.0
  %2975 = vadd.xlane.f32.xlu0 %v2974
  %v2976 = vpop.xlane.xlu0 %2975
  %v2977 = vmul.f32 %v2973, %v2964
  %v2978 = vmul.f32 %v2976, %v2964
  %v2979 = vadd.f32 %v2977, 1e-05
  %v2980 = vadd.f32 %v2978, 1e-05
  %v2981 = vrsqrt.pop %v2979
  %v2982 = vrsqrt.pop %v2980
  %v2983 = vmul.f32 %v2967, %v2981
  %v2984 = vmul.f32 %v2968, %v2982
  %v2985 = vld [vmem:[%s21] sm:$0x1]
  %v2987 = vlaneseq
  %v2988 = vshrl.u32 %v2987, 7
  %v2989 = vsub.s32 0, %v2988
  %v2990 = vrot.slane %v2985, %v2989
  %v2992 = vmul.f32 %v2983, %v2990
  %v2993 = vmul.f32 %v2984, %v2990
  %v2994 = vld [vmem:[%s23] sm:$0x1]
  %v2996 = vlaneseq
  %v2997 = vshrl.u32 %v2996, 7
  %v2998 = vsub.s32 0, %v2997
  %v2999 = vrot.slane %v2994, %v2998
  %v3001 = vadd.f32 %v2992, %v2999
  %v3002 = vadd.f32 %v2993, %v2999
  %v3003 = vld [vmem:[%s25] sm:$0xff]
  %v3004 = vld [vmem:[%s25 + $0x8] sm:$0xff]
  %v3005 = vld [vmem:[%s25 + $0x10] sm:$0xff]
  %v3006 = vld [vmem:[%s25 + $0x18] sm:$0xff]
  %v3007 = vld [vmem:[%s27] sm:$0x1]
  %v3009 = vlaneseq
  %v3010 = vshrl.u32 %v3009, 7
  %v3011 = vsub.s32 0, %v3010
  %v3012 = vrot.slane %v3007, %v3011
  %v3015 = vsel %vm277, %v3001, 0
  %v3018 = vsel %vm277, %v3002, 0
  %3020 = vmatprep.subr.mxu0 0.0
  %3021 = vmatpush1.msra.mxu0 %v3003
  %3022 = vmatprep.subr.mxu0 0.0
  %3023 = vmatpush1.msra.mxu0 %v3004
  %3024 = vmatprep.subr.mxu0 0.0
  %3025 = vmatpush1.msra.mxu0 %v3005
  %3026 = vmatprep.subr.mxu0 0.0
  %3027 = vmatpush1.msra.mxu0 %v3006
  %3028 = vmatprep.subr.mxu0 0.0
  %3029 = vmatpush1.msra.mxu0 0.0
  %3030 = vmatprep.subr.mxu0 0.0
  %3031 = vmatpush1.msra.mxu0 0.0
  %3032 = vmatprep.subr.mxu0 0.0
  %3033 = vmatpush1.msra.mxu0 0.0
  %3034 = vmatprep.subr.mxu0 0.0
  %3035 = vmatpush1.msra.mxu0 0.0
  %3036 = vmatprep.subr.mxu0 0.0
  %3037 = vmatpush1.msra.mxu0 0.0
  %3038 = vmatprep.subr.mxu0 0.0
  %3039 = vmatpush1.msra.mxu0 0.0
  %3040 = vmatprep.subr.mxu0 0.0
  %3041 = vmatpush1.msra.mxu0 0.0
  %3042 = vmatprep.subr.mxu0 0.0
  %3043 = vmatpush1.msra.mxu0 0.0
  %3044 = vmatprep.subr.mxu0 0.0
  %3045 = vmatpush1.msra.mxu0 0.0
  %3046 = vmatprep.subr.mxu0 0.0
  %3047 = vmatpush1.msra.mxu0 0.0
  %3048 = vmatprep.subr.mxu0 0.0
  %3049 = vmatpush1.msra.mxu0 0.0
  %3050 = vmatprep.subr.mxu0 0.0
  %3051 = vmatpush1.msra.mxu0 0.0
  %3052 = vmatprep.subr.mxu0 0.0
  %3053 = vmatpush1.msra.mxu0 0.0
  %3054 = vmatprep.subr.mxu0 0.0
  %3055 = vmatpush1.msra.mxu0 0.0
  %3056 = vmatprep.subr.mxu0 0.0
  %3057 = vmatpush1.msra.mxu0 0.0
  %3058 = vmatprep.subr.mxu0 0.0
  %3059 = vmatpush1.msra.mxu0 0.0
  %3060 = vmatprep.subr.mxu0 0.0
  %3061 = vmatpush1.msra.mxu0 0.0
  %3062 = vmatprep.subr.mxu0 0.0
  %3063 = vmatpush1.msra.mxu0 0.0
  %3064 = vmatprep.subr.mxu0 0.0
  %3065 = vmatpush1.msra.mxu0 0.0
  %3066 = vmatprep.subr.mxu0 0.0
  %3067 = vmatpush1.msra.mxu0 0.0
  %3068 = vmatprep.subr.mxu0 0.0
  %3069 = vmatpush1.msra.mxu0 0.0
  %3070 = vmatprep.subr.mxu0 0.0
  %3071 = vmatpush1.msra.mxu0 0.0
  %3072 = vmatprep.subr.mxu0 0.0
  %3073 = vmatpush1.msra.mxu0 0.0
  %3074 = vmatprep.subr.mxu0 0.0
  %3075 = vmatpush1.msra.mxu0 0.0
  %3076 = vmatprep.subr.mxu0 0.0
  %3077 = vmatpush1.msra.mxu0 0.0
  %3078 = vmatprep.subr.mxu0 0.0
  %3079 = vmatpush1.msra.mxu0 0.0
  %3080 = vmatprep.subr.mxu0 0.0
  %3081 = vmatpush1.msra.mxu0 0.0
  %3082 = vmatprep.subr.mxu0 0.0
  %3083 = vmatpush1.msra.mxu0 0.0
  %3084 = vmatprep.mubr.f32.mxu0 0.0
  %3085 = vmatmul.mubr.f32.gmra.mrb[0].mxu0 %v3015
  %v3086 = vpop.f32.mrb[0].mxu0
  %v3087 = vadd.f32 %v3012, %v3086
  %v3088 = vpop.f32.mrb[0].mxu0
  %3089 = vmatprep.mubr.f32.mxu0 0.0
  %3090 = vmatmul.mubr.f32.gmra.mrb[0].mxu0 %v3018
  %v3091 = vpop.f32.mrb[0].mxu0
  %v3092 = vadd.f32 %v3012, %v3091
  %v3093 = vpop.f32.mrb[0].mxu0
  %3094 = vdwg.mxu0
  %v3095 = vmul.f32 %v3087, 0.5
  %v3096 = vmul.f32 %v3092, 0.5
  %v3097 = vrcp.pop 1.4142135
  %v3098 = vmul.f32 %v3087, %v3097
  %v3099 = vmul.f32 %v3092, %v3097
  %v3100 = verf.f32.pop %v3098
  %v3101 = verf.f32.pop %v3099
  %v3102 = vadd.f32 %v3100, 1.0
  %v3103 = vadd.f32 %v3101, 1.0
  %v3104 = vmul.f32 %v3095, %v3102
  %v3105 = vmul.f32 %v3096, %v3103
  %v3106 = vld [vmem:[%s29] sm:$0x3]
  %v3107 = vld [vmem:[%s31] sm:$0x1]
  %v3109 = vlaneseq
  %v3110 = vshrl.u32 %v3109, 7
  %v3111 = vsub.s32 0, %v3110
  %v3112 = vrot.slane %v3107, %v3111
  %vm3114 = vcmask 15360
  %v3116 = vsel %vm3114, %v3104, 0
  %v3119 = vsel %vm3114, %v3105, 0
  %v3122 = vsel %vm187, %v3106, 0
  %3124 = vmatprep.subr.mxu0 0.0
  %3125 = vmatpush1.msra.mxu0 %v3122
  %3126 = vmatprep.subr.mxu0 0.0
  %3127 = vmatpush1.msra.mxu0 0.0
  %3128 = vmatprep.subr.mxu0 0.0
  %3129 = vmatpush1.msra.mxu0 0.0
  %3130 = vmatprep.subr.mxu0 0.0
  %3131 = vmatpush1.msra.mxu0 0.0
  %3132 = vmatprep.subr.mxu0 0.0
  %3133 = vmatpush1.msra.mxu0 0.0
  %3134 = vmatprep.subr.mxu0 0.0
  %3135 = vmatpush1.msra.mxu0 0.0
  %3136 = vmatprep.subr.mxu0 0.0
  %3137 = vmatpush1.msra.mxu0 0.0
  %3138 = vmatprep.subr.mxu0 0.0
  %3139 = vmatpush1.msra.mxu0 0.0
  %3140 = vmatprep.subr.mxu0 0.0
  %3141 = vmatpush1.msra.mxu0 0.0
  %3142 = vmatprep.subr.mxu0 0.0
  %3143 = vmatpush1.msra.mxu0 0.0
  %3144 = vmatprep.subr.mxu0 0.0
  %3145 = vmatpush1.msra.mxu0 0.0
  %3146 = vmatprep.subr.mxu0 0.0
  %3147 = vmatpush1.msra.mxu0 0.0
  %3148 = vmatprep.subr.mxu0 0.0
  %3149 = vmatpush1.msra.mxu0 0.0
  %3150 = vmatprep.subr.mxu0 0.0
  %3151 = vmatpush1.msra.mxu0 0.0
  %3152 = vmatprep.subr.mxu0 0.0
  %3153 = vmatpush1.msra.mxu0 0.0
  %3154 = vmatprep.subr.mxu0 0.0
  %3155 = vmatpush1.msra.mxu0 0.0
  %3156 = vmatprep.subr.mxu0 0.0
  %3157 = vmatpush1.msra.mxu0 0.0
  %3158 = vmatprep.subr.mxu0 0.0
  %3159 = vmatpush1.msra.mxu0 0.0
  %3160 = vmatprep.subr.mxu0 0.0
  %3161 = vmatpush1.msra.mxu0 0.0
  %3162 = vmatprep.subr.mxu0 0.0
  %3163 = vmatpush1.msra.mxu0 0.0
  %3164 = vmatprep.subr.mxu0 0.0
  %3165 = vmatpush1.msra.mxu0 0.0
  %3166 = vmatprep.subr.mxu0 0.0
  %3167 = vmatpush1.msra.mxu0 0.0
  %3168 = vmatprep.subr.mxu0 0.0
  %3169 = vmatpush1.msra.mxu0 0.0
  %3170 = vmatprep.subr.mxu0 0.0
  %3171 = vmatpush1.msra.mxu0 0.0
  %3172 = vmatprep.subr.mxu0 0.0
  %3173 = vmatpush1.msra.mxu0 0.0
  %3174 = vmatprep.subr.mxu0 0.0
  %3175 = vmatpush1.msra.mxu0 0.0
  %3176 = vmatprep.subr.mxu0 0.0
  %3177 = vmatpush1.msra.mxu0 0.0
  %3178 = vmatprep.subr.mxu0 0.0
  %3179 = vmatpush1.msra.mxu0 0.0
  %3180 = vmatprep.subr.mxu0 0.0
  %3181 = vmatpush1.msra.mxu0 0.0
  %3182 = vmatprep.subr.mxu0 0.0
  %3183 = vmatpush1.msra.mxu0 0.0
  %3184 = vmatprep.subr.mxu0 0.0
  %3185 = vmatpush1.msra.mxu0 0.0
  %3186 = vmatprep.subr.mxu0 0.0
  %3187 = vmatpush1.msra.mxu0 0.0
  %3188 = vmatprep.mubr.f32.mxu0 0.0
  %3189 = vmatmul.mubr.f32.gmra.mrb[0].mxu0 %v3116
  %v3190 = vpop.f32.mrb[0].mxu0
  %v3191 = vadd.f32 %v3112, %v3190
  %v3192 = vpop.f32.mrb[0].mxu0
  %3193 = vmatprep.mubr.f32.mxu0 0.0
  %3194 = vmatmul.mubr.f32.gmra.mrb[0].mxu0 %v3119
  %v3195 = vpop.f32.mrb[0].mxu0
  %v3196 = vadd.f32 %v3112, %v3195
  %v3197 = vpop.f32.mrb[0].mxu0
  %3198 = vdwg.mxu0
  %v3199 = vadd.f32 %v3001, %v3191
  %v3200 = vadd.f32 %v3002, %v3196
  %v3201 = vsel %vm277, %v3199, 0.0
  %3202 = vadd.xlane.f32.xlu0 %v3201
  %v3203 = vpop.xlane.xlu0 %3202
  %v3204 = vsel %vm277, %v3200, 0.0
  %3205 = vadd.xlane.f32.xlu0 %v3204
  %v3206 = vpop.xlane.xlu0 %3205
  %v3207 = vmul.f32 %v3203, %v2964
  %v3208 = vmul.f32 %v3206, %v2964
  %v3209 = vsub.f32 %v3199, %v3207
  %v3210 = vsub.f32 %v3200, %v3208
  %v3211 = vmul.f32 %v3209, %v3209
  %v3212 = vmul.f32 %v3210, %v3210
  %v3213 = vsel %vm277, %v3211, 0.0
  %3214 = vadd.xlane.f32.xlu0 %v3213
  %v3215 = vpop.xlane.xlu0 %3214
  %v3216 = vsel %vm277, %v3212, 0.0
  %3217 = vadd.xlane.f32.xlu0 %v3216
  %v3218 = vpop.xlane.xlu0 %3217
  %v3219 = vmul.f32 %v3215, %v2964
  %v3220 = vmul.f32 %v3218, %v2964
  %v3221 = vadd.f32 %v3219, 1e-05
  %v3222 = vadd.f32 %v3220, 1e-05
  %v3223 = vrsqrt.pop %v3221
  %v3224 = vrsqrt.pop %v3222
  %v3225 = vmul.f32 %v3209, %v3223
  %v3226 = vmul.f32 %v3210, %v3224
  %v3227 = vld [vmem:[%s33] sm:$0x1]
  %v3229 = vlaneseq
  %v3230 = vshrl.u32 %v3229, 7
  %v3231 = vsub.s32 0, %v3230
  %v3232 = vrot.slane %v3227, %v3231
  %v3234 = vmul.f32 %v3225, %v3232
  %v3235 = vmul.f32 %v3226, %v3232
  %v3236 = vld [vmem:[%s35] sm:$0x1]
  %v3238 = vlaneseq
  %v3239 = vshrl.u32 %v3238, 7
  %v3240 = vsub.s32 0, %v3239
  %v3241 = vrot.slane %v3236, %v3240
  %v3243 = vadd.f32 %v3234, %v3241
  %v3244 = vadd.f32 %v3235, %v3241
  %v3245 = vld [vmem:[%s37] sm:$0xff]
  %v3246 = vld [vmem:[%s37 + $0x8] sm:$0xff]
  %v3247 = vld [vmem:[%s37 + $0x10] sm:$0xff]
  %v3248 = vld [vmem:[%s37 + $0x18] sm:$0xff]
  %v3249 = vld [vmem:[%s39] sm:$0x1]
  %v3251 = vlaneseq
  %v3252 = vshrl.u32 %v3251, 7
  %v3253 = vsub.s32 0, %v3252
  %v3254 = vrot.slane %v3249, %v3253
  %v3257 = vsel %vm277, %v3243, 0
  %v3260 = vsel %vm277, %v3244, 0
  %3262 = vmatprep.subr.mxu0 0.0
  %3263 = vmatpush1.msra.mxu0 %v3245
  %3264 = vmatprep.subr.mxu0 0.0
  %3265 = vmatpush1.msra.mxu0 %v3246
  %3266 = vmatprep.subr.mxu0 0.0
  %3267 = vmatpush1.msra.mxu0 %v3247
  %3268 = vmatprep.subr.mxu0 0.0
  %3269 = vmatpush1.msra.mxu0 %v3248
  %3270 = vmatprep.subr.mxu0 0.0
  %3271 = vmatpush1.msra.mxu0 0.0
  %3272 = vmatprep.subr.mxu0 0.0
  %3273 = vmatpush1.msra.mxu0 0.0
  %3274 = vmatprep.subr.mxu0 0.0
  %3275 = vmatpush1.msra.mxu0 0.0
  %3276 = vmatprep.subr.mxu0 0.0
  %3277 = vmatpush1.msra.mxu0 0.0
  %3278 = vmatprep.subr.mxu0 0.0
  %3279 = vmatpush1.msra.mxu0 0.0
  %3280 = vmatprep.subr.mxu0 0.0
  %3281 = vmatpush1.msra.mxu0 0.0
  %3282 = vmatprep.subr.mxu0 0.0
  %3283 = vmatpush1.msra.mxu0 0.0
  %3284 = vmatprep.subr.mxu0 0.0
  %3285 = vmatpush1.msra.mxu0 0.0
  %3286 = vmatprep.subr.mxu0 0.0
  %3287 = vmatpush1.msra.mxu0 0.0
  %3288 = vmatprep.subr.mxu0 0.0
  %3289 = vmatpush1.msra.mxu0 0.0
  %3290 = vmatprep.subr.mxu0 0.0
  %3291 = vmatpush1.msra.mxu0 0.0
  %3292 = vmatprep.subr.mxu0 0.0
  %3293 = vmatpush1.msra.mxu0 0.0
  %3294 = vmatprep.subr.mxu0 0.0
  %3295 = vmatpush1.msra.mxu0 0.0
  %3296 = vmatprep.subr.mxu0 0.0
  %3297 = vmatpush1.msra.mxu0 0.0
  %3298 = vmatprep.subr.mxu0 0.0
  %3299 = vmatpush1.msra.mxu0 0.0
  %3300 = vmatprep.subr.mxu0 0.0
  %3301 = vmatpush1.msra.mxu0 0.0
  %3302 = vmatprep.subr.mxu0 0.0
  %3303 = vmatpush1.msra.mxu0 0.0
  %3304 = vmatprep.subr.mxu0 0.0
  %3305 = vmatpush1.msra.mxu0 0.0
  %3306 = vmatprep.subr.mxu0 0.0
  %3307 = vmatpush1.msra.mxu0 0.0
  %3308 = vmatprep.subr.mxu0 0.0
  %3309 = vmatpush1.msra.mxu0 0.0
  %3310 = vmatprep.subr.mxu0 0.0
  %3311 = vmatpush1.msra.mxu0 0.0
  %3312 = vmatprep.subr.mxu0 0.0
  %3313 = vmatpush1.msra.mxu0 0.0
  %3314 = vmatprep.subr.mxu0 0.0
  %3315 = vmatpush1.msra.mxu0 0.0
  %3316 = vmatprep.subr.mxu0 0.0
  %3317 = vmatpush1.msra.mxu0 0.0
  %3318 = vmatprep.subr.mxu0 0.0
  %3319 = vmatpush1.msra.mxu0 0.0
  %3320 = vmatprep.subr.mxu0 0.0
  %3321 = vmatpush1.msra.mxu0 0.0
  %3322 = vmatprep.subr.mxu0 0.0
  %3323 = vmatpush1.msra.mxu0 0.0
  %3324 = vmatprep.subr.mxu0 0.0
  %3325 = vmatpush1.msra.mxu0 0.0
  %3326 = vmatprep.mubr.f32.mxu0 0.0
  %3327 = vmatmul.mubr.f32.gmra.mrb[0].mxu0 %v3257
  %v3328 = vpop.f32.mrb[0].mxu0
  %v3329 = vadd.f32 %v3254, %v3328
  %v3330 = vpop.f32.mrb[0].mxu0
  %3331 = vmatprep.mubr.f32.mxu0 0.0
  %3332 = vmatmul.mubr.f32.gmra.mrb[0].mxu0 %v3260
  %v3333 = vpop.f32.mrb[0].mxu0
  %v3334 = vadd.f32 %v3254, %v3333
  %v3335 = vpop.f32.mrb[0].mxu0
  %3336 = vdwg.mxu0
  %v3337 = vld [vmem:[%s41] sm:$0xff]
  %v3338 = vld [vmem:[%s41 + $0x8] sm:$0xff]
  %v3339 = vld [vmem:[%s41 + $0x10] sm:$0xff]
  %v3340 = vld [vmem:[%s41 + $0x18] sm:$0xff]
  %v3341 = vld [vmem:[%s43] sm:$0x1]
  %v3343 = vlaneseq
  %v3344 = vshrl.u32 %v3343, 7
  %v3345 = vsub.s32 0, %v3344
  %v3346 = vrot.slane %v3341, %v3345
  %3348 = vmatprep.subr.mxu0 0.0
  %3349 = vmatpush1.msra.mxu0 %v3337
  %3350 = vmatprep.subr.mxu0 0.0
  %3351 = vmatpush1.msra.mxu0 %v3338
  %3352 = vmatprep.subr.mxu0 0.0
  %3353 = vmatpush1.msra.mxu0 %v3339
  %3354 = vmatprep.subr.mxu0 0.0
  %3355 = vmatpush1.msra.mxu0 %v3340
  %3356 = vmatprep.subr.mxu0 0.0
  %3357 = vmatpush1.msra.mxu0 0.0
  %3358 = vmatprep.subr.mxu0 0.0
  %3359 = vmatpush1.msra.mxu0 0.0
  %3360 = vmatprep.subr.mxu0 0.0
  %3361 = vmatpush1.msra.mxu0 0.0
  %3362 = vmatprep.subr.mxu0 0.0
  %3363 = vmatpush1.msra.mxu0 0.0
  %3364 = vmatprep.subr.mxu0 0.0
  %3365 = vmatpush1.msra.mxu0 0.0
  %3366 = vmatprep.subr.mxu0 0.0
  %3367 = vmatpush1.msra.mxu0 0.0
  %3368 = vmatprep.subr.mxu0 0.0
  %3369 = vmatpush1.msra.mxu0 0.0
  %3370 = vmatprep.subr.mxu0 0.0
  %3371 = vmatpush1.msra.mxu0 0.0
  %3372 = vmatprep.subr.mxu0 0.0
  %3373 = vmatpush1.msra.mxu0 0.0
  %3374 = vmatprep.subr.mxu0 0.0
  %3375 = vmatpush1.msra.mxu0 0.0
  %3376 = vmatprep.subr.mxu0 0.0
  %3377 = vmatpush1.msra.mxu0 0.0
  %3378 = vmatprep.subr.mxu0 0.0
  %3379 = vmatpush1.msra.mxu0 0.0
  %3380 = vmatprep.subr.mxu0 0.0
  %3381 = vmatpush1.msra.mxu0 0.0
  %3382 = vmatprep.subr.mxu0 0.0
  %3383 = vmatpush1.msra.mxu0 0.0
  %3384 = vmatprep.subr.mxu0 0.0
  %3385 = vmatpush1.msra.mxu0 0.0
  %3386 = vmatprep.subr.mxu0 0.0
  %3387 = vmatpush1.msra.mxu0 0.0
  %3388 = vmatprep.subr.mxu0 0.0
  %3389 = vmatpush1.msra.mxu0 0.0
  %3390 = vmatprep.subr.mxu0 0.0
  %3391 = vmatpush1.msra.mxu0 0.0
  %3392 = vmatprep.subr.mxu0 0.0
  %3393 = vmatpush1.msra.mxu0 0.0
  %3394 = vmatprep.subr.mxu0 0.0
  %3395 = vmatpush1.msra.mxu0 0.0
  %3396 = vmatprep.subr.mxu0 0.0
  %3397 = vmatpush1.msra.mxu0 0.0
  %3398 = vmatprep.subr.mxu0 0.0
  %3399 = vmatpush1.msra.mxu0 0.0
  %3400 = vmatprep.subr.mxu0 0.0
  %3401 = vmatpush1.msra.mxu0 0.0
  %3402 = vmatprep.subr.mxu0 0.0
  %3403 = vmatpush1.msra.mxu0 0.0
  %3404 = vmatprep.subr.mxu0 0.0
  %3405 = vmatpush1.msra.mxu0 0.0
  %3406 = vmatprep.subr.mxu0 0.0
  %3407 = vmatpush1.msra.mxu0 0.0
  %3408 = vmatprep.subr.mxu0 0.0
  %3409 = vmatpush1.msra.mxu0 0.0
  %3410 = vmatprep.subr.mxu0 0.0
  %3411 = vmatpush1.msra.mxu0 0.0
  %3412 = vmatprep.mubr.f32.mxu0 0.0
  %3413 = vmatmul.mubr.f32.gmra.mrb[0].mxu0 %v3257
  %v3414 = vpop.f32.mrb[0].mxu0
  %v3415 = vadd.f32 %v3346, %v3414
  %v3416 = vpop.f32.mrb[0].mxu0
  %3417 = vmatprep.mubr.f32.mxu0 0.0
  %3418 = vmatmul.mubr.f32.gmra.mrb[0].mxu0 %v3260
  %v3419 = vpop.f32.mrb[0].mxu0
  %v3420 = vadd.f32 %v3346, %v3419
  %v3421 = vpop.f32.mrb[0].mxu0
  %3422 = vdwg.mxu0
  %v3423 = vld [vmem:[%s45] sm:$0xff]
  %v3424 = vld [vmem:[%s45 + $0x8] sm:$0xff]
  %v3425 = vld [vmem:[%s45 + $0x10] sm:$0xff]
  %v3426 = vld [vmem:[%s45 + $0x18] sm:$0xff]
  %v3427 = vld [vmem:[%s47] sm:$0x1]
  %v3429 = vlaneseq
  %v3430 = vshrl.u32 %v3429, 7
  %v3431 = vsub.s32 0, %v3430
  %v3432 = vrot.slane %v3427, %v3431
  %3434 = vmatprep.subr.mxu0 0.0
  %3435 = vmatpush1.msra.mxu0 %v3423
  %3436 = vmatprep.subr.mxu0 0.0
  %3437 = vmatpush1.msra.mxu0 %v3424
  %3438 = vmatprep.subr.mxu0 0.0
  %3439 = vmatpush1.msra.mxu0 %v3425
  %3440 = vmatprep.subr.mxu0 0.0
  %3441 = vmatpush1.msra.mxu0 %v3426
  %3442 = vmatprep.subr.mxu0 0.0
  %3443 = vmatpush1.msra.mxu0 0.0
  %3444 = vmatprep.subr.mxu0 0.0
  %3445 = vmatpush1.msra.mxu0 0.0
  %3446 = vmatprep.subr.mxu0 0.0
  %3447 = vmatpush1.msra.mxu0 0.0
  %3448 = vmatprep.subr.mxu0 0.0
  %3449 = vmatpush1.msra.mxu0 0.0
  %3450 = vmatprep.subr.mxu0 0.0
  %3451 = vmatpush1.msra.mxu0 0.0
  %3452 = vmatprep.subr.mxu0 0.0
  %3453 = vmatpush1.msra.mxu0 0.0
  %3454 = vmatprep.subr.mxu0 0.0
  %3455 = vmatpush1.msra.mxu0 0.0
  %3456 = vmatprep.subr.mxu0 0.0
  %3457 = vmatpush1.msra.mxu0 0.0
  %3458 = vmatprep.subr.mxu0 0.0
  %3459 = vmatpush1.msra.mxu0 0.0
  %3460 = vmatprep.subr.mxu0 0.0
  %3461 = vmatpush1.msra.mxu0 0.0
  %3462 = vmatprep.subr.mxu0 0.0
  %3463 = vmatpush1.msra.mxu0 0.0
  %3464 = vmatprep.subr.mxu0 0.0
  %3465 = vmatpush1.msra.mxu0 0.0
  %3466 = vmatprep.subr.mxu0 0.0
  %3467 = vmatpush1.msra.mxu0 0.0
  %3468 = vmatprep.subr.mxu0 0.0
  %3469 = vmatpush1.msra.mxu0 0.0
  %3470 = vmatprep.subr.mxu0 0.0
  %3471 = vmatpush1.msra.mxu0 0.0
  %3472 = vmatprep.subr.mxu0 0.0
  %3473 = vmatpush1.msra.mxu0 0.0
  %3474 = vmatprep.subr.mxu0 0.0
  %3475 = vmatpush1.msra.mxu0 0.0
  %3476 = vmatprep.subr.mxu0 0.0
  %3477 = vmatpush1.msra.mxu0 0.0
  %3478 = vmatprep.subr.mxu0 0.0
  %3479 = vmatpush1.msra.mxu0 0.0
  %3480 = vmatprep.subr.mxu0 0.0
  %3481 = vmatpush1.msra.mxu0 0.0
  %3482 = vmatprep.subr.mxu0 0.0
  %3483 = vmatpush1.msra.mxu0 0.0
  %3484 = vmatprep.subr.mxu0 0.0
  %3485 = vmatpush1.msra.mxu0 0.0
  %3486 = vmatprep.subr.mxu0 0.0
  %3487 = vmatpush1.msra.mxu0 0.0
  %3488 = vmatprep.subr.mxu0 0.0
  %3489 = vmatpush1.msra.mxu0 0.0
  %3490 = vmatprep.subr.mxu0 0.0
  %3491 = vmatpush1.msra.mxu0 0.0
  %3492 = vmatprep.subr.mxu0 0.0
  %3493 = vmatpush1.msra.mxu0 0.0
  %3494 = vmatprep.subr.mxu0 0.0
  %3495 = vmatpush1.msra.mxu0 0.0
  %3496 = vmatprep.subr.mxu0 0.0
  %3497 = vmatpush1.msra.mxu0 0.0
  %3498 = vmatprep.mubr.f32.mxu0 0.0
  %3499 = vmatmul.mubr.f32.gmra.mrb[0].mxu0 %v3257
  %v3500 = vpop.f32.mrb[0].mxu0
  %v3501 = vadd.f32 %v3432, %v3500
  %v3502 = vpop.f32.mrb[0].mxu0
  %3503 = vmatprep.mubr.f32.mxu0 0.0
  %3504 = vmatmul.mubr.f32.gmra.mrb[0].mxu0 %v3260
  %v3505 = vpop.f32.mrb[0].mxu0
  %v3506 = vadd.f32 %v3432, %v3505
  %v3507 = vpop.f32.mrb[0].mxu0
  %3508 = vdwg.mxu0
  %v3509 = vmul.f32 %v3329, 0.35355338
  %v3510 = vmul.f32 %v3334, 0.35355338
  %v3512 = vsel %vm533, %v3509, 0
  %v3515 = vsel %vm533, %v3415, 0
  %3517 = vmatprep.subr.mxu0 0.0
  %3518 = vmatpush1.xpose.msra.mxu0 %v3515
  %3519 = vmatprep.subr.mxu0 0.0
  %3520 = vmatpush1.xpose.msra.mxu0 0.0
  %3521 = vmatprep.subr.mxu0 0.0
  %3522 = vmatpush1.xpose.msra.mxu0 0.0
  %3523 = vmatprep.subr.mxu0 0.0
  %3524 = vmatpush1.xpose.msra.mxu0 0.0
  %3525 = vmatprep.subr.mxu0 0.0
  %3526 = vmatpush1.xpose.msra.mxu0 0.0
  %3527 = vmatprep.subr.mxu0 0.0
  %3528 = vmatpush1.xpose.msra.mxu0 0.0
  %3529 = vmatprep.subr.mxu0 0.0
  %3530 = vmatpush1.xpose.msra.mxu0 0.0
  %3531 = vmatprep.subr.mxu0 0.0
  %3532 = vmatpush1.xpose.msra.mxu0 0.0
  %3533 = vmatprep.subr.mxu0 0.0
  %3534 = vmatpush1.xpose.msra.mxu0 0.0
  %3535 = vmatprep.subr.mxu0 0.0
  %3536 = vmatpush1.xpose.msra.mxu0 0.0
  %3537 = vmatprep.subr.mxu0 0.0
  %3538 = vmatpush1.xpose.msra.mxu0 0.0
  %3539 = vmatprep.subr.mxu0 0.0
  %3540 = vmatpush1.xpose.msra.mxu0 0.0
  %3541 = vmatprep.subr.mxu0 0.0
  %3542 = vmatpush1.xpose.msra.mxu0 0.0
  %3543 = vmatprep.subr.mxu0 0.0
  %3544 = vmatpush1.xpose.msra.mxu0 0.0
  %3545 = vmatprep.subr.mxu0 0.0
  %3546 = vmatpush1.xpose.msra.mxu0 0.0
  %3547 = vmatprep.subr.mxu0 0.0
  %3548 = vmatpush1.xpose.msra.mxu0 0.0
  %3549 = vmatprep.subr.mxu0 0.0
  %3550 = vmatpush1.xpose.msra.mxu0 0.0
  %3551 = vmatprep.subr.mxu0 0.0
  %3552 = vmatpush1.xpose.msra.mxu0 0.0
  %3553 = vmatprep.subr.mxu0 0.0
  %3554 = vmatpush1.xpose.msra.mxu0 0.0
  %3555 = vmatprep.subr.mxu0 0.0
  %3556 = vmatpush1.xpose.msra.mxu0 0.0
  %3557 = vmatprep.subr.mxu0 0.0
  %3558 = vmatpush1.xpose.msra.mxu0 0.0
  %3559 = vmatprep.subr.mxu0 0.0
  %3560 = vmatpush1.xpose.msra.mxu0 0.0
  %3561 = vmatprep.subr.mxu0 0.0
  %3562 = vmatpush1.xpose.msra.mxu0 0.0
  %3563 = vmatprep.subr.mxu0 0.0
  %3564 = vmatpush1.xpose.msra.mxu0 0.0
  %3565 = vmatprep.subr.mxu0 0.0
  %3566 = vmatpush1.xpose.msra.mxu0 0.0
  %3567 = vmatprep.subr.mxu0 0.0
  %3568 = vmatpush1.xpose.msra.mxu0 0.0
  %3569 = vmatprep.subr.mxu0 0.0
  %3570 = vmatpush1.xpose.msra.mxu0 0.0
  %3571 = vmatprep.subr.mxu0 0.0
  %3572 = vmatpush1.xpose.msra.mxu0 0.0
  %3573 = vmatprep.subr.mxu0 0.0
  %3574 = vmatpush1.xpose.msra.mxu0 0.0
  %3575 = vmatprep.subr.mxu0 0.0
  %3576 = vmatpush1.xpose.msra.mxu0 0.0
  %3577 = vmatprep.subr.mxu0 0.0
  %3578 = vmatpush1.xpose.msra.mxu0 0.0
  %3579 = vmatprep.subr.mxu0 0.0
  %3580 = vmatpush1.xpose.msra.mxu0 0.0
  %3581 = vmatprep.mubr.f32.mxu0 0.0
  %3582 = vmatmul.mubr.f32.gmra.mrb[0].mxu0 %v3512
  %v3583 = vpop.f32.mrb[0].mxu0
  %v3584 = vadd.f32 0.0, %v3583
  %v3585 = vpop.f32.mrb[0].mxu0
  %3586 = vdwg.mxu0
  %v3588 = vsel %vm533, %v3510, 0
  %v3591 = vsel %vm533, %v3420, 0
  %3593 = vmatprep.subr.mxu0 0.0
  %3594 = vmatpush1.xpose.msra.mxu0 %v3591
  %3595 = vmatprep.subr.mxu0 0.0
  %3596 = vmatpush1.xpose.msra.mxu0 0.0
  %3597 = vmatprep.subr.mxu0 0.0
  %3598 = vmatpush1.xpose.msra.mxu0 0.0
  %3599 = vmatprep.subr.mxu0 0.0
  %3600 = vmatpush1.xpose.msra.mxu0 0.0
  %3601 = vmatprep.subr.mxu0 0.0
  %3602 = vmatpush1.xpose.msra.mxu0 0.0
  %3603 = vmatprep.subr.mxu0 0.0
  %3604 = vmatpush1.xpose.msra.mxu0 0.0
  %3605 = vmatprep.subr.mxu0 0.0
  %3606 = vmatpush1.xpose.msra.mxu0 0.0
  %3607 = vmatprep.subr.mxu0 0.0
  %3608 = vmatpush1.xpose.msra.mxu0 0.0
  %3609 = vmatprep.subr.mxu0 0.0
  %3610 = vmatpush1.xpose.msra.mxu0 0.0
  %3611 = vmatprep.subr.mxu0 0.0
  %3612 = vmatpush1.xpose.msra.mxu0 0.0
  %3613 = vmatprep.subr.mxu0 0.0
  %3614 = vmatpush1.xpose.msra.mxu0 0.0
  %3615 = vmatprep.subr.mxu0 0.0
  %3616 = vmatpush1.xpose.msra.mxu0 0.0
  %3617 = vmatprep.subr.mxu0 0.0
  %3618 = vmatpush1.xpose.msra.mxu0 0.0
  %3619 = vmatprep.subr.mxu0 0.0
  %3620 = vmatpush1.xpose.msra.mxu0 0.0
  %3621 = vmatprep.subr.mxu0 0.0
  %3622 = vmatpush1.xpose.msra.mxu0 0.0
  %3623 = vmatprep.subr.mxu0 0.0
  %3624 = vmatpush1.xpose.msra.mxu0 0.0
  %3625 = vmatprep.subr.mxu0 0.0
  %3626 = vmatpush1.xpose.msra.mxu0 0.0
  %3627 = vmatprep.subr.mxu0 0.0
  %3628 = vmatpush1.xpose.msra.mxu0 0.0
  %3629 = vmatprep.subr.mxu0 0.0
  %3630 = vmatpush1.xpose.msra.mxu0 0.0
  %3631 = vmatprep.subr.mxu0 0.0
  %3632 = vmatpush1.xpose.msra.mxu0 0.0
  %3633 = vmatprep.subr.mxu0 0.0
  %3634 = vmatpush1.xpose.msra.mxu0 0.0
  %3635 = vmatprep.subr.mxu0 0.0
  %3636 = vmatpush1.xpose.msra.mxu0 0.0
  %3637 = vmatprep.subr.mxu0 0.0
  %3638 = vmatpush1.xpose.msra.mxu0 0.0
  %3639 = vmatprep.subr.mxu0 0.0
  %3640 = vmatpush1.xpose.msra.mxu0 0.0
  %3641 = vmatprep.subr.mxu0 0.0
  %3642 = vmatpush1.xpose.msra.mxu0 0.0
  %3643 = vmatprep.subr.mxu0 0.0
  %3644 = vmatpush1.xpose.msra.mxu0 0.0
  %3645 = vmatprep.subr.mxu0 0.0
  %3646 = vmatpush1.xpose.msra.mxu0 0.0
  %3647 = vmatprep.subr.mxu0 0.0
  %3648 = vmatpush1.xpose.msra.mxu0 0.0
  %3649 = vmatprep.subr.mxu0 0.0
  %3650 = vmatpush1.xpose.msra.mxu0 0.0
  %3651 = vmatprep.subr.mxu0 0.0
  %3652 = vmatpush1.xpose.msra.mxu0 0.0
  %3653 = vmatprep.subr.mxu0 0.0
  %3654 = vmatpush1.xpose.msra.mxu0 0.0
  %3655 = vmatprep.subr.mxu0 0.0
  %3656 = vmatpush1.xpose.msra.mxu0 0.0
  %3657 = vmatprep.mubr.f32.mxu0 0.0
  %3658 = vmatmul.mubr.f32.gmra.mrb[0].mxu0 %v3588
  %v3659 = vpop.f32.mrb[0].mxu0
  %v3660 = vadd.f32 0.0, %v3659
  %v3661 = vpop.f32.mrb[0].mxu0
  %3662 = vdwg.mxu0
  %v3663 = vsel %vm533, %v3584, -inf
  %3664 = vmax.xlane.f32.xlu0 %v3663
  %v3665 = vpop.xlane.xlu0 %3664
  %v3666 = vsel %vm533, %v3660, -inf
  %3667 = vmax.xlane.f32.xlu0 %v3666
  %v3668 = vpop.xlane.xlu0 %3667
  %v3669 = vsub.f32 %v3584, %v3665
  %v3670 = vsub.f32 %v3660, %v3668
  %v3671 = vmul.f32 %v3669, 1.442695
  %v3672 = vpow.pop %v3671
  %v3673 = vmul.f32 %v3670, 1.442695
  %v3674 = vpow.pop %v3673
  %v3675 = vsel %vm533, %v3672, 0.0
  %3676 = vadd.xlane.f32.xlu0 %v3675
  %v3677 = vpop.xlane.xlu0 %3676
  %v3678 = vsel %vm533, %v3674, 0.0
  %3679 = vadd.xlane.f32.xlu0 %v3678
  %v3680 = vpop.xlane.xlu0 %3679
  %v3681 = vrcp.pop %v3677
  %v3682 = vrcp.pop %v3680
  %v3683 = vmul.f32 %v3672, %v3681
  %v3684 = vmul.f32 %v3674, %v3682
  %v3686 = vsel %vm533, %v3683, 0
  %3688 = vmatprep.subr.mxu0 0.0
  %3689 = vmatpush1.msra.mxu0 %v3501
  %3690 = vmatprep.subr.mxu0 0.0
  %3691 = vmatpush1.msra.mxu0 0.0
  %3692 = vmatprep.subr.mxu0 0.0
  %3693 = vmatpush1.msra.mxu0 0.0
  %3694 = vmatprep.subr.mxu0 0.0
  %3695 = vmatpush1.msra.mxu0 0.0
  %3696 = vmatprep.subr.mxu0 0.0
  %3697 = vmatpush1.msra.mxu0 0.0
  %3698 = vmatprep.subr.mxu0 0.0
  %3699 = vmatpush1.msra.mxu0 0.0
  %3700 = vmatprep.subr.mxu0 0.0
  %3701 = vmatpush1.msra.mxu0 0.0
  %3702 = vmatprep.subr.mxu0 0.0
  %3703 = vmatpush1.msra.mxu0 0.0
  %3704 = vmatprep.subr.mxu0 0.0
  %3705 = vmatpush1.msra.mxu0 0.0
  %3706 = vmatprep.subr.mxu0 0.0
  %3707 = vmatpush1.msra.mxu0 0.0
  %3708 = vmatprep.subr.mxu0 0.0
  %3709 = vmatpush1.msra.mxu0 0.0
  %3710 = vmatprep.subr.mxu0 0.0
  %3711 = vmatpush1.msra.mxu0 0.0
  %3712 = vmatprep.subr.mxu0 0.0
  %3713 = vmatpush1.msra.mxu0 0.0
  %3714 = vmatprep.subr.mxu0 0.0
  %3715 = vmatpush1.msra.mxu0 0.0
  %3716 = vmatprep.subr.mxu0 0.0
  %3717 = vmatpush1.msra.mxu0 0.0
  %3718 = vmatprep.subr.mxu0 0.0
  %3719 = vmatpush1.msra.mxu0 0.0
  %3720 = vmatprep.subr.mxu0 0.0
  %3721 = vmatpush1.msra.mxu0 0.0
  %3722 = vmatprep.subr.mxu0 0.0
  %3723 = vmatpush1.msra.mxu0 0.0
  %3724 = vmatprep.subr.mxu0 0.0
  %3725 = vmatpush1.msra.mxu0 0.0
  %3726 = vmatprep.subr.mxu0 0.0
  %3727 = vmatpush1.msra.mxu0 0.0
  %3728 = vmatprep.subr.mxu0 0.0
  %3729 = vmatpush1.msra.mxu0 0.0
  %3730 = vmatprep.subr.mxu0 0.0
  %3731 = vmatpush1.msra.mxu0 0.0
  %3732 = vmatprep.subr.mxu0 0.0
  %3733 = vmatpush1.msra.mxu0 0.0
  %3734 = vmatprep.subr.mxu0 0.0
  %3735 = vmatpush1.msra.mxu0 0.0
  %3736 = vmatprep.subr.mxu0 0.0
  %3737 = vmatpush1.msra.mxu0 0.0
  %3738 = vmatprep.subr.mxu0 0.0
  %3739 = vmatpush1.msra.mxu0 0.0
  %3740 = vmatprep.subr.mxu0 0.0
  %3741 = vmatpush1.msra.mxu0 0.0
  %3742 = vmatprep.subr.mxu0 0.0
  %3743 = vmatpush1.msra.mxu0 0.0
  %3744 = vmatprep.subr.mxu0 0.0
  %3745 = vmatpush1.msra.mxu0 0.0
  %3746 = vmatprep.subr.mxu0 0.0
  %3747 = vmatpush1.msra.mxu0 0.0
  %3748 = vmatprep.subr.mxu0 0.0
  %3749 = vmatpush1.msra.mxu0 0.0
  %3750 = vmatprep.subr.mxu0 0.0
  %3751 = vmatpush1.msra.mxu0 0.0
  %3752 = vmatprep.mubr.f32.mxu0 0.0
  %3753 = vmatmul.mubr.f32.gmra.mrb[0].mxu0 %v3686
  %v3754 = vpop.f32.mrb[0].mxu0
  %v3755 = vadd.f32 0.0, %v3754
  %v3756 = vpop.f32.mrb[0].mxu0
  %3757 = vdwg.mxu0
  %v3759 = vsel %vm533, %v3684, 0
  %3761 = vmatprep.subr.mxu0 0.0
  %3762 = vmatpush1.msra.mxu0 %v3506
  %3763 = vmatprep.subr.mxu0 0.0
  %3764 = vmatpush1.msra.mxu0 0.0
  %3765 = vmatprep.subr.mxu0 0.0
  %3766 = vmatpush1.msra.mxu0 0.0
  %3767 = vmatprep.subr.mxu0 0.0
  %3768 = vmatpush1.msra.mxu0 0.0
  %3769 = vmatprep.subr.mxu0 0.0
  %3770 = vmatpush1.msra.mxu0 0.0
  %3771 = vmatprep.subr.mxu0 0.0
  %3772 = vmatpush1.msra.mxu0 0.0
  %3773 = vmatprep.subr.mxu0 0.0
  %3774 = vmatpush1.msra.mxu0 0.0
  %3775 = vmatprep.subr.mxu0 0.0
  %3776 = vmatpush1.msra.mxu0 0.0
  %3777 = vmatprep.subr.mxu0 0.0
  %3778 = vmatpush1.msra.mxu0 0.0
  %3779 = vmatprep.subr.mxu0 0.0
  %3780 = vmatpush1.msra.mxu0 0.0
  %3781 = vmatprep.subr.mxu0 0.0
  %3782 = vmatpush1.msra.mxu0 0.0
  %3783 = vmatprep.subr.mxu0 0.0
  %3784 = vmatpush1.msra.mxu0 0.0
  %3785 = vmatprep.subr.mxu0 0.0
  %3786 = vmatpush1.msra.mxu0 0.0
  %3787 = vmatprep.subr.mxu0 0.0
  %3788 = vmatpush1.msra.mxu0 0.0
  %3789 = vmatprep.subr.mxu0 0.0
  %3790 = vmatpush1.msra.mxu0 0.0
  %3791 = vmatprep.subr.mxu0 0.0
  %3792 = vmatpush1.msra.mxu0 0.0
  %3793 = vmatprep.subr.mxu0 0.0
  %3794 = vmatpush1.msra.mxu0 0.0
  %3795 = vmatprep.subr.mxu0 0.0
  %3796 = vmatpush1.msra.mxu0 0.0
  %3797 = vmatprep.subr.mxu0 0.0
  %3798 = vmatpush1.msra.mxu0 0.0
  %3799 = vmatprep.subr.mxu0 0.0
  %3800 = vmatpush1.msra.mxu0 0.0
  %3801 = vmatprep.subr.mxu0 0.0
  %3802 = vmatpush1.msra.mxu0 0.0
  %3803 = vmatprep.subr.mxu0 0.0
  %3804 = vmatpush1.msra.mxu0 0.0
  %3805 = vmatprep.subr.mxu0 0.0
  %3806 = vmatpush1.msra.mxu0 0.0
  %3807 = vmatprep.subr.mxu0 0.0
  %3808 = vmatpush1.msra.mxu0 0.0
  %3809 = vmatprep.subr.mxu0 0.0
  %3810 = vmatpush1.msra.mxu0 0.0
  %3811 = vmatprep.subr.mxu0 0.0
  %3812 = vmatpush1.msra.mxu0 0.0
  %3813 = vmatprep.subr.mxu0 0.0
  %3814 = vmatpush1.msra.mxu0 0.0
  %3815 = vmatprep.subr.mxu0 0.0
  %3816 = vmatpush1.msra.mxu0 0.0
  %3817 = vmatprep.subr.mxu0 0.0
  %3818 = vmatpush1.msra.mxu0 0.0
  %3819 = vmatprep.subr.mxu0 0.0
  %3820 = vmatpush1.msra.mxu0 0.0
  %3821 = vmatprep.subr.mxu0 0.0
  %3822 = vmatpush1.msra.mxu0 0.0
  %3823 = vmatprep.subr.mxu0 0.0
  %3824 = vmatpush1.msra.mxu0 0.0
  %3825 = vmatprep.mubr.f32.mxu0 0.0
  %3826 = vmatmul.mubr.f32.gmra.mrb[0].mxu0 %v3759
  %v3827 = vpop.f32.mrb[0].mxu0
  %v3828 = vadd.f32 0.0, %v3827
  %v3829 = vpop.f32.mrb[0].mxu0
  %3830 = vdwg.mxu0
  %v3831 = vld [vmem:[%s49] sm:$0xff]
  %s3832 = scalar_lea.vmem %s37, 32
  %v3833 = vld [vmem:[%s3832] sm:$0xff]
  %v3834 = vld [vmem:[%s3832 + $0x8] sm:$0xff]
  %v3835 = vld [vmem:[%s3832 + $0x10] sm:$0xff]
  %v3836 = vld [vmem:[%s3832 + $0x18] sm:$0xff]
  %s3837 = scalar_lea.vmem %s39, 1
  %v3838 = vld [vmem:[%s3837] sm:$0x1]
  %v3840 = vlaneseq
  %v3841 = vshrl.u32 %v3840, 7
  %v3842 = vsub.s32 0, %v3841
  %v3843 = vrot.slane %v3838, %v3842
  %3845 = vmatprep.subr.mxu0 0.0
  %3846 = vmatpush1.msra.mxu0 %v3833
  %3847 = vmatprep.subr.mxu0 0.0
  %3848 = vmatpush1.msra.mxu0 %v3834
  %3849 = vmatprep.subr.mxu0 0.0
  %3850 = vmatpush1.msra.mxu0 %v3835
  %3851 = vmatprep.subr.mxu0 0.0
  %3852 = vmatpush1.msra.mxu0 %v3836
  %3853 = vmatprep.subr.mxu0 0.0
  %3854 = vmatpush1.msra.mxu0 0.0
  %3855 = vmatprep.subr.mxu0 0.0
  %3856 = vmatpush1.msra.mxu0 0.0
  %3857 = vmatprep.subr.mxu0 0.0
  %3858 = vmatpush1.msra.mxu0 0.0
  %3859 = vmatprep.subr.mxu0 0.0
  %3860 = vmatpush1.msra.mxu0 0.0
  %3861 = vmatprep.subr.mxu0 0.0
  %3862 = vmatpush1.msra.mxu0 0.0
  %3863 = vmatprep.subr.mxu0 0.0
  %3864 = vmatpush1.msra.mxu0 0.0
  %3865 = vmatprep.subr.mxu0 0.0
  %3866 = vmatpush1.msra.mxu0 0.0
  %3867 = vmatprep.subr.mxu0 0.0
  %3868 = vmatpush1.msra.mxu0 0.0
  %3869 = vmatprep.subr.mxu0 0.0
  %3870 = vmatpush1.msra.mxu0 0.0
  %3871 = vmatprep.subr.mxu0 0.0
  %3872 = vmatpush1.msra.mxu0 0.0
  %3873 = vmatprep.subr.mxu0 0.0
  %3874 = vmatpush1.msra.mxu0 0.0
  %3875 = vmatprep.subr.mxu0 0.0
  %3876 = vmatpush1.msra.mxu0 0.0
  %3877 = vmatprep.subr.mxu0 0.0
  %3878 = vmatpush1.msra.mxu0 0.0
  %3879 = vmatprep.subr.mxu0 0.0
  %3880 = vmatpush1.msra.mxu0 0.0
  %3881 = vmatprep.subr.mxu0 0.0
  %3882 = vmatpush1.msra.mxu0 0.0
  %3883 = vmatprep.subr.mxu0 0.0
  %3884 = vmatpush1.msra.mxu0 0.0
  %3885 = vmatprep.subr.mxu0 0.0
  %3886 = vmatpush1.msra.mxu0 0.0
  %3887 = vmatprep.subr.mxu0 0.0
  %3888 = vmatpush1.msra.mxu0 0.0
  %3889 = vmatprep.subr.mxu0 0.0
  %3890 = vmatpush1.msra.mxu0 0.0
  %3891 = vmatprep.subr.mxu0 0.0
  %3892 = vmatpush1.msra.mxu0 0.0
  %3893 = vmatprep.subr.mxu0 0.0
  %3894 = vmatpush1.msra.mxu0 0.0
  %3895 = vmatprep.subr.mxu0 0.0
  %3896 = vmatpush1.msra.mxu0 0.0
  %3897 = vmatprep.subr.mxu0 0.0
  %3898 = vmatpush1.msra.mxu0 0.0
  %3899 = vmatprep.subr.mxu0 0.0
  %3900 = vmatpush1.msra.mxu0 0.0
  %3901 = vmatprep.subr.mxu0 0.0
  %3902 = vmatpush1.msra.mxu0 0.0
  %3903 = vmatprep.subr.mxu0 0.0
  %3904 = vmatpush1.msra.mxu0 0.0
  %3905 = vmatprep.subr.mxu0 0.0
  %3906 = vmatpush1.msra.mxu0 0.0
  %3907 = vmatprep.subr.mxu0 0.0
  %3908 = vmatpush1.msra.mxu0 0.0
  %3909 = vmatprep.mubr.f32.mxu0 0.0
  %3910 = vmatmul.mubr.f32.gmra.mrb[0].mxu0 %v3257
  %v3911 = vpop.f32.mrb[0].mxu0
  %v3912 = vadd.f32 %v3843, %v3911
  %v3913 = vpop.f32.mrb[0].mxu0
  %3914 = vmatprep.mubr.f32.mxu0 0.0
  %3915 = vmatmul.mubr.f32.gmra.mrb[0].mxu0 %v3260
  %v3916 = vpop.f32.mrb[0].mxu0
  %v3917 = vadd.f32 %v3843, %v3916
  %v3918 = vpop.f32.mrb[0].mxu0
  %3919 = vdwg.mxu0
  %s3920 = scalar_lea.vmem %s41, 32
  %v3921 = vld [vmem:[%s3920] sm:$0xff]
  %v3922 = vld [vmem:[%s3920 + $0x8] sm:$0xff]
  %v3923 = vld [vmem:[%s3920 + $0x10] sm:$0xff]
  %v3924 = vld [vmem:[%s3920 + $0x18] sm:$0xff]
  %s3925 = scalar_lea.vmem %s43, 1
  %v3926 = vld [vmem:[%s3925] sm:$0x1]
  %v3928 = vlaneseq
  %v3929 = vshrl.u32 %v3928, 7
  %v3930 = vsub.s32 0, %v3929
  %v3931 = vrot.slane %v3926, %v3930
  %3933 = vmatprep.subr.mxu0 0.0
  %3934 = vmatpush1.msra.mxu0 %v3921
  %3935 = vmatprep.subr.mxu0 0.0
  %3936 = vmatpush1.msra.mxu0 %v3922
  %3937 = vmatprep.subr.mxu0 0.0
  %3938 = vmatpush1.msra.mxu0 %v3923
  %3939 = vmatprep.subr.mxu0 0.0
  %3940 = vmatpush1.msra.mxu0 %v3924
  %3941 = vmatprep.subr.mxu0 0.0
  %3942 = vmatpush1.msra.mxu0 0.0
  %3943 = vmatprep.subr.mxu0 0.0
  %3944 = vmatpush1.msra.mxu0 0.0
  %3945 = vmatprep.subr.mxu0 0.0
  %3946 = vmatpush1.msra.mxu0 0.0
  %3947 = vmatprep.subr.mxu0 0.0
  %3948 = vmatpush1.msra.mxu0 0.0
  %3949 = vmatprep.subr.mxu0 0.0
  %3950 = vmatpush1.msra.mxu0 0.0
  %3951 = vmatprep.subr.mxu0 0.0
  %3952 = vmatpush1.msra.mxu0 0.0
  %3953 = vmatprep.subr.mxu0 0.0
  %3954 = vmatpush1.msra.mxu0 0.0
  %3955 = vmatprep.subr.mxu0 0.0
  %3956 = vmatpush1.msra.mxu0 0.0
  %3957 = vmatprep.subr.mxu0 0.0
  %3958 = vmatpush1.msra.mxu0 0.0
  %3959 = vmatprep.subr.mxu0 0.0
  %3960 = vmatpush1.msra.mxu0 0.0
  %3961 = vmatprep.subr.mxu0 0.0
  %3962 = vmatpush1.msra.mxu0 0.0
  %3963 = vmatprep.subr.mxu0 0.0
  %3964 = vmatpush1.msra.mxu0 0.0
  %3965 = vmatprep.subr.mxu0 0.0
  %3966 = vmatpush1.msra.mxu0 0.0
  %3967 = vmatprep.subr.mxu0 0.0
  %3968 = vmatpush1.msra.mxu0 0.0
  %3969 = vmatprep.subr.mxu0 0.0
  %3970 = vmatpush1.msra.mxu0 0.0
  %3971 = vmatprep.subr.mxu0 0.0
  %3972 = vmatpush1.msra.mxu0 0.0
  %3973 = vmatprep.subr.mxu0 0.0
  %3974 = vmatpush1.msra.mxu0 0.0
  %3975 = vmatprep.subr.mxu0 0.0
  %3976 = vmatpush1.msra.mxu0 0.0
  %3977 = vmatprep.subr.mxu0 0.0
  %3978 = vmatpush1.msra.mxu0 0.0
  %3979 = vmatprep.subr.mxu0 0.0
  %3980 = vmatpush1.msra.mxu0 0.0
  %3981 = vmatprep.subr.mxu0 0.0
  %3982 = vmatpush1.msra.mxu0 0.0
  %3983 = vmatprep.subr.mxu0 0.0
  %3984 = vmatpush1.msra.mxu0 0.0
  %3985 = vmatprep.subr.mxu0 0.0
  %3986 = vmatpush1.msra.mxu0 0.0
  %3987 = vmatprep.subr.mxu0 0.0
  %3988 = vmatpush1.msra.mxu0 0.0
  %3989 = vmatprep.subr.mxu0 0.0
  %3990 = vmatpush1.msra.mxu0 0.0
  %3991 = vmatprep.subr.mxu0 0.0
  %3992 = vmatpush1.msra.mxu0 0.0
  %3993 = vmatprep.subr.mxu0 0.0
  %3994 = vmatpush1.msra.mxu0 0.0
  %3995 = vmatprep.subr.mxu0 0.0
  %3996 = vmatpush1.msra.mxu0 0.0
  %3997 = vmatprep.mubr.f32.mxu0 0.0
  %3998 = vmatmul.mubr.f32.gmra.mrb[0].mxu0 %v3257
  %v3999 = vpop.f32.mrb[0].mxu0
  %v4000 = vadd.f32 %v3931, %v3999
  %v4001 = vpop.f32.mrb[0].mxu0
  %4002 = vmatprep.mubr.f32.mxu0 0.0
  %4003 = vmatmul.mubr.f32.gmra.mrb[0].mxu0 %v3260
  %v4004 = vpop.f32.mrb[0].mxu0
  %v4005 = vadd.f32 %v3931, %v4004
  %v4006 = vpop.f32.mrb[0].mxu0
  %4007 = vdwg.mxu0
  %s4008 = scalar_lea.vmem %s45, 32
  %v4009 = vld [vmem:[%s4008] sm:$0xff]
  %v4010 = vld [vmem:[%s4008 + $0x8] sm:$0xff]
  %v4011 = vld [vmem:[%s4008 + $0x10] sm:$0xff]
  %v4012 = vld [vmem:[%s4008 + $0x18] sm:$0xff]
  %s4013 = scalar_lea.vmem %s47, 1
  %v4014 = vld [vmem:[%s4013] sm:$0x1]
  %v4016 = vlaneseq
  %v4017 = vshrl.u32 %v4016, 7
  %v4018 = vsub.s32 0, %v4017
  %v4019 = vrot.slane %v4014, %v4018
  %4021 = vmatprep.subr.mxu0 0.0
  %4022 = vmatpush1.msra.mxu0 %v4009
  %4023 = vmatprep.subr.mxu0 0.0
  %4024 = vmatpush1.msra.mxu0 %v4010
  %4025 = vmatprep.subr.mxu0 0.0
  %4026 = vmatpush1.msra.mxu0 %v4011
  %4027 = vmatprep.subr.mxu0 0.0
  %4028 = vmatpush1.msra.mxu0 %v4012
  %4029 = vmatprep.subr.mxu0 0.0
  %4030 = vmatpush1.msra.mxu0 0.0
  %4031 = vmatprep.subr.mxu0 0.0
  %4032 = vmatpush1.msra.mxu0 0.0
  %4033 = vmatprep.subr.mxu0 0.0
  %4034 = vmatpush1.msra.mxu0 0.0
  %4035 = vmatprep.subr.mxu0 0.0
  %4036 = vmatpush1.msra.mxu0 0.0
  %4037 = vmatprep.subr.mxu0 0.0
  %4038 = vmatpush1.msra.mxu0 0.0
  %4039 = vmatprep.subr.mxu0 0.0
  %4040 = vmatpush1.msra.mxu0 0.0
  %4041 = vmatprep.subr.mxu0 0.0
  %4042 = vmatpush1.msra.mxu0 0.0
  %4043 = vmatprep.subr.mxu0 0.0
  %4044 = vmatpush1.msra.mxu0 0.0
  %4045 = vmatprep.subr.mxu0 0.0
  %4046 = vmatpush1.msra.mxu0 0.0
  %4047 = vmatprep.subr.mxu0 0.0
  %4048 = vmatpush1.msra.mxu0 0.0
  %4049 = vmatprep.subr.mxu0 0.0
  %4050 = vmatpush1.msra.mxu0 0.0
  %4051 = vmatprep.subr.mxu0 0.0
  %4052 = vmatpush1.msra.mxu0 0.0
  %4053 = vmatprep.subr.mxu0 0.0
  %4054 = vmatpush1.msra.mxu0 0.0
  %4055 = vmatprep.subr.mxu0 0.0
  %4056 = vmatpush1.msra.mxu0 0.0
  %4057 = vmatprep.subr.mxu0 0.0
  %4058 = vmatpush1.msra.mxu0 0.0
  %4059 = vmatprep.subr.mxu0 0.0
  %4060 = vmatpush1.msra.mxu0 0.0
  %4061 = vmatprep.subr.mxu0 0.0
  %4062 = vmatpush1.msra.mxu0 0.0
  %4063 = vmatprep.subr.mxu0 0.0
  %4064 = vmatpush1.msra.mxu0 0.0
  %4065 = vmatprep.subr.mxu0 0.0
  %4066 = vmatpush1.msra.mxu0 0.0
  %4067 = vmatprep.subr.mxu0 0.0
  %4068 = vmatpush1.msra.mxu0 0.0
  %4069 = vmatprep.subr.mxu0 0.0
  %4070 = vmatpush1.msra.mxu0 0.0
  %4071 = vmatprep.subr.mxu0 0.0
  %4072 = vmatpush1.msra.mxu0 0.0
  %4073 = vmatprep.subr.mxu0 0.0
  %4074 = vmatpush1.msra.mxu0 0.0
  %4075 = vmatprep.subr.mxu0 0.0
  %4076 = vmatpush1.msra.mxu0 0.0
  %4077 = vmatprep.subr.mxu0 0.0
  %4078 = vmatpush1.msra.mxu0 0.0
  %4079 = vmatprep.subr.mxu0 0.0
  %4080 = vmatpush1.msra.mxu0 0.0
  %4081 = vmatprep.subr.mxu0 0.0
  %4082 = vmatpush1.msra.mxu0 0.0
  %4083 = vmatprep.subr.mxu0 0.0
  %4084 = vmatpush1.msra.mxu0 0.0
  %4085 = vmatprep.mubr.f32.mxu0 0.0
  %4086 = vmatmul.mubr.f32.gmra.mrb[0].mxu0 %v3257
  %v4087 = vpop.f32.mrb[0].mxu0
  %v4088 = vadd.f32 %v4019, %v4087
  %v4089 = vpop.f32.mrb[0].mxu0
  %4090 = vmatprep.mubr.f32.mxu0 0.0
  %4091 = vmatmul.mubr.f32.gmra.mrb[0].mxu0 %v3260
  %v4092 = vpop.f32.mrb[0].mxu0
  %v4093 = vadd.f32 %v4019, %v4092
  %v4094 = vpop.f32.mrb[0].mxu0
  %4095 = vdwg.mxu0
  %v4096 = vmul.f32 %v3912, 0.35355338
  %v4097 = vmul.f32 %v3917, 0.35355338
  %v4099 = vsel %vm533, %v4096, 0
  %v4102 = vsel %vm533, %v4000, 0
  %4104 = vmatprep.subr.mxu0 0.0
  %4105 = vmatpush1.xpose.msra.mxu0 %v4102
  %4106 = vmatprep.subr.mxu0 0.0
  %4107 = vmatpush1.xpose.msra.mxu0 0.0
  %4108 = vmatprep.subr.mxu0 0.0
  %4109 = vmatpush1.xpose.msra.mxu0 0.0
  %4110 = vmatprep.subr.mxu0 0.0
  %4111 = vmatpush1.xpose.msra.mxu0 0.0
  %4112 = vmatprep.subr.mxu0 0.0
  %4113 = vmatpush1.xpose.msra.mxu0 0.0
  %4114 = vmatprep.subr.mxu0 0.0
  %4115 = vmatpush1.xpose.msra.mxu0 0.0
  %4116 = vmatprep.subr.mxu0 0.0
  %4117 = vmatpush1.xpose.msra.mxu0 0.0
  %4118 = vmatprep.subr.mxu0 0.0
  %4119 = vmatpush1.xpose.msra.mxu0 0.0
  %4120 = vmatprep.subr.mxu0 0.0
  %4121 = vmatpush1.xpose.msra.mxu0 0.0
  %4122 = vmatprep.subr.mxu0 0.0
  %4123 = vmatpush1.xpose.msra.mxu0 0.0
  %4124 = vmatprep.subr.mxu0 0.0
  %4125 = vmatpush1.xpose.msra.mxu0 0.0
  %4126 = vmatprep.subr.mxu0 0.0
  %4127 = vmatpush1.xpose.msra.mxu0 0.0
  %4128 = vmatprep.subr.mxu0 0.0
  %4129 = vmatpush1.xpose.msra.mxu0 0.0
  %4130 = vmatprep.subr.mxu0 0.0
  %4131 = vmatpush1.xpose.msra.mxu0 0.0
  %4132 = vmatprep.subr.mxu0 0.0
  %4133 = vmatpush1.xpose.msra.mxu0 0.0
  %4134 = vmatprep.subr.mxu0 0.0
  %4135 = vmatpush1.xpose.msra.mxu0 0.0
  %4136 = vmatprep.subr.mxu0 0.0
  %4137 = vmatpush1.xpose.msra.mxu0 0.0
  %4138 = vmatprep.subr.mxu0 0.0
  %4139 = vmatpush1.xpose.msra.mxu0 0.0
  %4140 = vmatprep.subr.mxu0 0.0
  %4141 = vmatpush1.xpose.msra.mxu0 0.0
  %4142 = vmatprep.subr.mxu0 0.0
  %4143 = vmatpush1.xpose.msra.mxu0 0.0
  %4144 = vmatprep.subr.mxu0 0.0
  %4145 = vmatpush1.xpose.msra.mxu0 0.0
  %4146 = vmatprep.subr.mxu0 0.0
  %4147 = vmatpush1.xpose.msra.mxu0 0.0
  %4148 = vmatprep.subr.mxu0 0.0
  %4149 = vmatpush1.xpose.msra.mxu0 0.0
  %4150 = vmatprep.subr.mxu0 0.0
  %4151 = vmatpush1.xpose.msra.mxu0 0.0
  %4152 = vmatprep.subr.mxu0 0.0
  %4153 = vmatpush1.xpose.msra.mxu0 0.0
  %4154 = vmatprep.subr.mxu0 0.0
  %4155 = vmatpush1.xpose.msra.mxu0 0.0
  %4156 = vmatprep.subr.mxu0 0.0
  %4157 = vmatpush1.xpose.msra.mxu0 0.0
  %4158 = vmatprep.subr.mxu0 0.0
  %4159 = vmatpush1.xpose.msra.mxu0 0.0
  %4160 = vmatprep.subr.mxu0 0.0
  %4161 = vmatpush1.xpose.msra.mxu0 0.0
  %4162 = vmatprep.subr.mxu0 0.0
  %4163 = vmatpush1.xpose.msra.mxu0 0.0
  %4164 = vmatprep.subr.mxu0 0.0
  %4165 = vmatpush1.xpose.msra.mxu0 0.0
  %4166 = vmatprep.subr.mxu0 0.0
  %4167 = vmatpush1.xpose.msra.mxu0 0.0
  %4168 = vmatprep.mubr.f32.mxu0 0.0
  %4169 = vmatmul.mubr.f32.gmra.mrb[0].mxu0 %v4099
  %v4170 = vpop.f32.mrb[0].mxu0
  %v4171 = vadd.f32 0.0, %v4170
  %v4172 = vpop.f32.mrb[0].mxu0
  %4173 = vdwg.mxu0
  %v4175 = vsel %vm533, %v4097, 0
  %v4178 = vsel %vm533, %v4005, 0
  %4180 = vmatprep.subr.mxu0 0.0
  %4181 = vmatpush1.xpose.msra.mxu0 %v4178
  %4182 = vmatprep.subr.mxu0 0.0
  %4183 = vmatpush1.xpose.msra.mxu0 0.0
  %4184 = vmatprep.subr.mxu0 0.0
  %4185 = vmatpush1.xpose.msra.mxu0 0.0
  %4186 = vmatprep.subr.mxu0 0.0
  %4187 = vmatpush1.xpose.msra.mxu0 0.0
  %4188 = vmatprep.subr.mxu0 0.0
  %4189 = vmatpush1.xpose.msra.mxu0 0.0
  %4190 = vmatprep.subr.mxu0 0.0
  %4191 = vmatpush1.xpose.msra.mxu0 0.0
  %4192 = vmatprep.subr.mxu0 0.0
  %4193 = vmatpush1.xpose.msra.mxu0 0.0
  %4194 = vmatprep.subr.mxu0 0.0
  %4195 = vmatpush1.xpose.msra.mxu0 0.0
  %4196 = vmatprep.subr.mxu0 0.0
  %4197 = vmatpush1.xpose.msra.mxu0 0.0
  %4198 = vmatprep.subr.mxu0 0.0
  %4199 = vmatpush1.xpose.msra.mxu0 0.0
  %4200 = vmatprep.subr.mxu0 0.0
  %4201 = vmatpush1.xpose.msra.mxu0 0.0
  %4202 = vmatprep.subr.mxu0 0.0
  %4203 = vmatpush1.xpose.msra.mxu0 0.0
  %4204 = vmatprep.subr.mxu0 0.0
  %4205 = vmatpush1.xpose.msra.mxu0 0.0
  %4206 = vmatprep.subr.mxu0 0.0
  %4207 = vmatpush1.xpose.msra.mxu0 0.0
  %4208 = vmatprep.subr.mxu0 0.0
  %4209 = vmatpush1.xpose.msra.mxu0 0.0
  %4210 = vmatprep.subr.mxu0 0.0
  %4211 = vmatpush1.xpose.msra.mxu0 0.0
  %4212 = vmatprep.subr.mxu0 0.0
  %4213 = vmatpush1.xpose.msra.mxu0 0.0
  %4214 = vmatprep.subr.mxu0 0.0
  %4215 = vmatpush1.xpose.msra.mxu0 0.0
  %4216 = vmatprep.subr.mxu0 0.0
  %4217 = vmatpush1.xpose.msra.mxu0 0.0
  %4218 = vmatprep.subr.mxu0 0.0
  %4219 = vmatpush1.xpose.msra.mxu0 0.0
  %4220 = vmatprep.subr.mxu0 0.0
  %4221 = vmatpush1.xpose.msra.mxu0 0.0
  %4222 = vmatprep.subr.mxu0 0.0
  %4223 = vmatpush1.xpose.msra.mxu0 0.0
  %4224 = vmatprep.subr.mxu0 0.0
  %4225 = vmatpush1.xpose.msra.mxu0 0.0
  %4226 = vmatprep.subr.mxu0 0.0
  %4227 = vmatpush1.xpose.msra.mxu0 0.0
  %4228 = vmatprep.subr.mxu0 0.0
  %4229 = vmatpush1.xpose.msra.mxu0 0.0
  %4230 = vmatprep.subr.mxu0 0.0
  %4231 = vmatpush1.xpose.msra.mxu0 0.0
  %4232 = vmatprep.subr.mxu0 0.0
  %4233 = vmatpush1.xpose.msra.mxu0 0.0
  %4234 = vmatprep.subr.mxu0 0.0
  %4235 = vmatpush1.xpose.msra.mxu0 0.0
  %4236 = vmatprep.subr.mxu0 0.0
  %4237 = vmatpush1.xpose.msra.mxu0 0.0
  %4238 = vmatprep.subr.mxu0 0.0
  %4239 = vmatpush1.xpose.msra.mxu0 0.0
  %4240 = vmatprep.subr.mxu0 0.0
  %4241 = vmatpush1.xpose.msra.mxu0 0.0
  %4242 = vmatprep.subr.mxu0 0.0
  %4243 = vmatpush1.xpose.msra.mxu0 0.0
  %4244 = vmatprep.mubr.f32.mxu0 0.0
  %4245 = vmatmul.mubr.f32.gmra.mrb[0].mxu0 %v4175
  %v4246 = vpop.f32.mrb[0].mxu0
  %v4247 = vadd.f32 0.0, %v4246
  %v4248 = vpop.f32.mrb[0].mxu0
  %4249 = vdwg.mxu0
  %v4250 = vsel %vm533, %v4171, -inf
  %4251 = vmax.xlane.f32.xlu0 %v4250
  %v4252 = vpop.xlane.xlu0 %4251
  %v4253 = vsel %vm533, %v4247, -inf
  %4254 = vmax.xlane.f32.xlu0 %v4253
  %v4255 = vpop.xlane.xlu0 %4254
  %v4256 = vsub.f32 %v4171, %v4252
  %v4257 = vsub.f32 %v4247, %v4255
  %v4258 = vmul.f32 %v4256, 1.442695
  %v4259 = vpow.pop %v4258
  %v4260 = vmul.f32 %v4257, 1.442695
  %v4261 = vpow.pop %v4260
  %v4262 = vsel %vm533, %v4259, 0.0
  %4263 = vadd.xlane.f32.xlu0 %v4262
  %v4264 = vpop.xlane.xlu0 %4263
  %v4265 = vsel %vm533, %v4261, 0.0
  %4266 = vadd.xlane.f32.xlu0 %v4265
  %v4267 = vpop.xlane.xlu0 %4266
  %v4268 = vrcp.pop %v4264
  %v4269 = vrcp.pop %v4267
  %v4270 = vmul.f32 %v4259, %v4268
  %v4271 = vmul.f32 %v4261, %v4269
  %v4273 = vsel %vm533, %v4270, 0
  %4275 = vmatprep.subr.mxu0 0.0
  %4276 = vmatpush1.msra.mxu0 %v4088
  %4277 = vmatprep.subr.mxu0 0.0
  %4278 = vmatpush1.msra.mxu0 0.0
  %4279 = vmatprep.subr.mxu0 0.0
  %4280 = vmatpush1.msra.mxu0 0.0
  %4281 = vmatprep.subr.mxu0 0.0
  %4282 = vmatpush1.msra.mxu0 0.0
  %4283 = vmatprep.subr.mxu0 0.0
  %4284 = vmatpush1.msra.mxu0 0.0
  %4285 = vmatprep.subr.mxu0 0.0
  %4286 = vmatpush1.msra.mxu0 0.0
  %4287 = vmatprep.subr.mxu0 0.0
  %4288 = vmatpush1.msra.mxu0 0.0
  %4289 = vmatprep.subr.mxu0 0.0
  %4290 = vmatpush1.msra.mxu0 0.0
  %4291 = vmatprep.subr.mxu0 0.0
  %4292 = vmatpush1.msra.mxu0 0.0
  %4293 = vmatprep.subr.mxu0 0.0
  %4294 = vmatpush1.msra.mxu0 0.0
  %4295 = vmatprep.subr.mxu0 0.0
  %4296 = vmatpush1.msra.mxu0 0.0
  %4297 = vmatprep.subr.mxu0 0.0
  %4298 = vmatpush1.msra.mxu0 0.0
  %4299 = vmatprep.subr.mxu0 0.0
  %4300 = vmatpush1.msra.mxu0 0.0
  %4301 = vmatprep.subr.mxu0 0.0
  %4302 = vmatpush1.msra.mxu0 0.0
  %4303 = vmatprep.subr.mxu0 0.0
  %4304 = vmatpush1.msra.mxu0 0.0
  %4305 = vmatprep.subr.mxu0 0.0
  %4306 = vmatpush1.msra.mxu0 0.0
  %4307 = vmatprep.subr.mxu0 0.0
  %4308 = vmatpush1.msra.mxu0 0.0
  %4309 = vmatprep.subr.mxu0 0.0
  %4310 = vmatpush1.msra.mxu0 0.0
  %4311 = vmatprep.subr.mxu0 0.0
  %4312 = vmatpush1.msra.mxu0 0.0
  %4313 = vmatprep.subr.mxu0 0.0
  %4314 = vmatpush1.msra.mxu0 0.0
  %4315 = vmatprep.subr.mxu0 0.0
  %4316 = vmatpush1.msra.mxu0 0.0
  %4317 = vmatprep.subr.mxu0 0.0
  %4318 = vmatpush1.msra.mxu0 0.0
  %4319 = vmatprep.subr.mxu0 0.0
  %4320 = vmatpush1.msra.mxu0 0.0
  %4321 = vmatprep.subr.mxu0 0.0
  %4322 = vmatpush1.msra.mxu0 0.0
  %4323 = vmatprep.subr.mxu0 0.0
  %4324 = vmatpush1.msra.mxu0 0.0
  %4325 = vmatprep.subr.mxu0 0.0
  %4326 = vmatpush1.msra.mxu0 0.0
  %4327 = vmatprep.subr.mxu0 0.0
  %4328 = vmatpush1.msra.mxu0 0.0
  %4329 = vmatprep.subr.mxu0 0.0
  %4330 = vmatpush1.msra.mxu0 0.0
  %4331 = vmatprep.subr.mxu0 0.0
  %4332 = vmatpush1.msra.mxu0 0.0
  %4333 = vmatprep.subr.mxu0 0.0
  %4334 = vmatpush1.msra.mxu0 0.0
  %4335 = vmatprep.subr.mxu0 0.0
  %4336 = vmatpush1.msra.mxu0 0.0
  %4337 = vmatprep.subr.mxu0 0.0
  %4338 = vmatpush1.msra.mxu0 0.0
  %4339 = vmatprep.mubr.f32.mxu0 0.0
  %4340 = vmatmul.mubr.f32.gmra.mrb[0].mxu0 %v4273
  %v4341 = vpop.f32.mrb[0].mxu0
  %v4342 = vadd.f32 0.0, %v4341
  %v4343 = vpop.f32.mrb[0].mxu0
  %4344 = vdwg.mxu0
  %v4346 = vsel %vm533, %v4271, 0
  %4348 = vmatprep.subr.mxu0 0.0
  %4349 = vmatpush1.msra.mxu0 %v4093
  %4350 = vmatprep.subr.mxu0 0.0
  %4351 = vmatpush1.msra.mxu0 0.0
  %4352 = vmatprep.subr.mxu0 0.0
  %4353 = vmatpush1.msra.mxu0 0.0
  %4354 = vmatprep.subr.mxu0 0.0
  %4355 = vmatpush1.msra.mxu0 0.0
  %4356 = vmatprep.subr.mxu0 0.0
  %4357 = vmatpush1.msra.mxu0 0.0
  %4358 = vmatprep.subr.mxu0 0.0
  %4359 = vmatpush1.msra.mxu0 0.0
  %4360 = vmatprep.subr.mxu0 0.0
  %4361 = vmatpush1.msra.mxu0 0.0
  %4362 = vmatprep.subr.mxu0 0.0
  %4363 = vmatpush1.msra.mxu0 0.0
  %4364 = vmatprep.subr.mxu0 0.0
  %4365 = vmatpush1.msra.mxu0 0.0
  %4366 = vmatprep.subr.mxu0 0.0
  %4367 = vmatpush1.msra.mxu0 0.0
  %4368 = vmatprep.subr.mxu0 0.0
  %4369 = vmatpush1.msra.mxu0 0.0
  %4370 = vmatprep.subr.mxu0 0.0
  %4371 = vmatpush1.msra.mxu0 0.0
  %4372 = vmatprep.subr.mxu0 0.0
  %4373 = vmatpush1.msra.mxu0 0.0
  %4374 = vmatprep.subr.mxu0 0.0
  %4375 = vmatpush1.msra.mxu0 0.0
  %4376 = vmatprep.subr.mxu0 0.0
  %4377 = vmatpush1.msra.mxu0 0.0
  %4378 = vmatprep.subr.mxu0 0.0
  %4379 = vmatpush1.msra.mxu0 0.0
  %4380 = vmatprep.subr.mxu0 0.0
  %4381 = vmatpush1.msra.mxu0 0.0
  %4382 = vmatprep.subr.mxu0 0.0
  %4383 = vmatpush1.msra.mxu0 0.0
  %4384 = vmatprep.subr.mxu0 0.0
  %4385 = vmatpush1.msra.mxu0 0.0
  %4386 = vmatprep.subr.mxu0 0.0
  %4387 = vmatpush1.msra.mxu0 0.0
  %4388 = vmatprep.subr.mxu0 0.0
  %4389 = vmatpush1.msra.mxu0 0.0
  %4390 = vmatprep.subr.mxu0 0.0
  %4391 = vmatpush1.msra.mxu0 0.0
  %4392 = vmatprep.subr.mxu0 0.0
  %4393 = vmatpush1.msra.mxu0 0.0
  %4394 = vmatprep.subr.mxu0 0.0
  %4395 = vmatpush1.msra.mxu0 0.0
  %4396 = vmatprep.subr.mxu0 0.0
  %4397 = vmatpush1.msra.mxu0 0.0
  %4398 = vmatprep.subr.mxu0 0.0
  %4399 = vmatpush1.msra.mxu0 0.0
  %4400 = vmatprep.subr.mxu0 0.0
  %4401 = vmatpush1.msra.mxu0 0.0
  %4402 = vmatprep.subr.mxu0 0.0
  %4403 = vmatpush1.msra.mxu0 0.0
  %4404 = vmatprep.subr.mxu0 0.0
  %4405 = vmatpush1.msra.mxu0 0.0
  %4406 = vmatprep.subr.mxu0 0.0
  %4407 = vmatpush1.msra.mxu0 0.0
  %4408 = vmatprep.subr.mxu0 0.0
  %4409 = vmatpush1.msra.mxu0 0.0
  %4410 = vmatprep.subr.mxu0 0.0
  %4411 = vmatpush1.msra.mxu0 0.0
  %4412 = vmatprep.mubr.f32.mxu0 0.0
  %4413 = vmatmul.mubr.f32.gmra.mrb[0].mxu0 %v4346
  %v4414 = vpop.f32.mrb[0].mxu0
  %v4415 = vadd.f32 0.0, %v4414
  %v4416 = vpop.f32.mrb[0].mxu0
  %4417 = vdwg.mxu0
  %s4418 = scalar_lea.vmem %s49, 8
  %v4419 = vld [vmem:[%s4418] sm:$0xff]
  %v4421 = vsel %vm533, %v4342, 0
  %v4424 = vsel %vm533, %v4415, 0
  %4426 = vmatprep.subr.mxu0 0.0
  %4427 = vmatpush1.msra.mxu0 %v4419
  %4428 = vmatprep.subr.mxu0 0.0
  %4429 = vmatpush1.msra.mxu0 0.0
  %4430 = vmatprep.subr.mxu0 0.0
  %4431 = vmatpush1.msra.mxu0 0.0
  %4432 = vmatprep.subr.mxu0 0.0
  %4433 = vmatpush1.msra.mxu0 0.0
  %4434 = vmatprep.subr.mxu0 0.0
  %4435 = vmatpush1.msra.mxu0 0.0
  %4436 = vmatprep.subr.mxu0 0.0
  %4437 = vmatpush1.msra.mxu0 0.0
  %4438 = vmatprep.subr.mxu0 0.0
  %4439 = vmatpush1.msra.mxu0 0.0
  %4440 = vmatprep.subr.mxu0 0.0
  %4441 = vmatpush1.msra.mxu0 0.0
  %4442 = vmatprep.subr.mxu0 0.0
  %4443 = vmatpush1.msra.mxu0 0.0
  %4444 = vmatprep.subr.mxu0 0.0
  %4445 = vmatpush1.msra.mxu0 0.0
  %4446 = vmatprep.subr.mxu0 0.0
  %4447 = vmatpush1.msra.mxu0 0.0
  %4448 = vmatprep.subr.mxu0 0.0
  %4449 = vmatpush1.msra.mxu0 0.0
  %4450 = vmatprep.subr.mxu0 0.0
  %4451 = vmatpush1.msra.mxu0 0.0
  %4452 = vmatprep.subr.mxu0 0.0
  %4453 = vmatpush1.msra.mxu0 0.0
  %4454 = vmatprep.subr.mxu0 0.0
  %4455 = vmatpush1.msra.mxu0 0.0
  %4456 = vmatprep.subr.mxu0 0.0
  %4457 = vmatpush1.msra.mxu0 0.0
  %4458 = vmatprep.subr.mxu0 0.0
  %4459 = vmatpush1.msra.mxu0 0.0
  %4460 = vmatprep.subr.mxu0 0.0
  %4461 = vmatpush1.msra.mxu0 0.0
  %4462 = vmatprep.subr.mxu0 0.0
  %4463 = vmatpush1.msra.mxu0 0.0
  %4464 = vmatprep.subr.mxu0 0.0
  %4465 = vmatpush1.msra.mxu0 0.0
  %4466 = vmatprep.subr.mxu0 0.0
  %4467 = vmatpush1.msra.mxu0 0.0
  %4468 = vmatprep.subr.mxu0 0.0
  %4469 = vmatpush1.msra.mxu0 0.0
  %4470 = vmatprep.subr.mxu0 0.0
  %4471 = vmatpush1.msra.mxu0 0.0
  %4472 = vmatprep.subr.mxu0 0.0
  %4473 = vmatpush1.msra.mxu0 0.0
  %4474 = vmatprep.subr.mxu0 0.0
  %4475 = vmatpush1.msra.mxu0 0.0
  %4476 = vmatprep.subr.mxu0 0.0
  %4477 = vmatpush1.msra.mxu0 0.0
  %4478 = vmatprep.subr.mxu0 0.0
  %4479 = vmatpush1.msra.mxu0 0.0
  %4480 = vmatprep.subr.mxu0 0.0
  %4481 = vmatpush1.msra.mxu0 0.0
  %4482 = vmatprep.subr.mxu0 0.0
  %4483 = vmatpush1.msra.mxu0 0.0
  %4484 = vmatprep.subr.mxu0 0.0
  %4485 = vmatpush1.msra.mxu0 0.0
  %4486 = vmatprep.subr.mxu0 0.0
  %4487 = vmatpush1.msra.mxu0 0.0
  %4488 = vmatprep.subr.mxu0 0.0
  %4489 = vmatpush1.msra.mxu0 0.0
  %4490 = vmatprep.mubr.f32.mxu0 0.0
  %4491 = vmatmul.mubr.f32.gmra.mrb[0].mxu0 %v4421
  %v4492 = vpop.f32.mrb[0].mxu0
  %v4493 = vadd.f32 0.0, %v4492
  %v4494 = vpop.f32.mrb[0].mxu0
  %4495 = vmatprep.mubr.f32.mxu0 0.0
  %4496 = vmatmul.mubr.f32.gmra.mrb[0].mxu0 %v4424
  %v4497 = vpop.f32.mrb[0].mxu0
  %v4498 = vadd.f32 0.0, %v4497
  %v4499 = vpop.f32.mrb[0].mxu0
  %4500 = vdwg.mxu0
  %v4502 = vsel %vm533, %v3755, 0
  %v4505 = vsel %vm533, %v3828, 0
  %4507 = vmatprep.subr.mxu0 0.0
  %4508 = vmatpush1.msra.mxu0 %v3831
  %4509 = vmatprep.subr.mxu0 0.0
  %4510 = vmatpush1.msra.mxu0 0.0
  %4511 = vmatprep.subr.mxu0 0.0
  %4512 = vmatpush1.msra.mxu0 0.0
  %4513 = vmatprep.subr.mxu0 0.0
  %4514 = vmatpush1.msra.mxu0 0.0
  %4515 = vmatprep.subr.mxu0 0.0
  %4516 = vmatpush1.msra.mxu0 0.0
  %4517 = vmatprep.subr.mxu0 0.0
  %4518 = vmatpush1.msra.mxu0 0.0
  %4519 = vmatprep.subr.mxu0 0.0
  %4520 = vmatpush1.msra.mxu0 0.0
  %4521 = vmatprep.subr.mxu0 0.0
  %4522 = vmatpush1.msra.mxu0 0.0
  %4523 = vmatprep.subr.mxu0 0.0
  %4524 = vmatpush1.msra.mxu0 0.0
  %4525 = vmatprep.subr.mxu0 0.0
  %4526 = vmatpush1.msra.mxu0 0.0
  %4527 = vmatprep.subr.mxu0 0.0
  %4528 = vmatpush1.msra.mxu0 0.0
  %4529 = vmatprep.subr.mxu0 0.0
  %4530 = vmatpush1.msra.mxu0 0.0
  %4531 = vmatprep.subr.mxu0 0.0
  %4532 = vmatpush1.msra.mxu0 0.0
  %4533 = vmatprep.subr.mxu0 0.0
  %4534 = vmatpush1.msra.mxu0 0.0
  %4535 = vmatprep.subr.mxu0 0.0
  %4536 = vmatpush1.msra.mxu0 0.0
  %4537 = vmatprep.subr.mxu0 0.0
  %4538 = vmatpush1.msra.mxu0 0.0
  %4539 = vmatprep.subr.mxu0 0.0
  %4540 = vmatpush1.msra.mxu0 0.0
  %4541 = vmatprep.subr.mxu0 0.0
  %4542 = vmatpush1.msra.mxu0 0.0
  %4543 = vmatprep.subr.mxu0 0.0
  %4544 = vmatpush1.msra.mxu0 0.0
  %4545 = vmatprep.subr.mxu0 0.0
  %4546 = vmatpush1.msra.mxu0 0.0
  %4547 = vmatprep.subr.mxu0 0.0
  %4548 = vmatpush1.msra.mxu0 0.0
  %4549 = vmatprep.subr.mxu0 0.0
  %4550 = vmatpush1.msra.mxu0 0.0
  %4551 = vmatprep.subr.mxu0 0.0
  %4552 = vmatpush1.msra.mxu0 0.0
  %4553 = vmatprep.subr.mxu0 0.0
  %4554 = vmatpush1.msra.mxu0 0.0
  %4555 = vmatprep.subr.mxu0 0.0
  %4556 = vmatpush1.msra.mxu0 0.0
  %4557 = vmatprep.subr.mxu0 0.0
  %4558 = vmatpush1.msra.mxu0 0.0
  %4559 = vmatprep.subr.mxu0 0.0
  %4560 = vmatpush1.msra.mxu0 0.0
  %4561 = vmatprep.subr.mxu0 0.0
  %4562 = vmatpush1.msra.mxu0 0.0
  %4563 = vmatprep.subr.mxu0 0.0
  %4564 = vmatpush1.msra.mxu0 0.0
  %4565 = vmatprep.subr.mxu0 0.0
  %4566 = vmatpush1.msra.mxu0 0.0
  %4567 = vmatprep.subr.mxu0 0.0
  %4568 = vmatpush1.msra.mxu0 0.0
  %4569 = vmatprep.subr.mxu0 0.0
  %4570 = vmatpush1.msra.mxu0 0.0
  %4571 = vmatprep.mubr.f32.mxu0 0.0
  %4572 = vmatmul.mubr.f32.gmra.mrb[0].mxu0 %v4502
  %v4573 = vpop.f32.mrb[0].mxu0
  %v4574 = vadd.f32 %v4493, %v4573
  %v4575 = vpop.f32.mrb[0].mxu0
  %4576 = vmatprep.mubr.f32.mxu0 0.0
  %4577 = vmatmul.mubr.f32.gmra.mrb[0].mxu0 %v4505
  %v4578 = vpop.f32.mrb[0].mxu0
  %v4579 = vadd.f32 %v4498, %v4578
  %v4580 = vpop.f32.mrb[0].mxu0
  %4581 = vdwg.mxu0
  %s4582 = scalar_lea.vmem %s37, 64
  %v4583 = vld [vmem:[%s4582] sm:$0xff]
  %v4584 = vld [vmem:[%s4582 + $0x8] sm:$0xff]
  %v4585 = vld [vmem:[%s4582 + $0x10] sm:$0xff]
  %v4586 = vld [vmem:[%s4582 + $0x18] sm:$0xff]
  %s4587 = scalar_lea.vmem %s39, 2
  %v4588 = vld [vmem:[%s4587] sm:$0x1]
  %v4590 = vlaneseq
  %v4591 = vshrl.u32 %v4590, 7
  %v4592 = vsub.s32 0, %v4591
  %v4593 = vrot.slane %v4588, %v4592
  %4595 = vmatprep.subr.mxu0 0.0
  %4596 = vmatpush1.msra.mxu0 %v4583
  %4597 = vmatprep.subr.mxu0 0.0
  %4598 = vmatpush1.msra.mxu0 %v4584
  %4599 = vmatprep.subr.mxu0 0.0
  %4600 = vmatpush1.msra.mxu0 %v4585
  %4601 = vmatprep.subr.mxu0 0.0
  %4602 = vmatpush1.msra.mxu0 %v4586
  %4603 = vmatprep.subr.mxu0 0.0
  %4604 = vmatpush1.msra.mxu0 0.0
  %4605 = vmatprep.subr.mxu0 0.0
  %4606 = vmatpush1.msra.mxu0 0.0
  %4607 = vmatprep.subr.mxu0 0.0
  %4608 = vmatpush1.msra.mxu0 0.0
  %4609 = vmatprep.subr.mxu0 0.0
  %4610 = vmatpush1.msra.mxu0 0.0
  %4611 = vmatprep.subr.mxu0 0.0
  %4612 = vmatpush1.msra.mxu0 0.0
  %4613 = vmatprep.subr.mxu0 0.0
  %4614 = vmatpush1.msra.mxu0 0.0
  %4615 = vmatprep.subr.mxu0 0.0
  %4616 = vmatpush1.msra.mxu0 0.0
  %4617 = vmatprep.subr.mxu0 0.0
  %4618 = vmatpush1.msra.mxu0 0.0
  %4619 = vmatprep.subr.mxu0 0.0
  %4620 = vmatpush1.msra.mxu0 0.0
  %4621 = vmatprep.subr.mxu0 0.0
  %4622 = vmatpush1.msra.mxu0 0.0
  %4623 = vmatprep.subr.mxu0 0.0
  %4624 = vmatpush1.msra.mxu0 0.0
  %4625 = vmatprep.subr.mxu0 0.0
  %4626 = vmatpush1.msra.mxu0 0.0
  %4627 = vmatprep.subr.mxu0 0.0
  %4628 = vmatpush1.msra.mxu0 0.0
  %4629 = vmatprep.subr.mxu0 0.0
  %4630 = vmatpush1.msra.mxu0 0.0
  %4631 = vmatprep.subr.mxu0 0.0
  %4632 = vmatpush1.msra.mxu0 0.0
  %4633 = vmatprep.subr.mxu0 0.0
  %4634 = vmatpush1.msra.mxu0 0.0
  %4635 = vmatprep.subr.mxu0 0.0
  %4636 = vmatpush1.msra.mxu0 0.0
  %4637 = vmatprep.subr.mxu0 0.0
  %4638 = vmatpush1.msra.mxu0 0.0
  %4639 = vmatprep.subr.mxu0 0.0
  %4640 = vmatpush1.msra.mxu0 0.0
  %4641 = vmatprep.subr.mxu0 0.0
  %4642 = vmatpush1.msra.mxu0 0.0
  %4643 = vmatprep.subr.mxu0 0.0
  %4644 = vmatpush1.msra.mxu0 0.0
  %4645 = vmatprep.subr.mxu0 0.0
  %4646 = vmatpush1.msra.mxu0 0.0
  %4647 = vmatprep.subr.mxu0 0.0
  %4648 = vmatpush1.msra.mxu0 0.0
  %4649 = vmatprep.subr.mxu0 0.0
  %4650 = vmatpush1.msra.mxu0 0.0
  %4651 = vmatprep.subr.mxu0 0.0
  %4652 = vmatpush1.msra.mxu0 0.0
  %4653 = vmatprep.subr.mxu0 0.0
  %4654 = vmatpush1.msra.mxu0 0.0
  %4655 = vmatprep.subr.mxu0 0.0
  %4656 = vmatpush1.msra.mxu0 0.0
  %4657 = vmatprep.subr.mxu0 0.0
  %4658 = vmatpush1.msra.mxu0 0.0
  %4659 = vmatprep.mubr.f32.mxu0 0.0
  %4660 = vmatmul.mubr.f32.gmra.mrb[0].mxu0 %v3257
  %v4661 = vpop.f32.mrb[0].mxu0
  %v4662 = vadd.f32 %v4593, %v4661
  %v4663 = vpop.f32.mrb[0].mxu0
  %4664 = vmatprep.mubr.f32.mxu0 0.0
  %4665 = vmatmul.mubr.f32.gmra.mrb[0].mxu0 %v3260
  %v4666 = vpop.f32.mrb[0].mxu0
  %v4667 = vadd.f32 %v4593, %v4666
  %v4668 = vpop.f32.mrb[0].mxu0
  %4669 = vdwg.mxu0
  %s4670 = scalar_lea.vmem %s41, 64
  %v4671 = vld [vmem:[%s4670] sm:$0xff]
  %v4672 = vld [vmem:[%s4670 + $0x8] sm:$0xff]
  %v4673 = vld [vmem:[%s4670 + $0x10] sm:$0xff]
  %v4674 = vld [vmem:[%s4670 + $0x18] sm:$0xff]
  %s4675 = scalar_lea.vmem %s43, 2
  %v4676 = vld [vmem:[%s4675] sm:$0x1]
  %v4678 = vlaneseq
  %v4679 = vshrl.u32 %v4678, 7
  %v4680 = vsub.s32 0, %v4679
  %v4681 = vrot.slane %v4676, %v4680
  %4683 = vmatprep.subr.mxu0 0.0
  %4684 = vmatpush1.msra.mxu0 %v4671
  %4685 = vmatprep.subr.mxu0 0.0
  %4686 = vmatpush1.msra.mxu0 %v4672
  %4687 = vmatprep.subr.mxu0 0.0
  %4688 = vmatpush1.msra.mxu0 %v4673
  %4689 = vmatprep.subr.mxu0 0.0
  %4690 = vmatpush1.msra.mxu0 %v4674
  %4691 = vmatprep.subr.mxu0 0.0
  %4692 = vmatpush1.msra.mxu0 0.0
  %4693 = vmatprep.subr.mxu0 0.0
  %4694 = vmatpush1.msra.mxu0 0.0
  %4695 = vmatprep.subr.mxu0 0.0
  %4696 = vmatpush1.msra.mxu0 0.0
  %4697 = vmatprep.subr.mxu0 0.0
  %4698 = vmatpush1.msra.mxu0 0.0
  %4699 = vmatprep.subr.mxu0 0.0
  %4700 = vmatpush1.msra.mxu0 0.0
  %4701 = vmatprep.subr.mxu0 0.0
  %4702 = vmatpush1.msra.mxu0 0.0
  %4703 = vmatprep.subr.mxu0 0.0
  %4704 = vmatpush1.msra.mxu0 0.0
  %4705 = vmatprep.subr.mxu0 0.0
  %4706 = vmatpush1.msra.mxu0 0.0
  %4707 = vmatprep.subr.mxu0 0.0
  %4708 = vmatpush1.msra.mxu0 0.0
  %4709 = vmatprep.subr.mxu0 0.0
  %4710 = vmatpush1.msra.mxu0 0.0
  %4711 = vmatprep.subr.mxu0 0.0
  %4712 = vmatpush1.msra.mxu0 0.0
  %4713 = vmatprep.subr.mxu0 0.0
  %4714 = vmatpush1.msra.mxu0 0.0
  %4715 = vmatprep.subr.mxu0 0.0
  %4716 = vmatpush1.msra.mxu0 0.0
  %4717 = vmatprep.subr.mxu0 0.0
  %4718 = vmatpush1.msra.mxu0 0.0
  %4719 = vmatprep.subr.mxu0 0.0
  %4720 = vmatpush1.msra.mxu0 0.0
  %4721 = vmatprep.subr.mxu0 0.0
  %4722 = vmatpush1.msra.mxu0 0.0
  %4723 = vmatprep.subr.mxu0 0.0
  %4724 = vmatpush1.msra.mxu0 0.0
  %4725 = vmatprep.subr.mxu0 0.0
  %4726 = vmatpush1.msra.mxu0 0.0
  %4727 = vmatprep.subr.mxu0 0.0
  %4728 = vmatpush1.msra.mxu0 0.0
  %4729 = vmatprep.subr.mxu0 0.0
  %4730 = vmatpush1.msra.mxu0 0.0
  %4731 = vmatprep.subr.mxu0 0.0
  %4732 = vmatpush1.msra.mxu0 0.0
  %4733 = vmatprep.subr.mxu0 0.0
  %4734 = vmatpush1.msra.mxu0 0.0
  %4735 = vmatprep.subr.mxu0 0.0
  %4736 = vmatpush1.msra.mxu0 0.0
  %4737 = vmatprep.subr.mxu0 0.0
  %4738 = vmatpush1.msra.mxu0 0.0
  %4739 = vmatprep.subr.mxu0 0.0
  %4740 = vmatpush1.msra.mxu0 0.0
  %4741 = vmatprep.subr.mxu0 0.0
  %4742 = vmatpush1.msra.mxu0 0.0
  %4743 = vmatprep.subr.mxu0 0.0
  %4744 = vmatpush1.msra.mxu0 0.0
  %4745 = vmatprep.subr.mxu0 0.0
  %4746 = vmatpush1.msra.mxu0 0.0
  %4747 = vmatprep.mubr.f32.mxu0 0.0
  %4748 = vmatmul.mubr.f32.gmra.mrb[0].mxu0 %v3257
  %v4749 = vpop.f32.mrb[0].mxu0
  %v4750 = vadd.f32 %v4681, %v4749
  %v4751 = vpop.f32.mrb[0].mxu0
  %4752 = vmatprep.mubr.f32.mxu0 0.0
  %4753 = vmatmul.mubr.f32.gmra.mrb[0].mxu0 %v3260
  %v4754 = vpop.f32.mrb[0].mxu0
  %v4755 = vadd.f32 %v4681, %v4754
  %v4756 = vpop.f32.mrb[0].mxu0
  %4757 = vdwg.mxu0
  %s4758 = scalar_lea.vmem %s45, 64
  %v4759 = vld [vmem:[%s4758] sm:$0xff]
  %v4760 = vld [vmem:[%s4758 + $0x8] sm:$0xff]
  %v4761 = vld [vmem:[%s4758 + $0x10] sm:$0xff]
  %v4762 = vld [vmem:[%s4758 + $0x18] sm:$0xff]
  %s4763 = scalar_lea.vmem %s47, 2
  %v4764 = vld [vmem:[%s4763] sm:$0x1]
  %v4766 = vlaneseq
  %v4767 = vshrl.u32 %v4766, 7
  %v4768 = vsub.s32 0, %v4767
  %v4769 = vrot.slane %v4764, %v4768
  %4771 = vmatprep.subr.mxu0 0.0
  %4772 = vmatpush1.msra.mxu0 %v4759
  %4773 = vmatprep.subr.mxu0 0.0
  %4774 = vmatpush1.msra.mxu0 %v4760
  %4775 = vmatprep.subr.mxu0 0.0
  %4776 = vmatpush1.msra.mxu0 %v4761
  %4777 = vmatprep.subr.mxu0 0.0
  %4778 = vmatpush1.msra.mxu0 %v4762
  %4779 = vmatprep.subr.mxu0 0.0
  %4780 = vmatpush1.msra.mxu0 0.0
  %4781 = vmatprep.subr.mxu0 0.0
  %4782 = vmatpush1.msra.mxu0 0.0
  %4783 = vmatprep.subr.mxu0 0.0
  %4784 = vmatpush1.msra.mxu0 0.0
  %4785 = vmatprep.subr.mxu0 0.0
  %4786 = vmatpush1.msra.mxu0 0.0
  %4787 = vmatprep.subr.mxu0 0.0
  %4788 = vmatpush1.msra.mxu0 0.0
  %4789 = vmatprep.subr.mxu0 0.0
  %4790 = vmatpush1.msra.mxu0 0.0
  %4791 = vmatprep.subr.mxu0 0.0
  %4792 = vmatpush1.msra.mxu0 0.0
  %4793 = vmatprep.subr.mxu0 0.0
  %4794 = vmatpush1.msra.mxu0 0.0
  %4795 = vmatprep.subr.mxu0 0.0
  %4796 = vmatpush1.msra.mxu0 0.0
  %4797 = vmatprep.subr.mxu0 0.0
  %4798 = vmatpush1.msra.mxu0 0.0
  %4799 = vmatprep.subr.mxu0 0.0
  %4800 = vmatpush1.msra.mxu0 0.0
  %4801 = vmatprep.subr.mxu0 0.0
  %4802 = vmatpush1.msra.mxu0 0.0
  %4803 = vmatprep.subr.mxu0 0.0
  %4804 = vmatpush1.msra.mxu0 0.0
  %4805 = vmatprep.subr.mxu0 0.0
  %4806 = vmatpush1.msra.mxu0 0.0
  %4807 = vmatprep.subr.mxu0 0.0
  %4808 = vmatpush1.msra.mxu0 0.0
  %4809 = vmatprep.subr.mxu0 0.0
  %4810 = vmatpush1.msra.mxu0 0.0
  %4811 = vmatprep.subr.mxu0 0.0
  %4812 = vmatpush1.msra.mxu0 0.0
  %4813 = vmatprep.subr.mxu0 0.0
  %4814 = vmatpush1.msra.mxu0 0.0
  %4815 = vmatprep.subr.mxu0 0.0
  %4816 = vmatpush1.msra.mxu0 0.0
  %4817 = vmatprep.subr.mxu0 0.0
  %4818 = vmatpush1.msra.mxu0 0.0
  %4819 = vmatprep.subr.mxu0 0.0
  %4820 = vmatpush1.msra.mxu0 0.0
  %4821 = vmatprep.subr.mxu0 0.0
  %4822 = vmatpush1.msra.mxu0 0.0
  %4823 = vmatprep.subr.mxu0 0.0
  %4824 = vmatpush1.msra.mxu0 0.0
  %4825 = vmatprep.subr.mxu0 0.0
  %4826 = vmatpush1.msra.mxu0 0.0
  %4827 = vmatprep.subr.mxu0 0.0
  %4828 = vmatpush1.msra.mxu0 0.0
  %4829 = vmatprep.subr.mxu0 0.0
  %4830 = vmatpush1.msra.mxu0 0.0
  %4831 = vmatprep.subr.mxu0 0.0
  %4832 = vmatpush1.msra.mxu0 0.0
  %4833 = vmatprep.subr.mxu0 0.0
  %4834 = vmatpush1.msra.mxu0 0.0
  %4835 = vmatprep.mubr.f32.mxu0 0.0
  %4836 = vmatmul.mubr.f32.gmra.mrb[0].mxu0 %v3257
  %v4837 = vpop.f32.mrb[0].mxu0
  %v4838 = vadd.f32 %v4769, %v4837
  %v4839 = vpop.f32.mrb[0].mxu0
  %4840 = vmatprep.mubr.f32.mxu0 0.0
  %4841 = vmatmul.mubr.f32.gmra.mrb[0].mxu0 %v3260
  %v4842 = vpop.f32.mrb[0].mxu0
  %v4843 = vadd.f32 %v4769, %v4842
  %v4844 = vpop.f32.mrb[0].mxu0
  %4845 = vdwg.mxu0
  %v4846 = vmul.f32 %v4662, 0.35355338
  %v4847 = vmul.f32 %v4667, 0.35355338
  %v4849 = vsel %vm533, %v4846, 0
  %v4852 = vsel %vm533, %v4750, 0
  %4854 = vmatprep.subr.mxu0 0.0
  %4855 = vmatpush1.xpose.msra.mxu0 %v4852
  %4856 = vmatprep.subr.mxu0 0.0
  %4857 = vmatpush1.xpose.msra.mxu0 0.0
  %4858 = vmatprep.subr.mxu0 0.0
  %4859 = vmatpush1.xpose.msra.mxu0 0.0
  %4860 = vmatprep.subr.mxu0 0.0
  %4861 = vmatpush1.xpose.msra.mxu0 0.0
  %4862 = vmatprep.subr.mxu0 0.0
  %4863 = vmatpush1.xpose.msra.mxu0 0.0
  %4864 = vmatprep.subr.mxu0 0.0
  %4865 = vmatpush1.xpose.msra.mxu0 0.0
  %4866 = vmatprep.subr.mxu0 0.0
  %4867 = vmatpush1.xpose.msra.mxu0 0.0
  %4868 = vmatprep.subr.mxu0 0.0
  %4869 = vmatpush1.xpose.msra.mxu0 0.0
  %4870 = vmatprep.subr.mxu0 0.0
  %4871 = vmatpush1.xpose.msra.mxu0 0.0
  %4872 = vmatprep.subr.mxu0 0.0
  %4873 = vmatpush1.xpose.msra.mxu0 0.0
  %4874 = vmatprep.subr.mxu0 0.0
  %4875 = vmatpush1.xpose.msra.mxu0 0.0
  %4876 = vmatprep.subr.mxu0 0.0
  %4877 = vmatpush1.xpose.msra.mxu0 0.0
  %4878 = vmatprep.subr.mxu0 0.0
  %4879 = vmatpush1.xpose.msra.mxu0 0.0
  %4880 = vmatprep.subr.mxu0 0.0
  %4881 = vmatpush1.xpose.msra.mxu0 0.0
  %4882 = vmatprep.subr.mxu0 0.0
  %4883 = vmatpush1.xpose.msra.mxu0 0.0
  %4884 = vmatprep.subr.mxu0 0.0
  %4885 = vmatpush1.xpose.msra.mxu0 0.0
  %4886 = vmatprep.subr.mxu0 0.0
  %4887 = vmatpush1.xpose.msra.mxu0 0.0
  %4888 = vmatprep.subr.mxu0 0.0
  %4889 = vmatpush1.xpose.msra.mxu0 0.0
  %4890 = vmatprep.subr.mxu0 0.0
  %4891 = vmatpush1.xpose.msra.mxu0 0.0
  %4892 = vmatprep.subr.mxu0 0.0
  %4893 = vmatpush1.xpose.msra.mxu0 0.0
  %4894 = vmatprep.subr.mxu0 0.0
  %4895 = vmatpush1.xpose.msra.mxu0 0.0
  %4896 = vmatprep.subr.mxu0 0.0
  %4897 = vmatpush1.xpose.msra.mxu0 0.0
  %4898 = vmatprep.subr.mxu0 0.0
  %4899 = vmatpush1.xpose.msra.mxu0 0.0
  %4900 = vmatprep.subr.mxu0 0.0
  %4901 = vmatpush1.xpose.msra.mxu0 0.0
  %4902 = vmatprep.subr.mxu0 0.0
  %4903 = vmatpush1.xpose.msra.mxu0 0.0
  %4904 = vmatprep.subr.mxu0 0.0
  %4905 = vmatpush1.xpose.msra.mxu0 0.0
  %4906 = vmatprep.subr.mxu0 0.0
  %4907 = vmatpush1.xpose.msra.mxu0 0.0
  %4908 = vmatprep.subr.mxu0 0.0
  %4909 = vmatpush1.xpose.msra.mxu0 0.0
  %4910 = vmatprep.subr.mxu0 0.0
  %4911 = vmatpush1.xpose.msra.mxu0 0.0
  %4912 = vmatprep.subr.mxu0 0.0
  %4913 = vmatpush1.xpose.msra.mxu0 0.0
  %4914 = vmatprep.subr.mxu0 0.0
  %4915 = vmatpush1.xpose.msra.mxu0 0.0
  %4916 = vmatprep.subr.mxu0 0.0
  %4917 = vmatpush1.xpose.msra.mxu0 0.0
  %4918 = vmatprep.mubr.f32.mxu0 0.0
  %4919 = vmatmul.mubr.f32.gmra.mrb[0].mxu0 %v4849
  %v4920 = vpop.f32.mrb[0].mxu0
  %v4921 = vadd.f32 0.0, %v4920
  %v4922 = vpop.f32.mrb[0].mxu0
  %4923 = vdwg.mxu0
  %v4925 = vsel %vm533, %v4847, 0
  %v4928 = vsel %vm533, %v4755, 0
  %4930 = vmatprep.subr.mxu0 0.0
  %4931 = vmatpush1.xpose.msra.mxu0 %v4928
  %4932 = vmatprep.subr.mxu0 0.0
  %4933 = vmatpush1.xpose.msra.mxu0 0.0
  %4934 = vmatprep.subr.mxu0 0.0
  %4935 = vmatpush1.xpose.msra.mxu0 0.0
  %4936 = vmatprep.subr.mxu0 0.0
  %4937 = vmatpush1.xpose.msra.mxu0 0.0
  %4938 = vmatprep.subr.mxu0 0.0
  %4939 = vmatpush1.xpose.msra.mxu0 0.0
  %4940 = vmatprep.subr.mxu0 0.0
  %4941 = vmatpush1.xpose.msra.mxu0 0.0
  %4942 = vmatprep.subr.mxu0 0.0
  %4943 = vmatpush1.xpose.msra.mxu0 0.0
  %4944 = vmatprep.subr.mxu0 0.0
  %4945 = vmatpush1.xpose.msra.mxu0 0.0
  %4946 = vmatprep.subr.mxu0 0.0
  %4947 = vmatpush1.xpose.msra.mxu0 0.0
  %4948 = vmatprep.subr.mxu0 0.0
  %4949 = vmatpush1.xpose.msra.mxu0 0.0
  %4950 = vmatprep.subr.mxu0 0.0
  %4951 = vmatpush1.xpose.msra.mxu0 0.0
  %4952 = vmatprep.subr.mxu0 0.0
  %4953 = vmatpush1.xpose.msra.mxu0 0.0
  %4954 = vmatprep.subr.mxu0 0.0
  %4955 = vmatpush1.xpose.msra.mxu0 0.0
  %4956 = vmatprep.subr.mxu0 0.0
  %4957 = vmatpush1.xpose.msra.mxu0 0.0
  %4958 = vmatprep.subr.mxu0 0.0
  %4959 = vmatpush1.xpose.msra.mxu0 0.0
  %4960 = vmatprep.subr.mxu0 0.0
  %4961 = vmatpush1.xpose.msra.mxu0 0.0
  %4962 = vmatprep.subr.mxu0 0.0
  %4963 = vmatpush1.xpose.msra.mxu0 0.0
  %4964 = vmatprep.subr.mxu0 0.0
  %4965 = vmatpush1.xpose.msra.mxu0 0.0
  %4966 = vmatprep.subr.mxu0 0.0
  %4967 = vmatpush1.xpose.msra.mxu0 0.0
  %4968 = vmatprep.subr.mxu0 0.0
  %4969 = vmatpush1.xpose.msra.mxu0 0.0
  %4970 = vmatprep.subr.mxu0 0.0
  %4971 = vmatpush1.xpose.msra.mxu0 0.0
  %4972 = vmatprep.subr.mxu0 0.0
  %4973 = vmatpush1.xpose.msra.mxu0 0.0
  %4974 = vmatprep.subr.mxu0 0.0
  %4975 = vmatpush1.xpose.msra.mxu0 0.0
  %4976 = vmatprep.subr.mxu0 0.0
  %4977 = vmatpush1.xpose.msra.mxu0 0.0
  %4978 = vmatprep.subr.mxu0 0.0
  %4979 = vmatpush1.xpose.msra.mxu0 0.0
  %4980 = vmatprep.subr.mxu0 0.0
  %4981 = vmatpush1.xpose.msra.mxu0 0.0
  %4982 = vmatprep.subr.mxu0 0.0
  %4983 = vmatpush1.xpose.msra.mxu0 0.0
  %4984 = vmatprep.subr.mxu0 0.0
  %4985 = vmatpush1.xpose.msra.mxu0 0.0
  %4986 = vmatprep.subr.mxu0 0.0
  %4987 = vmatpush1.xpose.msra.mxu0 0.0
  %4988 = vmatprep.subr.mxu0 0.0
  %4989 = vmatpush1.xpose.msra.mxu0 0.0
  %4990 = vmatprep.subr.mxu0 0.0
  %4991 = vmatpush1.xpose.msra.mxu0 0.0
  %4992 = vmatprep.subr.mxu0 0.0
  %4993 = vmatpush1.xpose.msra.mxu0 0.0
  %4994 = vmatprep.mubr.f32.mxu0 0.0
  %4995 = vmatmul.mubr.f32.gmra.mrb[0].mxu0 %v4925
  %v4996 = vpop.f32.mrb[0].mxu0
  %v4997 = vadd.f32 0.0, %v4996
  %v4998 = vpop.f32.mrb[0].mxu0
  %4999 = vdwg.mxu0
  %v5000 = vsel %vm533, %v4921, -inf
  %5001 = vmax.xlane.f32.xlu0 %v5000
  %v5002 = vpop.xlane.xlu0 %5001
  %v5003 = vsel %vm533, %v4997, -inf
  %5004 = vmax.xlane.f32.xlu0 %v5003
  %v5005 = vpop.xlane.xlu0 %5004
  %v5006 = vsub.f32 %v4921, %v5002
  %v5007 = vsub.f32 %v4997, %v5005
  %v5008 = vmul.f32 %v5006, 1.442695
  %v5009 = vpow.pop %v5008
  %v5010 = vmul.f32 %v5007, 1.442695
  %v5011 = vpow.pop %v5010
  %v5012 = vsel %vm533, %v5009, 0.0
  %5013 = vadd.xlane.f32.xlu0 %v5012
  %v5014 = vpop.xlane.xlu0 %5013
  %v5015 = vsel %vm533, %v5011, 0.0
  %5016 = vadd.xlane.f32.xlu0 %v5015
  %v5017 = vpop.xlane.xlu0 %5016
  %v5018 = vrcp.pop %v5014
  %v5019 = vrcp.pop %v5017
  %v5020 = vmul.f32 %v5009, %v5018
  %v5021 = vmul.f32 %v5011, %v5019
  %v5023 = vsel %vm533, %v5020, 0
  %5025 = vmatprep.subr.mxu0 0.0
  %5026 = vmatpush1.msra.mxu0 %v4838
  %5027 = vmatprep.subr.mxu0 0.0
  %5028 = vmatpush1.msra.mxu0 0.0
  %5029 = vmatprep.subr.mxu0 0.0
  %5030 = vmatpush1.msra.mxu0 0.0
  %5031 = vmatprep.subr.mxu0 0.0
  %5032 = vmatpush1.msra.mxu0 0.0
  %5033 = vmatprep.subr.mxu0 0.0
  %5034 = vmatpush1.msra.mxu0 0.0
  %5035 = vmatprep.subr.mxu0 0.0
  %5036 = vmatpush1.msra.mxu0 0.0
  %5037 = vmatprep.subr.mxu0 0.0
  %5038 = vmatpush1.msra.mxu0 0.0
  %5039 = vmatprep.subr.mxu0 0.0
  %5040 = vmatpush1.msra.mxu0 0.0
  %5041 = vmatprep.subr.mxu0 0.0
  %5042 = vmatpush1.msra.mxu0 0.0
  %5043 = vmatprep.subr.mxu0 0.0
  %5044 = vmatpush1.msra.mxu0 0.0
  %5045 = vmatprep.subr.mxu0 0.0
  %5046 = vmatpush1.msra.mxu0 0.0
  %5047 = vmatprep.subr.mxu0 0.0
  %5048 = vmatpush1.msra.mxu0 0.0
  %5049 = vmatprep.subr.mxu0 0.0
  %5050 = vmatpush1.msra.mxu0 0.0
  %5051 = vmatprep.subr.mxu0 0.0
  %5052 = vmatpush1.msra.mxu0 0.0
  %5053 = vmatprep.subr.mxu0 0.0
  %5054 = vmatpush1.msra.mxu0 0.0
  %5055 = vmatprep.subr.mxu0 0.0
  %5056 = vmatpush1.msra.mxu0 0.0
  %5057 = vmatprep.subr.mxu0 0.0
  %5058 = vmatpush1.msra.mxu0 0.0
  %5059 = vmatprep.subr.mxu0 0.0
  %5060 = vmatpush1.msra.mxu0 0.0
  %5061 = vmatprep.subr.mxu0 0.0
  %5062 = vmatpush1.msra.mxu0 0.0
  %5063 = vmatprep.subr.mxu0 0.0
  %5064 = vmatpush1.msra.mxu0 0.0
  %5065 = vmatprep.subr.mxu0 0.0
  %5066 = vmatpush1.msra.mxu0 0.0
  %5067 = vmatprep.subr.mxu0 0.0
  %5068 = vmatpush1.msra.mxu0 0.0
  %5069 = vmatprep.subr.mxu0 0.0
  %5070 = vmatpush1.msra.mxu0 0.0
  %5071 = vmatprep.subr.mxu0 0.0
  %5072 = vmatpush1.msra.mxu0 0.0
  %5073 = vmatprep.subr.mxu0 0.0
  %5074 = vmatpush1.msra.mxu0 0.0
  %5075 = vmatprep.subr.mxu0 0.0
  %5076 = vmatpush1.msra.mxu0 0.0
  %5077 = vmatprep.subr.mxu0 0.0
  %5078 = vmatpush1.msra.mxu0 0.0
  %5079 = vmatprep.subr.mxu0 0.0
  %5080 = vmatpush1.msra.mxu0 0.0
  %5081 = vmatprep.subr.mxu0 0.0
  %5082 = vmatpush1.msra.mxu0 0.0
  %5083 = vmatprep.subr.mxu0 0.0
  %5084 = vmatpush1.msra.mxu0 0.0
  %5085 = vmatprep.subr.mxu0 0.0
  %5086 = vmatpush1.msra.mxu0 0.0
  %5087 = vmatprep.subr.mxu0 0.0
  %5088 = vmatpush1.msra.mxu0 0.0
  %5089 = vmatprep.mubr.f32.mxu0 0.0
  %5090 = vmatmul.mubr.f32.gmra.mrb[0].mxu0 %v5023
  %v5091 = vpop.f32.mrb[0].mxu0
  %v5092 = vadd.f32 0.0, %v5091
  %v5093 = vpop.f32.mrb[0].mxu0
  %5094 = vdwg.mxu0
  %v5096 = vsel %vm533, %v5021, 0
  %5098 = vmatprep.subr.mxu0 0.0
  %5099 = vmatpush1.msra.mxu0 %v4843
  %5100 = vmatprep.subr.mxu0 0.0
  %5101 = vmatpush1.msra.mxu0 0.0
  %5102 = vmatprep.subr.mxu0 0.0
  %5103 = vmatpush1.msra.mxu0 0.0
  %5104 = vmatprep.subr.mxu0 0.0
  %5105 = vmatpush1.msra.mxu0 0.0
  %5106 = vmatprep.subr.mxu0 0.0
  %5107 = vmatpush1.msra.mxu0 0.0
  %5108 = vmatprep.subr.mxu0 0.0
  %5109 = vmatpush1.msra.mxu0 0.0
  %5110 = vmatprep.subr.mxu0 0.0
  %5111 = vmatpush1.msra.mxu0 0.0
  %5112 = vmatprep.subr.mxu0 0.0
  %5113 = vmatpush1.msra.mxu0 0.0
  %5114 = vmatprep.subr.mxu0 0.0
  %5115 = vmatpush1.msra.mxu0 0.0
  %5116 = vmatprep.subr.mxu0 0.0
  %5117 = vmatpush1.msra.mxu0 0.0
  %5118 = vmatprep.subr.mxu0 0.0
  %5119 = vmatpush1.msra.mxu0 0.0
  %5120 = vmatprep.subr.mxu0 0.0
  %5121 = vmatpush1.msra.mxu0 0.0
  %5122 = vmatprep.subr.mxu0 0.0
  %5123 = vmatpush1.msra.mxu0 0.0
  %5124 = vmatprep.subr.mxu0 0.0
  %5125 = vmatpush1.msra.mxu0 0.0
  %5126 = vmatprep.subr.mxu0 0.0
  %5127 = vmatpush1.msra.mxu0 0.0
  %5128 = vmatprep.subr.mxu0 0.0
  %5129 = vmatpush1.msra.mxu0 0.0
  %5130 = vmatprep.subr.mxu0 0.0
  %5131 = vmatpush1.msra.mxu0 0.0
  %5132 = vmatprep.subr.mxu0 0.0
  %5133 = vmatpush1.msra.mxu0 0.0
  %5134 = vmatprep.subr.mxu0 0.0
  %5135 = vmatpush1.msra.mxu0 0.0
  %5136 = vmatprep.subr.mxu0 0.0
  %5137 = vmatpush1.msra.mxu0 0.0
  %5138 = vmatprep.subr.mxu0 0.0
  %5139 = vmatpush1.msra.mxu0 0.0
  %5140 = vmatprep.subr.mxu0 0.0
  %5141 = vmatpush1.msra.mxu0 0.0
  %5142 = vmatprep.subr.mxu0 0.0
  %5143 = vmatpush1.msra.mxu0 0.0
  %5144 = vmatprep.subr.mxu0 0.0
  %5145 = vmatpush1.msra.mxu0 0.0
  %5146 = vmatprep.subr.mxu0 0.0
  %5147 = vmatpush1.msra.mxu0 0.0
  %5148 = vmatprep.subr.mxu0 0.0
  %5149 = vmatpush1.msra.mxu0 0.0
  %5150 = vmatprep.subr.mxu0 0.0
  %5151 = vmatpush1.msra.mxu0 0.0
  %5152 = vmatprep.subr.mxu0 0.0
  %5153 = vmatpush1.msra.mxu0 0.0
  %5154 = vmatprep.subr.mxu0 0.0
  %5155 = vmatpush1.msra.mxu0 0.0
  %5156 = vmatprep.subr.mxu0 0.0
  %5157 = vmatpush1.msra.mxu0 0.0
  %5158 = vmatprep.subr.mxu0 0.0
  %5159 = vmatpush1.msra.mxu0 0.0
  %5160 = vmatprep.subr.mxu0 0.0
  %5161 = vmatpush1.msra.mxu0 0.0
  %5162 = vmatprep.mubr.f32.mxu0 0.0
  %5163 = vmatmul.mubr.f32.gmra.mrb[0].mxu0 %v5096
  %v5164 = vpop.f32.mrb[0].mxu0
  %v5165 = vadd.f32 0.0, %v5164
  %v5166 = vpop.f32.mrb[0].mxu0
  %5167 = vdwg.mxu0
  %s5168 = scalar_lea.vmem %s49, 16
  %v5169 = vld [vmem:[%s5168] sm:$0xff]
  %v5171 = vsel %vm533, %v5092, 0
  %v5174 = vsel %vm533, %v5165, 0
  %5176 = vmatprep.subr.mxu0 0.0
  %5177 = vmatpush1.msra.mxu0 %v5169
  %5178 = vmatprep.subr.mxu0 0.0
  %5179 = vmatpush1.msra.mxu0 0.0
  %5180 = vmatprep.subr.mxu0 0.0
  %5181 = vmatpush1.msra.mxu0 0.0
  %5182 = vmatprep.subr.mxu0 0.0
  %5183 = vmatpush1.msra.mxu0 0.0
  %5184 = vmatprep.subr.mxu0 0.0
  %5185 = vmatpush1.msra.mxu0 0.0
  %5186 = vmatprep.subr.mxu0 0.0
  %5187 = vmatpush1.msra.mxu0 0.0
  %5188 = vmatprep.subr.mxu0 0.0
  %5189 = vmatpush1.msra.mxu0 0.0
  %5190 = vmatprep.subr.mxu0 0.0
  %5191 = vmatpush1.msra.mxu0 0.0
  %5192 = vmatprep.subr.mxu0 0.0
  %5193 = vmatpush1.msra.mxu0 0.0
  %5194 = vmatprep.subr.mxu0 0.0
  %5195 = vmatpush1.msra.mxu0 0.0
  %5196 = vmatprep.subr.mxu0 0.0
  %5197 = vmatpush1.msra.mxu0 0.0
  %5198 = vmatprep.subr.mxu0 0.0
  %5199 = vmatpush1.msra.mxu0 0.0
  %5200 = vmatprep.subr.mxu0 0.0
  %5201 = vmatpush1.msra.mxu0 0.0
  %5202 = vmatprep.subr.mxu0 0.0
  %5203 = vmatpush1.msra.mxu0 0.0
  %5204 = vmatprep.subr.mxu0 0.0
  %5205 = vmatpush1.msra.mxu0 0.0
  %5206 = vmatprep.subr.mxu0 0.0
  %5207 = vmatpush1.msra.mxu0 0.0
  %5208 = vmatprep.subr.mxu0 0.0
  %5209 = vmatpush1.msra.mxu0 0.0
  %5210 = vmatprep.subr.mxu0 0.0
  %5211 = vmatpush1.msra.mxu0 0.0
  %5212 = vmatprep.subr.mxu0 0.0
  %5213 = vmatpush1.msra.mxu0 0.0
  %5214 = vmatprep.subr.mxu0 0.0
  %5215 = vmatpush1.msra.mxu0 0.0
  %5216 = vmatprep.subr.mxu0 0.0
  %5217 = vmatpush1.msra.mxu0 0.0
  %5218 = vmatprep.subr.mxu0 0.0
  %5219 = vmatpush1.msra.mxu0 0.0
  %5220 = vmatprep.subr.mxu0 0.0
  %5221 = vmatpush1.msra.mxu0 0.0
  %5222 = vmatprep.subr.mxu0 0.0
  %5223 = vmatpush1.msra.mxu0 0.0
  %5224 = vmatprep.subr.mxu0 0.0
  %5225 = vmatpush1.msra.mxu0 0.0
  %5226 = vmatprep.subr.mxu0 0.0
  %5227 = vmatpush1.msra.mxu0 0.0
  %5228 = vmatprep.subr.mxu0 0.0
  %5229 = vmatpush1.msra.mxu0 0.0
  %5230 = vmatprep.subr.mxu0 0.0
  %5231 = vmatpush1.msra.mxu0 0.0
  %5232 = vmatprep.subr.mxu0 0.0
  %5233 = vmatpush1.msra.mxu0 0.0
  %5234 = vmatprep.subr.mxu0 0.0
  %5235 = vmatpush1.msra.mxu0 0.0
  %5236 = vmatprep.subr.mxu0 0.0
  %5237 = vmatpush1.msra.mxu0 0.0
  %5238 = vmatprep.subr.mxu0 0.0
  %5239 = vmatpush1.msra.mxu0 0.0
  %5240 = vmatprep.mubr.f32.mxu0 0.0
  %5241 = vmatmul.mubr.f32.gmra.mrb[0].mxu0 %v5171
  %v5242 = vpop.f32.mrb[0].mxu0
  %v5243 = vadd.f32 0.0, %v5242
  %v5244 = vpop.f32.mrb[0].mxu0
  %5245 = vmatprep.mubr.f32.mxu0 0.0
  %5246 = vmatmul.mubr.f32.gmra.mrb[0].mxu0 %v5174
  %v5247 = vpop.f32.mrb[0].mxu0
  %v5248 = vadd.f32 0.0, %v5247
  %v5249 = vpop.f32.mrb[0].mxu0
  %5250 = vdwg.mxu0
  %v5251 = vadd.f32 %v4574, %v5243
  %v5252 = vadd.f32 %v4579, %v5248
  %s5253 = scalar_lea.vmem %s37, 96
  %v5254 = vld [vmem:[%s5253] sm:$0xff]
  %v5255 = vld [vmem:[%s5253 + $0x8] sm:$0xff]
  %v5256 = vld [vmem:[%s5253 + $0x10] sm:$0xff]
  %v5257 = vld [vmem:[%s5253 + $0x18] sm:$0xff]
  %s5258 = scalar_lea.vmem %s39, 3
  %v5259 = vld [vmem:[%s5258] sm:$0x1]
  %v5261 = vlaneseq
  %v5262 = vshrl.u32 %v5261, 7
  %v5263 = vsub.s32 0, %v5262
  %v5264 = vrot.slane %v5259, %v5263
  %5266 = vmatprep.subr.mxu0 0.0
  %5267 = vmatpush1.msra.mxu0 %v5254
  %5268 = vmatprep.subr.mxu0 0.0
  %5269 = vmatpush1.msra.mxu0 %v5255
  %5270 = vmatprep.subr.mxu0 0.0
  %5271 = vmatpush1.msra.mxu0 %v5256
  %5272 = vmatprep.subr.mxu0 0.0
  %5273 = vmatpush1.msra.mxu0 %v5257
  %5274 = vmatprep.subr.mxu0 0.0
  %5275 = vmatpush1.msra.mxu0 0.0
  %5276 = vmatprep.subr.mxu0 0.0
  %5277 = vmatpush1.msra.mxu0 0.0
  %5278 = vmatprep.subr.mxu0 0.0
  %5279 = vmatpush1.msra.mxu0 0.0
  %5280 = vmatprep.subr.mxu0 0.0
  %5281 = vmatpush1.msra.mxu0 0.0
  %5282 = vmatprep.subr.mxu0 0.0
  %5283 = vmatpush1.msra.mxu0 0.0
  %5284 = vmatprep.subr.mxu0 0.0
  %5285 = vmatpush1.msra.mxu0 0.0
  %5286 = vmatprep.subr.mxu0 0.0
  %5287 = vmatpush1.msra.mxu0 0.0
  %5288 = vmatprep.subr.mxu0 0.0
  %5289 = vmatpush1.msra.mxu0 0.0
  %5290 = vmatprep.subr.mxu0 0.0
  %5291 = vmatpush1.msra.mxu0 0.0
  %5292 = vmatprep.subr.mxu0 0.0
  %5293 = vmatpush1.msra.mxu0 0.0
  %5294 = vmatprep.subr.mxu0 0.0
  %5295 = vmatpush1.msra.mxu0 0.0
  %5296 = vmatprep.subr.mxu0 0.0
  %5297 = vmatpush1.msra.mxu0 0.0
  %5298 = vmatprep.subr.mxu0 0.0
  %5299 = vmatpush1.msra.mxu0 0.0
  %5300 = vmatprep.subr.mxu0 0.0
  %5301 = vmatpush1.msra.mxu0 0.0
  %5302 = vmatprep.subr.mxu0 0.0
  %5303 = vmatpush1.msra.mxu0 0.0
  %5304 = vmatprep.subr.mxu0 0.0
  %5305 = vmatpush1.msra.mxu0 0.0
  %5306 = vmatprep.subr.mxu0 0.0
  %5307 = vmatpush1.msra.mxu0 0.0
  %5308 = vmatprep.subr.mxu0 0.0
  %5309 = vmatpush1.msra.mxu0 0.0
  %5310 = vmatprep.subr.mxu0 0.0
  %5311 = vmatpush1.msra.mxu0 0.0
  %5312 = vmatprep.subr.mxu0 0.0
  %5313 = vmatpush1.msra.mxu0 0.0
  %5314 = vmatprep.subr.mxu0 0.0
  %5315 = vmatpush1.msra.mxu0 0.0
  %5316 = vmatprep.subr.mxu0 0.0
  %5317 = vmatpush1.msra.mxu0 0.0
  %5318 = vmatprep.subr.mxu0 0.0
  %5319 = vmatpush1.msra.mxu0 0.0
  %5320 = vmatprep.subr.mxu0 0.0
  %5321 = vmatpush1.msra.mxu0 0.0
  %5322 = vmatprep.subr.mxu0 0.0
  %5323 = vmatpush1.msra.mxu0 0.0
  %5324 = vmatprep.subr.mxu0 0.0
  %5325 = vmatpush1.msra.mxu0 0.0
  %5326 = vmatprep.subr.mxu0 0.0
  %5327 = vmatpush1.msra.mxu0 0.0
  %5328 = vmatprep.subr.mxu0 0.0
  %5329 = vmatpush1.msra.mxu0 0.0
  %5330 = vmatprep.mubr.f32.mxu0 0.0
  %5331 = vmatmul.mubr.f32.gmra.mrb[0].mxu0 %v3257
  %v5332 = vpop.f32.mrb[0].mxu0
  %v5333 = vadd.f32 %v5264, %v5332
  %v5334 = vpop.f32.mrb[0].mxu0
  %5335 = vmatprep.mubr.f32.mxu0 0.0
  %5336 = vmatmul.mubr.f32.gmra.mrb[0].mxu0 %v3260
  %v5337 = vpop.f32.mrb[0].mxu0
  %v5338 = vadd.f32 %v5264, %v5337
  %v5339 = vpop.f32.mrb[0].mxu0
  %5340 = vdwg.mxu0
  %s5341 = scalar_lea.vmem %s41, 96
  %v5342 = vld [vmem:[%s5341] sm:$0xff]
  %v5343 = vld [vmem:[%s5341 + $0x8] sm:$0xff]
  %v5344 = vld [vmem:[%s5341 + $0x10] sm:$0xff]
  %v5345 = vld [vmem:[%s5341 + $0x18] sm:$0xff]
  %s5346 = scalar_lea.vmem %s43, 3
  %v5347 = vld [vmem:[%s5346] sm:$0x1]
  %v5349 = vlaneseq
  %v5350 = vshrl.u32 %v5349, 7
  %v5351 = vsub.s32 0, %v5350
  %v5352 = vrot.slane %v5347, %v5351
  %5354 = vmatprep.subr.mxu0 0.0
  %5355 = vmatpush1.msra.mxu0 %v5342
  %5356 = vmatprep.subr.mxu0 0.0
  %5357 = vmatpush1.msra.mxu0 %v5343
  %5358 = vmatprep.subr.mxu0 0.0
  %5359 = vmatpush1.msra.mxu0 %v5344
  %5360 = vmatprep.subr.mxu0 0.0
  %5361 = vmatpush1.msra.mxu0 %v5345
  %5362 = vmatprep.subr.mxu0 0.0
  %5363 = vmatpush1.msra.mxu0 0.0
  %5364 = vmatprep.subr.mxu0 0.0
  %5365 = vmatpush1.msra.mxu0 0.0
  %5366 = vmatprep.subr.mxu0 0.0
  %5367 = vmatpush1.msra.mxu0 0.0
  %5368 = vmatprep.subr.mxu0 0.0
  %5369 = vmatpush1.msra.mxu0 0.0
  %5370 = vmatprep.subr.mxu0 0.0
  %5371 = vmatpush1.msra.mxu0 0.0
  %5372 = vmatprep.subr.mxu0 0.0
  %5373 = vmatpush1.msra.mxu0 0.0
  %5374 = vmatprep.subr.mxu0 0.0
  %5375 = vmatpush1.msra.mxu0 0.0
  %5376 = vmatprep.subr.mxu0 0.0
  %5377 = vmatpush1.msra.mxu0 0.0
  %5378 = vmatprep.subr.mxu0 0.0
  %5379 = vmatpush1.msra.mxu0 0.0
  %5380 = vmatprep.subr.mxu0 0.0
  %5381 = vmatpush1.msra.mxu0 0.0
  %5382 = vmatprep.subr.mxu0 0.0
  %5383 = vmatpush1.msra.mxu0 0.0
  %5384 = vmatprep.subr.mxu0 0.0
  %5385 = vmatpush1.msra.mxu0 0.0
  %5386 = vmatprep.subr.mxu0 0.0
  %5387 = vmatpush1.msra.mxu0 0.0
  %5388 = vmatprep.subr.mxu0 0.0
  %5389 = vmatpush1.msra.mxu0 0.0
  %5390 = vmatprep.subr.mxu0 0.0
  %5391 = vmatpush1.msra.mxu0 0.0
  %5392 = vmatprep.subr.mxu0 0.0
  %5393 = vmatpush1.msra.mxu0 0.0
  %5394 = vmatprep.subr.mxu0 0.0
  %5395 = vmatpush1.msra.mxu0 0.0
  %5396 = vmatprep.subr.mxu0 0.0
  %5397 = vmatpush1.msra.mxu0 0.0
  %5398 = vmatprep.subr.mxu0 0.0
  %5399 = vmatpush1.msra.mxu0 0.0
  %5400 = vmatprep.subr.mxu0 0.0
  %5401 = vmatpush1.msra.mxu0 0.0
  %5402 = vmatprep.subr.mxu0 0.0
  %5403 = vmatpush1.msra.mxu0 0.0
  %5404 = vmatprep.subr.mxu0 0.0
  %5405 = vmatpush1.msra.mxu0 0.0
  %5406 = vmatprep.subr.mxu0 0.0
  %5407 = vmatpush1.msra.mxu0 0.0
  %5408 = vmatprep.subr.mxu0 0.0
  %5409 = vmatpush1.msra.mxu0 0.0
  %5410 = vmatprep.subr.mxu0 0.0
  %5411 = vmatpush1.msra.mxu0 0.0
  %5412 = vmatprep.subr.mxu0 0.0
  %5413 = vmatpush1.msra.mxu0 0.0
  %5414 = vmatprep.subr.mxu0 0.0
  %5415 = vmatpush1.msra.mxu0 0.0
  %5416 = vmatprep.subr.mxu0 0.0
  %5417 = vmatpush1.msra.mxu0 0.0
  %5418 = vmatprep.mubr.f32.mxu0 0.0
  %5419 = vmatmul.mubr.f32.gmra.mrb[0].mxu0 %v3257
  %v5420 = vpop.f32.mrb[0].mxu0
  %v5421 = vadd.f32 %v5352, %v5420
  %v5422 = vpop.f32.mrb[0].mxu0
  %5423 = vmatprep.mubr.f32.mxu0 0.0
  %5424 = vmatmul.mubr.f32.gmra.mrb[0].mxu0 %v3260
  %v5425 = vpop.f32.mrb[0].mxu0
  %v5426 = vadd.f32 %v5352, %v5425
  %v5427 = vpop.f32.mrb[0].mxu0
  %5428 = vdwg.mxu0
  %s5429 = scalar_lea.vmem %s45, 96
  %v5430 = vld [vmem:[%s5429] sm:$0xff]
  %v5431 = vld [vmem:[%s5429 + $0x8] sm:$0xff]
  %v5432 = vld [vmem:[%s5429 + $0x10] sm:$0xff]
  %v5433 = vld [vmem:[%s5429 + $0x18] sm:$0xff]
  %s5434 = scalar_lea.vmem %s47, 3
  %v5435 = vld [vmem:[%s5434] sm:$0x1]
  %v5437 = vlaneseq
  %v5438 = vshrl.u32 %v5437, 7
  %v5439 = vsub.s32 0, %v5438
  %v5440 = vrot.slane %v5435, %v5439
  %5442 = vmatprep.subr.mxu0 0.0
  %5443 = vmatpush1.msra.mxu0 %v5430
  %5444 = vmatprep.subr.mxu0 0.0
  %5445 = vmatpush1.msra.mxu0 %v5431
  %5446 = vmatprep.subr.mxu0 0.0
  %5447 = vmatpush1.msra.mxu0 %v5432
  %5448 = vmatprep.subr.mxu0 0.0
  %5449 = vmatpush1.msra.mxu0 %v5433
  %5450 = vmatprep.subr.mxu0 0.0
  %5451 = vmatpush1.msra.mxu0 0.0
  %5452 = vmatprep.subr.mxu0 0.0
  %5453 = vmatpush1.msra.mxu0 0.0
  %5454 = vmatprep.subr.mxu0 0.0
  %5455 = vmatpush1.msra.mxu0 0.0
  %5456 = vmatprep.subr.mxu0 0.0
  %5457 = vmatpush1.msra.mxu0 0.0
  %5458 = vmatprep.subr.mxu0 0.0
  %5459 = vmatpush1.msra.mxu0 0.0
  %5460 = vmatprep.subr.mxu0 0.0
  %5461 = vmatpush1.msra.mxu0 0.0
  %5462 = vmatprep.subr.mxu0 0.0
  %5463 = vmatpush1.msra.mxu0 0.0
  %5464 = vmatprep.subr.mxu0 0.0
  %5465 = vmatpush1.msra.mxu0 0.0
  %5466 = vmatprep.subr.mxu0 0.0
  %5467 = vmatpush1.msra.mxu0 0.0
  %5468 = vmatprep.subr.mxu0 0.0
  %5469 = vmatpush1.msra.mxu0 0.0
  %5470 = vmatprep.subr.mxu0 0.0
  %5471 = vmatpush1.msra.mxu0 0.0
  %5472 = vmatprep.subr.mxu0 0.0
  %5473 = vmatpush1.msra.mxu0 0.0
  %5474 = vmatprep.subr.mxu0 0.0
  %5475 = vmatpush1.msra.mxu0 0.0
  %5476 = vmatprep.subr.mxu0 0.0
  %5477 = vmatpush1.msra.mxu0 0.0
  %5478 = vmatprep.subr.mxu0 0.0
  %5479 = vmatpush1.msra.mxu0 0.0
  %5480 = vmatprep.subr.mxu0 0.0
  %5481 = vmatpush1.msra.mxu0 0.0
  %5482 = vmatprep.subr.mxu0 0.0
  %5483 = vmatpush1.msra.mxu0 0.0
  %5484 = vmatprep.subr.mxu0 0.0
  %5485 = vmatpush1.msra.mxu0 0.0
  %5486 = vmatprep.subr.mxu0 0.0
  %5487 = vmatpush1.msra.mxu0 0.0
  %5488 = vmatprep.subr.mxu0 0.0
  %5489 = vmatpush1.msra.mxu0 0.0
  %5490 = vmatprep.subr.mxu0 0.0
  %5491 = vmatpush1.msra.mxu0 0.0
  %5492 = vmatprep.subr.mxu0 0.0
  %5493 = vmatpush1.msra.mxu0 0.0
  %5494 = vmatprep.subr.mxu0 0.0
  %5495 = vmatpush1.msra.mxu0 0.0
  %5496 = vmatprep.subr.mxu0 0.0
  %5497 = vmatpush1.msra.mxu0 0.0
  %5498 = vmatprep.subr.mxu0 0.0
  %5499 = vmatpush1.msra.mxu0 0.0
  %5500 = vmatprep.subr.mxu0 0.0
  %5501 = vmatpush1.msra.mxu0 0.0
  %5502 = vmatprep.subr.mxu0 0.0
  %5503 = vmatpush1.msra.mxu0 0.0
  %5504 = vmatprep.subr.mxu0 0.0
  %5505 = vmatpush1.msra.mxu0 0.0
  %5506 = vmatprep.mubr.f32.mxu0 0.0
  %5507 = vmatmul.mubr.f32.gmra.mrb[0].mxu0 %v3257
  %v5508 = vpop.f32.mrb[0].mxu0
  %v5509 = vadd.f32 %v5440, %v5508
  %v5510 = vpop.f32.mrb[0].mxu0
  %5511 = vmatprep.mubr.f32.mxu0 0.0
  %5512 = vmatmul.mubr.f32.gmra.mrb[0].mxu0 %v3260
  %v5513 = vpop.f32.mrb[0].mxu0
  %v5514 = vadd.f32 %v5440, %v5513
  %v5515 = vpop.f32.mrb[0].mxu0
  %5516 = vdwg.mxu0
  %v5517 = vmul.f32 %v5333, 0.35355338
  %v5518 = vmul.f32 %v5338, 0.35355338
  %v5520 = vsel %vm533, %v5517, 0
  %v5523 = vsel %vm533, %v5421, 0
  %5525 = vmatprep.subr.mxu0 0.0
  %5526 = vmatpush1.xpose.msra.mxu0 %v5523
  %5527 = vmatprep.subr.mxu0 0.0
  %5528 = vmatpush1.xpose.msra.mxu0 0.0
  %5529 = vmatprep.subr.mxu0 0.0
  %5530 = vmatpush1.xpose.msra.mxu0 0.0
  %5531 = vmatprep.subr.mxu0 0.0
  %5532 = vmatpush1.xpose.msra.mxu0 0.0
  %5533 = vmatprep.subr.mxu0 0.0
  %5534 = vmatpush1.xpose.msra.mxu0 0.0
  %5535 = vmatprep.subr.mxu0 0.0
  %5536 = vmatpush1.xpose.msra.mxu0 0.0
  %5537 = vmatprep.subr.mxu0 0.0
  %5538 = vmatpush1.xpose.msra.mxu0 0.0
  %5539 = vmatprep.subr.mxu0 0.0
  %5540 = vmatpush1.xpose.msra.mxu0 0.0
  %5541 = vmatprep.subr.mxu0 0.0
  %5542 = vmatpush1.xpose.msra.mxu0 0.0
  %5543 = vmatprep.subr.mxu0 0.0
  %5544 = vmatpush1.xpose.msra.mxu0 0.0
  %5545 = vmatprep.subr.mxu0 0.0
  %5546 = vmatpush1.xpose.msra.mxu0 0.0
  %5547 = vmatprep.subr.mxu0 0.0
  %5548 = vmatpush1.xpose.msra.mxu0 0.0
  %5549 = vmatprep.subr.mxu0 0.0
  %5550 = vmatpush1.xpose.msra.mxu0 0.0
  %5551 = vmatprep.subr.mxu0 0.0
  %5552 = vmatpush1.xpose.msra.mxu0 0.0
  %5553 = vmatprep.subr.mxu0 0.0
  %5554 = vmatpush1.xpose.msra.mxu0 0.0
  %5555 = vmatprep.subr.mxu0 0.0
  %5556 = vmatpush1.xpose.msra.mxu0 0.0
  %5557 = vmatprep.subr.mxu0 0.0
  %5558 = vmatpush1.xpose.msra.mxu0 0.0
  %5559 = vmatprep.subr.mxu0 0.0
  %5560 = vmatpush1.xpose.msra.mxu0 0.0
  %5561 = vmatprep.subr.mxu0 0.0
  %5562 = vmatpush1.xpose.msra.mxu0 0.0
  %5563 = vmatprep.subr.mxu0 0.0
  %5564 = vmatpush1.xpose.msra.mxu0 0.0
  %5565 = vmatprep.subr.mxu0 0.0
  %5566 = vmatpush1.xpose.msra.mxu0 0.0
  %5567 = vmatprep.subr.mxu0 0.0
  %5568 = vmatpush1.xpose.msra.mxu0 0.0
  %5569 = vmatprep.subr.mxu0 0.0
  %5570 = vmatpush1.xpose.msra.mxu0 0.0
  %5571 = vmatprep.subr.mxu0 0.0
  %5572 = vmatpush1.xpose.msra.mxu0 0.0
  %5573 = vmatprep.subr.mxu0 0.0
  %5574 = vmatpush1.xpose.msra.mxu0 0.0
  %5575 = vmatprep.subr.mxu0 0.0
  %5576 = vmatpush1.xpose.msra.mxu0 0.0
  %5577 = vmatprep.subr.mxu0 0.0
  %5578 = vmatpush1.xpose.msra.mxu0 0.0
  %5579 = vmatprep.subr.mxu0 0.0
  %5580 = vmatpush1.xpose.msra.mxu0 0.0
  %5581 = vmatprep.subr.mxu0 0.0
  %5582 = vmatpush1.xpose.msra.mxu0 0.0
  %5583 = vmatprep.subr.mxu0 0.0
  %5584 = vmatpush1.xpose.msra.mxu0 0.0
  %5585 = vmatprep.subr.mxu0 0.0
  %5586 = vmatpush1.xpose.msra.mxu0 0.0
  %5587 = vmatprep.subr.mxu0 0.0
  %5588 = vmatpush1.xpose.msra.mxu0 0.0
  %5589 = vmatprep.mubr.f32.mxu0 0.0
  %5590 = vmatmul.mubr.f32.gmra.mrb[0].mxu0 %v5520
  %v5591 = vpop.f32.mrb[0].mxu0
  %v5592 = vadd.f32 0.0, %v5591
  %v5593 = vpop.f32.mrb[0].mxu0
  %5594 = vdwg.mxu0
  %v5596 = vsel %vm533, %v5518, 0
  %v5599 = vsel %vm533, %v5426, 0
  %5601 = vmatprep.subr.mxu0 0.0
  %5602 = vmatpush1.xpose.msra.mxu0 %v5599
  %5603 = vmatprep.subr.mxu0 0.0
  %5604 = vmatpush1.xpose.msra.mxu0 0.0
  %5605 = vmatprep.subr.mxu0 0.0
  %5606 = vmatpush1.xpose.msra.mxu0 0.0
  %5607 = vmatprep.subr.mxu0 0.0
  %5608 = vmatpush1.xpose.msra.mxu0 0.0
  %5609 = vmatprep.subr.mxu0 0.0
  %5610 = vmatpush1.xpose.msra.mxu0 0.0
  %5611 = vmatprep.subr.mxu0 0.0
  %5612 = vmatpush1.xpose.msra.mxu0 0.0
  %5613 = vmatprep.subr.mxu0 0.0
  %5614 = vmatpush1.xpose.msra.mxu0 0.0
  %5615 = vmatprep.subr.mxu0 0.0
  %5616 = vmatpush1.xpose.msra.mxu0 0.0
  %5617 = vmatprep.subr.mxu0 0.0
  %5618 = vmatpush1.xpose.msra.mxu0 0.0
  %5619 = vmatprep.subr.mxu0 0.0
  %5620 = vmatpush1.xpose.msra.mxu0 0.0
  %5621 = vmatprep.subr.mxu0 0.0
  %5622 = vmatpush1.xpose.msra.mxu0 0.0
  %5623 = vmatprep.subr.mxu0 0.0
  %5624 = vmatpush1.xpose.msra.mxu0 0.0
  %5625 = vmatprep.subr.mxu0 0.0
  %5626 = vmatpush1.xpose.msra.mxu0 0.0
  %5627 = vmatprep.subr.mxu0 0.0
  %5628 = vmatpush1.xpose.msra.mxu0 0.0
  %5629 = vmatprep.subr.mxu0 0.0
  %5630 = vmatpush1.xpose.msra.mxu0 0.0
  %5631 = vmatprep.subr.mxu0 0.0
  %5632 = vmatpush1.xpose.msra.mxu0 0.0
  %5633 = vmatprep.subr.mxu0 0.0
  %5634 = vmatpush1.xpose.msra.mxu0 0.0
  %5635 = vmatprep.subr.mxu0 0.0
  %5636 = vmatpush1.xpose.msra.mxu0 0.0
  %5637 = vmatprep.subr.mxu0 0.0
  %5638 = vmatpush1.xpose.msra.mxu0 0.0
  %5639 = vmatprep.subr.mxu0 0.0
  %5640 = vmatpush1.xpose.msra.mxu0 0.0
  %5641 = vmatprep.subr.mxu0 0.0
  %5642 = vmatpush1.xpose.msra.mxu0 0.0
  %5643 = vmatprep.subr.mxu0 0.0
  %5644 = vmatpush1.xpose.msra.mxu0 0.0
  %5645 = vmatprep.subr.mxu0 0.0
  %5646 = vmatpush1.xpose.msra.mxu0 0.0
  %5647 = vmatprep.subr.mxu0 0.0
  %5648 = vmatpush1.xpose.msra.mxu0 0.0
  %5649 = vmatprep.subr.mxu0 0.0
  %5650 = vmatpush1.xpose.msra.mxu0 0.0
  %5651 = vmatprep.subr.mxu0 0.0
  %5652 = vmatpush1.xpose.msra.mxu0 0.0
  %5653 = vmatprep.subr.mxu0 0.0
  %5654 = vmatpush1.xpose.msra.mxu0 0.0
  %5655 = vmatprep.subr.mxu0 0.0
  %5656 = vmatpush1.xpose.msra.mxu0 0.0
  %5657 = vmatprep.subr.mxu0 0.0
  %5658 = vmatpush1.xpose.msra.mxu0 0.0
  %5659 = vmatprep.subr.mxu0 0.0
  %5660 = vmatpush1.xpose.msra.mxu0 0.0
  %5661 = vmatprep.subr.mxu0 0.0
  %5662 = vmatpush1.xpose.msra.mxu0 0.0
  %5663 = vmatprep.subr.mxu0 0.0
  %5664 = vmatpush1.xpose.msra.mxu0 0.0
  %5665 = vmatprep.mubr.f32.mxu0 0.0
  %5666 = vmatmul.mubr.f32.gmra.mrb[0].mxu0 %v5596
  %v5667 = vpop.f32.mrb[0].mxu0
  %v5668 = vadd.f32 0.0, %v5667
  %v5669 = vpop.f32.mrb[0].mxu0
  %5670 = vdwg.mxu0
  %v5671 = vsel %vm533, %v5592, -inf
  %5672 = vmax.xlane.f32.xlu0 %v5671
  %v5673 = vpop.xlane.xlu0 %5672
  %v5674 = vsel %vm533, %v5668, -inf
  %5675 = vmax.xlane.f32.xlu0 %v5674
  %v5676 = vpop.xlane.xlu0 %5675
  %v5677 = vsub.f32 %v5592, %v5673
  %v5678 = vsub.f32 %v5668, %v5676
  %v5679 = vmul.f32 %v5677, 1.442695
  %v5680 = vpow.pop %v5679
  %v5681 = vmul.f32 %v5678, 1.442695
  %v5682 = vpow.pop %v5681
  %v5683 = vsel %vm533, %v5680, 0.0
  %5684 = vadd.xlane.f32.xlu0 %v5683
  %v5685 = vpop.xlane.xlu0 %5684
  %v5686 = vsel %vm533, %v5682, 0.0
  %5687 = vadd.xlane.f32.xlu0 %v5686
  %v5688 = vpop.xlane.xlu0 %5687
  %v5689 = vrcp.pop %v5685
  %v5690 = vrcp.pop %v5688
  %v5691 = vmul.f32 %v5680, %v5689
  %v5692 = vmul.f32 %v5682, %v5690
  %v5694 = vsel %vm533, %v5691, 0
  %5696 = vmatprep.subr.mxu0 0.0
  %5697 = vmatpush1.msra.mxu0 %v5509
  %5698 = vmatprep.subr.mxu0 0.0
  %5699 = vmatpush1.msra.mxu0 0.0
  %5700 = vmatprep.subr.mxu0 0.0
  %5701 = vmatpush1.msra.mxu0 0.0
  %5702 = vmatprep.subr.mxu0 0.0
  %5703 = vmatpush1.msra.mxu0 0.0
  %5704 = vmatprep.subr.mxu0 0.0
  %5705 = vmatpush1.msra.mxu0 0.0
  %5706 = vmatprep.subr.mxu0 0.0
  %5707 = vmatpush1.msra.mxu0 0.0
  %5708 = vmatprep.subr.mxu0 0.0
  %5709 = vmatpush1.msra.mxu0 0.0
  %5710 = vmatprep.subr.mxu0 0.0
  %5711 = vmatpush1.msra.mxu0 0.0
  %5712 = vmatprep.subr.mxu0 0.0
  %5713 = vmatpush1.msra.mxu0 0.0
  %5714 = vmatprep.subr.mxu0 0.0
  %5715 = vmatpush1.msra.mxu0 0.0
  %5716 = vmatprep.subr.mxu0 0.0
  %5717 = vmatpush1.msra.mxu0 0.0
  %5718 = vmatprep.subr.mxu0 0.0
  %5719 = vmatpush1.msra.mxu0 0.0
  %5720 = vmatprep.subr.mxu0 0.0
  %5721 = vmatpush1.msra.mxu0 0.0
  %5722 = vmatprep.subr.mxu0 0.0
  %5723 = vmatpush1.msra.mxu0 0.0
  %5724 = vmatprep.subr.mxu0 0.0
  %5725 = vmatpush1.msra.mxu0 0.0
  %5726 = vmatprep.subr.mxu0 0.0
  %5727 = vmatpush1.msra.mxu0 0.0
  %5728 = vmatprep.subr.mxu0 0.0
  %5729 = vmatpush1.msra.mxu0 0.0
  %5730 = vmatprep.subr.mxu0 0.0
  %5731 = vmatpush1.msra.mxu0 0.0
  %5732 = vmatprep.subr.mxu0 0.0
  %5733 = vmatpush1.msra.mxu0 0.0
  %5734 = vmatprep.subr.mxu0 0.0
  %5735 = vmatpush1.msra.mxu0 0.0
  %5736 = vmatprep.subr.mxu0 0.0
  %5737 = vmatpush1.msra.mxu0 0.0
  %5738 = vmatprep.subr.mxu0 0.0
  %5739 = vmatpush1.msra.mxu0 0.0
  %5740 = vmatprep.subr.mxu0 0.0
  %5741 = vmatpush1.msra.mxu0 0.0
  %5742 = vmatprep.subr.mxu0 0.0
  %5743 = vmatpush1.msra.mxu0 0.0
  %5744 = vmatprep.subr.mxu0 0.0
  %5745 = vmatpush1.msra.mxu0 0.0
  %5746 = vmatprep.subr.mxu0 0.0
  %5747 = vmatpush1.msra.mxu0 0.0
  %5748 = vmatprep.subr.mxu0 0.0
  %5749 = vmatpush1.msra.mxu0 0.0
  %5750 = vmatprep.subr.mxu0 0.0
  %5751 = vmatpush1.msra.mxu0 0.0
  %5752 = vmatprep.subr.mxu0 0.0
  %5753 = vmatpush1.msra.mxu0 0.0
  %5754 = vmatprep.subr.mxu0 0.0
  %5755 = vmatpush1.msra.mxu0 0.0
  %5756 = vmatprep.subr.mxu0 0.0
  %5757 = vmatpush1.msra.mxu0 0.0
  %5758 = vmatprep.subr.mxu0 0.0
  %5759 = vmatpush1.msra.mxu0 0.0
  %5760 = vmatprep.mubr.f32.mxu0 0.0
  %5761 = vmatmul.mubr.f32.gmra.mrb[0].mxu0 %v5694
  %v5762 = vpop.f32.mrb[0].mxu0
  %v5763 = vadd.f32 0.0, %v5762
  %v5764 = vpop.f32.mrb[0].mxu0
  %5765 = vdwg.mxu0
  %v5767 = vsel %vm533, %v5692, 0
  %5769 = vmatprep.subr.mxu0 0.0
  %5770 = vmatpush1.msra.mxu0 %v5514
  %5771 = vmatprep.subr.mxu0 0.0
  %5772 = vmatpush1.msra.mxu0 0.0
  %5773 = vmatprep.subr.mxu0 0.0
  %5774 = vmatpush1.msra.mxu0 0.0
  %5775 = vmatprep.subr.mxu0 0.0
  %5776 = vmatpush1.msra.mxu0 0.0
  %5777 = vmatprep.subr.mxu0 0.0
  %5778 = vmatpush1.msra.mxu0 0.0
  %5779 = vmatprep.subr.mxu0 0.0
  %5780 = vmatpush1.msra.mxu0 0.0
  %5781 = vmatprep.subr.mxu0 0.0
  %5782 = vmatpush1.msra.mxu0 0.0
  %5783 = vmatprep.subr.mxu0 0.0
  %5784 = vmatpush1.msra.mxu0 0.0
  %5785 = vmatprep.subr.mxu0 0.0
  %5786 = vmatpush1.msra.mxu0 0.0
  %5787 = vmatprep.subr.mxu0 0.0
  %5788 = vmatpush1.msra.mxu0 0.0
  %5789 = vmatprep.subr.mxu0 0.0
  %5790 = vmatpush1.msra.mxu0 0.0
  %5791 = vmatprep.subr.mxu0 0.0
  %5792 = vmatpush1.msra.mxu0 0.0
  %5793 = vmatprep.subr.mxu0 0.0
  %5794 = vmatpush1.msra.mxu0 0.0
  %5795 = vmatprep.subr.mxu0 0.0
  %5796 = vmatpush1.msra.mxu0 0.0
  %5797 = vmatprep.subr.mxu0 0.0
  %5798 = vmatpush1.msra.mxu0 0.0
  %5799 = vmatprep.subr.mxu0 0.0
  %5800 = vmatpush1.msra.mxu0 0.0
  %5801 = vmatprep.subr.mxu0 0.0
  %5802 = vmatpush1.msra.mxu0 0.0
  %5803 = vmatprep.subr.mxu0 0.0
  %5804 = vmatpush1.msra.mxu0 0.0
  %5805 = vmatprep.subr.mxu0 0.0
  %5806 = vmatpush1.msra.mxu0 0.0
  %5807 = vmatprep.subr.mxu0 0.0
  %5808 = vmatpush1.msra.mxu0 0.0
  %5809 = vmatprep.subr.mxu0 0.0
  %5810 = vmatpush1.msra.mxu0 0.0
  %5811 = vmatprep.subr.mxu0 0.0
  %5812 = vmatpush1.msra.mxu0 0.0
  %5813 = vmatprep.subr.mxu0 0.0
  %5814 = vmatpush1.msra.mxu0 0.0
  %5815 = vmatprep.subr.mxu0 0.0
  %5816 = vmatpush1.msra.mxu0 0.0
  %5817 = vmatprep.subr.mxu0 0.0
  %5818 = vmatpush1.msra.mxu0 0.0
  %5819 = vmatprep.subr.mxu0 0.0
  %5820 = vmatpush1.msra.mxu0 0.0
  %5821 = vmatprep.subr.mxu0 0.0
  %5822 = vmatpush1.msra.mxu0 0.0
  %5823 = vmatprep.subr.mxu0 0.0
  %5824 = vmatpush1.msra.mxu0 0.0
  %5825 = vmatprep.subr.mxu0 0.0
  %5826 = vmatpush1.msra.mxu0 0.0
  %5827 = vmatprep.subr.mxu0 0.0
  %5828 = vmatpush1.msra.mxu0 0.0
  %5829 = vmatprep.subr.mxu0 0.0
  %5830 = vmatpush1.msra.mxu0 0.0
  %5831 = vmatprep.subr.mxu0 0.0
  %5832 = vmatpush1.msra.mxu0 0.0
  %5833 = vmatprep.mubr.f32.mxu0 0.0
  %5834 = vmatmul.mubr.f32.gmra.mrb[0].mxu0 %v5767
  %v5835 = vpop.f32.mrb[0].mxu0
  %v5836 = vadd.f32 0.0, %v5835
  %v5837 = vpop.f32.mrb[0].mxu0
  %5838 = vdwg.mxu0
  %s5839 = scalar_lea.vmem %s49, 24
  %v5840 = vld [vmem:[%s5839] sm:$0xff]
  %v5842 = vsel %vm533, %v5763, 0
  %v5845 = vsel %vm533, %v5836, 0
  %5847 = vmatprep.subr.mxu0 0.0
  %5848 = vmatpush1.msra.mxu0 %v5840
  %5849 = vmatprep.subr.mxu0 0.0
  %5850 = vmatpush1.msra.mxu0 0.0
  %5851 = vmatprep.subr.mxu0 0.0
  %5852 = vmatpush1.msra.mxu0 0.0
  %5853 = vmatprep.subr.mxu0 0.0
  %5854 = vmatpush1.msra.mxu0 0.0
  %5855 = vmatprep.subr.mxu0 0.0
  %5856 = vmatpush1.msra.mxu0 0.0
  %5857 = vmatprep.subr.mxu0 0.0
  %5858 = vmatpush1.msra.mxu0 0.0
  %5859 = vmatprep.subr.mxu0 0.0
  %5860 = vmatpush1.msra.mxu0 0.0
  %5861 = vmatprep.subr.mxu0 0.0
  %5862 = vmatpush1.msra.mxu0 0.0
  %5863 = vmatprep.subr.mxu0 0.0
  %5864 = vmatpush1.msra.mxu0 0.0
  %5865 = vmatprep.subr.mxu0 0.0
  %5866 = vmatpush1.msra.mxu0 0.0
  %5867 = vmatprep.subr.mxu0 0.0
  %5868 = vmatpush1.msra.mxu0 0.0
  %5869 = vmatprep.subr.mxu0 0.0
  %5870 = vmatpush1.msra.mxu0 0.0
  %5871 = vmatprep.subr.mxu0 0.0
  %5872 = vmatpush1.msra.mxu0 0.0
  %5873 = vmatprep.subr.mxu0 0.0
  %5874 = vmatpush1.msra.mxu0 0.0
  %5875 = vmatprep.subr.mxu0 0.0
  %5876 = vmatpush1.msra.mxu0 0.0
  %5877 = vmatprep.subr.mxu0 0.0
  %5878 = vmatpush1.msra.mxu0 0.0
  %5879 = vmatprep.subr.mxu0 0.0
  %5880 = vmatpush1.msra.mxu0 0.0
  %5881 = vmatprep.subr.mxu0 0.0
  %5882 = vmatpush1.msra.mxu0 0.0
  %5883 = vmatprep.subr.mxu0 0.0
  %5884 = vmatpush1.msra.mxu0 0.0
  %5885 = vmatprep.subr.mxu0 0.0
  %5886 = vmatpush1.msra.mxu0 0.0
  %5887 = vmatprep.subr.mxu0 0.0
  %5888 = vmatpush1.msra.mxu0 0.0
  %5889 = vmatprep.subr.mxu0 0.0
  %5890 = vmatpush1.msra.mxu0 0.0
  %5891 = vmatprep.subr.mxu0 0.0
  %5892 = vmatpush1.msra.mxu0 0.0
  %5893 = vmatprep.subr.mxu0 0.0
  %5894 = vmatpush1.msra.mxu0 0.0
  %5895 = vmatprep.subr.mxu0 0.0
  %5896 = vmatpush1.msra.mxu0 0.0
  %5897 = vmatprep.subr.mxu0 0.0
  %5898 = vmatpush1.msra.mxu0 0.0
  %5899 = vmatprep.subr.mxu0 0.0
  %5900 = vmatpush1.msra.mxu0 0.0
  %5901 = vmatprep.subr.mxu0 0.0
  %5902 = vmatpush1.msra.mxu0 0.0
  %5903 = vmatprep.subr.mxu0 0.0
  %5904 = vmatpush1.msra.mxu0 0.0
  %5905 = vmatprep.subr.mxu0 0.0
  %5906 = vmatpush1.msra.mxu0 0.0
  %5907 = vmatprep.subr.mxu0 0.0
  %5908 = vmatpush1.msra.mxu0 0.0
  %5909 = vmatprep.subr.mxu0 0.0
  %5910 = vmatpush1.msra.mxu0 0.0
  %5911 = vmatprep.mubr.f32.mxu0 0.0
  %5912 = vmatmul.mubr.f32.gmra.mrb[0].mxu0 %v5842
  %v5913 = vpop.f32.mrb[0].mxu0
  %v5914 = vadd.f32 0.0, %v5913
  %v5915 = vpop.f32.mrb[0].mxu0
  %5916 = vmatprep.mubr.f32.mxu0 0.0
  %5917 = vmatmul.mubr.f32.gmra.mrb[0].mxu0 %v5845
  %v5918 = vpop.f32.mrb[0].mxu0
  %v5919 = vadd.f32 0.0, %v5918
  %v5920 = vpop.f32.mrb[0].mxu0
  %5921 = vdwg.mxu0
  %v5922 = vadd.f32 %v5251, %v5914
  %v5923 = vadd.f32 %v5252, %v5919
  %v5924 = vld [vmem:[%s51] sm:$0x1]
  %v5926 = vlaneseq
  %v5927 = vshrl.u32 %v5926, 7
  %v5928 = vsub.s32 0, %v5927
  %v5929 = vrot.slane %v5924, %v5928
  %v5931 = vadd.f32 %v5922, %v5929
  %v5932 = vadd.f32 %v5923, %v5929
  %v5933 = vadd.f32 %v3243, %v5931
  %v5934 = vadd.f32 %v3244, %v5932
  %v5935 = vsel %vm277, %v5933, 0.0
  %5936 = vadd.xlane.f32.xlu0 %v5935
  %v5937 = vpop.xlane.xlu0 %5936
  %v5938 = vsel %vm277, %v5934, 0.0
  %5939 = vadd.xlane.f32.xlu0 %v5938
  %v5940 = vpop.xlane.xlu0 %5939
  %v5941 = vmul.f32 %v5937, %v2964
  %v5942 = vmul.f32 %v5940, %v2964
  %v5943 = vsub.f32 %v5933, %v5941
  %v5944 = vsub.f32 %v5934, %v5942
  %v5945 = vmul.f32 %v5943, %v5943
  %v5946 = vmul.f32 %v5944, %v5944
  %v5947 = vsel %vm277, %v5945, 0.0
  %5948 = vadd.xlane.f32.xlu0 %v5947
  %v5949 = vpop.xlane.xlu0 %5948
  %v5950 = vsel %vm277, %v5946, 0.0
  %5951 = vadd.xlane.f32.xlu0 %v5950
  %v5952 = vpop.xlane.xlu0 %5951
  %v5953 = vmul.f32 %v5949, %v2964
  %v5954 = vmul.f32 %v5952, %v2964
  %v5955 = vadd.f32 %v5953, 1e-05
  %v5956 = vadd.f32 %v5954, 1e-05
  %v5957 = vrsqrt.pop %v5955
  %v5958 = vrsqrt.pop %v5956
  %v5959 = vmul.f32 %v5943, %v5957
  %v5960 = vmul.f32 %v5944, %v5958
  %v5961 = vld [vmem:[%s53] sm:$0x1]
  %v5963 = vlaneseq
  %v5964 = vshrl.u32 %v5963, 7
  %v5965 = vsub.s32 0, %v5964
  %v5966 = vrot.slane %v5961, %v5965
  %v5968 = vmul.f32 %v5959, %v5966
  %v5969 = vmul.f32 %v5960, %v5966
  %v5970 = vld [vmem:[%s55] sm:$0x1]
  %v5972 = vlaneseq
  %v5973 = vshrl.u32 %v5972, 7
  %v5974 = vsub.s32 0, %v5973
  %v5975 = vrot.slane %v5970, %v5974
  %v5977 = vadd.f32 %v5968, %v5975
  %v5978 = vadd.f32 %v5969, %v5975
  %v5979 = vld [vmem:[%s57] sm:$0xff]
  %v5980 = vld [vmem:[%s57 + $0x8] sm:$0xff]
  %v5981 = vld [vmem:[%s57 + $0x10] sm:$0xff]
  %v5982 = vld [vmem:[%s57 + $0x18] sm:$0xff]
  %v5983 = vld [vmem:[%s59] sm:$0x1]
  %v5985 = vlaneseq
  %v5986 = vshrl.u32 %v5985, 7
  %v5987 = vsub.s32 0, %v5986
  %v5988 = vrot.slane %v5983, %v5987
  %v5991 = vsel %vm277, %v5977, 0
  %v5994 = vsel %vm277, %v5978, 0
  %5996 = vmatprep.subr.mxu0 0.0
  %5997 = vmatpush1.msra.mxu0 %v5979
  %5998 = vmatprep.subr.mxu0 0.0
  %5999 = vmatpush1.msra.mxu0 %v5980
  %6000 = vmatprep.subr.mxu0 0.0
  %6001 = vmatpush1.msra.mxu0 %v5981
  %6002 = vmatprep.subr.mxu0 0.0
  %6003 = vmatpush1.msra.mxu0 %v5982
  %6004 = vmatprep.subr.mxu0 0.0
  %6005 = vmatpush1.msra.mxu0 0.0
  %6006 = vmatprep.subr.mxu0 0.0
  %6007 = vmatpush1.msra.mxu0 0.0
  %6008 = vmatprep.subr.mxu0 0.0
  %6009 = vmatpush1.msra.mxu0 0.0
  %6010 = vmatprep.subr.mxu0 0.0
  %6011 = vmatpush1.msra.mxu0 0.0
  %6012 = vmatprep.subr.mxu0 0.0
  %6013 = vmatpush1.msra.mxu0 0.0
  %6014 = vmatprep.subr.mxu0 0.0
  %6015 = vmatpush1.msra.mxu0 0.0
  %6016 = vmatprep.subr.mxu0 0.0
  %6017 = vmatpush1.msra.mxu0 0.0
  %6018 = vmatprep.subr.mxu0 0.0
  %6019 = vmatpush1.msra.mxu0 0.0
  %6020 = vmatprep.subr.mxu0 0.0
  %6021 = vmatpush1.msra.mxu0 0.0
  %6022 = vmatprep.subr.mxu0 0.0
  %6023 = vmatpush1.msra.mxu0 0.0
  %6024 = vmatprep.subr.mxu0 0.0
  %6025 = vmatpush1.msra.mxu0 0.0
  %6026 = vmatprep.subr.mxu0 0.0
  %6027 = vmatpush1.msra.mxu0 0.0
  %6028 = vmatprep.subr.mxu0 0.0
  %6029 = vmatpush1.msra.mxu0 0.0
  %6030 = vmatprep.subr.mxu0 0.0
  %6031 = vmatpush1.msra.mxu0 0.0
  %6032 = vmatprep.subr.mxu0 0.0
  %6033 = vmatpush1.msra.mxu0 0.0
  %6034 = vmatprep.subr.mxu0 0.0
  %6035 = vmatpush1.msra.mxu0 0.0
  %6036 = vmatprep.subr.mxu0 0.0
  %6037 = vmatpush1.msra.mxu0 0.0
  %6038 = vmatprep.subr.mxu0 0.0
  %6039 = vmatpush1.msra.mxu0 0.0
  %6040 = vmatprep.subr.mxu0 0.0
  %6041 = vmatpush1.msra.mxu0 0.0
  %6042 = vmatprep.subr.mxu0 0.0
  %6043 = vmatpush1.msra.mxu0 0.0
  %6044 = vmatprep.subr.mxu0 0.0
  %6045 = vmatpush1.msra.mxu0 0.0
  %6046 = vmatprep.subr.mxu0 0.0
  %6047 = vmatpush1.msra.mxu0 0.0
  %6048 = vmatprep.subr.mxu0 0.0
  %6049 = vmatpush1.msra.mxu0 0.0
  %6050 = vmatprep.subr.mxu0 0.0
  %6051 = vmatpush1.msra.mxu0 0.0
  %6052 = vmatprep.subr.mxu0 0.0
  %6053 = vmatpush1.msra.mxu0 0.0
  %6054 = vmatprep.subr.mxu0 0.0
  %6055 = vmatpush1.msra.mxu0 0.0
  %6056 = vmatprep.subr.mxu0 0.0
  %6057 = vmatpush1.msra.mxu0 0.0
  %6058 = vmatprep.subr.mxu0 0.0
  %6059 = vmatpush1.msra.mxu0 0.0
  %6060 = vmatprep.mubr.f32.mxu0 0.0
  %6061 = vmatmul.mubr.f32.gmra.mrb[0].mxu0 %v5991
  %v6062 = vpop.f32.mrb[0].mxu0
  %v6063 = vadd.f32 %v5988, %v6062
  %v6064 = vpop.f32.mrb[0].mxu0
  %6065 = vmatprep.mubr.f32.mxu0 0.0
  %6066 = vmatmul.mubr.f32.gmra.mrb[0].mxu0 %v5994
  %v6067 = vpop.f32.mrb[0].mxu0
  %v6068 = vadd.f32 %v5988, %v6067
  %v6069 = vpop.f32.mrb[0].mxu0
  %6070 = vdwg.mxu0
  %v6071 = vmul.f32 %v6063, 0.5
  %v6072 = vmul.f32 %v6068, 0.5
  %v6073 = vmul.f32 %v6063, %v3097
  %v6074 = vmul.f32 %v6068, %v3097
  %v6075 = verf.f32.pop %v6073
  %v6076 = verf.f32.pop %v6074
  %v6077 = vadd.f32 %v6075, 1.0
  %v6078 = vadd.f32 %v6076, 1.0
  %v6079 = vmul.f32 %v6071, %v6077
  %v6080 = vmul.f32 %v6072, %v6078
  %v6081 = vld [vmem:[%s61] sm:$0x3]
  %v6082 = vld [vmem:[%s63] sm:$0x1]
  %v6084 = vlaneseq
  %v6085 = vshrl.u32 %v6084, 7
  %v6086 = vsub.s32 0, %v6085
  %v6087 = vrot.slane %v6082, %v6086
  %v6090 = vsel %vm3114, %v6079, 0
  %v6093 = vsel %vm3114, %v6080, 0
  %v6096 = vsel %vm187, %v6081, 0
  %6098 = vmatprep.subr.mxu0 0.0
  %6099 = vmatpush1.msra.mxu0 %v6096
  %6100 = vmatprep.subr.mxu0 0.0
  %6101 = vmatpush1.msra.mxu0 0.0
  %6102 = vmatprep.subr.mxu0 0.0
  %6103 = vmatpush1.msra.mxu0 0.0
  %6104 = vmatprep.subr.mxu0 0.0
  %6105 = vmatpush1.msra.mxu0 0.0
  %6106 = vmatprep.subr.mxu0 0.0
  %6107 = vmatpush1.msra.mxu0 0.0
  %6108 = vmatprep.subr.mxu0 0.0
  %6109 = vmatpush1.msra.mxu0 0.0
  %6110 = vmatprep.subr.mxu0 0.0
  %6111 = vmatpush1.msra.mxu0 0.0
  %6112 = vmatprep.subr.mxu0 0.0
  %6113 = vmatpush1.msra.mxu0 0.0
  %6114 = vmatprep.subr.mxu0 0.0
  %6115 = vmatpush1.msra.mxu0 0.0
  %6116 = vmatprep.subr.mxu0 0.0
  %6117 = vmatpush1.msra.mxu0 0.0
  %6118 = vmatprep.subr.mxu0 0.0
  %6119 = vmatpush1.msra.mxu0 0.0
  %6120 = vmatprep.subr.mxu0 0.0
  %6121 = vmatpush1.msra.mxu0 0.0
  %6122 = vmatprep.subr.mxu0 0.0
  %6123 = vmatpush1.msra.mxu0 0.0
  %6124 = vmatprep.subr.mxu0 0.0
  %6125 = vmatpush1.msra.mxu0 0.0
  %6126 = vmatprep.subr.mxu0 0.0
  %6127 = vmatpush1.msra.mxu0 0.0
  %6128 = vmatprep.subr.mxu0 0.0
  %6129 = vmatpush1.msra.mxu0 0.0
  %6130 = vmatprep.subr.mxu0 0.0
  %6131 = vmatpush1.msra.mxu0 0.0
  %6132 = vmatprep.subr.mxu0 0.0
  %6133 = vmatpush1.msra.mxu0 0.0
  %6134 = vmatprep.subr.mxu0 0.0
  %6135 = vmatpush1.msra.mxu0 0.0
  %6136 = vmatprep.subr.mxu0 0.0
  %6137 = vmatpush1.msra.mxu0 0.0
  %6138 = vmatprep.subr.mxu0 0.0
  %6139 = vmatpush1.msra.mxu0 0.0
  %6140 = vmatprep.subr.mxu0 0.0
  %6141 = vmatpush1.msra.mxu0 0.0
  %6142 = vmatprep.subr.mxu0 0.0
  %6143 = vmatpush1.msra.mxu0 0.0
  %6144 = vmatprep.subr.mxu0 0.0
  %6145 = vmatpush1.msra.mxu0 0.0
  %6146 = vmatprep.subr.mxu0 0.0
  %6147 = vmatpush1.msra.mxu0 0.0
  %6148 = vmatprep.subr.mxu0 0.0
  %6149 = vmatpush1.msra.mxu0 0.0
  %6150 = vmatprep.subr.mxu0 0.0
  %6151 = vmatpush1.msra.mxu0 0.0
  %6152 = vmatprep.subr.mxu0 0.0
  %6153 = vmatpush1.msra.mxu0 0.0
  %6154 = vmatprep.subr.mxu0 0.0
  %6155 = vmatpush1.msra.mxu0 0.0
  %6156 = vmatprep.subr.mxu0 0.0
  %6157 = vmatpush1.msra.mxu0 0.0
  %6158 = vmatprep.subr.mxu0 0.0
  %6159 = vmatpush1.msra.mxu0 0.0
  %6160 = vmatprep.subr.mxu0 0.0
  %6161 = vmatpush1.msra.mxu0 0.0
  %6162 = vmatprep.mubr.f32.mxu0 0.0
  %6163 = vmatmul.mubr.f32.gmra.mrb[0].mxu0 %v6090
  %v6164 = vpop.f32.mrb[0].mxu0
  %v6165 = vadd.f32 %v6087, %v6164
  %v6166 = vpop.f32.mrb[0].mxu0
  %6167 = vmatprep.mubr.f32.mxu0 0.0
  %6168 = vmatmul.mubr.f32.gmra.mrb[0].mxu0 %v6093
  %v6169 = vpop.f32.mrb[0].mxu0
  %v6170 = vadd.f32 %v6087, %v6169
  %v6171 = vpop.f32.mrb[0].mxu0
  %6172 = vdwg.mxu0
  %v6173 = vadd.f32 %v5977, %v6165
  %v6174 = vadd.f32 %v5978, %v6170
  %v6175 = vsel %vm277, %v6173, 0.0
  %6176 = vadd.xlane.f32.xlu0 %v6175
  %v6177 = vpop.xlane.xlu0 %6176
  %v6178 = vsel %vm277, %v6174, 0.0
  %6179 = vadd.xlane.f32.xlu0 %v6178
  %v6180 = vpop.xlane.xlu0 %6179
  %v6181 = vmul.f32 %v6177, %v2964
  %v6182 = vmul.f32 %v6180, %v2964
  %v6183 = vsub.f32 %v6173, %v6181
  %v6184 = vsub.f32 %v6174, %v6182
  %v6185 = vmul.f32 %v6183, %v6183
  %v6186 = vmul.f32 %v6184, %v6184
  %v6187 = vsel %vm277, %v6185, 0.0
  %6188 = vadd.xlane.f32.xlu0 %v6187
  %v6189 = vpop.xlane.xlu0 %6188
  %v6190 = vsel %vm277, %v6186, 0.0
  %6191 = vadd.xlane.f32.xlu0 %v6190
  %v6192 = vpop.xlane.xlu0 %6191
  %v6193 = vmul.f32 %v6189, %v2964
  %v6194 = vmul.f32 %v6192, %v2964
  %v6195 = vadd.f32 %v6193, 1e-05
  %v6196 = vadd.f32 %v6194, 1e-05
  %v6197 = vrsqrt.pop %v6195
  %v6198 = vrsqrt.pop %v6196
  %v6199 = vmul.f32 %v6183, %v6197
  %v6200 = vmul.f32 %v6184, %v6198
  %v6201 = vld [vmem:[%s65] sm:$0x1]
  %v6203 = vlaneseq
  %v6204 = vshrl.u32 %v6203, 7
  %v6205 = vsub.s32 0, %v6204
  %v6206 = vrot.slane %v6201, %v6205
  %v6208 = vmul.f32 %v6199, %v6206
  %v6209 = vmul.f32 %v6200, %v6206
  %v6210 = vld [vmem:[%s67] sm:$0x1]
  %v6212 = vlaneseq
  %v6213 = vshrl.u32 %v6212, 7
  %v6214 = vsub.s32 0, %v6213
  %v6215 = vrot.slane %v6210, %v6214
  %v6217 = vadd.f32 %v6208, %v6215
  %v6218 = vadd.f32 %v6209, %v6215
  %6219 = vst.msk [vmem:[%s69] sm:$0xff] %vm277, %v6217
  %6220 = vst.msk [vmem:[%s69 + $0x8] sm:$0xff] %vm277, %v6218
  // Predicated region
  $region138: #{_forward_impl.1} parent=0 // pred_check
    _
  $region139: #{_forward_impl.1} parent=0 // pred_check_branch
    %6222 = sbr.rel (0) target = $region141
  $region140: #{_forward_impl.1} parent=0 // pred_region
    _
  $region141: #{_forward_impl.1} parent=0 // pred_fallthru
    _
  // Predicated region
  $region142: #{_forward_impl.1} parent=0 // pred_check
    _
  $region143: #{_forward_impl.1} parent=0 // pred_check_branch
    %6224 = sbr.rel (0) target = $region145
  $region144: #{_forward_impl.1} parent=0 // pred_region
    _
  $region145: #{_forward_impl.1} parent=0 // pred_fallthru
    _

</llo_original>
